<compile_context>
chip_gen: v7x
topology: tpu7x:2x2x1
jax: 0.10.0
libtpu: 0.0.40
codegen_flags: <defaults>
</compile_context>

<pallas_src>
import functools
import math

import jax
import jax.numpy as jnp
from jax.experimental import pallas as pl
from jax.experimental.pallas import tpu as pltpu

BN_EPS = 1e-5
LN_EPS = 1e-5


# ---------------------------------------------------------------------------
# Kernels
# ---------------------------------------------------------------------------

def _res_block_kernel(xe_ref, w1_ref, b1_ref, wr_ref, br_ref, w2_ref, b2_ref,
                      o_ref, *, c_in, c_out, t_out):
    """Fused ResBlock(stride=2) for one batch element.

    xe_ref: (1, t_out + 1, 2*c_in) zero-padded input with even/odd time rows
    interleaved along channels: xe[i, :c_in] = x_pad[2i], xe[i, c_in:] = x_pad[2i+1].
    Conv weights have the eval-mode BatchNorm scale folded in; biases hold
    beta + (conv_bias - mean) * scale.
    """
    xe = xe_ref[0]                                   # (t_out + 1, 2*c_in)
    even = xe[:, :c_in]                              # x_pad[0], x_pad[2], ...
    odd = xe[:, c_in:]                               # x_pad[1], x_pad[3], ...
    tap0 = even[:t_out, :]                           # x_pad[2t]
    tap1 = odd[:t_out, :]                            # x_pad[2t + 1]
    tap2 = even[1:, :]                               # x_pad[2t + 2]

    # conv1 (k=3, stride=2) + folded BN + ReLU
    acc = jnp.dot(tap0, w1_ref[0], preferred_element_type=jnp.float32)
    acc = acc + jnp.dot(tap1, w1_ref[1], preferred_element_type=jnp.float32)
    acc = acc + jnp.dot(tap2, w1_ref[2], preferred_element_type=jnp.float32)
    h = jnp.maximum(acc + b1_ref[...], 0.0)          # (t_out, c_out)

    # residual path: 1x1 conv stride 2 (== tap1) + folded BN
    res = jnp.dot(tap1, wr_ref[...], preferred_element_type=jnp.float32) + br_ref[...]

    # conv2 (k=3, stride=1, pad=1) + folded BN, then add residual + ReLU
    row = jax.lax.broadcasted_iota(jnp.int32, (t_out, c_out), 0)
    h_prev = jnp.where(row >= 1, pltpu.roll(h, 1, axis=0), 0.0)          # h[t-1]
    h_next = jnp.where(row <= t_out - 2, pltpu.roll(h, t_out - 1, axis=0), 0.0)  # h[t+1]
    acc2 = jnp.dot(h_prev, w2_ref[0], preferred_element_type=jnp.float32)
    acc2 = acc2 + jnp.dot(h, w2_ref[1], preferred_element_type=jnp.float32)
    acc2 = acc2 + jnp.dot(h_next, w2_ref[2], preferred_element_type=jnp.float32)
    o_ref[0] = jnp.maximum(acc2 + b2_ref[...] + res, 0.0)


def _transformer_layer_kernel(x_ref, wqkv_ref, wo_ref, rel_ref,
                              ln1_g_ref, ln1_b_ref,
                              ff_w1_ref, ff_b1_ref, ff_w2_ref, ff_b2_ref,
                              ln2_g_ref, ln2_b_ref, o_ref,
                              *, n_batch, seq, n_head, d_qkv, rel_pad):
    """Fused post-LN TransformerEncoderLayer on the whole (B*T, D) activation slab."""
    d_model = n_head * d_qkv
    scale = 1.0 / math.sqrt(d_qkv)
    skew_shift = rel_pad - (seq - 1)                 # row q gets shift skew_shift + q

    x = x_ref[...]                                                        # (B*T, D)
    # single fused QKV projection for all heads and both batches (M = B*T, N = 3D)
    qkv = jnp.dot(x, wqkv_ref[...], preferred_element_type=jnp.float32)   # (B*T, 3D)

    batch_ctx = []
    for b in range(n_batch):
        r0 = b * seq
        head_ctx = []
        for h in range(n_head):
            c0 = h * d_qkv
            qh = qkv[r0:r0 + seq, c0:c0 + d_qkv]                          # (T, dq)
            kh = qkv[r0:r0 + seq, d_model + c0:d_model + c0 + d_qkv]
            vh = qkv[r0:r0 + seq, 2 * d_model + c0:2 * d_model + c0 + d_qkv]

            # content logits: (T, T), scaled
            logits = jax.lax.dot_general(
                qh, kh, (((1,), (1,)), ((), ())),
                preferred_element_type=jnp.float32) * scale

            # relative positional logits: MXU matmul against the compact (dq, 2T-1)
            # embedding slice, then skew columns->diagonals with a strided lane roll:
            # rel[q, k] = relq[q, k - q + T - 1]
            relq = jnp.dot(qh, rel_ref[h], preferred_element_type=jnp.float32)  # (T, rel_pad)
            rel = pltpu.roll(relq, skew_shift, axis=1, stride=1, stride_axis=0)[:, :seq]
            logits = logits + rel

            m = jnp.max(logits, axis=-1, keepdims=True)
            p = jnp.exp(logits - m)
            p = p * pl.reciprocal(jnp.sum(p, axis=-1, keepdims=True), approx=True)
            head_ctx.append(jnp.dot(p, vh, preferred_element_type=jnp.float32))  # (T, dq)
        batch_ctx.append(jnp.concatenate(head_ctx, axis=1))               # (T, D)
    ctx = jnp.concatenate(batch_ctx, axis=0)                              # (B*T, D)

    # single output projection over all heads / batches
    attn = jnp.dot(ctx, wo_ref[...], preferred_element_type=jnp.float32)  # (B*T, D)

    # add + LayerNorm 1
    z = x + attn
    zc = z - jnp.mean(z, axis=-1, keepdims=True)
    var = jnp.mean(zc * zc, axis=-1, keepdims=True)
    x1 = zc * jax.lax.rsqrt(var + LN_EPS) * ln1_g_ref[...] + ln1_b_ref[...]

    # FFN (ReLU)
    hdn = jnp.dot(x1, ff_w1_ref[...], preferred_element_type=jnp.float32) + ff_b1_ref[...]
    hdn = jnp.maximum(hdn, 0.0)
    ff = jnp.dot(hdn, ff_w2_ref[...], preferred_element_type=jnp.float32) + ff_b2_ref[...]

    # add + LayerNorm 2
    z2 = x1 + ff
    zc2 = z2 - jnp.mean(z2, axis=-1, keepdims=True)
    var2 = jnp.mean(zc2 * zc2, axis=-1, keepdims=True)
    o_ref[...] = zc2 * jax.lax.rsqrt(var2 + LN_EPS) * ln2_g_ref[...] + ln2_b_ref[...]


def _linear_kernel(x_ref, w_ref, b_ref, o_ref):
    o_ref[...] = jnp.dot(x_ref[...], w_ref[...],
                         preferred_element_type=jnp.float32) + b_ref[...]


# ---------------------------------------------------------------------------
# pallas_call wrappers
# ---------------------------------------------------------------------------

def _linear(x, w, b):
    return pl.pallas_call(
        _linear_kernel,
        out_shape=jax.ShapeDtypeStruct((x.shape[0], w.shape[1]), jnp.float32),
    )(x, w, b)


def res_block(x, p):
    B, T, c_in = x.shape
    c_out = p["w1f"].shape[-1]
    t_out = T // 2
    # zero-pad time by 1 on each side, interleave even/odd rows along channels:
    # a single ~1x copy instead of three overlapping tap copies + strided slice.
    xe = jnp.pad(x, ((0, 0), (1, 1), (0, 0))).reshape(B, t_out + 1, 2 * c_in)
    kernel = functools.partial(_res_block_kernel, c_in=c_in, c_out=c_out, t_out=t_out)
    return pl.pallas_call(
        kernel,
        out_shape=jax.ShapeDtypeStruct((B, t_out, c_out), jnp.float32),
        grid_spec=pltpu.PrefetchScalarGridSpec(
            num_scalar_prefetch=0,
            grid=(B,),
            in_specs=[
                pl.BlockSpec((1, t_out + 1, 2 * c_in), lambda b: (b, 0, 0)),
                pl.BlockSpec((3, c_in, c_out), lambda b: (0, 0, 0)),
                pl.BlockSpec((1, c_out), lambda b: (0, 0)),
                pl.BlockSpec((c_in, c_out), lambda b: (0, 0)),
                pl.BlockSpec((1, c_out), lambda b: (0, 0)),
                pl.BlockSpec((3, c_out, c_out), lambda b: (0, 0, 0)),
                pl.BlockSpec((1, c_out), lambda b: (0, 0)),
            ],
            out_specs=pl.BlockSpec((1, t_out, c_out), lambda b: (b, 0, 0)),
        ),
        compiler_params=pltpu.CompilerParams(dimension_semantics=("parallel",)),
    )(xe, p["w1f"], p["b1f"], p["wrf"], p["brf"], p["w2f"], p["b2f"])


def transformer_layer(xf, p, n_batch, seq, n_head, d_qkv, max_rel):
    d_model = n_head * d_qkv
    # TODO(synk): the reference pads/-1e8-masks relative distances beyond max_rel;
    # not needed while the post-conv sequence length <= max_rel.
    assert seq <= max_rel
    rel_pad = max(128, pl.cdiv(2 * seq - 1, 128) * 128)
    e_used = p["rel_emb"][:, max_rel - seq: max_rel + seq - 1, :]      # (H, 2T-1, dq)
    rel_k = jnp.transpose(e_used, (0, 2, 1))                           # (H, dq, 2T-1)
    rel_k = jnp.pad(rel_k, ((0, 0), (0, 0), (0, rel_pad - (2 * seq - 1))))
    kernel = functools.partial(_transformer_layer_kernel, n_batch=n_batch,
                               seq=seq, n_head=n_head, d_qkv=d_qkv, rel_pad=rel_pad)
    return pl.pallas_call(
        kernel,
        out_shape=jax.ShapeDtypeStruct((n_batch * seq, d_model), jnp.float32),
    )(xf, p["wqkv"], p["wo_cat"], rel_k,
      p["ln1_g"], p["ln1_b"], p["ff_w1"], p["ff_b1"], p["ff_w2"], p["ff_b2"],
      p["ln2_g"], p["ln2_b"])


def emg_encoder_transformer_forward(pp, x_raw):
    """x_raw: (B, T, num_ins) f32 -> (out (B, T/16, num_outs), aux (B, T/16, num_aux_outs))."""
    x = x_raw
    for rb in pp["res_blocks"]:
        x = res_block(x, rb)
    B, T, D = x.shape
    xf = x.reshape(B * T, D)
    xf = _linear(xf, pp["w_raw_in"], pp["b_raw_in"])
    n_head = pp["nhead"]
    d_qkv = D // n_head
    for lp in pp["layers"]:
        xf = transformer_layer(xf, lp, B, T, n_head, d_qkv, pp["max_rel"])
    heads = _linear(xf, pp["w_heads"], pp["b_heads"]).reshape(B, T, -1)
    n_out = pp["num_outs"]
    return heads[..., :n_out], heads[..., n_out:]


# ---------------------------------------------------------------------------
# Parameter folding / packing (done once, outside the hot path)
# ---------------------------------------------------------------------------

def _fold_bn(w, conv_bias, g, b, m, v):
    """Fold eval-mode BatchNorm into conv weights (per out-channel) and bias."""
    scale = g / jnp.sqrt(v + BN_EPS)                        # (c_out,)
    wf = (w * scale).astype(jnp.float32)                    # broadcast over last dim
    bf = (b + (conv_bias - m) * scale).reshape(1, -1).astype(jnp.float32)
    return wf, bf


def prepare_params(params):
    blocks = []
    for p in params["res_blocks"]:
        w1f, b1f = _fold_bn(p["w1"], p["c1_bias"], p["bn1_g"], p["bn1_b"], p["bn1_m"], p["bn1_v"])
        w2f, b2f = _fold_bn(p["w2"], p["c2_bias"], p["bn2_g"], p["bn2_b"], p["bn2_m"], p["bn2_v"])
        wrf, brf = _fold_bn(p["wr"], p["cr_bias"], p["bnr_g"], p["bnr_b"], p["bnr_m"], p["bnr_v"])
        blocks.append(dict(w1f=w1f, b1f=b1f, w2f=w2f, b2f=b2f, wrf=wrf, brf=brf))

    layers = []
    for lp in params["layers"]:
        H, D, dq = lp["wq"].shape

        def heads_to_cols(w):
            # (H, D, dq) -> (D, H*dq) with head h occupying columns [h*dq, (h+1)*dq)
            return jnp.transpose(w, (1, 0, 2)).reshape(D, H * dq)

        wqkv = jnp.concatenate([heads_to_cols(lp["wq"]), heads_to_cols(lp["wk"]),
                                heads_to_cols(lp["wv"])], axis=1)          # (D, 3D)
        layers.append(dict(
            wqkv=wqkv,
            wo_cat=lp["wo"].reshape(H * dq, D),                            # rows h*dq+j = wo[h, j, :]
            rel_emb=lp["rel_emb"],
            ln1_g=lp["ln1_g"].reshape(1, -1), ln1_b=lp["ln1_b"].reshape(1, -1),
            ff_w1=lp["ff_w1"], ff_b1=lp["ff_b1"].reshape(1, -1),
            ff_w2=lp["ff_w2"], ff_b2=lp["ff_b2"].reshape(1, -1),
            ln2_g=lp["ln2_g"].reshape(1, -1), ln2_b=lp["ln2_b"].reshape(1, -1)))

    return dict(
        res_blocks=blocks,
        w_raw_in=params["w_raw_in"], b_raw_in=params["b_raw_in"].reshape(1, -1),
        layers=layers,
        w_heads=jnp.concatenate([params["w_out"], params["w_aux"]], axis=1),
        b_heads=jnp.concatenate([params["b_out"], params["b_aux"]]).reshape(1, -1),
        num_outs=int(params["w_out"].shape[-1]),
        nhead=params["nhead"], max_rel=params["max_rel"],
    )


# ---------------------------------------------------------------------------
# Deterministic synthetic parameters (no checkpoint)
# ---------------------------------------------------------------------------

def init_params(key, num_ins, num_outs, num_aux_outs, model_size=64,
                num_extra_res_blocks=3, nhead=8, dim_feedforward=256,
                num_transformer_layers=2, max_rel=100):
    d_qkv = model_size // nhead
    keys = iter(jax.random.split(key, 4096))

    def nrm(shape, s=0.05):
        return (s * jax.random.normal(next(keys), shape)).astype(jnp.float32)

    def bn(c, prefix):
        return {
            prefix + "_g": 1.0 + nrm((c,), 0.1),
            prefix + "_b": nrm((c,), 0.1),
            prefix + "_m": nrm((c,), 0.1),
            prefix + "_v": 1.0 + 0.1 * jax.random.uniform(next(keys), (c,), dtype=jnp.float32),
        }

    def res_block_params(c_in, c_out):
        p = {
            "w1": nrm((3, c_in, c_out)), "c1_bias": nrm((c_out,)),
            "w2": nrm((3, c_out, c_out)), "c2_bias": nrm((c_out,)),
            "wr": nrm((c_in, c_out)), "cr_bias": nrm((c_out,)),
        }
        p.update(bn(c_out, "bn1")); p.update(bn(c_out, "bn2")); p.update(bn(c_out, "bnr"))
        return p

    def layer_params():
        d, h, dq, ff = model_size, nhead, d_qkv, dim_feedforward
        return {
            "wq": nrm((h, d, dq), d ** -0.5), "wk": nrm((h, d, dq), d ** -0.5),
            "wv": nrm((h, d, dq), d ** -0.5), "wo": nrm((h, dq, d), d ** -0.5),
            "rel_emb": nrm((h, 2 * max_rel - 1, dq), dq ** -0.5),
            "ln1_g": jnp.ones((d,), jnp.float32), "ln1_b": jnp.zeros((d,), jnp.float32),
            "ff_w1": nrm((d, ff)), "ff_b1": nrm((ff,)),
            "ff_w2": nrm((ff, d)), "ff_b2": nrm((d,)),
            "ln2_g": jnp.ones((d,), jnp.float32), "ln2_b": jnp.zeros((d,), jnp.float32),
        }

    res_blocks = [res_block_params(num_ins, model_size)]
    for _ in range(num_extra_res_blocks):
        res_blocks.append(res_block_params(model_size, model_size))

    return {
        "res_blocks": res_blocks,
        "w_raw_in": nrm((model_size, model_size)), "b_raw_in": nrm((model_size,)),
        "layers": [layer_params() for _ in range(num_transformer_layers)],
        "w_out": nrm((model_size, num_outs)), "b_out": nrm((num_outs,)),
        "w_aux": nrm((model_size, num_aux_outs)), "b_aux": nrm((num_aux_outs,)),
        "nhead": nhead, "max_rel": max_rel,
    }


if __name__ == "__main__":
    key = jax.random.PRNGKey(0)
    k_param, k_x = jax.random.split(key)

    B, T, num_ins = 2, 128, 8          # 4 stride-2 ResBlocks -> T' = 8
    model_size, num_outs, num_aux_outs = 64, 16, 8

    raw_params = init_params(k_param, num_ins, num_outs, num_aux_outs,
                             model_size=model_size, num_extra_res_blocks=3,
                             nhead=8, dim_feedforward=4 * model_size,
                             num_transformer_layers=2, max_rel=100)
    params = prepare_params(raw_params)

    x_raw = jax.random.normal(k_x, (B, T, num_ins), dtype=jnp.float32)

    fwd = jax.jit(functools.partial(emg_encoder_transformer_forward, params))
    out, aux = fwd(x_raw)
    jax.block_until_ready((out, aux))

    assert out.shape == (B, T // 16, num_outs), out.shape
    assert aux.shape == (B, T // 16, num_aux_outs), aux.shape
    assert bool(jnp.all(jnp.isfinite(out))) and bool(jnp.all(jnp.isfinite(aux)))
    print("KERNEL_OK")
</pallas_src>

<mosaic_0001>
module attributes {stable_mosaic.version = 11 : i64} {
  func.func @_res_block_kernel(%arg0: i32, %arg1: memref<1x65x16xf32, #tpu.memory_space<vmem>>, %arg2: memref<3x8x64xf32, #tpu.memory_space<vmem>>, %arg3: memref<1x64xf32, #tpu.memory_space<vmem>>, %arg4: memref<8x64xf32, #tpu.memory_space<vmem>>, %arg5: memref<1x64xf32, #tpu.memory_space<vmem>>, %arg6: memref<3x64x64xf32, #tpu.memory_space<vmem>>, %arg7: memref<1x64xf32, #tpu.memory_space<vmem>>, %arg8: memref<1x64x64xf32, #tpu.memory_space<vmem>>) attributes {dimension_semantics = [#tpu.dimension_semantics<parallel>], iteration_bounds = array<i64: 2>, scalar_prefetch = 0 : i64, scratch_operands = 0 : i64, tpu.core_type = #tpu.core_type<tc>, window_params = [{transform_indices = @transform_0, window_bounds = array<i64: 1, 65, 16>}, {pipeline_mode = #tpu.pipeline_mode<synchronous>, transform_indices = @transform_1, window_bounds = array<i64: 3, 8, 64>}, {pipeline_mode = #tpu.pipeline_mode<synchronous>, transform_indices = @transform_2, window_bounds = array<i64: 1, 64>}, {pipeline_mode = #tpu.pipeline_mode<synchronous>, transform_indices = @transform_3, window_bounds = array<i64: 8, 64>}, {pipeline_mode = #tpu.pipeline_mode<synchronous>, transform_indices = @transform_4, window_bounds = array<i64: 1, 64>}, {pipeline_mode = #tpu.pipeline_mode<synchronous>, transform_indices = @transform_5, window_bounds = array<i64: 3, 64, 64>}, {pipeline_mode = #tpu.pipeline_mode<synchronous>, transform_indices = @transform_6, window_bounds = array<i64: 1, 64>}, {transform_indices = @transform_7, window_bounds = array<i64: 1, 64, 64>}]} {
    %c0 = arith.constant 0 : index
    %c0_0 = arith.constant 0 : index
    %c0_1 = arith.constant 0 : index
    %0 = vector.load %arg1[%c0, %c0_0, %c0_1] : memref<1x65x16xf32, #tpu.memory_space<vmem>>, vector<1x65x16xf32>
    %1 = vector.shape_cast %0 : vector<1x65x16xf32> to vector<65x16xf32>
    %2 = vector.extract_strided_slice %1 {offsets = [0, 0], sizes = [65, 8], strides = [1, 1]} : vector<65x16xf32> to vector<65x8xf32>
    %3 = vector.extract_strided_slice %1 {offsets = [0, 8], sizes = [65, 8], strides = [1, 1]} : vector<65x16xf32> to vector<65x8xf32>
    %4 = vector.extract_strided_slice %2 {offsets = [0, 0], sizes = [64, 8], strides = [1, 1]} : vector<65x8xf32> to vector<64x8xf32>
    %5 = vector.extract_strided_slice %3 {offsets = [0, 0], sizes = [64, 8], strides = [1, 1]} : vector<65x8xf32> to vector<64x8xf32>
    %6 = vector.extract_strided_slice %2 {offsets = [1, 0], sizes = [64, 8], strides = [1, 1]} : vector<65x8xf32> to vector<64x8xf32>
    %c0_2 = arith.constant 0 : index
    %c0_3 = arith.constant 0 : index
    %c0_4 = arith.constant 0 : index
    %7 = vector.load %arg2[%c0_2, %c0_3, %c0_4] : memref<3x8x64xf32, #tpu.memory_space<vmem>>, vector<1x8x64xf32>
    %8 = vector.shape_cast %7 : vector<1x8x64xf32> to vector<8x64xf32>
    %cst = arith.constant dense<0.000000e+00> : vector<64x64xf32>
    %9 = tpu.matmul %4, %8, %cst {dimension_numbers = #tpu.dot_dimension_numbers<[1], [0], [0], [1], [0, 0, 1, 1], [], []>} : vector<64x8xf32>, vector<8x64xf32>, vector<64x64xf32> -> vector<64x64xf32>
    %c1 = arith.constant 1 : index
    %c0_5 = arith.constant 0 : index
    %c0_6 = arith.constant 0 : index
    %10 = vector.load %arg2[%c1, %c0_5, %c0_6] : memref<3x8x64xf32, #tpu.memory_space<vmem>>, vector<1x8x64xf32>
    %11 = vector.shape_cast %10 : vector<1x8x64xf32> to vector<8x64xf32>
    %cst_7 = arith.constant dense<0.000000e+00> : vector<64x64xf32>
    %12 = tpu.matmul %5, %11, %cst_7 {dimension_numbers = #tpu.dot_dimension_numbers<[1], [0], [0], [1], [0, 0, 1, 1], [], []>} : vector<64x8xf32>, vector<8x64xf32>, vector<64x64xf32> -> vector<64x64xf32>
    %13 = arith.addf %9, %12 : vector<64x64xf32>
    %c2 = arith.constant 2 : index
    %c0_8 = arith.constant 0 : index
    %c0_9 = arith.constant 0 : index
    %14 = vector.load %arg2[%c2, %c0_8, %c0_9] : memref<3x8x64xf32, #tpu.memory_space<vmem>>, vector<1x8x64xf32>
    %15 = vector.shape_cast %14 : vector<1x8x64xf32> to vector<8x64xf32>
    %cst_10 = arith.constant dense<0.000000e+00> : vector<64x64xf32>
    %16 = tpu.matmul %6, %15, %cst_10 {dimension_numbers = #tpu.dot_dimension_numbers<[1], [0], [0], [1], [0, 0, 1, 1], [], []>} : vector<64x8xf32>, vector<8x64xf32>, vector<64x64xf32> -> vector<64x64xf32>
    %17 = arith.addf %13, %16 : vector<64x64xf32>
    %c0_11 = arith.constant 0 : index
    %c0_12 = arith.constant 0 : index
    %18 = vector.load %arg3[%c0_11, %c0_12] : memref<1x64xf32, #tpu.memory_space<vmem>>, vector<1x64xf32>
    %19 = vector.broadcast %18 : vector<1x64xf32> to vector<64x64xf32>
    %20 = arith.addf %17, %19 : vector<64x64xf32>
    %cst_13 = arith.constant 0.000000e+00 : f32
    %21 = vector.broadcast %cst_13 : f32 to vector<64x64xf32>
    %22 = arith.maximumf %20, %21 : vector<64x64xf32>
    %c0_14 = arith.constant 0 : index
    %c0_15 = arith.constant 0 : index
    %23 = vector.load %arg4[%c0_14, %c0_15] : memref<8x64xf32, #tpu.memory_space<vmem>>, vector<8x64xf32>
    %cst_16 = arith.constant dense<0.000000e+00> : vector<64x64xf32>
    %24 = tpu.matmul %5, %23, %cst_16 {dimension_numbers = #tpu.dot_dimension_numbers<[1], [0], [0], [1], [0, 0, 1, 1], [], []>} : vector<64x8xf32>, vector<8x64xf32>, vector<64x64xf32> -> vector<64x64xf32>
    %c0_17 = arith.constant 0 : index
    %c0_18 = arith.constant 0 : index
    %25 = vector.load %arg5[%c0_17, %c0_18] : memref<1x64xf32, #tpu.memory_space<vmem>>, vector<1x64xf32>
    %26 = vector.broadcast %25 : vector<1x64xf32> to vector<64x64xf32>
    %27 = arith.addf %24, %26 : vector<64x64xf32>
    %28 = tpu.iota {dimensions = array<i32: 0>} : vector<64x64xi32>
    %c1_i32 = arith.constant 1 : i32
    %29 = vector.broadcast %c1_i32 : i32 to vector<64x64xi32>
    %30 = arith.cmpi sge, %28, %29 : vector<64x64xi32>
    %c1_i32_19 = arith.constant 1 : i32
    %31 = tpu.dynamic_rotate %22 by %c1_i32_19 dim 0 : vector<64x64xf32>, i32 -> vector<64x64xf32>
    %cst_20 = arith.constant 0.000000e+00 : f32
    %32 = vector.broadcast %cst_20 : f32 to vector<64x64xf32>
    %33 = arith.select %30, %31, %32 : vector<64x64xi1>, vector<64x64xf32>
    %c62_i32 = arith.constant 62 : i32
    %34 = vector.broadcast %c62_i32 : i32 to vector<64x64xi32>
    %35 = arith.cmpi sle, %28, %34 : vector<64x64xi32>
    %c63_i32 = arith.constant 63 : i32
    %36 = tpu.dynamic_rotate %22 by %c63_i32 dim 0 : vector<64x64xf32>, i32 -> vector<64x64xf32>
    %cst_21 = arith.constant 0.000000e+00 : f32
    %37 = vector.broadcast %cst_21 : f32 to vector<64x64xf32>
    %38 = arith.select %35, %36, %37 : vector<64x64xi1>, vector<64x64xf32>
    %c0_22 = arith.constant 0 : index
    %c0_23 = arith.constant 0 : index
    %c0_24 = arith.constant 0 : index
    %39 = vector.load %arg6[%c0_22, %c0_23, %c0_24] : memref<3x64x64xf32, #tpu.memory_space<vmem>>, vector<1x64x64xf32>
    %40 = vector.shape_cast %39 : vector<1x64x64xf32> to vector<64x64xf32>
    %cst_25 = arith.constant dense<0.000000e+00> : vector<64x64xf32>
    %41 = tpu.matmul %33, %40, %cst_25 {dimension_numbers = #tpu.dot_dimension_numbers<[1], [0], [0], [1], [0, 0, 1, 1], [], []>} : vector<64x64xf32>, vector<64x64xf32>, vector<64x64xf32> -> vector<64x64xf32>
    %c1_26 = arith.constant 1 : index
    %c0_27 = arith.constant 0 : index
    %c0_28 = arith.constant 0 : index
    %42 = vector.load %arg6[%c1_26, %c0_27, %c0_28] : memref<3x64x64xf32, #tpu.memory_space<vmem>>, vector<1x64x64xf32>
    %43 = vector.shape_cast %42 : vector<1x64x64xf32> to vector<64x64xf32>
    %cst_29 = arith.constant dense<0.000000e+00> : vector<64x64xf32>
    %44 = tpu.matmul %22, %43, %cst_29 {dimension_numbers = #tpu.dot_dimension_numbers<[1], [0], [0], [1], [0, 0, 1, 1], [], []>} : vector<64x64xf32>, vector<64x64xf32>, vector<64x64xf32> -> vector<64x64xf32>
    %45 = arith.addf %41, %44 : vector<64x64xf32>
    %c2_30 = arith.constant 2 : index
    %c0_31 = arith.constant 0 : index
    %c0_32 = arith.constant 0 : index
    %46 = vector.load %arg6[%c2_30, %c0_31, %c0_32] : memref<3x64x64xf32, #tpu.memory_space<vmem>>, vector<1x64x64xf32>
    %47 = vector.shape_cast %46 : vector<1x64x64xf32> to vector<64x64xf32>
    %cst_33 = arith.constant dense<0.000000e+00> : vector<64x64xf32>
    %48 = tpu.matmul %38, %47, %cst_33 {dimension_numbers = #tpu.dot_dimension_numbers<[1], [0], [0], [1], [0, 0, 1, 1], [], []>} : vector<64x64xf32>, vector<64x64xf32>, vector<64x64xf32> -> vector<64x64xf32>
    %49 = arith.addf %45, %48 : vector<64x64xf32>
    %c0_34 = arith.constant 0 : index
    %c0_35 = arith.constant 0 : index
    %50 = vector.load %arg7[%c0_34, %c0_35] : memref<1x64xf32, #tpu.memory_space<vmem>>, vector<1x64xf32>
    %51 = vector.broadcast %50 : vector<1x64xf32> to vector<64x64xf32>
    %52 = arith.addf %49, %51 : vector<64x64xf32>
    %53 = arith.addf %52, %27 : vector<64x64xf32>
    %cst_36 = arith.constant 0.000000e+00 : f32
    %54 = vector.broadcast %cst_36 : f32 to vector<64x64xf32>
    %55 = arith.maximumf %53, %54 : vector<64x64xf32>
    %c0_37 = arith.constant 0 : index
    %c0_38 = arith.constant 0 : index
    %c0_39 = arith.constant 0 : index
    %56 = vector.load %arg8[%c0_37, %c0_38, %c0_39] : memref<1x64x64xf32, #tpu.memory_space<vmem>>, vector<1x64x64xf32>
    %57 = vector.shape_cast %56 : vector<1x64x64xf32> to vector<64x64xf32>
    %58 = vector.shape_cast %55 : vector<64x64xf32> to vector<1x64x64xf32>
    tpu.vector_store %arg8[%c0_37, %c0_38, %c0_39], %58 {strides = array<i32>} : memref<1x64x64xf32, #tpu.memory_space<vmem>>, vector<1x64x64xf32>,
    return
  }
  func.func @transform_0(%arg0: i32) -> (i32, i32, i32) {
    %c0_i32 = arith.constant 0 : i32
    %c0_i32_0 = arith.constant 0 : i32
    %c0_i32_1 = arith.constant 0 : i32
    return %arg0, %c0_i32, %c0_i32_0 : i32, i32, i32
  }
  func.func @transform_1(%arg0: i32) -> (i32, i32, i32) {
    %c0_i32 = arith.constant 0 : i32
    %c0_i32_0 = arith.constant 0 : i32
    %c0_i32_1 = arith.constant 0 : i32
    %c0_i32_2 = arith.constant 0 : i32
    return %c0_i32, %c0_i32_0, %c0_i32_1 : i32, i32, i32
  }
  func.func @transform_2(%arg0: i32) -> (i32, i32) {
    %c0_i32 = arith.constant 0 : i32
    %c0_i32_0 = arith.constant 0 : i32
    %c0_i32_1 = arith.constant 0 : i32
    return %c0_i32, %c0_i32_0 : i32, i32
  }
  func.func @transform_3(%arg0: i32) -> (i32, i32) {
    %c0_i32 = arith.constant 0 : i32
    %c0_i32_0 = arith.constant 0 : i32
    %c0_i32_1 = arith.constant 0 : i32
    return %c0_i32, %c0_i32_0 : i32, i32
  }
  func.func @transform_4(%arg0: i32) -> (i32, i32) {
    %c0_i32 = arith.constant 0 : i32
    %c0_i32_0 = arith.constant 0 : i32
    %c0_i32_1 = arith.constant 0 : i32
    return %c0_i32, %c0_i32_0 : i32, i32
  }
  func.func @transform_5(%arg0: i32) -> (i32, i32, i32) {
    %c0_i32 = arith.constant 0 : i32
    %c0_i32_0 = arith.constant 0 : i32
    %c0_i32_1 = arith.constant 0 : i32
    %c0_i32_2 = arith.constant 0 : i32
    return %c0_i32, %c0_i32_0, %c0_i32_1 : i32, i32, i32
  }
  func.func @transform_6(%arg0: i32) -> (i32, i32) {
    %c0_i32 = arith.constant 0 : i32
    %c0_i32_0 = arith.constant 0 : i32
    %c0_i32_1 = arith.constant 0 : i32
    return %c0_i32, %c0_i32_0 : i32, i32
  }
  func.func @transform_7(%arg0: i32) -> (i32, i32, i32) {
    %c0_i32 = arith.constant 0 : i32
    %c0_i32_0 = arith.constant 0 : i32
    %c0_i32_1 = arith.constant 0 : i32
    return %arg0, %c0_i32, %c0_i32_0 : i32, i32, i32
  }
}

module attributes {stable_mosaic.version = 11 : i64} {
  func.func @_res_block_kernel(%arg0: i32, %arg1: memref<1x33x128xf32, #tpu.memory_space<vmem>>, %arg2: memref<3x64x64xf32, #tpu.memory_space<vmem>>, %arg3: memref<1x64xf32, #tpu.memory_space<vmem>>, %arg4: memref<64x64xf32, #tpu.memory_space<vmem>>, %arg5: memref<1x64xf32, #tpu.memory_space<vmem>>, %arg6: memref<3x64x64xf32, #tpu.memory_space<vmem>>, %arg7: memref<1x64xf32, #tpu.memory_space<vmem>>, %arg8: memref<1x32x64xf32, #tpu.memory_space<vmem>>) attributes {dimension_semantics = [#tpu.dimension_semantics<parallel>], iteration_bounds = array<i64: 2>, scalar_prefetch = 0 : i64, scratch_operands = 0 : i64, tpu.core_type = #tpu.core_type<tc>, window_params = [{transform_indices = @transform_0, window_bounds = array<i64: 1, 33, 128>}, {pipeline_mode = #tpu.pipeline_mode<synchronous>, transform_indices = @transform_1, window_bounds = array<i64: 3, 64, 64>}, {pipeline_mode = #tpu.pipeline_mode<synchronous>, transform_indices = @transform_2, window_bounds = array<i64: 1, 64>}, {pipeline_mode = #tpu.pipeline_mode<synchronous>, transform_indices = @transform_3, window_bounds = array<i64: 64, 64>}, {pipeline_mode = #tpu.pipeline_mode<synchronous>, transform_indices = @transform_4, window_bounds = array<i64: 1, 64>}, {pipeline_mode = #tpu.pipeline_mode<synchronous>, transform_indices = @transform_5, window_bounds = array<i64: 3, 64, 64>}, {pipeline_mode = #tpu.pipeline_mode<synchronous>, transform_indices = @transform_6, window_bounds = array<i64: 1, 64>}, {transform_indices = @transform_7, window_bounds = array<i64: 1, 32, 64>}]} {
    %c0 = arith.constant 0 : index
    %c0_0 = arith.constant 0 : index
    %c0_1 = arith.constant 0 : index
    %0 = vector.load %arg1[%c0, %c0_0, %c0_1] : memref<1x33x128xf32, #tpu.memory_space<vmem>>, vector<1x33x128xf32>
    %1 = vector.shape_cast %0 : vector<1x33x128xf32> to vector<33x128xf32>
    %2 = vector.extract_strided_slice %1 {offsets = [0, 0], sizes = [33, 64], strides = [1, 1]} : vector<33x128xf32> to vector<33x64xf32>
    %3 = vector.extract_strided_slice %1 {offsets = [0, 64], sizes = [33, 64], strides = [1, 1]} : vector<33x128xf32> to vector<33x64xf32>
    %4 = vector.extract_strided_slice %2 {offsets = [0, 0], sizes = [32, 64], strides = [1, 1]} : vector<33x64xf32> to vector<32x64xf32>
    %5 = vector.extract_strided_slice %3 {offsets = [0, 0], sizes = [32, 64], strides = [1, 1]} : vector<33x64xf32> to vector<32x64xf32>
    %6 = vector.extract_strided_slice %2 {offsets = [1, 0], sizes = [32, 64], strides = [1, 1]} : vector<33x64xf32> to vector<32x64xf32>
    %c0_2 = arith.constant 0 : index
    %c0_3 = arith.constant 0 : index
    %c0_4 = arith.constant 0 : index
    %7 = vector.load %arg2[%c0_2, %c0_3, %c0_4] : memref<3x64x64xf32, #tpu.memory_space<vmem>>, vector<1x64x64xf32>
    %8 = vector.shape_cast %7 : vector<1x64x64xf32> to vector<64x64xf32>
    %cst = arith.constant dense<0.000000e+00> : vector<32x64xf32>
    %9 = tpu.matmul %4, %8, %cst {dimension_numbers = #tpu.dot_dimension_numbers<[1], [0], [0], [1], [0, 0, 1, 1], [], []>} : vector<32x64xf32>, vector<64x64xf32>, vector<32x64xf32> -> vector<32x64xf32>
    %c1 = arith.constant 1 : index
    %c0_5 = arith.constant 0 : index
    %c0_6 = arith.constant 0 : index
    %10 = vector.load %arg2[%c1, %c0_5, %c0_6] : memref<3x64x64xf32, #tpu.memory_space<vmem>>, vector<1x64x64xf32>
    %11 = vector.shape_cast %10 : vector<1x64x64xf32> to vector<64x64xf32>
    %cst_7 = arith.constant dense<0.000000e+00> : vector<32x64xf32>
    %12 = tpu.matmul %5, %11, %cst_7 {dimension_numbers = #tpu.dot_dimension_numbers<[1], [0], [0], [1], [0, 0, 1, 1], [], []>} : vector<32x64xf32>, vector<64x64xf32>, vector<32x64xf32> -> vector<32x64xf32>
    %13 = arith.addf %9, %12 : vector<32x64xf32>
    %c2 = arith.constant 2 : index
    %c0_8 = arith.constant 0 : index
    %c0_9 = arith.constant 0 : index
    %14 = vector.load %arg2[%c2, %c0_8, %c0_9] : memref<3x64x64xf32, #tpu.memory_space<vmem>>, vector<1x64x64xf32>
    %15 = vector.shape_cast %14 : vector<1x64x64xf32> to vector<64x64xf32>
    %cst_10 = arith.constant dense<0.000000e+00> : vector<32x64xf32>
    %16 = tpu.matmul %6, %15, %cst_10 {dimension_numbers = #tpu.dot_dimension_numbers<[1], [0], [0], [1], [0, 0, 1, 1], [], []>} : vector<32x64xf32>, vector<64x64xf32>, vector<32x64xf32> -> vector<32x64xf32>
    %17 = arith.addf %13, %16 : vector<32x64xf32>
    %c0_11 = arith.constant 0 : index
    %c0_12 = arith.constant 0 : index
    %18 = vector.load %arg3[%c0_11, %c0_12] : memref<1x64xf32, #tpu.memory_space<vmem>>, vector<1x64xf32>
    %19 = vector.broadcast %18 : vector<1x64xf32> to vector<32x64xf32>
    %20 = arith.addf %17, %19 : vector<32x64xf32>
    %cst_13 = arith.constant 0.000000e+00 : f32
    %21 = vector.broadcast %cst_13 : f32 to vector<32x64xf32>
    %22 = arith.maximumf %20, %21 : vector<32x64xf32>
    %c0_14 = arith.constant 0 : index
    %c0_15 = arith.constant 0 : index
    %23 = vector.load %arg4[%c0_14, %c0_15] : memref<64x64xf32, #tpu.memory_space<vmem>>, vector<64x64xf32>
    %cst_16 = arith.constant dense<0.000000e+00> : vector<32x64xf32>
    %24 = tpu.matmul %5, %23, %cst_16 {dimension_numbers = #tpu.dot_dimension_numbers<[1], [0], [0], [1], [0, 0, 1, 1], [], []>} : vector<32x64xf32>, vector<64x64xf32>, vector<32x64xf32> -> vector<32x64xf32>
    %c0_17 = arith.constant 0 : index
    %c0_18 = arith.constant 0 : index
    %25 = vector.load %arg5[%c0_17, %c0_18] : memref<1x64xf32, #tpu.memory_space<vmem>>, vector<1x64xf32>
    %26 = vector.broadcast %25 : vector<1x64xf32> to vector<32x64xf32>
    %27 = arith.addf %24, %26 : vector<32x64xf32>
    %28 = tpu.iota {dimensions = array<i32: 0>} : vector<32x64xi32>
    %c1_i32 = arith.constant 1 : i32
    %29 = vector.broadcast %c1_i32 : i32 to vector<32x64xi32>
    %30 = arith.cmpi sge, %28, %29 : vector<32x64xi32>
    %c1_i32_19 = arith.constant 1 : i32
    %31 = tpu.dynamic_rotate %22 by %c1_i32_19 dim 0 : vector<32x64xf32>, i32 -> vector<32x64xf32>
    %cst_20 = arith.constant 0.000000e+00 : f32
    %32 = vector.broadcast %cst_20 : f32 to vector<32x64xf32>
    %33 = arith.select %30, %31, %32 : vector<32x64xi1>, vector<32x64xf32>
    %c30_i32 = arith.constant 30 : i32
    %34 = vector.broadcast %c30_i32 : i32 to vector<32x64xi32>
    %35 = arith.cmpi sle, %28, %34 : vector<32x64xi32>
    %c31_i32 = arith.constant 31 : i32
    %36 = tpu.dynamic_rotate %22 by %c31_i32 dim 0 : vector<32x64xf32>, i32 -> vector<32x64xf32>
    %cst_21 = arith.constant 0.000000e+00 : f32
    %37 = vector.broadcast %cst_21 : f32 to vector<32x64xf32>
    %38 = arith.select %35, %36, %37 : vector<32x64xi1>, vector<32x64xf32>
    %c0_22 = arith.constant 0 : index
    %c0_23 = arith.constant 0 : index
    %c0_24 = arith.constant 0 : index
    %39 = vector.load %arg6[%c0_22, %c0_23, %c0_24] : memref<3x64x64xf32, #tpu.memory_space<vmem>>, vector<1x64x64xf32>
    %40 = vector.shape_cast %39 : vector<1x64x64xf32> to vector<64x64xf32>
    %cst_25 = arith.constant dense<0.000000e+00> : vector<32x64xf32>
    %41 = tpu.matmul %33, %40, %cst_25 {dimension_numbers = #tpu.dot_dimension_numbers<[1], [0], [0], [1], [0, 0, 1, 1], [], []>} : vector<32x64xf32>, vector<64x64xf32>, vector<32x64xf32> -> vector<32x64xf32>
    %c1_26 = arith.constant 1 : index
    %c0_27 = arith.constant 0 : index
    %c0_28 = arith.constant 0 : index
    %42 = vector.load %arg6[%c1_26, %c0_27, %c0_28] : memref<3x64x64xf32, #tpu.memory_space<vmem>>, vector<1x64x64xf32>
    %43 = vector.shape_cast %42 : vector<1x64x64xf32> to vector<64x64xf32>
    %cst_29 = arith.constant dense<0.000000e+00> : vector<32x64xf32>
    %44 = tpu.matmul %22, %43, %cst_29 {dimension_numbers = #tpu.dot_dimension_numbers<[1], [0], [0], [1], [0, 0, 1, 1], [], []>} : vector<32x64xf32>, vector<64x64xf32>, vector<32x64xf32> -> vector<32x64xf32>
    %45 = arith.addf %41, %44 : vector<32x64xf32>
    %c2_30 = arith.constant 2 : index
    %c0_31 = arith.constant 0 : index
    %c0_32 = arith.constant 0 : index
    %46 = vector.load %arg6[%c2_30, %c0_31, %c0_32] : memref<3x64x64xf32, #tpu.memory_space<vmem>>, vector<1x64x64xf32>
    %47 = vector.shape_cast %46 : vector<1x64x64xf32> to vector<64x64xf32>
    %cst_33 = arith.constant dense<0.000000e+00> : vector<32x64xf32>
    %48 = tpu.matmul %38, %47, %cst_33 {dimension_numbers = #tpu.dot_dimension_numbers<[1], [0], [0], [1], [0, 0, 1, 1], [], []>} : vector<32x64xf32>, vector<64x64xf32>, vector<32x64xf32> -> vector<32x64xf32>
    %49 = arith.addf %45, %48 : vector<32x64xf32>
    %c0_34 = arith.constant 0 : index
    %c0_35 = arith.constant 0 : index
    %50 = vector.load %arg7[%c0_34, %c0_35] : memref<1x64xf32, #tpu.memory_space<vmem>>, vector<1x64xf32>
    %51 = vector.broadcast %50 : vector<1x64xf32> to vector<32x64xf32>
    %52 = arith.addf %49, %51 : vector<32x64xf32>
    %53 = arith.addf %52, %27 : vector<32x64xf32>
    %cst_36 = arith.constant 0.000000e+00 : f32
    %54 = vector.broadcast %cst_36 : f32 to vector<32x64xf32>
    %55 = arith.maximumf %53, %54 : vector<32x64xf32>
    %c0_37 = arith.constant 0 : index
    %c0_38 = arith.constant 0 : index
    %c0_39 = arith.constant 0 : index
    %56 = vector.load %arg8[%c0_37, %c0_38, %c0_39] : memref<1x32x64xf32, #tpu.memory_space<vmem>>, vector<1x32x64xf32>
    %57 = vector.shape_cast %56 : vector<1x32x64xf32> to vector<32x64xf32>
    %58 = vector.shape_cast %55 : vector<32x64xf32> to vector<1x32x64xf32>
    tpu.vector_store %arg8[%c0_37, %c0_38, %c0_39], %58 {strides = array<i32>} : memref<1x32x64xf32, #tpu.memory_space<vmem>>, vector<1x32x64xf32>,
    return
  }
  func.func @transform_0(%arg0: i32) -> (i32, i32, i32) {
    %c0_i32 = arith.constant 0 : i32
    %c0_i32_0 = arith.constant 0 : i32
    %c0_i32_1 = arith.constant 0 : i32
    return %arg0, %c0_i32, %c0_i32_0 : i32, i32, i32
  }
  func.func @transform_1(%arg0: i32) -> (i32, i32, i32) {
    %c0_i32 = arith.constant 0 : i32
    %c0_i32_0 = arith.constant 0 : i32
    %c0_i32_1 = arith.constant 0 : i32
    %c0_i32_2 = arith.constant 0 : i32
    return %c0_i32, %c0_i32_0, %c0_i32_1 : i32, i32, i32
  }
  func.func @transform_2(%arg0: i32) -> (i32, i32) {
    %c0_i32 = arith.constant 0 : i32
    %c0_i32_0 = arith.constant 0 : i32
    %c0_i32_1 = arith.constant 0 : i32
    return %c0_i32, %c0_i32_0 : i32, i32
  }
  func.func @transform_3(%arg0: i32) -> (i32, i32) {
    %c0_i32 = arith.constant 0 : i32
    %c0_i32_0 = arith.constant 0 : i32
    %c0_i32_1 = arith.constant 0 : i32
    return %c0_i32, %c0_i32_0 : i32, i32
  }
  func.func @transform_4(%arg0: i32) -> (i32, i32) {
    %c0_i32 = arith.constant 0 : i32
    %c0_i32_0 = arith.constant 0 : i32
    %c0_i32_1 = arith.constant 0 : i32
    return %c0_i32, %c0_i32_0 : i32, i32
  }
  func.func @transform_5(%arg0: i32) -> (i32, i32, i32) {
    %c0_i32 = arith.constant 0 : i32
    %c0_i32_0 = arith.constant 0 : i32
    %c0_i32_1 = arith.constant 0 : i32
    %c0_i32_2 = arith.constant 0 : i32
    return %c0_i32, %c0_i32_0, %c0_i32_1 : i32, i32, i32
  }
  func.func @transform_6(%arg0: i32) -> (i32, i32) {
    %c0_i32 = arith.constant 0 : i32
    %c0_i32_0 = arith.constant 0 : i32
    %c0_i32_1 = arith.constant 0 : i32
    return %c0_i32, %c0_i32_0 : i32, i32
  }
  func.func @transform_7(%arg0: i32) -> (i32, i32, i32) {
    %c0_i32 = arith.constant 0 : i32
    %c0_i32_0 = arith.constant 0 : i32
    %c0_i32_1 = arith.constant 0 : i32
    return %arg0, %c0_i32, %c0_i32_0 : i32, i32, i32
  }
}

module attributes {stable_mosaic.version = 11 : i64} {
  func.func @_res_block_kernel(%arg0: i32, %arg1: memref<1x17x128xf32, #tpu.memory_space<vmem>>, %arg2: memref<3x64x64xf32, #tpu.memory_space<vmem>>, %arg3: memref<1x64xf32, #tpu.memory_space<vmem>>, %arg4: memref<64x64xf32, #tpu.memory_space<vmem>>, %arg5: memref<1x64xf32, #tpu.memory_space<vmem>>, %arg6: memref<3x64x64xf32, #tpu.memory_space<vmem>>, %arg7: memref<1x64xf32, #tpu.memory_space<vmem>>, %arg8: memref<1x16x64xf32, #tpu.memory_space<vmem>>) attributes {dimension_semantics = [#tpu.dimension_semantics<parallel>], iteration_bounds = array<i64: 2>, scalar_prefetch = 0 : i64, scratch_operands = 0 : i64, tpu.core_type = #tpu.core_type<tc>, window_params = [{transform_indices = @transform_0, window_bounds = array<i64: 1, 17, 128>}, {pipeline_mode = #tpu.pipeline_mode<synchronous>, transform_indices = @transform_1, window_bounds = array<i64: 3, 64, 64>}, {pipeline_mode = #tpu.pipeline_mode<synchronous>, transform_indices = @transform_2, window_bounds = array<i64: 1, 64>}, {pipeline_mode = #tpu.pipeline_mode<synchronous>, transform_indices = @transform_3, window_bounds = array<i64: 64, 64>}, {pipeline_mode = #tpu.pipeline_mode<synchronous>, transform_indices = @transform_4, window_bounds = array<i64: 1, 64>}, {pipeline_mode = #tpu.pipeline_mode<synchronous>, transform_indices = @transform_5, window_bounds = array<i64: 3, 64, 64>}, {pipeline_mode = #tpu.pipeline_mode<synchronous>, transform_indices = @transform_6, window_bounds = array<i64: 1, 64>}, {transform_indices = @transform_7, window_bounds = array<i64: 1, 16, 64>}]} {
    %c0 = arith.constant 0 : index
    %c0_0 = arith.constant 0 : index
    %c0_1 = arith.constant 0 : index
    %0 = vector.load %arg1[%c0, %c0_0, %c0_1] : memref<1x17x128xf32, #tpu.memory_space<vmem>>, vector<1x17x128xf32>
    %1 = vector.shape_cast %0 : vector<1x17x128xf32> to vector<17x128xf32>
    %2 = vector.extract_strided_slice %1 {offsets = [0, 0], sizes = [17, 64], strides = [1, 1]} : vector<17x128xf32> to vector<17x64xf32>
    %3 = vector.extract_strided_slice %1 {offsets = [0, 64], sizes = [17, 64], strides = [1, 1]} : vector<17x128xf32> to vector<17x64xf32>
    %4 = vector.extract_strided_slice %2 {offsets = [0, 0], sizes = [16, 64], strides = [1, 1]} : vector<17x64xf32> to vector<16x64xf32>
    %5 = vector.extract_strided_slice %3 {offsets = [0, 0], sizes = [16, 64], strides = [1, 1]} : vector<17x64xf32> to vector<16x64xf32>
    %6 = vector.extract_strided_slice %2 {offsets = [1, 0], sizes = [16, 64], strides = [1, 1]} : vector<17x64xf32> to vector<16x64xf32>
    %c0_2 = arith.constant 0 : index
    %c0_3 = arith.constant 0 : index
    %c0_4 = arith.constant 0 : index
    %7 = vector.load %arg2[%c0_2, %c0_3, %c0_4] : memref<3x64x64xf32, #tpu.memory_space<vmem>>, vector<1x64x64xf32>
    %8 = vector.shape_cast %7 : vector<1x64x64xf32> to vector<64x64xf32>
    %cst = arith.constant dense<0.000000e+00> : vector<16x64xf32>
    %9 = tpu.matmul %4, %8, %cst {dimension_numbers = #tpu.dot_dimension_numbers<[1], [0], [0], [1], [0, 0, 1, 1], [], []>} : vector<16x64xf32>, vector<64x64xf32>, vector<16x64xf32> -> vector<16x64xf32>
    %c1 = arith.constant 1 : index
    %c0_5 = arith.constant 0 : index
    %c0_6 = arith.constant 0 : index
    %10 = vector.load %arg2[%c1, %c0_5, %c0_6] : memref<3x64x64xf32, #tpu.memory_space<vmem>>, vector<1x64x64xf32>
    %11 = vector.shape_cast %10 : vector<1x64x64xf32> to vector<64x64xf32>
    %cst_7 = arith.constant dense<0.000000e+00> : vector<16x64xf32>
    %12 = tpu.matmul %5, %11, %cst_7 {dimension_numbers = #tpu.dot_dimension_numbers<[1], [0], [0], [1], [0, 0, 1, 1], [], []>} : vector<16x64xf32>, vector<64x64xf32>, vector<16x64xf32> -> vector<16x64xf32>
    %13 = arith.addf %9, %12 : vector<16x64xf32>
    %c2 = arith.constant 2 : index
    %c0_8 = arith.constant 0 : index
    %c0_9 = arith.constant 0 : index
    %14 = vector.load %arg2[%c2, %c0_8, %c0_9] : memref<3x64x64xf32, #tpu.memory_space<vmem>>, vector<1x64x64xf32>
    %15 = vector.shape_cast %14 : vector<1x64x64xf32> to vector<64x64xf32>
    %cst_10 = arith.constant dense<0.000000e+00> : vector<16x64xf32>
    %16 = tpu.matmul %6, %15, %cst_10 {dimension_numbers = #tpu.dot_dimension_numbers<[1], [0], [0], [1], [0, 0, 1, 1], [], []>} : vector<16x64xf32>, vector<64x64xf32>, vector<16x64xf32> -> vector<16x64xf32>
    %17 = arith.addf %13, %16 : vector<16x64xf32>
    %c0_11 = arith.constant 0 : index
    %c0_12 = arith.constant 0 : index
    %18 = vector.load %arg3[%c0_11, %c0_12] : memref<1x64xf32, #tpu.memory_space<vmem>>, vector<1x64xf32>
    %19 = vector.broadcast %18 : vector<1x64xf32> to vector<16x64xf32>
    %20 = arith.addf %17, %19 : vector<16x64xf32>
    %cst_13 = arith.constant 0.000000e+00 : f32
    %21 = vector.broadcast %cst_13 : f32 to vector<16x64xf32>
    %22 = arith.maximumf %20, %21 : vector<16x64xf32>
    %c0_14 = arith.constant 0 : index
    %c0_15 = arith.constant 0 : index
    %23 = vector.load %arg4[%c0_14, %c0_15] : memref<64x64xf32, #tpu.memory_space<vmem>>, vector<64x64xf32>
    %cst_16 = arith.constant dense<0.000000e+00> : vector<16x64xf32>
    %24 = tpu.matmul %5, %23, %cst_16 {dimension_numbers = #tpu.dot_dimension_numbers<[1], [0], [0], [1], [0, 0, 1, 1], [], []>} : vector<16x64xf32>, vector<64x64xf32>, vector<16x64xf32> -> vector<16x64xf32>
    %c0_17 = arith.constant 0 : index
    %c0_18 = arith.constant 0 : index
    %25 = vector.load %arg5[%c0_17, %c0_18] : memref<1x64xf32, #tpu.memory_space<vmem>>, vector<1x64xf32>
    %26 = vector.broadcast %25 : vector<1x64xf32> to vector<16x64xf32>
    %27 = arith.addf %24, %26 : vector<16x64xf32>
    %28 = tpu.iota {dimensions = array<i32: 0>} : vector<16x64xi32>
    %c1_i32 = arith.constant 1 : i32
    %29 = vector.broadcast %c1_i32 : i32 to vector<16x64xi32>
    %30 = arith.cmpi sge, %28, %29 : vector<16x64xi32>
    %c1_i32_19 = arith.constant 1 : i32
    %31 = tpu.dynamic_rotate %22 by %c1_i32_19 dim 0 : vector<16x64xf32>, i32 -> vector<16x64xf32>
    %cst_20 = arith.constant 0.000000e+00 : f32
    %32 = vector.broadcast %cst_20 : f32 to vector<16x64xf32>
    %33 = arith.select %30, %31, %32 : vector<16x64xi1>, vector<16x64xf32>
    %c14_i32 = arith.constant 14 : i32
    %34 = vector.broadcast %c14_i32 : i32 to vector<16x64xi32>
    %35 = arith.cmpi sle, %28, %34 : vector<16x64xi32>
    %c15_i32 = arith.constant 15 : i32
    %36 = tpu.dynamic_rotate %22 by %c15_i32 dim 0 : vector<16x64xf32>, i32 -> vector<16x64xf32>
    %cst_21 = arith.constant 0.000000e+00 : f32
    %37 = vector.broadcast %cst_21 : f32 to vector<16x64xf32>
    %38 = arith.select %35, %36, %37 : vector<16x64xi1>, vector<16x64xf32>
    %c0_22 = arith.constant 0 : index
    %c0_23 = arith.constant 0 : index
    %c0_24 = arith.constant 0 : index
    %39 = vector.load %arg6[%c0_22, %c0_23, %c0_24] : memref<3x64x64xf32, #tpu.memory_space<vmem>>, vector<1x64x64xf32>
    %40 = vector.shape_cast %39 : vector<1x64x64xf32> to vector<64x64xf32>
    %cst_25 = arith.constant dense<0.000000e+00> : vector<16x64xf32>
    %41 = tpu.matmul %33, %40, %cst_25 {dimension_numbers = #tpu.dot_dimension_numbers<[1], [0], [0], [1], [0, 0, 1, 1], [], []>} : vector<16x64xf32>, vector<64x64xf32>, vector<16x64xf32> -> vector<16x64xf32>
    %c1_26 = arith.constant 1 : index
    %c0_27 = arith.constant 0 : index
    %c0_28 = arith.constant 0 : index
    %42 = vector.load %arg6[%c1_26, %c0_27, %c0_28] : memref<3x64x64xf32, #tpu.memory_space<vmem>>, vector<1x64x64xf32>
    %43 = vector.shape_cast %42 : vector<1x64x64xf32> to vector<64x64xf32>
    %cst_29 = arith.constant dense<0.000000e+00> : vector<16x64xf32>
    %44 = tpu.matmul %22, %43, %cst_29 {dimension_numbers = #tpu.dot_dimension_numbers<[1], [0], [0], [1], [0, 0, 1, 1], [], []>} : vector<16x64xf32>, vector<64x64xf32>, vector<16x64xf32> -> vector<16x64xf32>
    %45 = arith.addf %41, %44 : vector<16x64xf32>
    %c2_30 = arith.constant 2 : index
    %c0_31 = arith.constant 0 : index
    %c0_32 = arith.constant 0 : index
    %46 = vector.load %arg6[%c2_30, %c0_31, %c0_32] : memref<3x64x64xf32, #tpu.memory_space<vmem>>, vector<1x64x64xf32>
    %47 = vector.shape_cast %46 : vector<1x64x64xf32> to vector<64x64xf32>
    %cst_33 = arith.constant dense<0.000000e+00> : vector<16x64xf32>
    %48 = tpu.matmul %38, %47, %cst_33 {dimension_numbers = #tpu.dot_dimension_numbers<[1], [0], [0], [1], [0, 0, 1, 1], [], []>} : vector<16x64xf32>, vector<64x64xf32>, vector<16x64xf32> -> vector<16x64xf32>
    %49 = arith.addf %45, %48 : vector<16x64xf32>
    %c0_34 = arith.constant 0 : index
    %c0_35 = arith.constant 0 : index
    %50 = vector.load %arg7[%c0_34, %c0_35] : memref<1x64xf32, #tpu.memory_space<vmem>>, vector<1x64xf32>
    %51 = vector.broadcast %50 : vector<1x64xf32> to vector<16x64xf32>
    %52 = arith.addf %49, %51 : vector<16x64xf32>
    %53 = arith.addf %52, %27 : vector<16x64xf32>
    %cst_36 = arith.constant 0.000000e+00 : f32
    %54 = vector.broadcast %cst_36 : f32 to vector<16x64xf32>
    %55 = arith.maximumf %53, %54 : vector<16x64xf32>
    %c0_37 = arith.constant 0 : index
    %c0_38 = arith.constant 0 : index
    %c0_39 = arith.constant 0 : index
    %56 = vector.load %arg8[%c0_37, %c0_38, %c0_39] : memref<1x16x64xf32, #tpu.memory_space<vmem>>, vector<1x16x64xf32>
    %57 = vector.shape_cast %56 : vector<1x16x64xf32> to vector<16x64xf32>
    %58 = vector.shape_cast %55 : vector<16x64xf32> to vector<1x16x64xf32>
    tpu.vector_store %arg8[%c0_37, %c0_38, %c0_39], %58 {strides = array<i32>} : memref<1x16x64xf32, #tpu.memory_space<vmem>>, vector<1x16x64xf32>,
    return
  }
  func.func @transform_0(%arg0: i32) -> (i32, i32, i32) {
    %c0_i32 = arith.constant 0 : i32
    %c0_i32_0 = arith.constant 0 : i32
    %c0_i32_1 = arith.constant 0 : i32
    return %arg0, %c0_i32, %c0_i32_0 : i32, i32, i32
  }
  func.func @transform_1(%arg0: i32) -> (i32, i32, i32) {
    %c0_i32 = arith.constant 0 : i32
    %c0_i32_0 = arith.constant 0 : i32
    %c0_i32_1 = arith.constant 0 : i32
    %c0_i32_2 = arith.constant 0 : i32
    return %c0_i32, %c0_i32_0, %c0_i32_1 : i32, i32, i32
  }
  func.func @transform_2(%arg0: i32) -> (i32, i32) {
    %c0_i32 = arith.constant 0 : i32
    %c0_i32_0 = arith.constant 0 : i32
    %c0_i32_1 = arith.constant 0 : i32
    return %c0_i32, %c0_i32_0 : i32, i32
  }
  func.func @transform_3(%arg0: i32) -> (i32, i32) {
    %c0_i32 = arith.constant 0 : i32
    %c0_i32_0 = arith.constant 0 : i32
    %c0_i32_1 = arith.constant 0 : i32
    return %c0_i32, %c0_i32_0 : i32, i32
  }
  func.func @transform_4(%arg0: i32) -> (i32, i32) {
    %c0_i32 = arith.constant 0 : i32
    %c0_i32_0 = arith.constant 0 : i32
    %c0_i32_1 = arith.constant 0 : i32
    return %c0_i32, %c0_i32_0 : i32, i32
  }
  func.func @transform_5(%arg0: i32) -> (i32, i32, i32) {
    %c0_i32 = arith.constant 0 : i32
    %c0_i32_0 = arith.constant 0 : i32
    %c0_i32_1 = arith.constant 0 : i32
    %c0_i32_2 = arith.constant 0 : i32
    return %c0_i32, %c0_i32_0, %c0_i32_1 : i32, i32, i32
  }
  func.func @transform_6(%arg0: i32) -> (i32, i32) {
    %c0_i32 = arith.constant 0 : i32
    %c0_i32_0 = arith.constant 0 : i32
    %c0_i32_1 = arith.constant 0 : i32
    return %c0_i32, %c0_i32_0 : i32, i32
  }
  func.func @transform_7(%arg0: i32) -> (i32, i32, i32) {
    %c0_i32 = arith.constant 0 : i32
    %c0_i32_0 = arith.constant 0 : i32
    %c0_i32_1 = arith.constant 0 : i32
    return %arg0, %c0_i32, %c0_i32_0 : i32, i32, i32
  }
}

module attributes {stable_mosaic.version = 11 : i64} {
  func.func @_res_block_kernel(%arg0: i32, %arg1: memref<1x9x128xf32, #tpu.memory_space<vmem>>, %arg2: memref<3x64x64xf32, #tpu.memory_space<vmem>>, %arg3: memref<1x64xf32, #tpu.memory_space<vmem>>, %arg4: memref<64x64xf32, #tpu.memory_space<vmem>>, %arg5: memref<1x64xf32, #tpu.memory_space<vmem>>, %arg6: memref<3x64x64xf32, #tpu.memory_space<vmem>>, %arg7: memref<1x64xf32, #tpu.memory_space<vmem>>, %arg8: memref<1x8x64xf32, #tpu.memory_space<vmem>>) attributes {dimension_semantics = [#tpu.dimension_semantics<parallel>], iteration_bounds = array<i64: 2>, scalar_prefetch = 0 : i64, scratch_operands = 0 : i64, tpu.core_type = #tpu.core_type<tc>, window_params = [{transform_indices = @transform_0, window_bounds = array<i64: 1, 9, 128>}, {pipeline_mode = #tpu.pipeline_mode<synchronous>, transform_indices = @transform_1, window_bounds = array<i64: 3, 64, 64>}, {pipeline_mode = #tpu.pipeline_mode<synchronous>, transform_indices = @transform_2, window_bounds = array<i64: 1, 64>}, {pipeline_mode = #tpu.pipeline_mode<synchronous>, transform_indices = @transform_3, window_bounds = array<i64: 64, 64>}, {pipeline_mode = #tpu.pipeline_mode<synchronous>, transform_indices = @transform_4, window_bounds = array<i64: 1, 64>}, {pipeline_mode = #tpu.pipeline_mode<synchronous>, transform_indices = @transform_5, window_bounds = array<i64: 3, 64, 64>}, {pipeline_mode = #tpu.pipeline_mode<synchronous>, transform_indices = @transform_6, window_bounds = array<i64: 1, 64>}, {transform_indices = @transform_7, window_bounds = array<i64: 1, 8, 64>}]} {
    %c0 = arith.constant 0 : index
    %c0_0 = arith.constant 0 : index
    %c0_1 = arith.constant 0 : index
    %0 = vector.load %arg1[%c0, %c0_0, %c0_1] : memref<1x9x128xf32, #tpu.memory_space<vmem>>, vector<1x9x128xf32>
    %1 = vector.shape_cast %0 : vector<1x9x128xf32> to vector<9x128xf32>
    %2 = vector.extract_strided_slice %1 {offsets = [0, 0], sizes = [9, 64], strides = [1, 1]} : vector<9x128xf32> to vector<9x64xf32>
    %3 = vector.extract_strided_slice %1 {offsets = [0, 64], sizes = [9, 64], strides = [1, 1]} : vector<9x128xf32> to vector<9x64xf32>
    %4 = vector.extract_strided_slice %2 {offsets = [0, 0], sizes = [8, 64], strides = [1, 1]} : vector<9x64xf32> to vector<8x64xf32>
    %5 = vector.extract_strided_slice %3 {offsets = [0, 0], sizes = [8, 64], strides = [1, 1]} : vector<9x64xf32> to vector<8x64xf32>
    %6 = vector.extract_strided_slice %2 {offsets = [1, 0], sizes = [8, 64], strides = [1, 1]} : vector<9x64xf32> to vector<8x64xf32>
    %c0_2 = arith.constant 0 : index
    %c0_3 = arith.constant 0 : index
    %c0_4 = arith.constant 0 : index
    %7 = vector.load %arg2[%c0_2, %c0_3, %c0_4] : memref<3x64x64xf32, #tpu.memory_space<vmem>>, vector<1x64x64xf32>
    %8 = vector.shape_cast %7 : vector<1x64x64xf32> to vector<64x64xf32>
    %cst = arith.constant dense<0.000000e+00> : vector<8x64xf32>
    %9 = tpu.matmul %4, %8, %cst {dimension_numbers = #tpu.dot_dimension_numbers<[1], [0], [0], [1], [0, 0, 1, 1], [], []>} : vector<8x64xf32>, vector<64x64xf32>, vector<8x64xf32> -> vector<8x64xf32>
    %c1 = arith.constant 1 : index
    %c0_5 = arith.constant 0 : index
    %c0_6 = arith.constant 0 : index
    %10 = vector.load %arg2[%c1, %c0_5, %c0_6] : memref<3x64x64xf32, #tpu.memory_space<vmem>>, vector<1x64x64xf32>
    %11 = vector.shape_cast %10 : vector<1x64x64xf32> to vector<64x64xf32>
    %cst_7 = arith.constant dense<0.000000e+00> : vector<8x64xf32>
    %12 = tpu.matmul %5, %11, %cst_7 {dimension_numbers = #tpu.dot_dimension_numbers<[1], [0], [0], [1], [0, 0, 1, 1], [], []>} : vector<8x64xf32>, vector<64x64xf32>, vector<8x64xf32> -> vector<8x64xf32>
    %13 = arith.addf %9, %12 : vector<8x64xf32>
    %c2 = arith.constant 2 : index
    %c0_8 = arith.constant 0 : index
    %c0_9 = arith.constant 0 : index
    %14 = vector.load %arg2[%c2, %c0_8, %c0_9] : memref<3x64x64xf32, #tpu.memory_space<vmem>>, vector<1x64x64xf32>
    %15 = vector.shape_cast %14 : vector<1x64x64xf32> to vector<64x64xf32>
    %cst_10 = arith.constant dense<0.000000e+00> : vector<8x64xf32>
    %16 = tpu.matmul %6, %15, %cst_10 {dimension_numbers = #tpu.dot_dimension_numbers<[1], [0], [0], [1], [0, 0, 1, 1], [], []>} : vector<8x64xf32>, vector<64x64xf32>, vector<8x64xf32> -> vector<8x64xf32>
    %17 = arith.addf %13, %16 : vector<8x64xf32>
    %c0_11 = arith.constant 0 : index
    %c0_12 = arith.constant 0 : index
    %18 = vector.load %arg3[%c0_11, %c0_12] : memref<1x64xf32, #tpu.memory_space<vmem>>, vector<1x64xf32>
    %19 = vector.broadcast %18 : vector<1x64xf32> to vector<8x64xf32>
    %20 = arith.addf %17, %19 : vector<8x64xf32>
    %cst_13 = arith.constant 0.000000e+00 : f32
    %21 = vector.broadcast %cst_13 : f32 to vector<8x64xf32>
    %22 = arith.maximumf %20, %21 : vector<8x64xf32>
    %c0_14 = arith.constant 0 : index
    %c0_15 = arith.constant 0 : index
    %23 = vector.load %arg4[%c0_14, %c0_15] : memref<64x64xf32, #tpu.memory_space<vmem>>, vector<64x64xf32>
    %cst_16 = arith.constant dense<0.000000e+00> : vector<8x64xf32>
    %24 = tpu.matmul %5, %23, %cst_16 {dimension_numbers = #tpu.dot_dimension_numbers<[1], [0], [0], [1], [0, 0, 1, 1], [], []>} : vector<8x64xf32>, vector<64x64xf32>, vector<8x64xf32> -> vector<8x64xf32>
    %c0_17 = arith.constant 0 : index
    %c0_18 = arith.constant 0 : index
    %25 = vector.load %arg5[%c0_17, %c0_18] : memref<1x64xf32, #tpu.memory_space<vmem>>, vector<1x64xf32>
    %26 = vector.broadcast %25 : vector<1x64xf32> to vector<8x64xf32>
    %27 = arith.addf %24, %26 : vector<8x64xf32>
    %28 = tpu.iota {dimensions = array<i32: 0>} : vector<8x64xi32>
    %c1_i32 = arith.constant 1 : i32
    %29 = vector.broadcast %c1_i32 : i32 to vector<8x64xi32>
    %30 = arith.cmpi sge, %28, %29 : vector<8x64xi32>
    %c1_i32_19 = arith.constant 1 : i32
    %31 = tpu.dynamic_rotate %22 by %c1_i32_19 dim 0 : vector<8x64xf32>, i32 -> vector<8x64xf32>
    %cst_20 = arith.constant 0.000000e+00 : f32
    %32 = vector.broadcast %cst_20 : f32 to vector<8x64xf32>
    %33 = arith.select %30, %31, %32 : vector<8x64xi1>, vector<8x64xf32>
    %c6_i32 = arith.constant 6 : i32
    %34 = vector.broadcast %c6_i32 : i32 to vector<8x64xi32>
    %35 = arith.cmpi sle, %28, %34 : vector<8x64xi32>
    %c7_i32 = arith.constant 7 : i32
    %36 = tpu.dynamic_rotate %22 by %c7_i32 dim 0 : vector<8x64xf32>, i32 -> vector<8x64xf32>
    %cst_21 = arith.constant 0.000000e+00 : f32
    %37 = vector.broadcast %cst_21 : f32 to vector<8x64xf32>
    %38 = arith.select %35, %36, %37 : vector<8x64xi1>, vector<8x64xf32>
    %c0_22 = arith.constant 0 : index
    %c0_23 = arith.constant 0 : index
    %c0_24 = arith.constant 0 : index
    %39 = vector.load %arg6[%c0_22, %c0_23, %c0_24] : memref<3x64x64xf32, #tpu.memory_space<vmem>>, vector<1x64x64xf32>
    %40 = vector.shape_cast %39 : vector<1x64x64xf32> to vector<64x64xf32>
    %cst_25 = arith.constant dense<0.000000e+00> : vector<8x64xf32>
    %41 = tpu.matmul %33, %40, %cst_25 {dimension_numbers = #tpu.dot_dimension_numbers<[1], [0], [0], [1], [0, 0, 1, 1], [], []>} : vector<8x64xf32>, vector<64x64xf32>, vector<8x64xf32> -> vector<8x64xf32>
    %c1_26 = arith.constant 1 : index
    %c0_27 = arith.constant 0 : index
    %c0_28 = arith.constant 0 : index
    %42 = vector.load %arg6[%c1_26, %c0_27, %c0_28] : memref<3x64x64xf32, #tpu.memory_space<vmem>>, vector<1x64x64xf32>
    %43 = vector.shape_cast %42 : vector<1x64x64xf32> to vector<64x64xf32>
    %cst_29 = arith.constant dense<0.000000e+00> : vector<8x64xf32>
    %44 = tpu.matmul %22, %43, %cst_29 {dimension_numbers = #tpu.dot_dimension_numbers<[1], [0], [0], [1], [0, 0, 1, 1], [], []>} : vector<8x64xf32>, vector<64x64xf32>, vector<8x64xf32> -> vector<8x64xf32>
    %45 = arith.addf %41, %44 : vector<8x64xf32>
    %c2_30 = arith.constant 2 : index
    %c0_31 = arith.constant 0 : index
    %c0_32 = arith.constant 0 : index
    %46 = vector.load %arg6[%c2_30, %c0_31, %c0_32] : memref<3x64x64xf32, #tpu.memory_space<vmem>>, vector<1x64x64xf32>
    %47 = vector.shape_cast %46 : vector<1x64x64xf32> to vector<64x64xf32>
    %cst_33 = arith.constant dense<0.000000e+00> : vector<8x64xf32>
    %48 = tpu.matmul %38, %47, %cst_33 {dimension_numbers = #tpu.dot_dimension_numbers<[1], [0], [0], [1], [0, 0, 1, 1], [], []>} : vector<8x64xf32>, vector<64x64xf32>, vector<8x64xf32> -> vector<8x64xf32>
    %49 = arith.addf %45, %48 : vector<8x64xf32>
    %c0_34 = arith.constant 0 : index
    %c0_35 = arith.constant 0 : index
    %50 = vector.load %arg7[%c0_34, %c0_35] : memref<1x64xf32, #tpu.memory_space<vmem>>, vector<1x64xf32>
    %51 = vector.broadcast %50 : vector<1x64xf32> to vector<8x64xf32>
    %52 = arith.addf %49, %51 : vector<8x64xf32>
    %53 = arith.addf %52, %27 : vector<8x64xf32>
    %cst_36 = arith.constant 0.000000e+00 : f32
    %54 = vector.broadcast %cst_36 : f32 to vector<8x64xf32>
    %55 = arith.maximumf %53, %54 : vector<8x64xf32>
    %c0_37 = arith.constant 0 : index
    %c0_38 = arith.constant 0 : index
    %c0_39 = arith.constant 0 : index
    %56 = vector.load %arg8[%c0_37, %c0_38, %c0_39] : memref<1x8x64xf32, #tpu.memory_space<vmem>>, vector<1x8x64xf32>
    %57 = vector.shape_cast %56 : vector<1x8x64xf32> to vector<8x64xf32>
    %58 = vector.shape_cast %55 : vector<8x64xf32> to vector<1x8x64xf32>
    tpu.vector_store %arg8[%c0_37, %c0_38, %c0_39], %58 {strides = array<i32>} : memref<1x8x64xf32, #tpu.memory_space<vmem>>, vector<1x8x64xf32>,
    return
  }
  func.func @transform_0(%arg0: i32) -> (i32, i32, i32) {
    %c0_i32 = arith.constant 0 : i32
    %c0_i32_0 = arith.constant 0 : i32
    %c0_i32_1 = arith.constant 0 : i32
    return %arg0, %c0_i32, %c0_i32_0 : i32, i32, i32
  }
  func.func @transform_1(%arg0: i32) -> (i32, i32, i32) {
    %c0_i32 = arith.constant 0 : i32
    %c0_i32_0 = arith.constant 0 : i32
    %c0_i32_1 = arith.constant 0 : i32
    %c0_i32_2 = arith.constant 0 : i32
    return %c0_i32, %c0_i32_0, %c0_i32_1 : i32, i32, i32
  }
  func.func @transform_2(%arg0: i32) -> (i32, i32) {
    %c0_i32 = arith.constant 0 : i32
    %c0_i32_0 = arith.constant 0 : i32
    %c0_i32_1 = arith.constant 0 : i32
    return %c0_i32, %c0_i32_0 : i32, i32
  }
  func.func @transform_3(%arg0: i32) -> (i32, i32) {
    %c0_i32 = arith.constant 0 : i32
    %c0_i32_0 = arith.constant 0 : i32
    %c0_i32_1 = arith.constant 0 : i32
    return %c0_i32, %c0_i32_0 : i32, i32
  }
  func.func @transform_4(%arg0: i32) -> (i32, i32) {
    %c0_i32 = arith.constant 0 : i32
    %c0_i32_0 = arith.constant 0 : i32
    %c0_i32_1 = arith.constant 0 : i32
    return %c0_i32, %c0_i32_0 : i32, i32
  }
  func.func @transform_5(%arg0: i32) -> (i32, i32, i32) {
    %c0_i32 = arith.constant 0 : i32
    %c0_i32_0 = arith.constant 0 : i32
    %c0_i32_1 = arith.constant 0 : i32
    %c0_i32_2 = arith.constant 0 : i32
    return %c0_i32, %c0_i32_0, %c0_i32_1 : i32, i32, i32
  }
  func.func @transform_6(%arg0: i32) -> (i32, i32) {
    %c0_i32 = arith.constant 0 : i32
    %c0_i32_0 = arith.constant 0 : i32
    %c0_i32_1 = arith.constant 0 : i32
    return %c0_i32, %c0_i32_0 : i32, i32
  }
  func.func @transform_7(%arg0: i32) -> (i32, i32, i32) {
    %c0_i32 = arith.constant 0 : i32
    %c0_i32_0 = arith.constant 0 : i32
    %c0_i32_1 = arith.constant 0 : i32
    return %arg0, %c0_i32, %c0_i32_0 : i32, i32, i32
  }
}

module attributes {stable_mosaic.version = 11 : i64} {
  func.func @_linear_kernel(%arg0: memref<16x64xf32, #tpu.memory_space<vmem>>, %arg1: memref<64x64xf32, #tpu.memory_space<vmem>>, %arg2: memref<1x64xf32, #tpu.memory_space<vmem>>, %arg3: memref<16x64xf32, #tpu.memory_space<vmem>>) attributes {dimension_semantics = [], scalar_prefetch = 0 : i64, scratch_operands = 0 : i64, tpu.core_type = #tpu.core_type<tc>} {
    %c0 = arith.constant 0 : index
    %c0_0 = arith.constant 0 : index
    %0 = vector.load %arg0[%c0, %c0_0] : memref<16x64xf32, #tpu.memory_space<vmem>>, vector<16x64xf32>
    %c0_1 = arith.constant 0 : index
    %c0_2 = arith.constant 0 : index
    %1 = vector.load %arg1[%c0_1, %c0_2] : memref<64x64xf32, #tpu.memory_space<vmem>>, vector<64x64xf32>
    %cst = arith.constant dense<0.000000e+00> : vector<16x64xf32>
    %2 = tpu.matmul %0, %1, %cst {dimension_numbers = #tpu.dot_dimension_numbers<[1], [0], [0], [1], [0, 0, 1, 1], [], []>} : vector<16x64xf32>, vector<64x64xf32>, vector<16x64xf32> -> vector<16x64xf32>
    %c0_3 = arith.constant 0 : index
    %c0_4 = arith.constant 0 : index
    %3 = vector.load %arg2[%c0_3, %c0_4] : memref<1x64xf32, #tpu.memory_space<vmem>>, vector<1x64xf32>
    %4 = vector.broadcast %3 : vector<1x64xf32> to vector<16x64xf32>
    %5 = arith.addf %2, %4 : vector<16x64xf32>
    %c0_5 = arith.constant 0 : index
    %c0_6 = arith.constant 0 : index
    %6 = vector.load %arg3[%c0_5, %c0_6] : memref<16x64xf32, #tpu.memory_space<vmem>>, vector<16x64xf32>
    tpu.vector_store %arg3[%c0_5, %c0_6], %5 {strides = array<i32>} : memref<16x64xf32, #tpu.memory_space<vmem>>, vector<16x64xf32>,
    return
  }
}

module attributes {stable_mosaic.version = 11 : i64} {
  func.func @_linear_kernel(%arg0: memref<16x64xf32, #tpu.memory_space<vmem>>, %arg1: memref<64x24xf32, #tpu.memory_space<vmem>>, %arg2: memref<1x24xf32, #tpu.memory_space<vmem>>, %arg3: memref<16x24xf32, #tpu.memory_space<vmem>>) attributes {dimension_semantics = [], scalar_prefetch = 0 : i64, scratch_operands = 0 : i64, tpu.core_type = #tpu.core_type<tc>} {
    %c0 = arith.constant 0 : index
    %c0_0 = arith.constant 0 : index
    %0 = vector.load %arg0[%c0, %c0_0] : memref<16x64xf32, #tpu.memory_space<vmem>>, vector<16x64xf32>
    %c0_1 = arith.constant 0 : index
    %c0_2 = arith.constant 0 : index
    %1 = vector.load %arg1[%c0_1, %c0_2] : memref<64x24xf32, #tpu.memory_space<vmem>>, vector<64x24xf32>
    %cst = arith.constant dense<0.000000e+00> : vector<16x24xf32>
    %2 = tpu.matmul %0, %1, %cst {dimension_numbers = #tpu.dot_dimension_numbers<[1], [0], [0], [1], [0, 0, 1, 1], [], []>} : vector<16x64xf32>, vector<64x24xf32>, vector<16x24xf32> -> vector<16x24xf32>
    %c0_3 = arith.constant 0 : index
    %c0_4 = arith.constant 0 : index
    %3 = vector.load %arg2[%c0_3, %c0_4] : memref<1x24xf32, #tpu.memory_space<vmem>>, vector<1x24xf32>
    %4 = vector.broadcast %3 : vector<1x24xf32> to vector<16x24xf32>
    %5 = arith.addf %2, %4 : vector<16x24xf32>
    %c0_5 = arith.constant 0 : index
    %c0_6 = arith.constant 0 : index
    %6 = vector.load %arg3[%c0_5, %c0_6] : memref<16x24xf32, #tpu.memory_space<vmem>>, vector<16x24xf32>
    tpu.vector_store %arg3[%c0_5, %c0_6], %5 {strides = array<i32>} : memref<16x24xf32, #tpu.memory_space<vmem>>, vector<16x24xf32>,
    return
  }
}

module attributes {stable_mosaic.version = 11 : i64} {
  func.func @_transformer_layer_kernel(%arg0: memref<16x64xf32, #tpu.memory_space<vmem>>, %arg1: memref<64x192xf32, #tpu.memory_space<vmem>>, %arg2: memref<64x64xf32, #tpu.memory_space<vmem>>, %arg3: memref<8x8x128xf32, #tpu.memory_space<vmem>>, %arg4: memref<1x64xf32, #tpu.memory_space<vmem>>, %arg5: memref<1x64xf32, #tpu.memory_space<vmem>>, %arg6: memref<64x256xf32, #tpu.memory_space<vmem>>, %arg7: memref<1x256xf32, #tpu.memory_space<vmem>>, %arg8: memref<256x64xf32, #tpu.memory_space<vmem>>, %arg9: memref<1x64xf32, #tpu.memory_space<vmem>>, %arg10: memref<1x64xf32, #tpu.memory_space<vmem>>, %arg11: memref<1x64xf32, #tpu.memory_space<vmem>>, %arg12: memref<16x64xf32, #tpu.memory_space<vmem>>) attributes {dimension_semantics = [], scalar_prefetch = 0 : i64, scratch_operands = 0 : i64, tpu.core_type = #tpu.core_type<tc>} {
    %c0 = arith.constant 0 : index
    %c0_0 = arith.constant 0 : index
    %0 = vector.load %arg0[%c0, %c0_0] : memref<16x64xf32, #tpu.memory_space<vmem>>, vector<16x64xf32>
    %c0_1 = arith.constant 0 : index
    %c0_2 = arith.constant 0 : index
    %1 = vector.load %arg1[%c0_1, %c0_2] : memref<64x192xf32, #tpu.memory_space<vmem>>, vector<64x192xf32>
    %cst = arith.constant dense<0.000000e+00> : vector<16x192xf32>
    %2 = tpu.matmul %0, %1, %cst {dimension_numbers = #tpu.dot_dimension_numbers<[1], [0], [0], [1], [0, 0, 1, 1], [], []>} : vector<16x64xf32>, vector<64x192xf32>, vector<16x192xf32> -> vector<16x192xf32>
    %3 = vector.extract_strided_slice %2 {offsets = [0, 0], sizes = [8, 8], strides = [1, 1]} : vector<16x192xf32> to vector<8x8xf32>
    %4 = vector.extract_strided_slice %2 {offsets = [0, 64], sizes = [8, 8], strides = [1, 1]} : vector<16x192xf32> to vector<8x8xf32>
    %5 = vector.extract_strided_slice %2 {offsets = [0, 128], sizes = [8, 8], strides = [1, 1]} : vector<16x192xf32> to vector<8x8xf32>
    %cst_3 = arith.constant dense<0.000000e+00> : vector<8x8xf32>
    %6 = tpu.matmul %3, %4, %cst_3 {dimension_numbers = #tpu.dot_dimension_numbers<[1], [1], [0], [0], [0, 0, 1, 0], [], []>} : vector<8x8xf32>, vector<8x8xf32>, vector<8x8xf32> -> vector<8x8xf32>
    %cst_4 = arith.constant 0.353553385 : f32
    %7 = vector.broadcast %cst_4 : f32 to vector<8x8xf32>
    %8 = arith.mulf %6, %7 : vector<8x8xf32>
    %c0_5 = arith.constant 0 : index
    %c0_6 = arith.constant 0 : index
    %c0_7 = arith.constant 0 : index
    %9 = vector.load %arg3[%c0_5, %c0_6, %c0_7] : memref<8x8x128xf32, #tpu.memory_space<vmem>>, vector<1x8x128xf32>
    %10 = vector.shape_cast %9 : vector<1x8x128xf32> to vector<8x128xf32>
    %cst_8 = arith.constant dense<0.000000e+00> : vector<8x128xf32>
    %11 = tpu.matmul %3, %10, %cst_8 {dimension_numbers = #tpu.dot_dimension_numbers<[1], [0], [0], [1], [0, 0, 1, 1], [], []>} : vector<8x8xf32>, vector<8x128xf32>, vector<8x128xf32> -> vector<8x128xf32>
    %c121_i32 = arith.constant 121 : i32
    %12 = tpu.dynamic_rotate %11 by %c121_i32 dim 1 {stride = 1 : si32, stride_dimension = 0 : si32} : vector<8x128xf32>, i32 -> vector<8x128xf32>
    %13 = vector.extract_strided_slice %12 {offsets = [0, 0], sizes = [8, 8], strides = [1, 1]} : vector<8x128xf32> to vector<8x8xf32>
    %14 = arith.addf %8, %13 : vector<8x8xf32>
    %cst_9 = arith.constant dense<0xFF800000> : vector<8xf32>
    %15 = vector.multi_reduction <maximumf>, %14, %cst_9 [1] : vector<8x8xf32> to vector<8xf32>
    %16 = vector.shape_cast %15 : vector<8xf32> to vector<8x1xf32>
    %17 = vector.broadcast %16 : vector<8x1xf32> to vector<8x8xf32>
    %18 = arith.subf %14, %17 : vector<8x8xf32>
    %19 = math.exp %18 : vector<8x8xf32>
    %cst_10 = arith.constant dense<0.000000e+00> : vector<8xf32>
    %20 = vector.multi_reduction <add>, %19, %cst_10 [1] : vector<8x8xf32> to vector<8xf32>
    %21 = vector.shape_cast %20 : vector<8xf32> to vector<8x1xf32>
    %22 = tpu.reciprocal %21 {approx = true} : vector<8x1xf32> -> vector<8x1xf32>
    %23 = vector.broadcast %22 : vector<8x1xf32> to vector<8x8xf32>
    %24 = arith.mulf %19, %23 : vector<8x8xf32>
    %cst_11 = arith.constant dense<0.000000e+00> : vector<8x8xf32>
    %25 = tpu.matmul %24, %5, %cst_11 {dimension_numbers = #tpu.dot_dimension_numbers<[1], [0], [0], [1], [0, 0, 1, 1], [], []>} : vector<8x8xf32>, vector<8x8xf32>, vector<8x8xf32> -> vector<8x8xf32>
    %26 = vector.extract_strided_slice %2 {offsets = [0, 8], sizes = [8, 8], strides = [1, 1]} : vector<16x192xf32> to vector<8x8xf32>
    %27 = vector.extract_strided_slice %2 {offsets = [0, 72], sizes = [8, 8], strides = [1, 1]} : vector<16x192xf32> to vector<8x8xf32>
    %28 = vector.extract_strided_slice %2 {offsets = [0, 136], sizes = [8, 8], strides = [1, 1]} : vector<16x192xf32> to vector<8x8xf32>
    %cst_12 = arith.constant dense<0.000000e+00> : vector<8x8xf32>
    %29 = tpu.matmul %26, %27, %cst_12 {dimension_numbers = #tpu.dot_dimension_numbers<[1], [1], [0], [0], [0, 0, 1, 0], [], []>} : vector<8x8xf32>, vector<8x8xf32>, vector<8x8xf32> -> vector<8x8xf32>
    %cst_13 = arith.constant 0.353553385 : f32
    %30 = vector.broadcast %cst_13 : f32 to vector<8x8xf32>
    %31 = arith.mulf %29, %30 : vector<8x8xf32>
    %c1 = arith.constant 1 : index
    %c0_14 = arith.constant 0 : index
    %c0_15 = arith.constant 0 : index
    %32 = vector.load %arg3[%c1, %c0_14, %c0_15] : memref<8x8x128xf32, #tpu.memory_space<vmem>>, vector<1x8x128xf32>
    %33 = vector.shape_cast %32 : vector<1x8x128xf32> to vector<8x128xf32>
    %cst_16 = arith.constant dense<0.000000e+00> : vector<8x128xf32>
    %34 = tpu.matmul %26, %33, %cst_16 {dimension_numbers = #tpu.dot_dimension_numbers<[1], [0], [0], [1], [0, 0, 1, 1], [], []>} : vector<8x8xf32>, vector<8x128xf32>, vector<8x128xf32> -> vector<8x128xf32>
    %c121_i32_17 = arith.constant 121 : i32
    %35 = tpu.dynamic_rotate %34 by %c121_i32_17 dim 1 {stride = 1 : si32, stride_dimension = 0 : si32} : vector<8x128xf32>, i32 -> vector<8x128xf32>
    %36 = vector.extract_strided_slice %35 {offsets = [0, 0], sizes = [8, 8], strides = [1, 1]} : vector<8x128xf32> to vector<8x8xf32>
    %37 = arith.addf %31, %36 : vector<8x8xf32>
    %cst_18 = arith.constant dense<0xFF800000> : vector<8xf32>
    %38 = vector.multi_reduction <maximumf>, %37, %cst_18 [1] : vector<8x8xf32> to vector<8xf32>
    %39 = vector.shape_cast %38 : vector<8xf32> to vector<8x1xf32>
    %40 = vector.broadcast %39 : vector<8x1xf32> to vector<8x8xf32>
    %41 = arith.subf %37, %40 : vector<8x8xf32>
    %42 = math.exp %41 : vector<8x8xf32>
    %cst_19 = arith.constant dense<0.000000e+00> : vector<8xf32>
    %43 = vector.multi_reduction <add>, %42, %cst_19 [1] : vector<8x8xf32> to vector<8xf32>
    %44 = vector.shape_cast %43 : vector<8xf32> to vector<8x1xf32>
    %45 = tpu.reciprocal %44 {approx = true} : vector<8x1xf32> -> vector<8x1xf32>
    %46 = vector.broadcast %45 : vector<8x1xf32> to vector<8x8xf32>
    %47 = arith.mulf %42, %46 : vector<8x8xf32>
    %cst_20 = arith.constant dense<0.000000e+00> : vector<8x8xf32>
    %48 = tpu.matmul %47, %28, %cst_20 {dimension_numbers = #tpu.dot_dimension_numbers<[1], [0], [0], [1], [0, 0, 1, 1], [], []>} : vector<8x8xf32>, vector<8x8xf32>, vector<8x8xf32> -> vector<8x8xf32>
    %49 = vector.extract_strided_slice %2 {offsets = [0, 16], sizes = [8, 8], strides = [1, 1]} : vector<16x192xf32> to vector<8x8xf32>
    %50 = vector.extract_strided_slice %2 {offsets = [0, 80], sizes = [8, 8], strides = [1, 1]} : vector<16x192xf32> to vector<8x8xf32>
    %51 = vector.extract_strided_slice %2 {offsets = [0, 144], sizes = [8, 8], strides = [1, 1]} : vector<16x192xf32> to vector<8x8xf32>
    %cst_21 = arith.constant dense<0.000000e+00> : vector<8x8xf32>
    %52 = tpu.matmul %49, %50, %cst_21 {dimension_numbers = #tpu.dot_dimension_numbers<[1], [1], [0], [0], [0, 0, 1, 0], [], []>} : vector<8x8xf32>, vector<8x8xf32>, vector<8x8xf32> -> vector<8x8xf32>
    %cst_22 = arith.constant 0.353553385 : f32
    %53 = vector.broadcast %cst_22 : f32 to vector<8x8xf32>
    %54 = arith.mulf %52, %53 : vector<8x8xf32>
    %c2 = arith.constant 2 : index
    %c0_23 = arith.constant 0 : index
    %c0_24 = arith.constant 0 : index
    %55 = vector.load %arg3[%c2, %c0_23, %c0_24] : memref<8x8x128xf32, #tpu.memory_space<vmem>>, vector<1x8x128xf32>
    %56 = vector.shape_cast %55 : vector<1x8x128xf32> to vector<8x128xf32>
    %cst_25 = arith.constant dense<0.000000e+00> : vector<8x128xf32>
    %57 = tpu.matmul %49, %56, %cst_25 {dimension_numbers = #tpu.dot_dimension_numbers<[1], [0], [0], [1], [0, 0, 1, 1], [], []>} : vector<8x8xf32>, vector<8x128xf32>, vector<8x128xf32> -> vector<8x128xf32>
    %c121_i32_26 = arith.constant 121 : i32
    %58 = tpu.dynamic_rotate %57 by %c121_i32_26 dim 1 {stride = 1 : si32, stride_dimension = 0 : si32} : vector<8x128xf32>, i32 -> vector<8x128xf32>
    %59 = vector.extract_strided_slice %58 {offsets = [0, 0], sizes = [8, 8], strides = [1, 1]} : vector<8x128xf32> to vector<8x8xf32>
    %60 = arith.addf %54, %59 : vector<8x8xf32>
    %cst_27 = arith.constant dense<0xFF800000> : vector<8xf32>
    %61 = vector.multi_reduction <maximumf>, %60, %cst_27 [1] : vector<8x8xf32> to vector<8xf32>
    %62 = vector.shape_cast %61 : vector<8xf32> to vector<8x1xf32>
    %63 = vector.broadcast %62 : vector<8x1xf32> to vector<8x8xf32>
    %64 = arith.subf %60, %63 : vector<8x8xf32>
    %65 = math.exp %64 : vector<8x8xf32>
    %cst_28 = arith.constant dense<0.000000e+00> : vector<8xf32>
    %66 = vector.multi_reduction <add>, %65, %cst_28 [1] : vector<8x8xf32> to vector<8xf32>
    %67 = vector.shape_cast %66 : vector<8xf32> to vector<8x1xf32>
    %68 = tpu.reciprocal %67 {approx = true} : vector<8x1xf32> -> vector<8x1xf32>
    %69 = vector.broadcast %68 : vector<8x1xf32> to vector<8x8xf32>
    %70 = arith.mulf %65, %69 : vector<8x8xf32>
    %cst_29 = arith.constant dense<0.000000e+00> : vector<8x8xf32>
    %71 = tpu.matmul %70, %51, %cst_29 {dimension_numbers = #tpu.dot_dimension_numbers<[1], [0], [0], [1], [0, 0, 1, 1], [], []>} : vector<8x8xf32>, vector<8x8xf32>, vector<8x8xf32> -> vector<8x8xf32>
    %72 = vector.extract_strided_slice %2 {offsets = [0, 24], sizes = [8, 8], strides = [1, 1]} : vector<16x192xf32> to vector<8x8xf32>
    %73 = vector.extract_strided_slice %2 {offsets = [0, 88], sizes = [8, 8], strides = [1, 1]} : vector<16x192xf32> to vector<8x8xf32>
    %74 = vector.extract_strided_slice %2 {offsets = [0, 152], sizes = [8, 8], strides = [1, 1]} : vector<16x192xf32> to vector<8x8xf32>
    %cst_30 = arith.constant dense<0.000000e+00> : vector<8x8xf32>
    %75 = tpu.matmul %72, %73, %cst_30 {dimension_numbers = #tpu.dot_dimension_numbers<[1], [1], [0], [0], [0, 0, 1, 0], [], []>} : vector<8x8xf32>, vector<8x8xf32>, vector<8x8xf32> -> vector<8x8xf32>
    %cst_31 = arith.constant 0.353553385 : f32
    %76 = vector.broadcast %cst_31 : f32 to vector<8x8xf32>
    %77 = arith.mulf %75, %76 : vector<8x8xf32>
    %c3 = arith.constant 3 : index
    %c0_32 = arith.constant 0 : index
    %c0_33 = arith.constant 0 : index
    %78 = vector.load %arg3[%c3, %c0_32, %c0_33] : memref<8x8x128xf32, #tpu.memory_space<vmem>>, vector<1x8x128xf32>
    %79 = vector.shape_cast %78 : vector<1x8x128xf32> to vector<8x128xf32>
    %cst_34 = arith.constant dense<0.000000e+00> : vector<8x128xf32>
    %80 = tpu.matmul %72, %79, %cst_34 {dimension_numbers = #tpu.dot_dimension_numbers<[1], [0], [0], [1], [0, 0, 1, 1], [], []>} : vector<8x8xf32>, vector<8x128xf32>, vector<8x128xf32> -> vector<8x128xf32>
    %c121_i32_35 = arith.constant 121 : i32
    %81 = tpu.dynamic_rotate %80 by %c121_i32_35 dim 1 {stride = 1 : si32, stride_dimension = 0 : si32} : vector<8x128xf32>, i32 -> vector<8x128xf32>
    %82 = vector.extract_strided_slice %81 {offsets = [0, 0], sizes = [8, 8], strides = [1, 1]} : vector<8x128xf32> to vector<8x8xf32>
    %83 = arith.addf %77, %82 : vector<8x8xf32>
    %cst_36 = arith.constant dense<0xFF800000> : vector<8xf32>
    %84 = vector.multi_reduction <maximumf>, %83, %cst_36 [1] : vector<8x8xf32> to vector<8xf32>
    %85 = vector.shape_cast %84 : vector<8xf32> to vector<8x1xf32>
    %86 = vector.broadcast %85 : vector<8x1xf32> to vector<8x8xf32>
    %87 = arith.subf %83, %86 : vector<8x8xf32>
    %88 = math.exp %87 : vector<8x8xf32>
    %cst_37 = arith.constant dense<0.000000e+00> : vector<8xf32>
    %89 = vector.multi_reduction <add>, %88, %cst_37 [1] : vector<8x8xf32> to vector<8xf32>
    %90 = vector.shape_cast %89 : vector<8xf32> to vector<8x1xf32>
    %91 = tpu.reciprocal %90 {approx = true} : vector<8x1xf32> -> vector<8x1xf32>
    %92 = vector.broadcast %91 : vector<8x1xf32> to vector<8x8xf32>
    %93 = arith.mulf %88, %92 : vector<8x8xf32>
    %cst_38 = arith.constant dense<0.000000e+00> : vector<8x8xf32>
    %94 = tpu.matmul %93, %74, %cst_38 {dimension_numbers = #tpu.dot_dimension_numbers<[1], [0], [0], [1], [0, 0, 1, 1], [], []>} : vector<8x8xf32>, vector<8x8xf32>, vector<8x8xf32> -> vector<8x8xf32>
    %95 = vector.extract_strided_slice %2 {offsets = [0, 32], sizes = [8, 8], strides = [1, 1]} : vector<16x192xf32> to vector<8x8xf32>
    %96 = vector.extract_strided_slice %2 {offsets = [0, 96], sizes = [8, 8], strides = [1, 1]} : vector<16x192xf32> to vector<8x8xf32>
    %97 = vector.extract_strided_slice %2 {offsets = [0, 160], sizes = [8, 8], strides = [1, 1]} : vector<16x192xf32> to vector<8x8xf32>
    %cst_39 = arith.constant dense<0.000000e+00> : vector<8x8xf32>
    %98 = tpu.matmul %95, %96, %cst_39 {dimension_numbers = #tpu.dot_dimension_numbers<[1], [1], [0], [0], [0, 0, 1, 0], [], []>} : vector<8x8xf32>, vector<8x8xf32>, vector<8x8xf32> -> vector<8x8xf32>
    %cst_40 = arith.constant 0.353553385 : f32
    %99 = vector.broadcast %cst_40 : f32 to vector<8x8xf32>
    %100 = arith.mulf %98, %99 : vector<8x8xf32>
    %c4 = arith.constant 4 : index
    %c0_41 = arith.constant 0 : index
    %c0_42 = arith.constant 0 : index
    %101 = vector.load %arg3[%c4, %c0_41, %c0_42] : memref<8x8x128xf32, #tpu.memory_space<vmem>>, vector<1x8x128xf32>
    %102 = vector.shape_cast %101 : vector<1x8x128xf32> to vector<8x128xf32>
    %cst_43 = arith.constant dense<0.000000e+00> : vector<8x128xf32>
    %103 = tpu.matmul %95, %102, %cst_43 {dimension_numbers = #tpu.dot_dimension_numbers<[1], [0], [0], [1], [0, 0, 1, 1], [], []>} : vector<8x8xf32>, vector<8x128xf32>, vector<8x128xf32> -> vector<8x128xf32>
    %c121_i32_44 = arith.constant 121 : i32
    %104 = tpu.dynamic_rotate %103 by %c121_i32_44 dim 1 {stride = 1 : si32, stride_dimension = 0 : si32} : vector<8x128xf32>, i32 -> vector<8x128xf32>
    %105 = vector.extract_strided_slice %104 {offsets = [0, 0], sizes = [8, 8], strides = [1, 1]} : vector<8x128xf32> to vector<8x8xf32>
    %106 = arith.addf %100, %105 : vector<8x8xf32>
    %cst_45 = arith.constant dense<0xFF800000> : vector<8xf32>
    %107 = vector.multi_reduction <maximumf>, %106, %cst_45 [1] : vector<8x8xf32> to vector<8xf32>
    %108 = vector.shape_cast %107 : vector<8xf32> to vector<8x1xf32>
    %109 = vector.broadcast %108 : vector<8x1xf32> to vector<8x8xf32>
    %110 = arith.subf %106, %109 : vector<8x8xf32>
    %111 = math.exp %110 : vector<8x8xf32>
    %cst_46 = arith.constant dense<0.000000e+00> : vector<8xf32>
    %112 = vector.multi_reduction <add>, %111, %cst_46 [1] : vector<8x8xf32> to vector<8xf32>
    %113 = vector.shape_cast %112 : vector<8xf32> to vector<8x1xf32>
    %114 = tpu.reciprocal %113 {approx = true} : vector<8x1xf32> -> vector<8x1xf32>
    %115 = vector.broadcast %114 : vector<8x1xf32> to vector<8x8xf32>
    %116 = arith.mulf %111, %115 : vector<8x8xf32>
    %cst_47 = arith.constant dense<0.000000e+00> : vector<8x8xf32>
    %117 = tpu.matmul %116, %97, %cst_47 {dimension_numbers = #tpu.dot_dimension_numbers<[1], [0], [0], [1], [0, 0, 1, 1], [], []>} : vector<8x8xf32>, vector<8x8xf32>, vector<8x8xf32> -> vector<8x8xf32>
    %118 = vector.extract_strided_slice %2 {offsets = [0, 40], sizes = [8, 8], strides = [1, 1]} : vector<16x192xf32> to vector<8x8xf32>
    %119 = vector.extract_strided_slice %2 {offsets = [0, 104], sizes = [8, 8], strides = [1, 1]} : vector<16x192xf32> to vector<8x8xf32>
    %120 = vector.extract_strided_slice %2 {offsets = [0, 168], sizes = [8, 8], strides = [1, 1]} : vector<16x192xf32> to vector<8x8xf32>
    %cst_48 = arith.constant dense<0.000000e+00> : vector<8x8xf32>
    %121 = tpu.matmul %118, %119, %cst_48 {dimension_numbers = #tpu.dot_dimension_numbers<[1], [1], [0], [0], [0, 0, 1, 0], [], []>} : vector<8x8xf32>, vector<8x8xf32>, vector<8x8xf32> -> vector<8x8xf32>
    %cst_49 = arith.constant 0.353553385 : f32
    %122 = vector.broadcast %cst_49 : f32 to vector<8x8xf32>
    %123 = arith.mulf %121, %122 : vector<8x8xf32>
    %c5 = arith.constant 5 : index
    %c0_50 = arith.constant 0 : index
    %c0_51 = arith.constant 0 : index
    %124 = vector.load %arg3[%c5, %c0_50, %c0_51] : memref<8x8x128xf32, #tpu.memory_space<vmem>>, vector<1x8x128xf32>
    %125 = vector.shape_cast %124 : vector<1x8x128xf32> to vector<8x128xf32>
    %cst_52 = arith.constant dense<0.000000e+00> : vector<8x128xf32>
    %126 = tpu.matmul %118, %125, %cst_52 {dimension_numbers = #tpu.dot_dimension_numbers<[1], [0], [0], [1], [0, 0, 1, 1], [], []>} : vector<8x8xf32>, vector<8x128xf32>, vector<8x128xf32> -> vector<8x128xf32>
    %c121_i32_53 = arith.constant 121 : i32
    %127 = tpu.dynamic_rotate %126 by %c121_i32_53 dim 1 {stride = 1 : si32, stride_dimension = 0 : si32} : vector<8x128xf32>, i32 -> vector<8x128xf32>
    %128 = vector.extract_strided_slice %127 {offsets = [0, 0], sizes = [8, 8], strides = [1, 1]} : vector<8x128xf32> to vector<8x8xf32>
    %129 = arith.addf %123, %128 : vector<8x8xf32>
    %cst_54 = arith.constant dense<0xFF800000> : vector<8xf32>
    %130 = vector.multi_reduction <maximumf>, %129, %cst_54 [1] : vector<8x8xf32> to vector<8xf32>
    %131 = vector.shape_cast %130 : vector<8xf32> to vector<8x1xf32>
    %132 = vector.broadcast %131 : vector<8x1xf32> to vector<8x8xf32>
    %133 = arith.subf %129, %132 : vector<8x8xf32>
    %134 = math.exp %133 : vector<8x8xf32>
    %cst_55 = arith.constant dense<0.000000e+00> : vector<8xf32>
    %135 = vector.multi_reduction <add>, %134, %cst_55 [1] : vector<8x8xf32> to vector<8xf32>
    %136 = vector.shape_cast %135 : vector<8xf32> to vector<8x1xf32>
    %137 = tpu.reciprocal %136 {approx = true} : vector<8x1xf32> -> vector<8x1xf32>
    %138 = vector.broadcast %137 : vector<8x1xf32> to vector<8x8xf32>
    %139 = arith.mulf %134, %138 : vector<8x8xf32>
    %cst_56 = arith.constant dense<0.000000e+00> : vector<8x8xf32>
    %140 = tpu.matmul %139, %120, %cst_56 {dimension_numbers = #tpu.dot_dimension_numbers<[1], [0], [0], [1], [0, 0, 1, 1], [], []>} : vector<8x8xf32>, vector<8x8xf32>, vector<8x8xf32> -> vector<8x8xf32>
    %141 = vector.extract_strided_slice %2 {offsets = [0, 48], sizes = [8, 8], strides = [1, 1]} : vector<16x192xf32> to vector<8x8xf32>
    %142 = vector.extract_strided_slice %2 {offsets = [0, 112], sizes = [8, 8], strides = [1, 1]} : vector<16x192xf32> to vector<8x8xf32>
    %143 = vector.extract_strided_slice %2 {offsets = [0, 176], sizes = [8, 8], strides = [1, 1]} : vector<16x192xf32> to vector<8x8xf32>
    %cst_57 = arith.constant dense<0.000000e+00> : vector<8x8xf32>
    %144 = tpu.matmul %141, %142, %cst_57 {dimension_numbers = #tpu.dot_dimension_numbers<[1], [1], [0], [0], [0, 0, 1, 0], [], []>} : vector<8x8xf32>, vector<8x8xf32>, vector<8x8xf32> -> vector<8x8xf32>
    %cst_58 = arith.constant 0.353553385 : f32
    %145 = vector.broadcast %cst_58 : f32 to vector<8x8xf32>
    %146 = arith.mulf %144, %145 : vector<8x8xf32>
    %c6 = arith.constant 6 : index
    %c0_59 = arith.constant 0 : index
    %c0_60 = arith.constant 0 : index
    %147 = vector.load %arg3[%c6, %c0_59, %c0_60] : memref<8x8x128xf32, #tpu.memory_space<vmem>>, vector<1x8x128xf32>
    %148 = vector.shape_cast %147 : vector<1x8x128xf32> to vector<8x128xf32>
    %cst_61 = arith.constant dense<0.000000e+00> : vector<8x128xf32>
    %149 = tpu.matmul %141, %148, %cst_61 {dimension_numbers = #tpu.dot_dimension_numbers<[1], [0], [0], [1], [0, 0, 1, 1], [], []>} : vector<8x8xf32>, vector<8x128xf32>, vector<8x128xf32> -> vector<8x128xf32>
    %c121_i32_62 = arith.constant 121 : i32
    %150 = tpu.dynamic_rotate %149 by %c121_i32_62 dim 1 {stride = 1 : si32, stride_dimension = 0 : si32} : vector<8x128xf32>, i32 -> vector<8x128xf32>
    %151 = vector.extract_strided_slice %150 {offsets = [0, 0], sizes = [8, 8], strides = [1, 1]} : vector<8x128xf32> to vector<8x8xf32>
    %152 = arith.addf %146, %151 : vector<8x8xf32>
    %cst_63 = arith.constant dense<0xFF800000> : vector<8xf32>
    %153 = vector.multi_reduction <maximumf>, %152, %cst_63 [1] : vector<8x8xf32> to vector<8xf32>
    %154 = vector.shape_cast %153 : vector<8xf32> to vector<8x1xf32>
    %155 = vector.broadcast %154 : vector<8x1xf32> to vector<8x8xf32>
    %156 = arith.subf %152, %155 : vector<8x8xf32>
    %157 = math.exp %156 : vector<8x8xf32>
    %cst_64 = arith.constant dense<0.000000e+00> : vector<8xf32>
    %158 = vector.multi_reduction <add>, %157, %cst_64 [1] : vector<8x8xf32> to vector<8xf32>
    %159 = vector.shape_cast %158 : vector<8xf32> to vector<8x1xf32>
    %160 = tpu.reciprocal %159 {approx = true} : vector<8x1xf32> -> vector<8x1xf32>
    %161 = vector.broadcast %160 : vector<8x1xf32> to vector<8x8xf32>
    %162 = arith.mulf %157, %161 : vector<8x8xf32>
    %cst_65 = arith.constant dense<0.000000e+00> : vector<8x8xf32>
    %163 = tpu.matmul %162, %143, %cst_65 {dimension_numbers = #tpu.dot_dimension_numbers<[1], [0], [0], [1], [0, 0, 1, 1], [], []>} : vector<8x8xf32>, vector<8x8xf32>, vector<8x8xf32> -> vector<8x8xf32>
    %164 = vector.extract_strided_slice %2 {offsets = [0, 56], sizes = [8, 8], strides = [1, 1]} : vector<16x192xf32> to vector<8x8xf32>
    %165 = vector.extract_strided_slice %2 {offsets = [0, 120], sizes = [8, 8], strides = [1, 1]} : vector<16x192xf32> to vector<8x8xf32>
    %166 = vector.extract_strided_slice %2 {offsets = [0, 184], sizes = [8, 8], strides = [1, 1]} : vector<16x192xf32> to vector<8x8xf32>
    %cst_66 = arith.constant dense<0.000000e+00> : vector<8x8xf32>
    %167 = tpu.matmul %164, %165, %cst_66 {dimension_numbers = #tpu.dot_dimension_numbers<[1], [1], [0], [0], [0, 0, 1, 0], [], []>} : vector<8x8xf32>, vector<8x8xf32>, vector<8x8xf32> -> vector<8x8xf32>
    %cst_67 = arith.constant 0.353553385 : f32
    %168 = vector.broadcast %cst_67 : f32 to vector<8x8xf32>
    %169 = arith.mulf %167, %168 : vector<8x8xf32>
    %c7 = arith.constant 7 : index
    %c0_68 = arith.constant 0 : index
    %c0_69 = arith.constant 0 : index
    %170 = vector.load %arg3[%c7, %c0_68, %c0_69] : memref<8x8x128xf32, #tpu.memory_space<vmem>>, vector<1x8x128xf32>
    %171 = vector.shape_cast %170 : vector<1x8x128xf32> to vector<8x128xf32>
    %cst_70 = arith.constant dense<0.000000e+00> : vector<8x128xf32>
    %172 = tpu.matmul %164, %171, %cst_70 {dimension_numbers = #tpu.dot_dimension_numbers<[1], [0], [0], [1], [0, 0, 1, 1], [], []>} : vector<8x8xf32>, vector<8x128xf32>, vector<8x128xf32> -> vector<8x128xf32>
    %c121_i32_71 = arith.constant 121 : i32
    %173 = tpu.dynamic_rotate %172 by %c121_i32_71 dim 1 {stride = 1 : si32, stride_dimension = 0 : si32} : vector<8x128xf32>, i32 -> vector<8x128xf32>
    %174 = vector.extract_strided_slice %173 {offsets = [0, 0], sizes = [8, 8], strides = [1, 1]} : vector<8x128xf32> to vector<8x8xf32>
    %175 = arith.addf %169, %174 : vector<8x8xf32>
    %cst_72 = arith.constant dense<0xFF800000> : vector<8xf32>
    %176 = vector.multi_reduction <maximumf>, %175, %cst_72 [1] : vector<8x8xf32> to vector<8xf32>
    %177 = vector.shape_cast %176 : vector<8xf32> to vector<8x1xf32>
    %178 = vector.broadcast %177 : vector<8x1xf32> to vector<8x8xf32>
    %179 = arith.subf %175, %178 : vector<8x8xf32>
    %180 = math.exp %179 : vector<8x8xf32>
    %cst_73 = arith.constant dense<0.000000e+00> : vector<8xf32>
    %181 = vector.multi_reduction <add>, %180, %cst_73 [1] : vector<8x8xf32> to vector<8xf32>
    %182 = vector.shape_cast %181 : vector<8xf32> to vector<8x1xf32>
    %183 = tpu.reciprocal %182 {approx = true} : vector<8x1xf32> -> vector<8x1xf32>
    %184 = vector.broadcast %183 : vector<8x1xf32> to vector<8x8xf32>
    %185 = arith.mulf %180, %184 : vector<8x8xf32>
    %cst_74 = arith.constant dense<0.000000e+00> : vector<8x8xf32>
    %186 = tpu.matmul %185, %166, %cst_74 {dimension_numbers = #tpu.dot_dimension_numbers<[1], [0], [0], [1], [0, 0, 1, 1], [], []>} : vector<8x8xf32>, vector<8x8xf32>, vector<8x8xf32> -> vector<8x8xf32>
    %187 = tpu.concatenate %25, %48, %71, %94, %117, %140, %163, %186 in 1 : vector<8x8xf32>, vector<8x8xf32>, vector<8x8xf32>, vector<8x8xf32>, vector<8x8xf32>, vector<8x8xf32>, vector<8x8xf32>, vector<8x8xf32> -> vector<8x64xf32>
    %188 = vector.extract_strided_slice %2 {offsets = [8, 0], sizes = [8, 8], strides = [1, 1]} : vector<16x192xf32> to vector<8x8xf32>
    %189 = vector.extract_strided_slice %2 {offsets = [8, 64], sizes = [8, 8], strides = [1, 1]} : vector<16x192xf32> to vector<8x8xf32>
    %190 = vector.extract_strided_slice %2 {offsets = [8, 128], sizes = [8, 8], strides = [1, 1]} : vector<16x192xf32> to vector<8x8xf32>
    %cst_75 = arith.constant dense<0.000000e+00> : vector<8x8xf32>
    %191 = tpu.matmul %188, %189, %cst_75 {dimension_numbers = #tpu.dot_dimension_numbers<[1], [1], [0], [0], [0, 0, 1, 0], [], []>} : vector<8x8xf32>, vector<8x8xf32>, vector<8x8xf32> -> vector<8x8xf32>
    %cst_76 = arith.constant 0.353553385 : f32
    %192 = vector.broadcast %cst_76 : f32 to vector<8x8xf32>
    %193 = arith.mulf %191, %192 : vector<8x8xf32>
    %c0_77 = arith.constant 0 : index
    %c0_78 = arith.constant 0 : index
    %c0_79 = arith.constant 0 : index
    %194 = vector.load %arg3[%c0_77, %c0_78, %c0_79] : memref<8x8x128xf32, #tpu.memory_space<vmem>>, vector<1x8x128xf32>
    %195 = vector.shape_cast %194 : vector<1x8x128xf32> to vector<8x128xf32>
    %cst_80 = arith.constant dense<0.000000e+00> : vector<8x128xf32>
    %196 = tpu.matmul %188, %195, %cst_80 {dimension_numbers = #tpu.dot_dimension_numbers<[1], [0], [0], [1], [0, 0, 1, 1], [], []>} : vector<8x8xf32>, vector<8x128xf32>, vector<8x128xf32> -> vector<8x128xf32>
    %c121_i32_81 = arith.constant 121 : i32
    %197 = tpu.dynamic_rotate %196 by %c121_i32_81 dim 1 {stride = 1 : si32, stride_dimension = 0 : si32} : vector<8x128xf32>, i32 -> vector<8x128xf32>
    %198 = vector.extract_strided_slice %197 {offsets = [0, 0], sizes = [8, 8], strides = [1, 1]} : vector<8x128xf32> to vector<8x8xf32>
    %199 = arith.addf %193, %198 : vector<8x8xf32>
    %cst_82 = arith.constant dense<0xFF800000> : vector<8xf32>
    %200 = vector.multi_reduction <maximumf>, %199, %cst_82 [1] : vector<8x8xf32> to vector<8xf32>
    %201 = vector.shape_cast %200 : vector<8xf32> to vector<8x1xf32>
    %202 = vector.broadcast %201 : vector<8x1xf32> to vector<8x8xf32>
    %203 = arith.subf %199, %202 : vector<8x8xf32>
    %204 = math.exp %203 : vector<8x8xf32>
    %cst_83 = arith.constant dense<0.000000e+00> : vector<8xf32>
    %205 = vector.multi_reduction <add>, %204, %cst_83 [1] : vector<8x8xf32> to vector<8xf32>
    %206 = vector.shape_cast %205 : vector<8xf32> to vector<8x1xf32>
    %207 = tpu.reciprocal %206 {approx = true} : vector<8x1xf32> -> vector<8x1xf32>
    %208 = vector.broadcast %207 : vector<8x1xf32> to vector<8x8xf32>
    %209 = arith.mulf %204, %208 : vector<8x8xf32>
    %cst_84 = arith.constant dense<0.000000e+00> : vector<8x8xf32>
    %210 = tpu.matmul %209, %190, %cst_84 {dimension_numbers = #tpu.dot_dimension_numbers<[1], [0], [0], [1], [0, 0, 1, 1], [], []>} : vector<8x8xf32>, vector<8x8xf32>, vector<8x8xf32> -> vector<8x8xf32>
    %211 = vector.extract_strided_slice %2 {offsets = [8, 8], sizes = [8, 8], strides = [1, 1]} : vector<16x192xf32> to vector<8x8xf32>
    %212 = vector.extract_strided_slice %2 {offsets = [8, 72], sizes = [8, 8], strides = [1, 1]} : vector<16x192xf32> to vector<8x8xf32>
    %213 = vector.extract_strided_slice %2 {offsets = [8, 136], sizes = [8, 8], strides = [1, 1]} : vector<16x192xf32> to vector<8x8xf32>
    %cst_85 = arith.constant dense<0.000000e+00> : vector<8x8xf32>
    %214 = tpu.matmul %211, %212, %cst_85 {dimension_numbers = #tpu.dot_dimension_numbers<[1], [1], [0], [0], [0, 0, 1, 0], [], []>} : vector<8x8xf32>, vector<8x8xf32>, vector<8x8xf32> -> vector<8x8xf32>
    %cst_86 = arith.constant 0.353553385 : f32
    %215 = vector.broadcast %cst_86 : f32 to vector<8x8xf32>
    %216 = arith.mulf %214, %215 : vector<8x8xf32>
    %c1_87 = arith.constant 1 : index
    %c0_88 = arith.constant 0 : index
    %c0_89 = arith.constant 0 : index
    %217 = vector.load %arg3[%c1_87, %c0_88, %c0_89] : memref<8x8x128xf32, #tpu.memory_space<vmem>>, vector<1x8x128xf32>
    %218 = vector.shape_cast %217 : vector<1x8x128xf32> to vector<8x128xf32>
    %cst_90 = arith.constant dense<0.000000e+00> : vector<8x128xf32>
    %219 = tpu.matmul %211, %218, %cst_90 {dimension_numbers = #tpu.dot_dimension_numbers<[1], [0], [0], [1], [0, 0, 1, 1], [], []>} : vector<8x8xf32>, vector<8x128xf32>, vector<8x128xf32> -> vector<8x128xf32>
    %c121_i32_91 = arith.constant 121 : i32
    %220 = tpu.dynamic_rotate %219 by %c121_i32_91 dim 1 {stride = 1 : si32, stride_dimension = 0 : si32} : vector<8x128xf32>, i32 -> vector<8x128xf32>
    %221 = vector.extract_strided_slice %220 {offsets = [0, 0], sizes = [8, 8], strides = [1, 1]} : vector<8x128xf32> to vector<8x8xf32>
    %222 = arith.addf %216, %221 : vector<8x8xf32>
    %cst_92 = arith.constant dense<0xFF800000> : vector<8xf32>
    %223 = vector.multi_reduction <maximumf>, %222, %cst_92 [1] : vector<8x8xf32> to vector<8xf32>
    %224 = vector.shape_cast %223 : vector<8xf32> to vector<8x1xf32>
    %225 = vector.broadcast %224 : vector<8x1xf32> to vector<8x8xf32>
    %226 = arith.subf %222, %225 : vector<8x8xf32>
    %227 = math.exp %226 : vector<8x8xf32>
    %cst_93 = arith.constant dense<0.000000e+00> : vector<8xf32>
    %228 = vector.multi_reduction <add>, %227, %cst_93 [1] : vector<8x8xf32> to vector<8xf32>
    %229 = vector.shape_cast %228 : vector<8xf32> to vector<8x1xf32>
    %230 = tpu.reciprocal %229 {approx = true} : vector<8x1xf32> -> vector<8x1xf32>
    %231 = vector.broadcast %230 : vector<8x1xf32> to vector<8x8xf32>
    %232 = arith.mulf %227, %231 : vector<8x8xf32>
    %cst_94 = arith.constant dense<0.000000e+00> : vector<8x8xf32>
    %233 = tpu.matmul %232, %213, %cst_94 {dimension_numbers = #tpu.dot_dimension_numbers<[1], [0], [0], [1], [0, 0, 1, 1], [], []>} : vector<8x8xf32>, vector<8x8xf32>, vector<8x8xf32> -> vector<8x8xf32>
    %234 = vector.extract_strided_slice %2 {offsets = [8, 16], sizes = [8, 8], strides = [1, 1]} : vector<16x192xf32> to vector<8x8xf32>
    %235 = vector.extract_strided_slice %2 {offsets = [8, 80], sizes = [8, 8], strides = [1, 1]} : vector<16x192xf32> to vector<8x8xf32>
    %236 = vector.extract_strided_slice %2 {offsets = [8, 144], sizes = [8, 8], strides = [1, 1]} : vector<16x192xf32> to vector<8x8xf32>
    %cst_95 = arith.constant dense<0.000000e+00> : vector<8x8xf32>
    %237 = tpu.matmul %234, %235, %cst_95 {dimension_numbers = #tpu.dot_dimension_numbers<[1], [1], [0], [0], [0, 0, 1, 0], [], []>} : vector<8x8xf32>, vector<8x8xf32>, vector<8x8xf32> -> vector<8x8xf32>
    %cst_96 = arith.constant 0.353553385 : f32
    %238 = vector.broadcast %cst_96 : f32 to vector<8x8xf32>
    %239 = arith.mulf %237, %238 : vector<8x8xf32>
    %c2_97 = arith.constant 2 : index
    %c0_98 = arith.constant 0 : index
    %c0_99 = arith.constant 0 : index
    %240 = vector.load %arg3[%c2_97, %c0_98, %c0_99] : memref<8x8x128xf32, #tpu.memory_space<vmem>>, vector<1x8x128xf32>
    %241 = vector.shape_cast %240 : vector<1x8x128xf32> to vector<8x128xf32>
    %cst_100 = arith.constant dense<0.000000e+00> : vector<8x128xf32>
    %242 = tpu.matmul %234, %241, %cst_100 {dimension_numbers = #tpu.dot_dimension_numbers<[1], [0], [0], [1], [0, 0, 1, 1], [], []>} : vector<8x8xf32>, vector<8x128xf32>, vector<8x128xf32> -> vector<8x128xf32>
    %c121_i32_101 = arith.constant 121 : i32
    %243 = tpu.dynamic_rotate %242 by %c121_i32_101 dim 1 {stride = 1 : si32, stride_dimension = 0 : si32} : vector<8x128xf32>, i32 -> vector<8x128xf32>
    %244 = vector.extract_strided_slice %243 {offsets = [0, 0], sizes = [8, 8], strides = [1, 1]} : vector<8x128xf32> to vector<8x8xf32>
    %245 = arith.addf %239, %244 : vector<8x8xf32>
    %cst_102 = arith.constant dense<0xFF800000> : vector<8xf32>
    %246 = vector.multi_reduction <maximumf>, %245, %cst_102 [1] : vector<8x8xf32> to vector<8xf32>
    %247 = vector.shape_cast %246 : vector<8xf32> to vector<8x1xf32>
    %248 = vector.broadcast %247 : vector<8x1xf32> to vector<8x8xf32>
    %249 = arith.subf %245, %248 : vector<8x8xf32>
    %250 = math.exp %249 : vector<8x8xf32>
    %cst_103 = arith.constant dense<0.000000e+00> : vector<8xf32>
    %251 = vector.multi_reduction <add>, %250, %cst_103 [1] : vector<8x8xf32> to vector<8xf32>
    %252 = vector.shape_cast %251 : vector<8xf32> to vector<8x1xf32>
    %253 = tpu.reciprocal %252 {approx = true} : vector<8x1xf32> -> vector<8x1xf32>
    %254 = vector.broadcast %253 : vector<8x1xf32> to vector<8x8xf32>
    %255 = arith.mulf %250, %254 : vector<8x8xf32>
    %cst_104 = arith.constant dense<0.000000e+00> : vector<8x8xf32>
    %256 = tpu.matmul %255, %236, %cst_104 {dimension_numbers = #tpu.dot_dimension_numbers<[1], [0], [0], [1], [0, 0, 1, 1], [], []>} : vector<8x8xf32>, vector<8x8xf32>, vector<8x8xf32> -> vector<8x8xf32>
    %257 = vector.extract_strided_slice %2 {offsets = [8, 24], sizes = [8, 8], strides = [1, 1]} : vector<16x192xf32> to vector<8x8xf32>
    %258 = vector.extract_strided_slice %2 {offsets = [8, 88], sizes = [8, 8], strides = [1, 1]} : vector<16x192xf32> to vector<8x8xf32>
    %259 = vector.extract_strided_slice %2 {offsets = [8, 152], sizes = [8, 8], strides = [1, 1]} : vector<16x192xf32> to vector<8x8xf32>
    %cst_105 = arith.constant dense<0.000000e+00> : vector<8x8xf32>
    %260 = tpu.matmul %257, %258, %cst_105 {dimension_numbers = #tpu.dot_dimension_numbers<[1], [1], [0], [0], [0, 0, 1, 0], [], []>} : vector<8x8xf32>, vector<8x8xf32>, vector<8x8xf32> -> vector<8x8xf32>
    %cst_106 = arith.constant 0.353553385 : f32
    %261 = vector.broadcast %cst_106 : f32 to vector<8x8xf32>
    %262 = arith.mulf %260, %261 : vector<8x8xf32>
    %c3_107 = arith.constant 3 : index
    %c0_108 = arith.constant 0 : index
    %c0_109 = arith.constant 0 : index
    %263 = vector.load %arg3[%c3_107, %c0_108, %c0_109] : memref<8x8x128xf32, #tpu.memory_space<vmem>>, vector<1x8x128xf32>
    %264 = vector.shape_cast %263 : vector<1x8x128xf32> to vector<8x128xf32>
    %cst_110 = arith.constant dense<0.000000e+00> : vector<8x128xf32>
    %265 = tpu.matmul %257, %264, %cst_110 {dimension_numbers = #tpu.dot_dimension_numbers<[1], [0], [0], [1], [0, 0, 1, 1], [], []>} : vector<8x8xf32>, vector<8x128xf32>, vector<8x128xf32> -> vector<8x128xf32>
    %c121_i32_111 = arith.constant 121 : i32
    %266 = tpu.dynamic_rotate %265 by %c121_i32_111 dim 1 {stride = 1 : si32, stride_dimension = 0 : si32} : vector<8x128xf32>, i32 -> vector<8x128xf32>
    %267 = vector.extract_strided_slice %266 {offsets = [0, 0], sizes = [8, 8], strides = [1, 1]} : vector<8x128xf32> to vector<8x8xf32>
    %268 = arith.addf %262, %267 : vector<8x8xf32>
    %cst_112 = arith.constant dense<0xFF800000> : vector<8xf32>
    %269 = vector.multi_reduction <maximumf>, %268, %cst_112 [1] : vector<8x8xf32> to vector<8xf32>
    %270 = vector.shape_cast %269 : vector<8xf32> to vector<8x1xf32>
    %271 = vector.broadcast %270 : vector<8x1xf32> to vector<8x8xf32>
    %272 = arith.subf %268, %271 : vector<8x8xf32>
    %273 = math.exp %272 : vector<8x8xf32>
    %cst_113 = arith.constant dense<0.000000e+00> : vector<8xf32>
    %274 = vector.multi_reduction <add>, %273, %cst_113 [1] : vector<8x8xf32> to vector<8xf32>
    %275 = vector.shape_cast %274 : vector<8xf32> to vector<8x1xf32>
    %276 = tpu.reciprocal %275 {approx = true} : vector<8x1xf32> -> vector<8x1xf32>
    %277 = vector.broadcast %276 : vector<8x1xf32> to vector<8x8xf32>
    %278 = arith.mulf %273, %277 : vector<8x8xf32>
    %cst_114 = arith.constant dense<0.000000e+00> : vector<8x8xf32>
    %279 = tpu.matmul %278, %259, %cst_114 {dimension_numbers = #tpu.dot_dimension_numbers<[1], [0], [0], [1], [0, 0, 1, 1], [], []>} : vector<8x8xf32>, vector<8x8xf32>, vector<8x8xf32> -> vector<8x8xf32>
    %280 = vector.extract_strided_slice %2 {offsets = [8, 32], sizes = [8, 8], strides = [1, 1]} : vector<16x192xf32> to vector<8x8xf32>
    %281 = vector.extract_strided_slice %2 {offsets = [8, 96], sizes = [8, 8], strides = [1, 1]} : vector<16x192xf32> to vector<8x8xf32>
    %282 = vector.extract_strided_slice %2 {offsets = [8, 160], sizes = [8, 8], strides = [1, 1]} : vector<16x192xf32> to vector<8x8xf32>
    %cst_115 = arith.constant dense<0.000000e+00> : vector<8x8xf32>
    %283 = tpu.matmul %280, %281, %cst_115 {dimension_numbers = #tpu.dot_dimension_numbers<[1], [1], [0], [0], [0, 0, 1, 0], [], []>} : vector<8x8xf32>, vector<8x8xf32>, vector<8x8xf32> -> vector<8x8xf32>
    %cst_116 = arith.constant 0.353553385 : f32
    %284 = vector.broadcast %cst_116 : f32 to vector<8x8xf32>
    %285 = arith.mulf %283, %284 : vector<8x8xf32>
    %c4_117 = arith.constant 4 : index
    %c0_118 = arith.constant 0 : index
    %c0_119 = arith.constant 0 : index
    %286 = vector.load %arg3[%c4_117, %c0_118, %c0_119] : memref<8x8x128xf32, #tpu.memory_space<vmem>>, vector<1x8x128xf32>
    %287 = vector.shape_cast %286 : vector<1x8x128xf32> to vector<8x128xf32>
    %cst_120 = arith.constant dense<0.000000e+00> : vector<8x128xf32>
    %288 = tpu.matmul %280, %287, %cst_120 {dimension_numbers = #tpu.dot_dimension_numbers<[1], [0], [0], [1], [0, 0, 1, 1], [], []>} : vector<8x8xf32>, vector<8x128xf32>, vector<8x128xf32> -> vector<8x128xf32>
    %c121_i32_121 = arith.constant 121 : i32
    %289 = tpu.dynamic_rotate %288 by %c121_i32_121 dim 1 {stride = 1 : si32, stride_dimension = 0 : si32} : vector<8x128xf32>, i32 -> vector<8x128xf32>
    %290 = vector.extract_strided_slice %289 {offsets = [0, 0], sizes = [8, 8], strides = [1, 1]} : vector<8x128xf32> to vector<8x8xf32>
    %291 = arith.addf %285, %290 : vector<8x8xf32>
    %cst_122 = arith.constant dense<0xFF800000> : vector<8xf32>
    %292 = vector.multi_reduction <maximumf>, %291, %cst_122 [1] : vector<8x8xf32> to vector<8xf32>
    %293 = vector.shape_cast %292 : vector<8xf32> to vector<8x1xf32>
    %294 = vector.broadcast %293 : vector<8x1xf32> to vector<8x8xf32>
    %295 = arith.subf %291, %294 : vector<8x8xf32>
    %296 = math.exp %295 : vector<8x8xf32>
    %cst_123 = arith.constant dense<0.000000e+00> : vector<8xf32>
    %297 = vector.multi_reduction <add>, %296, %cst_123 [1] : vector<8x8xf32> to vector<8xf32>
    %298 = vector.shape_cast %297 : vector<8xf32> to vector<8x1xf32>
    %299 = tpu.reciprocal %298 {approx = true} : vector<8x1xf32> -> vector<8x1xf32>
    %300 = vector.broadcast %299 : vector<8x1xf32> to vector<8x8xf32>
    %301 = arith.mulf %296, %300 : vector<8x8xf32>
    %cst_124 = arith.constant dense<0.000000e+00> : vector<8x8xf32>
    %302 = tpu.matmul %301, %282, %cst_124 {dimension_numbers = #tpu.dot_dimension_numbers<[1], [0], [0], [1], [0, 0, 1, 1], [], []>} : vector<8x8xf32>, vector<8x8xf32>, vector<8x8xf32> -> vector<8x8xf32>
    %303 = vector.extract_strided_slice %2 {offsets = [8, 40], sizes = [8, 8], strides = [1, 1]} : vector<16x192xf32> to vector<8x8xf32>
    %304 = vector.extract_strided_slice %2 {offsets = [8, 104], sizes = [8, 8], strides = [1, 1]} : vector<16x192xf32> to vector<8x8xf32>
    %305 = vector.extract_strided_slice %2 {offsets = [8, 168], sizes = [8, 8], strides = [1, 1]} : vector<16x192xf32> to vector<8x8xf32>
    %cst_125 = arith.constant dense<0.000000e+00> : vector<8x8xf32>
    %306 = tpu.matmul %303, %304, %cst_125 {dimension_numbers = #tpu.dot_dimension_numbers<[1], [1], [0], [0], [0, 0, 1, 0], [], []>} : vector<8x8xf32>, vector<8x8xf32>, vector<8x8xf32> -> vector<8x8xf32>
    %cst_126 = arith.constant 0.353553385 : f32
    %307 = vector.broadcast %cst_126 : f32 to vector<8x8xf32>
    %308 = arith.mulf %306, %307 : vector<8x8xf32>
    %c5_127 = arith.constant 5 : index
    %c0_128 = arith.constant 0 : index
    %c0_129 = arith.constant 0 : index
    %309 = vector.load %arg3[%c5_127, %c0_128, %c0_129] : memref<8x8x128xf32, #tpu.memory_space<vmem>>, vector<1x8x128xf32>
    %310 = vector.shape_cast %309 : vector<1x8x128xf32> to vector<8x128xf32>
    %cst_130 = arith.constant dense<0.000000e+00> : vector<8x128xf32>
    %311 = tpu.matmul %303, %310, %cst_130 {dimension_numbers = #tpu.dot_dimension_numbers<[1], [0], [0], [1], [0, 0, 1, 1], [], []>} : vector<8x8xf32>, vector<8x128xf32>, vector<8x128xf32> -> vector<8x128xf32>
    %c121_i32_131 = arith.constant 121 : i32
    %312 = tpu.dynamic_rotate %311 by %c121_i32_131 dim 1 {stride = 1 : si32, stride_dimension = 0 : si32} : vector<8x128xf32>, i32 -> vector<8x128xf32>
    %313 = vector.extract_strided_slice %312 {offsets = [0, 0], sizes = [8, 8], strides = [1, 1]} : vector<8x128xf32> to vector<8x8xf32>
    %314 = arith.addf %308, %313 : vector<8x8xf32>
    %cst_132 = arith.constant dense<0xFF800000> : vector<8xf32>
    %315 = vector.multi_reduction <maximumf>, %314, %cst_132 [1] : vector<8x8xf32> to vector<8xf32>
    %316 = vector.shape_cast %315 : vector<8xf32> to vector<8x1xf32>
    %317 = vector.broadcast %316 : vector<8x1xf32> to vector<8x8xf32>
    %318 = arith.subf %314, %317 : vector<8x8xf32>
    %319 = math.exp %318 : vector<8x8xf32>
    %cst_133 = arith.constant dense<0.000000e+00> : vector<8xf32>
    %320 = vector.multi_reduction <add>, %319, %cst_133 [1] : vector<8x8xf32> to vector<8xf32>
    %321 = vector.shape_cast %320 : vector<8xf32> to vector<8x1xf32>
    %322 = tpu.reciprocal %321 {approx = true} : vector<8x1xf32> -> vector<8x1xf32>
    %323 = vector.broadcast %322 : vector<8x1xf32> to vector<8x8xf32>
    %324 = arith.mulf %319, %323 : vector<8x8xf32>
    %cst_134 = arith.constant dense<0.000000e+00> : vector<8x8xf32>
    %325 = tpu.matmul %324, %305, %cst_134 {dimension_numbers = #tpu.dot_dimension_numbers<[1], [0], [0], [1], [0, 0, 1, 1], [], []>} : vector<8x8xf32>, vector<8x8xf32>, vector<8x8xf32> -> vector<8x8xf32>
    %326 = vector.extract_strided_slice %2 {offsets = [8, 48], sizes = [8, 8], strides = [1, 1]} : vector<16x192xf32> to vector<8x8xf32>
    %327 = vector.extract_strided_slice %2 {offsets = [8, 112], sizes = [8, 8], strides = [1, 1]} : vector<16x192xf32> to vector<8x8xf32>
    %328 = vector.extract_strided_slice %2 {offsets = [8, 176], sizes = [8, 8], strides = [1, 1]} : vector<16x192xf32> to vector<8x8xf32>
    %cst_135 = arith.constant dense<0.000000e+00> : vector<8x8xf32>
    %329 = tpu.matmul %326, %327, %cst_135 {dimension_numbers = #tpu.dot_dimension_numbers<[1], [1], [0], [0], [0, 0, 1, 0], [], []>} : vector<8x8xf32>, vector<8x8xf32>, vector<8x8xf32> -> vector<8x8xf32>
    %cst_136 = arith.constant 0.353553385 : f32
    %330 = vector.broadcast %cst_136 : f32 to vector<8x8xf32>
    %331 = arith.mulf %329, %330 : vector<8x8xf32>
    %c6_137 = arith.constant 6 : index
    %c0_138 = arith.constant 0 : index
    %c0_139 = arith.constant 0 : index
    %332 = vector.load %arg3[%c6_137, %c0_138, %c0_139] : memref<8x8x128xf32, #tpu.memory_space<vmem>>, vector<1x8x128xf32>
    %333 = vector.shape_cast %332 : vector<1x8x128xf32> to vector<8x128xf32>
    %cst_140 = arith.constant dense<0.000000e+00> : vector<8x128xf32>
    %334 = tpu.matmul %326, %333, %cst_140 {dimension_numbers = #tpu.dot_dimension_numbers<[1], [0], [0], [1], [0, 0, 1, 1], [], []>} : vector<8x8xf32>, vector<8x128xf32>, vector<8x128xf32> -> vector<8x128xf32>
    %c121_i32_141 = arith.constant 121 : i32
    %335 = tpu.dynamic_rotate %334 by %c121_i32_141 dim 1 {stride = 1 : si32, stride_dimension = 0 : si32} : vector<8x128xf32>, i32 -> vector<8x128xf32>
    %336 = vector.extract_strided_slice %335 {offsets = [0, 0], sizes = [8, 8], strides = [1, 1]} : vector<8x128xf32> to vector<8x8xf32>
    %337 = arith.addf %331, %336 : vector<8x8xf32>
    %cst_142 = arith.constant dense<0xFF800000> : vector<8xf32>
    %338 = vector.multi_reduction <maximumf>, %337, %cst_142 [1] : vector<8x8xf32> to vector<8xf32>
    %339 = vector.shape_cast %338 : vector<8xf32> to vector<8x1xf32>
    %340 = vector.broadcast %339 : vector<8x1xf32> to vector<8x8xf32>
    %341 = arith.subf %337, %340 : vector<8x8xf32>
    %342 = math.exp %341 : vector<8x8xf32>
    %cst_143 = arith.constant dense<0.000000e+00> : vector<8xf32>
    %343 = vector.multi_reduction <add>, %342, %cst_143 [1] : vector<8x8xf32> to vector<8xf32>
    %344 = vector.shape_cast %343 : vector<8xf32> to vector<8x1xf32>
    %345 = tpu.reciprocal %344 {approx = true} : vector<8x1xf32> -> vector<8x1xf32>
    %346 = vector.broadcast %345 : vector<8x1xf32> to vector<8x8xf32>
    %347 = arith.mulf %342, %346 : vector<8x8xf32>
    %cst_144 = arith.constant dense<0.000000e+00> : vector<8x8xf32>
    %348 = tpu.matmul %347, %328, %cst_144 {dimension_numbers = #tpu.dot_dimension_numbers<[1], [0], [0], [1], [0, 0, 1, 1], [], []>} : vector<8x8xf32>, vector<8x8xf32>, vector<8x8xf32> -> vector<8x8xf32>
    %349 = vector.extract_strided_slice %2 {offsets = [8, 56], sizes = [8, 8], strides = [1, 1]} : vector<16x192xf32> to vector<8x8xf32>
    %350 = vector.extract_strided_slice %2 {offsets = [8, 120], sizes = [8, 8], strides = [1, 1]} : vector<16x192xf32> to vector<8x8xf32>
    %351 = vector.extract_strided_slice %2 {offsets = [8, 184], sizes = [8, 8], strides = [1, 1]} : vector<16x192xf32> to vector<8x8xf32>
    %cst_145 = arith.constant dense<0.000000e+00> : vector<8x8xf32>
    %352 = tpu.matmul %349, %350, %cst_145 {dimension_numbers = #tpu.dot_dimension_numbers<[1], [1], [0], [0], [0, 0, 1, 0], [], []>} : vector<8x8xf32>, vector<8x8xf32>, vector<8x8xf32> -> vector<8x8xf32>
    %cst_146 = arith.constant 0.353553385 : f32
    %353 = vector.broadcast %cst_146 : f32 to vector<8x8xf32>
    %354 = arith.mulf %352, %353 : vector<8x8xf32>
    %c7_147 = arith.constant 7 : index
    %c0_148 = arith.constant 0 : index
    %c0_149 = arith.constant 0 : index
    %355 = vector.load %arg3[%c7_147, %c0_148, %c0_149] : memref<8x8x128xf32, #tpu.memory_space<vmem>>, vector<1x8x128xf32>
    %356 = vector.shape_cast %355 : vector<1x8x128xf32> to vector<8x128xf32>
    %cst_150 = arith.constant dense<0.000000e+00> : vector<8x128xf32>
    %357 = tpu.matmul %349, %356, %cst_150 {dimension_numbers = #tpu.dot_dimension_numbers<[1], [0], [0], [1], [0, 0, 1, 1], [], []>} : vector<8x8xf32>, vector<8x128xf32>, vector<8x128xf32> -> vector<8x128xf32>
    %c121_i32_151 = arith.constant 121 : i32
    %358 = tpu.dynamic_rotate %357 by %c121_i32_151 dim 1 {stride = 1 : si32, stride_dimension = 0 : si32} : vector<8x128xf32>, i32 -> vector<8x128xf32>
    %359 = vector.extract_strided_slice %358 {offsets = [0, 0], sizes = [8, 8], strides = [1, 1]} : vector<8x128xf32> to vector<8x8xf32>
    %360 = arith.addf %354, %359 : vector<8x8xf32>
    %cst_152 = arith.constant dense<0xFF800000> : vector<8xf32>
    %361 = vector.multi_reduction <maximumf>, %360, %cst_152 [1] : vector<8x8xf32> to vector<8xf32>
    %362 = vector.shape_cast %361 : vector<8xf32> to vector<8x1xf32>
    %363 = vector.broadcast %362 : vector<8x1xf32> to vector<8x8xf32>
    %364 = arith.subf %360, %363 : vector<8x8xf32>
    %365 = math.exp %364 : vector<8x8xf32>
    %cst_153 = arith.constant dense<0.000000e+00> : vector<8xf32>
    %366 = vector.multi_reduction <add>, %365, %cst_153 [1] : vector<8x8xf32> to vector<8xf32>
    %367 = vector.shape_cast %366 : vector<8xf32> to vector<8x1xf32>
    %368 = tpu.reciprocal %367 {approx = true} : vector<8x1xf32> -> vector<8x1xf32>
    %369 = vector.broadcast %368 : vector<8x1xf32> to vector<8x8xf32>
    %370 = arith.mulf %365, %369 : vector<8x8xf32>
    %cst_154 = arith.constant dense<0.000000e+00> : vector<8x8xf32>
    %371 = tpu.matmul %370, %351, %cst_154 {dimension_numbers = #tpu.dot_dimension_numbers<[1], [0], [0], [1], [0, 0, 1, 1], [], []>} : vector<8x8xf32>, vector<8x8xf32>, vector<8x8xf32> -> vector<8x8xf32>
    %372 = tpu.concatenate %210, %233, %256, %279, %302, %325, %348, %371 in 1 : vector<8x8xf32>, vector<8x8xf32>, vector<8x8xf32>, vector<8x8xf32>, vector<8x8xf32>, vector<8x8xf32>, vector<8x8xf32>, vector<8x8xf32> -> vector<8x64xf32>
    %373 = tpu.concatenate %187, %372 in 0 : vector<8x64xf32>, vector<8x64xf32> -> vector<16x64xf32>
    %c0_155 = arith.constant 0 : index
    %c0_156 = arith.constant 0 : index
    %374 = vector.load %arg2[%c0_155, %c0_156] : memref<64x64xf32, #tpu.memory_space<vmem>>, vector<64x64xf32>
    %cst_157 = arith.constant dense<0.000000e+00> : vector<16x64xf32>
    %375 = tpu.matmul %373, %374, %cst_157 {dimension_numbers = #tpu.dot_dimension_numbers<[1], [0], [0], [1], [0, 0, 1, 1], [], []>} : vector<16x64xf32>, vector<64x64xf32>, vector<16x64xf32> -> vector<16x64xf32>
    %376 = arith.addf %0, %375 : vector<16x64xf32>
    %cst_158 = arith.constant dense<0.000000e+00> : vector<16xf32>
    %377 = vector.multi_reduction <add>, %376, %cst_158 [1] : vector<16x64xf32> to vector<16xf32>
    %378 = vector.shape_cast %377 : vector<16xf32> to vector<16x1xf32>
    %cst_159 = arith.constant 6.400000e+01 : f32
    %379 = vector.broadcast %cst_159 : f32 to vector<16x1xf32>
    %380 = arith.divf %378, %379 : vector<16x1xf32>
    %381 = vector.broadcast %380 : vector<16x1xf32> to vector<16x64xf32>
    %382 = arith.subf %376, %381 : vector<16x64xf32>
    %383 = arith.mulf %382, %382 : vector<16x64xf32>
    %cst_160 = arith.constant dense<0.000000e+00> : vector<16xf32>
    %384 = vector.multi_reduction <add>, %383, %cst_160 [1] : vector<16x64xf32> to vector<16xf32>
    %385 = vector.shape_cast %384 : vector<16xf32> to vector<16x1xf32>
    %cst_161 = arith.constant 6.400000e+01 : f32
    %386 = vector.broadcast %cst_161 : f32 to vector<16x1xf32>
    %387 = arith.divf %385, %386 : vector<16x1xf32>
    %cst_162 = arith.constant 9.99999974E-6 : f32
    %388 = vector.broadcast %cst_162 : f32 to vector<16x1xf32>
    %389 = arith.addf %387, %388 : vector<16x1xf32>
    %390 = math.rsqrt %389 : vector<16x1xf32>
    %391 = vector.broadcast %390 : vector<16x1xf32> to vector<16x64xf32>
    %392 = arith.mulf %382, %391 : vector<16x64xf32>
    %c0_163 = arith.constant 0 : index
    %c0_164 = arith.constant 0 : index
    %393 = vector.load %arg4[%c0_163, %c0_164] : memref<1x64xf32, #tpu.memory_space<vmem>>, vector<1x64xf32>
    %394 = vector.broadcast %393 : vector<1x64xf32> to vector<16x64xf32>
    %395 = arith.mulf %392, %394 : vector<16x64xf32>
    %c0_165 = arith.constant 0 : index
    %c0_166 = arith.constant 0 : index
    %396 = vector.load %arg5[%c0_165, %c0_166] : memref<1x64xf32, #tpu.memory_space<vmem>>, vector<1x64xf32>
    %397 = vector.broadcast %396 : vector<1x64xf32> to vector<16x64xf32>
    %398 = arith.addf %395, %397 : vector<16x64xf32>
    %c0_167 = arith.constant 0 : index
    %c0_168 = arith.constant 0 : index
    %399 = vector.load %arg6[%c0_167, %c0_168] : memref<64x256xf32, #tpu.memory_space<vmem>>, vector<64x256xf32>
    %cst_169 = arith.constant dense<0.000000e+00> : vector<16x256xf32>
    %400 = tpu.matmul %398, %399, %cst_169 {dimension_numbers = #tpu.dot_dimension_numbers<[1], [0], [0], [1], [0, 0, 1, 1], [], []>} : vector<16x64xf32>, vector<64x256xf32>, vector<16x256xf32> -> vector<16x256xf32>
    %c0_170 = arith.constant 0 : index
    %c0_171 = arith.constant 0 : index
    %401 = vector.load %arg7[%c0_170, %c0_171] : memref<1x256xf32, #tpu.memory_space<vmem>>, vector<1x256xf32>
    %402 = vector.broadcast %401 : vector<1x256xf32> to vector<16x256xf32>
    %403 = arith.addf %400, %402 : vector<16x256xf32>
    %cst_172 = arith.constant 0.000000e+00 : f32
    %404 = vector.broadcast %cst_172 : f32 to vector<16x256xf32>
    %405 = arith.maximumf %403, %404 : vector<16x256xf32>
    %c0_173 = arith.constant 0 : index
    %c0_174 = arith.constant 0 : index
    %406 = vector.load %arg8[%c0_173, %c0_174] : memref<256x64xf32, #tpu.memory_space<vmem>>, vector<256x64xf32>
    %cst_175 = arith.constant dense<0.000000e+00> : vector<16x64xf32>
    %407 = tpu.matmul %405, %406, %cst_175 {dimension_numbers = #tpu.dot_dimension_numbers<[1], [0], [0], [1], [0, 0, 1, 1], [], []>} : vector<16x256xf32>, vector<256x64xf32>, vector<16x64xf32> -> vector<16x64xf32>
    %c0_176 = arith.constant 0 : index
    %c0_177 = arith.constant 0 : index
    %408 = vector.load %arg9[%c0_176, %c0_177] : memref<1x64xf32, #tpu.memory_space<vmem>>, vector<1x64xf32>
    %409 = vector.broadcast %408 : vector<1x64xf32> to vector<16x64xf32>
    %410 = arith.addf %407, %409 : vector<16x64xf32>
    %411 = arith.addf %398, %410 : vector<16x64xf32>
    %cst_178 = arith.constant dense<0.000000e+00> : vector<16xf32>
    %412 = vector.multi_reduction <add>, %411, %cst_178 [1] : vector<16x64xf32> to vector<16xf32>
    %413 = vector.shape_cast %412 : vector<16xf32> to vector<16x1xf32>
    %cst_179 = arith.constant 6.400000e+01 : f32
    %414 = vector.broadcast %cst_179 : f32 to vector<16x1xf32>
    %415 = arith.divf %413, %414 : vector<16x1xf32>
    %416 = vector.broadcast %415 : vector<16x1xf32> to vector<16x64xf32>
    %417 = arith.subf %411, %416 : vector<16x64xf32>
    %418 = arith.mulf %417, %417 : vector<16x64xf32>
    %cst_180 = arith.constant dense<0.000000e+00> : vector<16xf32>
    %419 = vector.multi_reduction <add>, %418, %cst_180 [1] : vector<16x64xf32> to vector<16xf32>
    %420 = vector.shape_cast %419 : vector<16xf32> to vector<16x1xf32>
    %cst_181 = arith.constant 6.400000e+01 : f32
    %421 = vector.broadcast %cst_181 : f32 to vector<16x1xf32>
    %422 = arith.divf %420, %421 : vector<16x1xf32>
    %cst_182 = arith.constant 9.99999974E-6 : f32
    %423 = vector.broadcast %cst_182 : f32 to vector<16x1xf32>
    %424 = arith.addf %422, %423 : vector<16x1xf32>
    %425 = math.rsqrt %424 : vector<16x1xf32>
    %426 = vector.broadcast %425 : vector<16x1xf32> to vector<16x64xf32>
    %427 = arith.mulf %417, %426 : vector<16x64xf32>
    %c0_183 = arith.constant 0 : index
    %c0_184 = arith.constant 0 : index
    %428 = vector.load %arg10[%c0_183, %c0_184] : memref<1x64xf32, #tpu.memory_space<vmem>>, vector<1x64xf32>
    %429 = vector.broadcast %428 : vector<1x64xf32> to vector<16x64xf32>
    %430 = arith.mulf %427, %429 : vector<16x64xf32>
    %c0_185 = arith.constant 0 : index
    %c0_186 = arith.constant 0 : index
    %431 = vector.load %arg11[%c0_185, %c0_186] : memref<1x64xf32, #tpu.memory_space<vmem>>, vector<1x64xf32>
    %432 = vector.broadcast %431 : vector<1x64xf32> to vector<16x64xf32>
    %433 = arith.addf %430, %432 : vector<16x64xf32>
    %c0_187 = arith.constant 0 : index
    %c0_188 = arith.constant 0 : index
    %434 = vector.load %arg12[%c0_187, %c0_188] : memref<16x64xf32, #tpu.memory_space<vmem>>, vector<16x64xf32>
    tpu.vector_store %arg12[%c0_187, %c0_188], %433 {strides = array<i32>} : memref<16x64xf32, #tpu.memory_space<vmem>>, vector<16x64xf32>,
    return
  }
}

</mosaic_0001>

<llo_original>
// kernel: emg_encoder_transformer_forward.8
$region0: #{emg_encoder_transformer_forward.8}
  #allocation0 [shape = 'u32[]', space=smem, size = 0x4, offset = 0x4, fixed_abs, tag = 'smem constant byte address 0x4 - core index']
  #allocation1 [shape = 'u32[144,128]{1,0:T(1,128)}', space=vmem, size = 0x12000, scoped, tag = 'internal scratch']
  %s0 = inlined_call_operand.vmem [shape: f32[2,65,16], index: 0, kind: input, shape index: {}]
  %s1 = inlined_call_operand.vmem [shape: f32[3,8,64], index: 1, kind: input, shape index: {}]
  %s2 = inlined_call_operand.vmem [shape: f32[1,64], index: 2, kind: input, shape index: {}]
  %s3 = inlined_call_operand.vmem [shape: f32[8,64], index: 3, kind: input, shape index: {}]
  %s4 = inlined_call_operand.vmem [shape: f32[1,64], index: 4, kind: input, shape index: {}]
  %s5 = inlined_call_operand.vmem [shape: f32[3,64,64], index: 5, kind: input, shape index: {}]
  %s6 = inlined_call_operand.vmem [shape: f32[1,64], index: 6, kind: input, shape index: {}]
  %s7 = inlined_call_operand.vmem [shape: f32[2,64,64], index: 7, kind: output, shape index: {}]
  %s8 = sld [smem:[#allocation0]]
  $region61: #{emg_encoder_transformer_forward.8} parent=0
    _
  %s10 = ssub.s32 1, %s8
  %s11 = scalar_select 0, %s10, %s8
  loop: start=0, step=1, limit=4
  $region2: #{emg_encoder_transformer_forward.8} parent=0 // loop_pre_header
    _
  $region3: #{emg_encoder_transformer_forward.8} parent=0 // loop_header
    %s13 = sphi 0, %s17
    %p14 = scmp.ge.s32.totalorder %s13, 4
    %s23 = sphi 0, %s25
    %s26 = sphi 0, %s23
    %s27 = sphi 0, %s26
    %s43 = sphi 0, %s27
    %s47 = sphi 0, %s47
    %s49 = sphi 0, %s47
    %s50 = sphi 0, %s49
    %s64 = sphi 0, %s50
    %s68 = sphi 0, %s68
    %s70 = sphi 0, %s68
    %s71 = sphi 0, %s70
    %s85 = sphi 0, %s71
    %s89 = sphi 0, %s89
    %s91 = sphi 0, %s89
    %s92 = sphi 0, %s91
    %s106 = sphi 0, %s92
    %s110 = sphi 0, %s110
    %s112 = sphi 0, %s110
    %s113 = sphi 0, %s112
    %s127 = sphi 0, %s113
    %s131 = sphi 0, %s131
    %s133 = sphi 0, %s131
    %s134 = sphi 0, %s133
    %s148 = sphi 0, %s134
    %s152 = sphi 0, %s152
    %s154 = sphi 0, %s152
    %s155 = sphi 0, %s154
    %s169 = sphi 0, %s155
    %s175 = sphi 0, %s177
    %s178 = sphi 0, %s175
    %s179 = sphi 0, %s178
    %s195 = sphi 0, %s179
  $region4: #{emg_encoder_transformer_forward.8} parent=0 // loop_header_branch
    %16 = sbr.rel (%p14) target = $region8
  $region5: #{emg_encoder_transformer_forward.8} parent=0 // loop_body
    %s18 = ssub.s32 %s13, 1
    %s19 = ssub.s32 %s13, 2
    %s20 = sadd.s32 %s13, 1
    %s21 = ssub.s32 %s13, %s20
    %p22 = scmp.eq.s32.totalorder %s21, 0
    %s24 = sadd.s32 %s23, 1
    %s25 = scalar_select %p22, %s23, %s24
    %p28 = pneg %p22
    %p29 = scmp.eq.s32.totalorder %s13, 1
    %p30 = por %p28, %p29
    %p31 = scmp.ne.s32.totalorder %s23, %s26
    %p32 = scmp.eq.s32.totalorder %s13, 0
    %p33 = por %p31, %p32
    %p34 = scmp.ne.s32.totalorder %s23, %s26
    %p35 = scmp.eq.s32.totalorder %s18, 1
    %p36 = por %p34, %p35
    %p37 = scmp.ne.s32.totalorder %s26, %s27
    %p38 = scmp.eq.s32.totalorder %s18, 0
    %p39 = por %p37, %p38
    %p40 = scmp.ne.s32.totalorder %s26, %s27
    %p41 = scmp.eq.s32.totalorder %s19, 1
    %p42 = por %p40, %p41
    %p44 = scmp.ne.s32.totalorder %s27, %s43
    %p45 = scmp.eq.s32.totalorder %s19, 0
    %p46 = por %p44, %p45
    %s48 = sadd.s32 %s47, 1
    %p51 = scmp.eq.s32.totalorder %s13, 1
    %p52 = scmp.ne.s32.totalorder %s47, %s49
    %p53 = scmp.eq.s32.totalorder %s13, 0
    %p54 = por %p52, %p53
    %p55 = scmp.ne.s32.totalorder %s47, %s49
    %p56 = scmp.eq.s32.totalorder %s18, 1
    %p57 = por %p55, %p56
    %p58 = scmp.ne.s32.totalorder %s49, %s50
    %p59 = scmp.eq.s32.totalorder %s18, 0
    %p60 = por %p58, %p59
    %p61 = scmp.ne.s32.totalorder %s49, %s50
    %p62 = scmp.eq.s32.totalorder %s19, 1
    %p63 = por %p61, %p62
    %p65 = scmp.ne.s32.totalorder %s50, %s64
    %p66 = scmp.eq.s32.totalorder %s19, 0
    %p67 = por %p65, %p66
    %s69 = sadd.s32 %s68, 1
    %p72 = scmp.eq.s32.totalorder %s13, 1
    %p73 = scmp.ne.s32.totalorder %s68, %s70
    %p74 = scmp.eq.s32.totalorder %s13, 0
    %p75 = por %p73, %p74
    %p76 = scmp.ne.s32.totalorder %s68, %s70
    %p77 = scmp.eq.s32.totalorder %s18, 1
    %p78 = por %p76, %p77
    %p79 = scmp.ne.s32.totalorder %s70, %s71
    %p80 = scmp.eq.s32.totalorder %s18, 0
    %p81 = por %p79, %p80
    %p82 = scmp.ne.s32.totalorder %s70, %s71
    %p83 = scmp.eq.s32.totalorder %s19, 1
    %p84 = por %p82, %p83
    %p86 = scmp.ne.s32.totalorder %s71, %s85
    %p87 = scmp.eq.s32.totalorder %s19, 0
    %p88 = por %p86, %p87
    %s90 = sadd.s32 %s89, 1
    %p93 = scmp.eq.s32.totalorder %s13, 1
    %p94 = scmp.ne.s32.totalorder %s89, %s91
    %p95 = scmp.eq.s32.totalorder %s13, 0
    %p96 = por %p94, %p95
    %p97 = scmp.ne.s32.totalorder %s89, %s91
    %p98 = scmp.eq.s32.totalorder %s18, 1
    %p99 = por %p97, %p98
    %p100 = scmp.ne.s32.totalorder %s91, %s92
    %p101 = scmp.eq.s32.totalorder %s18, 0
    %p102 = por %p100, %p101
    %p103 = scmp.ne.s32.totalorder %s91, %s92
    %p104 = scmp.eq.s32.totalorder %s19, 1
    %p105 = por %p103, %p104
    %p107 = scmp.ne.s32.totalorder %s92, %s106
    %p108 = scmp.eq.s32.totalorder %s19, 0
    %p109 = por %p107, %p108
    %s111 = sadd.s32 %s110, 1
    %p114 = scmp.eq.s32.totalorder %s13, 1
    %p115 = scmp.ne.s32.totalorder %s110, %s112
    %p116 = scmp.eq.s32.totalorder %s13, 0
    %p117 = por %p115, %p116
    %p118 = scmp.ne.s32.totalorder %s110, %s112
    %p119 = scmp.eq.s32.totalorder %s18, 1
    %p120 = por %p118, %p119
    %p121 = scmp.ne.s32.totalorder %s112, %s113
    %p122 = scmp.eq.s32.totalorder %s18, 0
    %p123 = por %p121, %p122
    %p124 = scmp.ne.s32.totalorder %s112, %s113
    %p125 = scmp.eq.s32.totalorder %s19, 1
    %p126 = por %p124, %p125
    %p128 = scmp.ne.s32.totalorder %s113, %s127
    %p129 = scmp.eq.s32.totalorder %s19, 0
    %p130 = por %p128, %p129
    %s132 = sadd.s32 %s131, 1
    %p135 = scmp.eq.s32.totalorder %s13, 1
    %p136 = scmp.ne.s32.totalorder %s131, %s133
    %p137 = scmp.eq.s32.totalorder %s13, 0
    %p138 = por %p136, %p137
    %p139 = scmp.ne.s32.totalorder %s131, %s133
    %p140 = scmp.eq.s32.totalorder %s18, 1
    %p141 = por %p139, %p140
    %p142 = scmp.ne.s32.totalorder %s133, %s134
    %p143 = scmp.eq.s32.totalorder %s18, 0
    %p144 = por %p142, %p143
    %p145 = scmp.ne.s32.totalorder %s133, %s134
    %p146 = scmp.eq.s32.totalorder %s19, 1
    %p147 = por %p145, %p146
    %p149 = scmp.ne.s32.totalorder %s134, %s148
    %p150 = scmp.eq.s32.totalorder %s19, 0
    %p151 = por %p149, %p150
    %s153 = sadd.s32 %s152, 1
    %p156 = scmp.eq.s32.totalorder %s13, 1
    %p157 = scmp.ne.s32.totalorder %s152, %s154
    %p158 = scmp.eq.s32.totalorder %s13, 0
    %p159 = por %p157, %p158
    %p160 = scmp.ne.s32.totalorder %s152, %s154
    %p161 = scmp.eq.s32.totalorder %s18, 1
    %p162 = por %p160, %p161
    %p163 = scmp.ne.s32.totalorder %s154, %s155
    %p164 = scmp.eq.s32.totalorder %s18, 0
    %p165 = por %p163, %p164
    %p166 = scmp.ne.s32.totalorder %s154, %s155
    %p167 = scmp.eq.s32.totalorder %s19, 1
    %p168 = por %p166, %p167
    %p170 = scmp.ne.s32.totalorder %s155, %s169
    %p171 = scmp.eq.s32.totalorder %s19, 0
    %p172 = por %p170, %p171
    %s173 = ssub.s32 %s13, %s20
    %p174 = scmp.eq.s32.totalorder %s173, 0
    %s176 = sadd.s32 %s175, 1
    %s177 = scalar_select %p174, %s175, %s176
    %p180 = pneg %p174
    %p181 = scmp.eq.s32.totalorder %s13, 1
    %p182 = por %p180, %p181
    %p183 = scmp.ne.s32.totalorder %s175, %s178
    %p184 = scmp.eq.s32.totalorder %s13, 0
    %p185 = por %p183, %p184
    %p186 = scmp.ne.s32.totalorder %s175, %s178
    %p187 = scmp.eq.s32.totalorder %s18, 1
    %p188 = por %p186, %p187
    %p189 = scmp.ne.s32.totalorder %s178, %s179
    %p190 = scmp.eq.s32.totalorder %s18, 0
    %p191 = por %p189, %p190
    %p192 = scmp.ne.s32.totalorder %s178, %s179
    %p193 = scmp.eq.s32.totalorder %s19, 1
    %p194 = por %p192, %p193
    %p196 = scmp.ne.s32.totalorder %s179, %s195
    %p197 = scmp.eq.s32.totalorder %s19, 0
    %p198 = por %p196, %p197
    %p199 = scmp.le.s32.totalorder 1, %s13
    %p200 = scmp.lt.s32.totalorder %s13, 3
    %p201 = pnand %p199, %p200
    %p202 = pneg %p201
    // Predicated region
    $region9: #{emg_encoder_transformer_forward.8} parent=5 // pred_check
      _
    $region10: #{emg_encoder_transformer_forward.8} parent=5 // pred_check_branch
      %204 = sbr.rel (%p201) target = $region12
    $region11: #{emg_encoder_transformer_forward.8} parent=5 // pred_region
      %s205 = ssub.s32 %s13, 1
      // Predicated region
      $region13: #{emg_encoder_transformer_forward.8} parent=11 // pred_check
        %p206 = pneg %p60
      $region14: #{emg_encoder_transformer_forward.8} parent=11 // pred_check_branch
        %208 = sbr.rel (%p206) target = $region16
      $region15: #{emg_encoder_transformer_forward.8} parent=11 // pred_region
        _
      $region16: #{emg_encoder_transformer_forward.8} parent=11 // pred_fallthru
        _
      // Predicated region
      $region17: #{emg_encoder_transformer_forward.8} parent=11 // pred_check
        %p209 = pneg %p81
      $region18: #{emg_encoder_transformer_forward.8} parent=11 // pred_check_branch
        %211 = sbr.rel (%p209) target = $region20
      $region19: #{emg_encoder_transformer_forward.8} parent=11 // pred_region
        _
      $region20: #{emg_encoder_transformer_forward.8} parent=11 // pred_fallthru
        _
      // Predicated region
      $region21: #{emg_encoder_transformer_forward.8} parent=11 // pred_check
        %p212 = pneg %p102
      $region22: #{emg_encoder_transformer_forward.8} parent=11 // pred_check_branch
        %214 = sbr.rel (%p212) target = $region24
      $region23: #{emg_encoder_transformer_forward.8} parent=11 // pred_region
        _
      $region24: #{emg_encoder_transformer_forward.8} parent=11 // pred_fallthru
        _
      // Predicated region
      $region25: #{emg_encoder_transformer_forward.8} parent=11 // pred_check
        %p215 = pneg %p123
      $region26: #{emg_encoder_transformer_forward.8} parent=11 // pred_check_branch
        %217 = sbr.rel (%p215) target = $region28
      $region27: #{emg_encoder_transformer_forward.8} parent=11 // pred_region
        _
      $region28: #{emg_encoder_transformer_forward.8} parent=11 // pred_fallthru
        _
      // Predicated region
      $region29: #{emg_encoder_transformer_forward.8} parent=11 // pred_check
        %p218 = pneg %p144
      $region30: #{emg_encoder_transformer_forward.8} parent=11 // pred_check_branch
        %220 = sbr.rel (%p218) target = $region32
      $region31: #{emg_encoder_transformer_forward.8} parent=11 // pred_region
        _
      $region32: #{emg_encoder_transformer_forward.8} parent=11 // pred_fallthru
        _
      // Predicated region
      $region33: #{emg_encoder_transformer_forward.8} parent=11 // pred_check
        %p221 = pneg %p165
      $region34: #{emg_encoder_transformer_forward.8} parent=11 // pred_check_branch
        %223 = sbr.rel (%p221) target = $region36
      $region35: #{emg_encoder_transformer_forward.8} parent=11 // pred_region
        _
      $region36: #{emg_encoder_transformer_forward.8} parent=11 // pred_fallthru
        _
    $region12: #{emg_encoder_transformer_forward.8} parent=5 // pred_fallthru
      _
    %p224 = scmp.lt.s32.totalorder %s13, 2
    // Predicated region
    $region37: #{emg_encoder_transformer_forward.8} parent=5 // pred_check
      %p225 = pneg %p224
    $region38: #{emg_encoder_transformer_forward.8} parent=5 // pred_check_branch
      %227 = sbr.rel (%p225) target = $region40
    $region39: #{emg_encoder_transformer_forward.8} parent=5 // pred_region
      // Predicated region
      $region41: #{emg_encoder_transformer_forward.8} parent=39 // pred_check
        %p228 = pneg %p33
      $region42: #{emg_encoder_transformer_forward.8} parent=39 // pred_check_branch
        %230 = sbr.rel (%p228) target = $region44
      $region43: #{emg_encoder_transformer_forward.8} parent=39 // pred_region
        %p231 = scmp.lt.s32.totalorder %s13, 1
        %s232 = scalar_select %p231, %s13, 1
        %s233 = smul.addr %s232, 9
        %s234 = smul.addr %s233, 8
        %s235 = scalar_lea.vmem %s0, %s234
      $region44: #{emg_encoder_transformer_forward.8} parent=39 // pred_fallthru
        _
    $region40: #{emg_encoder_transformer_forward.8} parent=5 // pred_fallthru
      _
    %p236 = scmp.le.s32.totalorder 1, %s13
    %p237 = scmp.lt.s32.totalorder %s13, 3
    %p238 = pnand %p236, %p237
    %p239 = pneg %p238
    // Predicated region
    $region45: #{emg_encoder_transformer_forward.8} parent=5 // pred_check
      _
    $region46: #{emg_encoder_transformer_forward.8} parent=5 // pred_check_branch
      %241 = sbr.rel (%p238) target = $region48
    $region47: #{emg_encoder_transformer_forward.8} parent=5 // pred_region
      %s242 = ssub.s32 %s13, 1
      %p243 = scmp.lt.s32.totalorder %s18, 1
      %s244 = scalar_select %p243, %s18, 1
      %s245 = smul.addr %s244, 9
      %s246 = smul.addr %s245, 8
      %s247 = scalar_lea.vmem %s0, %s246
      %p248 = pneg %p39
      %p249 = pneg %p36
      %p250 = pneg %p60
      %p251 = pneg %p57
      %p252 = pneg %p81
      %p253 = pneg %p78
      %p254 = pneg %p102
      %p255 = pneg %p99
      %p256 = pneg %p123
      %p257 = pneg %p120
      %p258 = pneg %p144
      %p259 = pneg %p141
      %p260 = pneg %p165
      %p261 = pneg %p162
      %p262 = pneg %p191
      %p263 = pneg %p188
      %p264 = scmp.lt.s32.totalorder %s18, 1
      %s265 = scalar_select %p264, %s18, 1
      %s266 = smul.addr %s265, 8
      %s267 = smul.addr %s266, 8
      %s268 = scalar_lea.vmem %s7, %s267
      %p269 = scmp.lt.s32.totalorder %s18, 1
      %s270 = scalar_select %p269, %s18, 1
      %s271 = smul.addr %s270, 9
      %s272 = smul.addr %s271, 8
      %s273 = scalar_lea.vmem %s0, %s272
      %p274 = scmp.lt.s32.totalorder %s18, 1
      %s275 = scalar_select %p274, %s18, 1
      %s276 = smul.addr %s275, 8
      %s277 = smul.addr %s276, 8
      %s278 = scalar_lea.vmem %s7, %s277
      %v279 = vld [vmem:[%s273] sm:$0xff]
      %v280 = vld [vmem:[%s273 + $0x8] sm:$0xff]
      %v281 = vld [vmem:[%s273 + $0x10] sm:$0xff]
      %v282 = vld [vmem:[%s273 + $0x18] sm:$0xff]
      %v283 = vld [vmem:[%s273 + $0x20] sm:$0xff]
      %v284 = vld [vmem:[%s273 + $0x28] sm:$0xff]
      %v285 = vld [vmem:[%s273 + $0x30] sm:$0xff]
      %v286 = vld [vmem:[%s273 + $0x38] sm:$0xff]
      %v287 = vld [vmem:[%s273 + $0x40] sm:$0x1]
      %v288 = vld [vmem:[%s1] sm:$0xff]
      %s289 = scalar_lea.vmem %s1, 8
      %v290 = vld [vmem:[%s289] sm:$0xff]
      %299 = vrot.lane.b32.xlu0 %v279, 120
      %v300 = vpop.permute.xlu0 %299
      %301 = vrot.lane.b32.xlu0 %v280, 120
      %v302 = vpop.permute.xlu0 %301
      %303 = vrot.lane.b32.xlu0 %v281, 120
      %v304 = vpop.permute.xlu0 %303
      %305 = vrot.lane.b32.xlu0 %v282, 120
      %v306 = vpop.permute.xlu0 %305
      %307 = vrot.lane.b32.xlu0 %v283, 120
      %v308 = vpop.permute.xlu0 %307
      %309 = vrot.lane.b32.xlu0 %v284, 120
      %v310 = vpop.permute.xlu0 %309
      %311 = vrot.lane.b32.xlu0 %v285, 120
      %v312 = vpop.permute.xlu0 %311
      %313 = vrot.lane.b32.xlu0 %v286, 120
      %v314 = vpop.permute.xlu0 %313
      %vm315 = vcmask 64512
      %v316 = vsel %vm315, %v300, 0
      %v318 = vsel %vm315, %v302, 0
      %v320 = vsel %vm315, %v304, 0
      %v322 = vsel %vm315, %v306, 0
      %v324 = vsel %vm315, %v308, 0
      %v326 = vsel %vm315, %v310, 0
      %v328 = vsel %vm315, %v312, 0
      %v330 = vsel %vm315, %v314, 0
      %332 = vmatprep.subr.mxu0 0.0
      %333 = vmatpush1.msra.mxu0 %v290
      %334 = vmatprep.subr.mxu0 0.0
      %335 = vmatpush1.msra.mxu0 0.0
      %336 = vmatprep.subr.mxu0 0.0
      %337 = vmatpush1.msra.mxu0 0.0
      %338 = vmatprep.subr.mxu0 0.0
      %339 = vmatpush1.msra.mxu0 0.0
      %340 = vmatprep.subr.mxu0 0.0
      %341 = vmatpush1.msra.mxu0 0.0
      %342 = vmatprep.subr.mxu0 0.0
      %343 = vmatpush1.msra.mxu0 0.0
      %344 = vmatprep.subr.mxu0 0.0
      %345 = vmatpush1.msra.mxu0 0.0
      %346 = vmatprep.subr.mxu0 0.0
      %347 = vmatpush1.msra.mxu0 0.0
      %348 = vmatprep.subr.mxu0 0.0
      %349 = vmatpush1.msra.mxu0 0.0
      %350 = vmatprep.subr.mxu0 0.0
      %351 = vmatpush1.msra.mxu0 0.0
      %352 = vmatprep.subr.mxu0 0.0
      %353 = vmatpush1.msra.mxu0 0.0
      %354 = vmatprep.subr.mxu0 0.0
      %355 = vmatpush1.msra.mxu0 0.0
      %356 = vmatprep.subr.mxu0 0.0
      %357 = vmatpush1.msra.mxu0 0.0
      %358 = vmatprep.subr.mxu0 0.0
      %359 = vmatpush1.msra.mxu0 0.0
      %360 = vmatprep.subr.mxu0 0.0
      %361 = vmatpush1.msra.mxu0 0.0
      %362 = vmatprep.subr.mxu0 0.0
      %363 = vmatpush1.msra.mxu0 0.0
      %364 = vmatprep.subr.mxu0 0.0
      %365 = vmatpush1.msra.mxu0 0.0
      %366 = vmatprep.subr.mxu0 0.0
      %367 = vmatpush1.msra.mxu0 0.0
      %368 = vmatprep.subr.mxu0 0.0
      %369 = vmatpush1.msra.mxu0 0.0
      %370 = vmatprep.subr.mxu0 0.0
      %371 = vmatpush1.msra.mxu0 0.0
      %372 = vmatprep.subr.mxu0 0.0
      %373 = vmatpush1.msra.mxu0 0.0
      %374 = vmatprep.subr.mxu0 0.0
      %375 = vmatpush1.msra.mxu0 0.0
      %376 = vmatprep.subr.mxu0 0.0
      %377 = vmatpush1.msra.mxu0 0.0
      %378 = vmatprep.subr.mxu0 0.0
      %379 = vmatpush1.msra.mxu0 0.0
      %380 = vmatprep.subr.mxu0 0.0
      %381 = vmatpush1.msra.mxu0 0.0
      %382 = vmatprep.subr.mxu0 0.0
      %383 = vmatpush1.msra.mxu0 0.0
      %384 = vmatprep.subr.mxu0 0.0
      %385 = vmatpush1.msra.mxu0 0.0
      %386 = vmatprep.subr.mxu0 0.0
      %387 = vmatpush1.msra.mxu0 0.0
      %388 = vmatprep.subr.mxu0 0.0
      %389 = vmatpush1.msra.mxu0 0.0
      %390 = vmatprep.subr.mxu0 0.0
      %391 = vmatpush1.msra.mxu0 0.0
      %392 = vmatprep.subr.mxu0 0.0
      %393 = vmatpush1.msra.mxu0 0.0
      %394 = vmatprep.subr.mxu0 0.0
      %395 = vmatpush1.msra.mxu0 0.0
      %396 = vmatprep.mubr.f32.mxu0 0.0
      %397 = vmatmul.mubr.f32.gmra.mrb[0].mxu0 %v316
      %v398 = vpop.f32.mrb[0].mxu0
      %v399 = vadd.f32 0.0, %v398
      %v400 = vpop.f32.mrb[0].mxu0
      %401 = vmatprep.mubr.f32.mxu0 0.0
      %402 = vmatmul.mubr.f32.gmra.mrb[0].mxu0 %v318
      %v403 = vpop.f32.mrb[0].mxu0
      %v404 = vadd.f32 0.0, %v403
      %v405 = vpop.f32.mrb[0].mxu0
      %406 = vmatprep.mubr.f32.mxu0 0.0
      %407 = vmatmul.mubr.f32.gmra.mrb[0].mxu0 %v320
      %v408 = vpop.f32.mrb[0].mxu0
      %v409 = vadd.f32 0.0, %v408
      %v410 = vpop.f32.mrb[0].mxu0
      %411 = vmatprep.mubr.f32.mxu0 0.0
      %412 = vmatmul.mubr.f32.gmra.mrb[0].mxu0 %v322
      %v413 = vpop.f32.mrb[0].mxu0
      %v414 = vadd.f32 0.0, %v413
      %v415 = vpop.f32.mrb[0].mxu0
      %416 = vmatprep.mubr.f32.mxu0 0.0
      %417 = vmatmul.mubr.f32.gmra.mrb[0].mxu0 %v324
      %v418 = vpop.f32.mrb[0].mxu0
      %v419 = vadd.f32 0.0, %v418
      %v420 = vpop.f32.mrb[0].mxu0
      %421 = vmatprep.mubr.f32.mxu0 0.0
      %422 = vmatmul.mubr.f32.gmra.mrb[0].mxu0 %v326
      %v423 = vpop.f32.mrb[0].mxu0
      %v424 = vadd.f32 0.0, %v423
      %v425 = vpop.f32.mrb[0].mxu0
      %426 = vmatprep.mubr.f32.mxu0 0.0
      %427 = vmatmul.mubr.f32.gmra.mrb[0].mxu0 %v328
      %v428 = vpop.f32.mrb[0].mxu0
      %v429 = vadd.f32 0.0, %v428
      %v430 = vpop.f32.mrb[0].mxu0
      %431 = vmatprep.mubr.f32.mxu0 0.0
      %432 = vmatmul.mubr.f32.gmra.mrb[0].mxu0 %v330
      %v433 = vpop.f32.mrb[0].mxu0
      %v434 = vadd.f32 0.0, %v433
      %v435 = vpop.f32.mrb[0].mxu0
      %436 = vdwg.mxu0
      %v437 = vsel %vm315, %v279, 0
      %v439 = vsel %vm315, %v280, 0
      %v441 = vsel %vm315, %v281, 0
      %v443 = vsel %vm315, %v282, 0
      %v445 = vsel %vm315, %v283, 0
      %v447 = vsel %vm315, %v284, 0
      %v449 = vsel %vm315, %v285, 0
      %v451 = vsel %vm315, %v286, 0
      %453 = vmatprep.subr.mxu0 0.0
      %454 = vmatpush1.msra.mxu0 %v288
      %455 = vmatprep.subr.mxu0 0.0
      %456 = vmatpush1.msra.mxu0 0.0
      %457 = vmatprep.subr.mxu0 0.0
      %458 = vmatpush1.msra.mxu0 0.0
      %459 = vmatprep.subr.mxu0 0.0
      %460 = vmatpush1.msra.mxu0 0.0
      %461 = vmatprep.subr.mxu0 0.0
      %462 = vmatpush1.msra.mxu0 0.0
      %463 = vmatprep.subr.mxu0 0.0
      %464 = vmatpush1.msra.mxu0 0.0
      %465 = vmatprep.subr.mxu0 0.0
      %466 = vmatpush1.msra.mxu0 0.0
      %467 = vmatprep.subr.mxu0 0.0
      %468 = vmatpush1.msra.mxu0 0.0
      %469 = vmatprep.subr.mxu0 0.0
      %470 = vmatpush1.msra.mxu0 0.0
      %471 = vmatprep.subr.mxu0 0.0
      %472 = vmatpush1.msra.mxu0 0.0
      %473 = vmatprep.subr.mxu0 0.0
      %474 = vmatpush1.msra.mxu0 0.0
      %475 = vmatprep.subr.mxu0 0.0
      %476 = vmatpush1.msra.mxu0 0.0
      %477 = vmatprep.subr.mxu0 0.0
      %478 = vmatpush1.msra.mxu0 0.0
      %479 = vmatprep.subr.mxu0 0.0
      %480 = vmatpush1.msra.mxu0 0.0
      %481 = vmatprep.subr.mxu0 0.0
      %482 = vmatpush1.msra.mxu0 0.0
      %483 = vmatprep.subr.mxu0 0.0
      %484 = vmatpush1.msra.mxu0 0.0
      %485 = vmatprep.subr.mxu0 0.0
      %486 = vmatpush1.msra.mxu0 0.0
      %487 = vmatprep.subr.mxu0 0.0
      %488 = vmatpush1.msra.mxu0 0.0
      %489 = vmatprep.subr.mxu0 0.0
      %490 = vmatpush1.msra.mxu0 0.0
      %491 = vmatprep.subr.mxu0 0.0
      %492 = vmatpush1.msra.mxu0 0.0
      %493 = vmatprep.subr.mxu0 0.0
      %494 = vmatpush1.msra.mxu0 0.0
      %495 = vmatprep.subr.mxu0 0.0
      %496 = vmatpush1.msra.mxu0 0.0
      %497 = vmatprep.subr.mxu0 0.0
      %498 = vmatpush1.msra.mxu0 0.0
      %499 = vmatprep.subr.mxu0 0.0
      %500 = vmatpush1.msra.mxu0 0.0
      %501 = vmatprep.subr.mxu0 0.0
      %502 = vmatpush1.msra.mxu0 0.0
      %503 = vmatprep.subr.mxu0 0.0
      %504 = vmatpush1.msra.mxu0 0.0
      %505 = vmatprep.subr.mxu0 0.0
      %506 = vmatpush1.msra.mxu0 0.0
      %507 = vmatprep.subr.mxu0 0.0
      %508 = vmatpush1.msra.mxu0 0.0
      %509 = vmatprep.subr.mxu0 0.0
      %510 = vmatpush1.msra.mxu0 0.0
      %511 = vmatprep.subr.mxu0 0.0
      %512 = vmatpush1.msra.mxu0 0.0
      %513 = vmatprep.subr.mxu0 0.0
      %514 = vmatpush1.msra.mxu0 0.0
      %515 = vmatprep.subr.mxu0 0.0
      %516 = vmatpush1.msra.mxu0 0.0
      %517 = vmatprep.mubr.f32.mxu0 0.0
      %518 = vmatmul.mubr.f32.gmra.mrb[0].mxu0 %v437
      %v519 = vpop.f32.mrb[0].mxu0
      %v520 = vadd.f32 %v399, %v519
      %v521 = vpop.f32.mrb[0].mxu0
      %522 = vmatprep.mubr.f32.mxu0 0.0
      %523 = vmatmul.mubr.f32.gmra.mrb[0].mxu0 %v439
      %v524 = vpop.f32.mrb[0].mxu0
      %v525 = vadd.f32 %v404, %v524
      %v526 = vpop.f32.mrb[0].mxu0
      %527 = vmatprep.mubr.f32.mxu0 0.0
      %528 = vmatmul.mubr.f32.gmra.mrb[0].mxu0 %v441
      %v529 = vpop.f32.mrb[0].mxu0
      %v530 = vadd.f32 %v409, %v529
      %v531 = vpop.f32.mrb[0].mxu0
      %532 = vmatprep.mubr.f32.mxu0 0.0
      %533 = vmatmul.mubr.f32.gmra.mrb[0].mxu0 %v443
      %v534 = vpop.f32.mrb[0].mxu0
      %v535 = vadd.f32 %v414, %v534
      %v536 = vpop.f32.mrb[0].mxu0
      %537 = vmatprep.mubr.f32.mxu0 0.0
      %538 = vmatmul.mubr.f32.gmra.mrb[0].mxu0 %v445
      %v539 = vpop.f32.mrb[0].mxu0
      %v540 = vadd.f32 %v419, %v539
      %v541 = vpop.f32.mrb[0].mxu0
      %542 = vmatprep.mubr.f32.mxu0 0.0
      %543 = vmatmul.mubr.f32.gmra.mrb[0].mxu0 %v447
      %v544 = vpop.f32.mrb[0].mxu0
      %v545 = vadd.f32 %v424, %v544
      %v546 = vpop.f32.mrb[0].mxu0
      %547 = vmatprep.mubr.f32.mxu0 0.0
      %548 = vmatmul.mubr.f32.gmra.mrb[0].mxu0 %v449
      %v549 = vpop.f32.mrb[0].mxu0
      %v550 = vadd.f32 %v429, %v549
      %v551 = vpop.f32.mrb[0].mxu0
      %552 = vmatprep.mubr.f32.mxu0 0.0
      %553 = vmatmul.mubr.f32.gmra.mrb[0].mxu0 %v451
      %v554 = vpop.f32.mrb[0].mxu0
      %v555 = vadd.f32 %v434, %v554
      %v556 = vpop.f32.mrb[0].mxu0
      %557 = vdwg.mxu0
      %s558 = scalar_lea.vmem %s1, 16
      %v559 = vld [vmem:[%s558] sm:$0xff]
      %vm561 = vcmask 1046528
      %v562 = vrot.slane %v279, 1
      %v563 = vrot.slane %v280, 1
      %v564 = vsel %vm561, %v562, %v563
      %v565 = vrot.slane %v281, 1
      %v566 = vsel %vm561, %v563, %v565
      %v567 = vrot.slane %v282, 1
      %v568 = vsel %vm561, %v565, %v567
      %v569 = vrot.slane %v283, 1
      %v570 = vsel %vm561, %v567, %v569
      %v571 = vrot.slane %v284, 1
      %v572 = vsel %vm561, %v569, %v571
      %v573 = vrot.slane %v285, 1
      %v574 = vsel %vm561, %v571, %v573
      %v575 = vrot.slane %v286, 1
      %v576 = vsel %vm561, %v573, %v575
      %v577 = vrot.slane %v287, 1
      %v578 = vsel %vm561, %v575, %v577
      %v579 = vsel %vm315, %v564, 0
      %v581 = vsel %vm315, %v566, 0
      %v583 = vsel %vm315, %v568, 0
      %v585 = vsel %vm315, %v570, 0
      %v587 = vsel %vm315, %v572, 0
      %v589 = vsel %vm315, %v574, 0
      %v591 = vsel %vm315, %v576, 0
      %v593 = vsel %vm315, %v578, 0
      %595 = vmatprep.subr.mxu0 0.0
      %596 = vmatpush1.msra.mxu0 %v559
      %597 = vmatprep.subr.mxu0 0.0
      %598 = vmatpush1.msra.mxu0 0.0
      %599 = vmatprep.subr.mxu0 0.0
      %600 = vmatpush1.msra.mxu0 0.0
      %601 = vmatprep.subr.mxu0 0.0
      %602 = vmatpush1.msra.mxu0 0.0
      %603 = vmatprep.subr.mxu0 0.0
      %604 = vmatpush1.msra.mxu0 0.0
      %605 = vmatprep.subr.mxu0 0.0
      %606 = vmatpush1.msra.mxu0 0.0
      %607 = vmatprep.subr.mxu0 0.0
      %608 = vmatpush1.msra.mxu0 0.0
      %609 = vmatprep.subr.mxu0 0.0
      %610 = vmatpush1.msra.mxu0 0.0
      %611 = vmatprep.subr.mxu0 0.0
      %612 = vmatpush1.msra.mxu0 0.0
      %613 = vmatprep.subr.mxu0 0.0
      %614 = vmatpush1.msra.mxu0 0.0
      %615 = vmatprep.subr.mxu0 0.0
      %616 = vmatpush1.msra.mxu0 0.0
      %617 = vmatprep.subr.mxu0 0.0
      %618 = vmatpush1.msra.mxu0 0.0
      %619 = vmatprep.subr.mxu0 0.0
      %620 = vmatpush1.msra.mxu0 0.0
      %621 = vmatprep.subr.mxu0 0.0
      %622 = vmatpush1.msra.mxu0 0.0
      %623 = vmatprep.subr.mxu0 0.0
      %624 = vmatpush1.msra.mxu0 0.0
      %625 = vmatprep.subr.mxu0 0.0
      %626 = vmatpush1.msra.mxu0 0.0
      %627 = vmatprep.subr.mxu0 0.0
      %628 = vmatpush1.msra.mxu0 0.0
      %629 = vmatprep.subr.mxu0 0.0
      %630 = vmatpush1.msra.mxu0 0.0
      %631 = vmatprep.subr.mxu0 0.0
      %632 = vmatpush1.msra.mxu0 0.0
      %633 = vmatprep.subr.mxu0 0.0
      %634 = vmatpush1.msra.mxu0 0.0
      %635 = vmatprep.subr.mxu0 0.0
      %636 = vmatpush1.msra.mxu0 0.0
      %637 = vmatprep.subr.mxu0 0.0
      %638 = vmatpush1.msra.mxu0 0.0
      %639 = vmatprep.subr.mxu0 0.0
      %640 = vmatpush1.msra.mxu0 0.0
      %641 = vmatprep.subr.mxu0 0.0
      %642 = vmatpush1.msra.mxu0 0.0
      %643 = vmatprep.subr.mxu0 0.0
      %644 = vmatpush1.msra.mxu0 0.0
      %645 = vmatprep.subr.mxu0 0.0
      %646 = vmatpush1.msra.mxu0 0.0
      %647 = vmatprep.subr.mxu0 0.0
      %648 = vmatpush1.msra.mxu0 0.0
      %649 = vmatprep.subr.mxu0 0.0
      %650 = vmatpush1.msra.mxu0 0.0
      %651 = vmatprep.subr.mxu0 0.0
      %652 = vmatpush1.msra.mxu0 0.0
      %653 = vmatprep.subr.mxu0 0.0
      %654 = vmatpush1.msra.mxu0 0.0
      %655 = vmatprep.subr.mxu0 0.0
      %656 = vmatpush1.msra.mxu0 0.0
      %657 = vmatprep.subr.mxu0 0.0
      %658 = vmatpush1.msra.mxu0 0.0
      %659 = vmatprep.mubr.f32.mxu0 0.0
      %660 = vmatmul.mubr.f32.gmra.mrb[0].mxu0 %v579
      %v661 = vpop.f32.mrb[0].mxu0
      %v662 = vadd.f32 0.0, %v661
      %v663 = vpop.f32.mrb[0].mxu0
      %664 = vmatprep.mubr.f32.mxu0 0.0
      %665 = vmatmul.mubr.f32.gmra.mrb[0].mxu0 %v581
      %v666 = vpop.f32.mrb[0].mxu0
      %v667 = vadd.f32 0.0, %v666
      %v668 = vpop.f32.mrb[0].mxu0
      %669 = vmatprep.mubr.f32.mxu0 0.0
      %670 = vmatmul.mubr.f32.gmra.mrb[0].mxu0 %v583
      %v671 = vpop.f32.mrb[0].mxu0
      %v672 = vadd.f32 0.0, %v671
      %v673 = vpop.f32.mrb[0].mxu0
      %674 = vmatprep.mubr.f32.mxu0 0.0
      %675 = vmatmul.mubr.f32.gmra.mrb[0].mxu0 %v585
      %v676 = vpop.f32.mrb[0].mxu0
      %v677 = vadd.f32 0.0, %v676
      %v678 = vpop.f32.mrb[0].mxu0
      %679 = vmatprep.mubr.f32.mxu0 0.0
      %680 = vmatmul.mubr.f32.gmra.mrb[0].mxu0 %v587
      %v681 = vpop.f32.mrb[0].mxu0
      %v682 = vadd.f32 0.0, %v681
      %v683 = vpop.f32.mrb[0].mxu0
      %684 = vmatprep.mubr.f32.mxu0 0.0
      %685 = vmatmul.mubr.f32.gmra.mrb[0].mxu0 %v589
      %v686 = vpop.f32.mrb[0].mxu0
      %v687 = vadd.f32 0.0, %v686
      %v688 = vpop.f32.mrb[0].mxu0
      %689 = vmatprep.mubr.f32.mxu0 0.0
      %690 = vmatmul.mubr.f32.gmra.mrb[0].mxu0 %v591
      %v691 = vpop.f32.mrb[0].mxu0
      %v692 = vadd.f32 0.0, %v691
      %v693 = vpop.f32.mrb[0].mxu0
      %694 = vmatprep.mubr.f32.mxu0 0.0
      %695 = vmatmul.mubr.f32.gmra.mrb[0].mxu0 %v593
      %v696 = vpop.f32.mrb[0].mxu0
      %v697 = vadd.f32 0.0, %v696
      %v698 = vpop.f32.mrb[0].mxu0
      %699 = vdwg.mxu0
      %v700 = vadd.f32 %v520, %v662
      %v701 = vadd.f32 %v525, %v667
      %v702 = vadd.f32 %v530, %v672
      %v703 = vadd.f32 %v535, %v677
      %v704 = vadd.f32 %v540, %v682
      %v705 = vadd.f32 %v545, %v687
      %v706 = vadd.f32 %v550, %v692
      %v707 = vadd.f32 %v555, %v697
      %v708 = vld [vmem:[%s2] sm:$0x1]
      %v710 = vlaneseq
      %v711 = vshrl.u32 %v710, 7
      %v712 = vsub.s32 0, %v711
      %v713 = vrot.slane %v708, %v712
      %v715 = vadd.f32 %v700, %v713
      %v716 = vadd.f32 %v701, %v713
      %v717 = vadd.f32 %v702, %v713
      %v718 = vadd.f32 %v703, %v713
      %v719 = vadd.f32 %v704, %v713
      %v720 = vadd.f32 %v705, %v713
      %v721 = vadd.f32 %v706, %v713
      %v722 = vadd.f32 %v707, %v713
      %v723 = vmax.f32 %v715, 0.0
      %v724 = vmax.f32 %v716, 0.0
      %v725 = vmax.f32 %v717, 0.0
      %v726 = vmax.f32 %v718, 0.0
      %v727 = vmax.f32 %v719, 0.0
      %v728 = vmax.f32 %v720, 0.0
      %v729 = vmax.f32 %v721, 0.0
      %v730 = vmax.f32 %v722, 0.0
      %v731 = vld [vmem:[%s3] sm:$0xff]
      %v732 = vld [vmem:[%s4] sm:$0x1]
      %v734 = vlaneseq
      %v735 = vshrl.u32 %v734, 7
      %v736 = vsub.s32 0, %v735
      %v737 = vrot.slane %v732, %v736
      %739 = vmatprep.subr.mxu0 0.0
      %740 = vmatpush1.msra.mxu0 %v731
      %741 = vmatprep.subr.mxu0 0.0
      %742 = vmatpush1.msra.mxu0 0.0
      %743 = vmatprep.subr.mxu0 0.0
      %744 = vmatpush1.msra.mxu0 0.0
      %745 = vmatprep.subr.mxu0 0.0
      %746 = vmatpush1.msra.mxu0 0.0
      %747 = vmatprep.subr.mxu0 0.0
      %748 = vmatpush1.msra.mxu0 0.0
      %749 = vmatprep.subr.mxu0 0.0
      %750 = vmatpush1.msra.mxu0 0.0
      %751 = vmatprep.subr.mxu0 0.0
      %752 = vmatpush1.msra.mxu0 0.0
      %753 = vmatprep.subr.mxu0 0.0
      %754 = vmatpush1.msra.mxu0 0.0
      %755 = vmatprep.subr.mxu0 0.0
      %756 = vmatpush1.msra.mxu0 0.0
      %757 = vmatprep.subr.mxu0 0.0
      %758 = vmatpush1.msra.mxu0 0.0
      %759 = vmatprep.subr.mxu0 0.0
      %760 = vmatpush1.msra.mxu0 0.0
      %761 = vmatprep.subr.mxu0 0.0
      %762 = vmatpush1.msra.mxu0 0.0
      %763 = vmatprep.subr.mxu0 0.0
      %764 = vmatpush1.msra.mxu0 0.0
      %765 = vmatprep.subr.mxu0 0.0
      %766 = vmatpush1.msra.mxu0 0.0
      %767 = vmatprep.subr.mxu0 0.0
      %768 = vmatpush1.msra.mxu0 0.0
      %769 = vmatprep.subr.mxu0 0.0
      %770 = vmatpush1.msra.mxu0 0.0
      %771 = vmatprep.subr.mxu0 0.0
      %772 = vmatpush1.msra.mxu0 0.0
      %773 = vmatprep.subr.mxu0 0.0
      %774 = vmatpush1.msra.mxu0 0.0
      %775 = vmatprep.subr.mxu0 0.0
      %776 = vmatpush1.msra.mxu0 0.0
      %777 = vmatprep.subr.mxu0 0.0
      %778 = vmatpush1.msra.mxu0 0.0
      %779 = vmatprep.subr.mxu0 0.0
      %780 = vmatpush1.msra.mxu0 0.0
      %781 = vmatprep.subr.mxu0 0.0
      %782 = vmatpush1.msra.mxu0 0.0
      %783 = vmatprep.subr.mxu0 0.0
      %784 = vmatpush1.msra.mxu0 0.0
      %785 = vmatprep.subr.mxu0 0.0
      %786 = vmatpush1.msra.mxu0 0.0
      %787 = vmatprep.subr.mxu0 0.0
      %788 = vmatpush1.msra.mxu0 0.0
      %789 = vmatprep.subr.mxu0 0.0
      %790 = vmatpush1.msra.mxu0 0.0
      %791 = vmatprep.subr.mxu0 0.0
      %792 = vmatpush1.msra.mxu0 0.0
      %793 = vmatprep.subr.mxu0 0.0
      %794 = vmatpush1.msra.mxu0 0.0
      %795 = vmatprep.subr.mxu0 0.0
      %796 = vmatpush1.msra.mxu0 0.0
      %797 = vmatprep.subr.mxu0 0.0
      %798 = vmatpush1.msra.mxu0 0.0
      %799 = vmatprep.subr.mxu0 0.0
      %800 = vmatpush1.msra.mxu0 0.0
      %801 = vmatprep.subr.mxu0 0.0
      %802 = vmatpush1.msra.mxu0 0.0
      %803 = vmatprep.mubr.f32.mxu0 0.0
      %804 = vmatmul.mubr.f32.gmra.mrb[0].mxu0 %v316
      %v805 = vpop.f32.mrb[0].mxu0
      %v806 = vadd.f32 %v737, %v805
      %v807 = vpop.f32.mrb[0].mxu0
      %808 = vmatprep.mubr.f32.mxu0 0.0
      %809 = vmatmul.mubr.f32.gmra.mrb[0].mxu0 %v318
      %v810 = vpop.f32.mrb[0].mxu0
      %v811 = vadd.f32 %v737, %v810
      %v812 = vpop.f32.mrb[0].mxu0
      %813 = vmatprep.mubr.f32.mxu0 0.0
      %814 = vmatmul.mubr.f32.gmra.mrb[0].mxu0 %v320
      %v815 = vpop.f32.mrb[0].mxu0
      %v816 = vadd.f32 %v737, %v815
      %v817 = vpop.f32.mrb[0].mxu0
      %818 = vmatprep.mubr.f32.mxu0 0.0
      %819 = vmatmul.mubr.f32.gmra.mrb[0].mxu0 %v322
      %v820 = vpop.f32.mrb[0].mxu0
      %v821 = vadd.f32 %v737, %v820
      %v822 = vpop.f32.mrb[0].mxu0
      %823 = vmatprep.mubr.f32.mxu0 0.0
      %824 = vmatmul.mubr.f32.gmra.mrb[0].mxu0 %v324
      %v825 = vpop.f32.mrb[0].mxu0
      %v826 = vadd.f32 %v737, %v825
      %v827 = vpop.f32.mrb[0].mxu0
      %828 = vmatprep.mubr.f32.mxu0 0.0
      %829 = vmatmul.mubr.f32.gmra.mrb[0].mxu0 %v326
      %v830 = vpop.f32.mrb[0].mxu0
      %v831 = vadd.f32 %v737, %v830
      %v832 = vpop.f32.mrb[0].mxu0
      %833 = vmatprep.mubr.f32.mxu0 0.0
      %834 = vmatmul.mubr.f32.gmra.mrb[0].mxu0 %v328
      %v835 = vpop.f32.mrb[0].mxu0
      %v836 = vadd.f32 %v737, %v835
      %v837 = vpop.f32.mrb[0].mxu0
      %838 = vmatprep.mubr.f32.mxu0 0.0
      %839 = vmatmul.mubr.f32.gmra.mrb[0].mxu0 %v330
      %v840 = vpop.f32.mrb[0].mxu0
      %v841 = vadd.f32 %v737, %v840
      %v842 = vpop.f32.mrb[0].mxu0
      %843 = vdwg.mxu0
      %v844 = vlaneseq
      %v845 = vshrl.u32 %v844, 7
      %v846 = vadd.s32 %v845, 8
      %v847 = vadd.s32 %v845, 16
      %v848 = vadd.s32 %v845, 24
      %v849 = vadd.s32 %v845, 32
      %v850 = vadd.s32 %v845, 40
      %v851 = vadd.s32 %v845, 48
      %v852 = vadd.s32 %v845, 56
      %vm853 = vcmp.ge.s32.totalorder %v845, 1
      %vm854 = vcmp.ge.s32.totalorder %v846, 1
      %vm855 = vcmp.ge.s32.totalorder %v847, 1
      %vm856 = vcmp.ge.s32.totalorder %v848, 1
      %vm857 = vcmp.ge.s32.totalorder %v849, 1
      %vm858 = vcmp.ge.s32.totalorder %v850, 1
      %vm859 = vcmp.ge.s32.totalorder %v851, 1
      %vm860 = vcmp.ge.s32.totalorder %v852, 1
      %v861 = vrot.slane %v723, 7
      %v862 = vrot.slane %v724, 7
      %v863 = vrot.slane %v725, 7
      %v864 = vrot.slane %v726, 7
      %v865 = vrot.slane %v727, 7
      %v866 = vrot.slane %v728, 7
      %v867 = vrot.slane %v729, 7
      %v868 = vrot.slane %v730, 7
      %vm869 = vcmp.lt.s32.totalorder %v845, 1
      %v870 = vsel %vm869, %v867, %v868
      %v871 = vsel %vm869, %v866, %v867
      %v872 = vsel %vm869, %v865, %v866
      %v873 = vsel %vm869, %v864, %v865
      %v874 = vsel %vm869, %v863, %v864
      %v875 = vsel %vm869, %v862, %v863
      %v876 = vsel %vm869, %v861, %v862
      %v877 = vsel %vm869, %v868, %v861
      %v878 = vsel %vm853, %v877, 0.0
      %v879 = vsel %vm854, %v876, 0.0
      %v880 = vsel %vm855, %v875, 0.0
      %v881 = vsel %vm856, %v874, 0.0
      %v882 = vsel %vm857, %v873, 0.0
      %v883 = vsel %vm858, %v872, 0.0
      %v884 = vsel %vm859, %v871, 0.0
      %v885 = vsel %vm860, %v870, 0.0
      %vm886 = vcmp.le.s32.totalorder %v845, 62
      %vm887 = vcmp.le.s32.totalorder %v846, 62
      %vm888 = vcmp.le.s32.totalorder %v847, 62
      %vm889 = vcmp.le.s32.totalorder %v848, 62
      %vm890 = vcmp.le.s32.totalorder %v849, 62
      %vm891 = vcmp.le.s32.totalorder %v850, 62
      %vm892 = vcmp.le.s32.totalorder %v851, 62
      %vm893 = vcmp.le.s32.totalorder %v852, 62
      %v894 = vrot.slane %v723, 1
      %v895 = vrot.slane %v724, 1
      %v896 = vrot.slane %v725, 1
      %v897 = vrot.slane %v726, 1
      %v898 = vrot.slane %v727, 1
      %v899 = vrot.slane %v728, 1
      %v900 = vrot.slane %v729, 1
      %v901 = vrot.slane %v730, 1
      %vm902 = vcmp.lt.s32.totalorder %v845, 7
      %v903 = vsel %vm902, %v900, %v901
      %v904 = vsel %vm902, %v899, %v900
      %v905 = vsel %vm902, %v898, %v899
      %v906 = vsel %vm902, %v897, %v898
      %v907 = vsel %vm902, %v896, %v897
      %v908 = vsel %vm902, %v895, %v896
      %v909 = vsel %vm902, %v894, %v895
      %v910 = vsel %vm902, %v901, %v894
      %v911 = vsel %vm886, %v909, 0.0
      %v912 = vsel %vm887, %v908, 0.0
      %v913 = vsel %vm888, %v907, 0.0
      %v914 = vsel %vm889, %v906, 0.0
      %v915 = vsel %vm890, %v905, 0.0
      %v916 = vsel %vm891, %v904, 0.0
      %v917 = vsel %vm892, %v903, 0.0
      %v918 = vsel %vm893, %v910, 0.0
      %v919 = vld [vmem:[%s5] sm:$0xff]
      %v920 = vld [vmem:[%s5 + $0x8] sm:$0xff]
      %v921 = vld [vmem:[%s5 + $0x10] sm:$0xff]
      %v922 = vld [vmem:[%s5 + $0x18] sm:$0xff]
      %v923 = vld [vmem:[%s5 + $0x20] sm:$0xff]
      %v924 = vld [vmem:[%s5 + $0x28] sm:$0xff]
      %v925 = vld [vmem:[%s5 + $0x30] sm:$0xff]
      %v926 = vld [vmem:[%s5 + $0x38] sm:$0xff]
      %s927 = scalar_lea.vmem %s5, 64
      %v928 = vld [vmem:[%s927] sm:$0xff]
      %v929 = vld [vmem:[%s927 + $0x8] sm:$0xff]
      %v930 = vld [vmem:[%s927 + $0x10] sm:$0xff]
      %v931 = vld [vmem:[%s927 + $0x18] sm:$0xff]
      %v932 = vld [vmem:[%s927 + $0x20] sm:$0xff]
      %v933 = vld [vmem:[%s927 + $0x28] sm:$0xff]
      %v934 = vld [vmem:[%s927 + $0x30] sm:$0xff]
      %v935 = vld [vmem:[%s927 + $0x38] sm:$0xff]
      %vm936 = vcmask 523264
      %v938 = vsel %vm936, %v723, 0
      %v941 = vsel %vm936, %v724, 0
      %v944 = vsel %vm936, %v725, 0
      %v947 = vsel %vm936, %v726, 0
      %v950 = vsel %vm936, %v727, 0
      %v953 = vsel %vm936, %v728, 0
      %v956 = vsel %vm936, %v729, 0
      %v959 = vsel %vm936, %v730, 0
      %961 = vmatprep.subr.mxu0 0.0
      %962 = vmatpush1.msra.mxu0 %v928
      %963 = vmatprep.subr.mxu0 0.0
      %964 = vmatpush1.msra.mxu0 %v929
      %965 = vmatprep.subr.mxu0 0.0
      %966 = vmatpush1.msra.mxu0 %v930
      %967 = vmatprep.subr.mxu0 0.0
      %968 = vmatpush1.msra.mxu0 %v931
      %969 = vmatprep.subr.mxu0 0.0
      %970 = vmatpush1.msra.mxu0 %v932
      %971 = vmatprep.subr.mxu0 0.0
      %972 = vmatpush1.msra.mxu0 %v933
      %973 = vmatprep.subr.mxu0 0.0
      %974 = vmatpush1.msra.mxu0 %v934
      %975 = vmatprep.subr.mxu0 0.0
      %976 = vmatpush1.msra.mxu0 %v935
      %977 = vmatprep.subr.mxu0 0.0
      %978 = vmatpush1.msra.mxu0 0.0
      %979 = vmatprep.subr.mxu0 0.0
      %980 = vmatpush1.msra.mxu0 0.0
      %981 = vmatprep.subr.mxu0 0.0
      %982 = vmatpush1.msra.mxu0 0.0
      %983 = vmatprep.subr.mxu0 0.0
      %984 = vmatpush1.msra.mxu0 0.0
      %985 = vmatprep.subr.mxu0 0.0
      %986 = vmatpush1.msra.mxu0 0.0
      %987 = vmatprep.subr.mxu0 0.0
      %988 = vmatpush1.msra.mxu0 0.0
      %989 = vmatprep.subr.mxu0 0.0
      %990 = vmatpush1.msra.mxu0 0.0
      %991 = vmatprep.subr.mxu0 0.0
      %992 = vmatpush1.msra.mxu0 0.0
      %993 = vmatprep.subr.mxu0 0.0
      %994 = vmatpush1.msra.mxu0 0.0
      %995 = vmatprep.subr.mxu0 0.0
      %996 = vmatpush1.msra.mxu0 0.0
      %997 = vmatprep.subr.mxu0 0.0
      %998 = vmatpush1.msra.mxu0 0.0
      %999 = vmatprep.subr.mxu0 0.0
      %1000 = vmatpush1.msra.mxu0 0.0
      %1001 = vmatprep.subr.mxu0 0.0
      %1002 = vmatpush1.msra.mxu0 0.0
      %1003 = vmatprep.subr.mxu0 0.0
      %1004 = vmatpush1.msra.mxu0 0.0
      %1005 = vmatprep.subr.mxu0 0.0
      %1006 = vmatpush1.msra.mxu0 0.0
      %1007 = vmatprep.subr.mxu0 0.0
      %1008 = vmatpush1.msra.mxu0 0.0
      %1009 = vmatprep.subr.mxu0 0.0
      %1010 = vmatpush1.msra.mxu0 0.0
      %1011 = vmatprep.subr.mxu0 0.0
      %1012 = vmatpush1.msra.mxu0 0.0
      %1013 = vmatprep.subr.mxu0 0.0
      %1014 = vmatpush1.msra.mxu0 0.0
      %1015 = vmatprep.subr.mxu0 0.0
      %1016 = vmatpush1.msra.mxu0 0.0
      %1017 = vmatprep.subr.mxu0 0.0
      %1018 = vmatpush1.msra.mxu0 0.0
      %1019 = vmatprep.subr.mxu0 0.0
      %1020 = vmatpush1.msra.mxu0 0.0
      %1021 = vmatprep.subr.mxu0 0.0
      %1022 = vmatpush1.msra.mxu0 0.0
      %1023 = vmatprep.subr.mxu0 0.0
      %1024 = vmatpush1.msra.mxu0 0.0
      %1025 = vmatprep.mubr.f32.mxu0 0.0
      %1026 = vmatmul.mubr.f32.gmra.mrb[0].mxu0 %v938
      %v1027 = vpop.f32.mrb[0].mxu0
      %v1028 = vadd.f32 0.0, %v1027
      %v1029 = vpop.f32.mrb[0].mxu0
      %1030 = vmatprep.mubr.f32.mxu0 0.0
      %1031 = vmatmul.mubr.f32.gmra.mrb[0].mxu0 %v941
      %v1032 = vpop.f32.mrb[0].mxu0
      %v1033 = vadd.f32 0.0, %v1032
      %v1034 = vpop.f32.mrb[0].mxu0
      %1035 = vmatprep.mubr.f32.mxu0 0.0
      %1036 = vmatmul.mubr.f32.gmra.mrb[0].mxu0 %v944
      %v1037 = vpop.f32.mrb[0].mxu0
      %v1038 = vadd.f32 0.0, %v1037
      %v1039 = vpop.f32.mrb[0].mxu0
      %1040 = vmatprep.mubr.f32.mxu0 0.0
      %1041 = vmatmul.mubr.f32.gmra.mrb[0].mxu0 %v947
      %v1042 = vpop.f32.mrb[0].mxu0
      %v1043 = vadd.f32 0.0, %v1042
      %v1044 = vpop.f32.mrb[0].mxu0
      %1045 = vmatprep.mubr.f32.mxu0 0.0
      %1046 = vmatmul.mubr.f32.gmra.mrb[0].mxu0 %v950
      %v1047 = vpop.f32.mrb[0].mxu0
      %v1048 = vadd.f32 0.0, %v1047
      %v1049 = vpop.f32.mrb[0].mxu0
      %1050 = vmatprep.mubr.f32.mxu0 0.0
      %1051 = vmatmul.mubr.f32.gmra.mrb[0].mxu0 %v953
      %v1052 = vpop.f32.mrb[0].mxu0
      %v1053 = vadd.f32 0.0, %v1052
      %v1054 = vpop.f32.mrb[0].mxu0
      %1055 = vmatprep.mubr.f32.mxu0 0.0
      %1056 = vmatmul.mubr.f32.gmra.mrb[0].mxu0 %v956
      %v1057 = vpop.f32.mrb[0].mxu0
      %v1058 = vadd.f32 0.0, %v1057
      %v1059 = vpop.f32.mrb[0].mxu0
      %1060 = vmatprep.mubr.f32.mxu0 0.0
      %1061 = vmatmul.mubr.f32.gmra.mrb[0].mxu0 %v959
      %v1062 = vpop.f32.mrb[0].mxu0
      %v1063 = vadd.f32 0.0, %v1062
      %v1064 = vpop.f32.mrb[0].mxu0
      %1065 = vdwg.mxu0
      %v1067 = vsel %vm936, %v878, 0
      %v1070 = vsel %vm936, %v879, 0
      %v1073 = vsel %vm936, %v880, 0
      %v1076 = vsel %vm936, %v881, 0
      %v1079 = vsel %vm936, %v882, 0
      %v1082 = vsel %vm936, %v883, 0
      %v1085 = vsel %vm936, %v884, 0
      %v1088 = vsel %vm936, %v885, 0
      %1090 = vmatprep.subr.mxu0 0.0
      %1091 = vmatpush1.msra.mxu0 %v919
      %1092 = vmatprep.subr.mxu0 0.0
      %1093 = vmatpush1.msra.mxu0 %v920
      %1094 = vmatprep.subr.mxu0 0.0
      %1095 = vmatpush1.msra.mxu0 %v921
      %1096 = vmatprep.subr.mxu0 0.0
      %1097 = vmatpush1.msra.mxu0 %v922
      %1098 = vmatprep.subr.mxu0 0.0
      %1099 = vmatpush1.msra.mxu0 %v923
      %1100 = vmatprep.subr.mxu0 0.0
      %1101 = vmatpush1.msra.mxu0 %v924
      %1102 = vmatprep.subr.mxu0 0.0
      %1103 = vmatpush1.msra.mxu0 %v925
      %1104 = vmatprep.subr.mxu0 0.0
      %1105 = vmatpush1.msra.mxu0 %v926
      %1106 = vmatprep.subr.mxu0 0.0
      %1107 = vmatpush1.msra.mxu0 0.0
      %1108 = vmatprep.subr.mxu0 0.0
      %1109 = vmatpush1.msra.mxu0 0.0
      %1110 = vmatprep.subr.mxu0 0.0
      %1111 = vmatpush1.msra.mxu0 0.0
      %1112 = vmatprep.subr.mxu0 0.0
      %1113 = vmatpush1.msra.mxu0 0.0
      %1114 = vmatprep.subr.mxu0 0.0
      %1115 = vmatpush1.msra.mxu0 0.0
      %1116 = vmatprep.subr.mxu0 0.0
      %1117 = vmatpush1.msra.mxu0 0.0
      %1118 = vmatprep.subr.mxu0 0.0
      %1119 = vmatpush1.msra.mxu0 0.0
      %1120 = vmatprep.subr.mxu0 0.0
      %1121 = vmatpush1.msra.mxu0 0.0
      %1122 = vmatprep.subr.mxu0 0.0
      %1123 = vmatpush1.msra.mxu0 0.0
      %1124 = vmatprep.subr.mxu0 0.0
      %1125 = vmatpush1.msra.mxu0 0.0
      %1126 = vmatprep.subr.mxu0 0.0
      %1127 = vmatpush1.msra.mxu0 0.0
      %1128 = vmatprep.subr.mxu0 0.0
      %1129 = vmatpush1.msra.mxu0 0.0
      %1130 = vmatprep.subr.mxu0 0.0
      %1131 = vmatpush1.msra.mxu0 0.0
      %1132 = vmatprep.subr.mxu0 0.0
      %1133 = vmatpush1.msra.mxu0 0.0
      %1134 = vmatprep.subr.mxu0 0.0
      %1135 = vmatpush1.msra.mxu0 0.0
      %1136 = vmatprep.subr.mxu0 0.0
      %1137 = vmatpush1.msra.mxu0 0.0
      %1138 = vmatprep.subr.mxu0 0.0
      %1139 = vmatpush1.msra.mxu0 0.0
      %1140 = vmatprep.subr.mxu0 0.0
      %1141 = vmatpush1.msra.mxu0 0.0
      %1142 = vmatprep.subr.mxu0 0.0
      %1143 = vmatpush1.msra.mxu0 0.0
      %1144 = vmatprep.subr.mxu0 0.0
      %1145 = vmatpush1.msra.mxu0 0.0
      %1146 = vmatprep.subr.mxu0 0.0
      %1147 = vmatpush1.msra.mxu0 0.0
      %1148 = vmatprep.subr.mxu0 0.0
      %1149 = vmatpush1.msra.mxu0 0.0
      %1150 = vmatprep.subr.mxu0 0.0
      %1151 = vmatpush1.msra.mxu0 0.0
      %1152 = vmatprep.subr.mxu0 0.0
      %1153 = vmatpush1.msra.mxu0 0.0
      %1154 = vmatprep.mubr.f32.mxu0 0.0
      %1155 = vmatmul.mubr.f32.gmra.mrb[0].mxu0 %v1067
      %v1156 = vpop.f32.mrb[0].mxu0
      %v1157 = vadd.f32 %v1028, %v1156
      %v1158 = vpop.f32.mrb[0].mxu0
      %1159 = vmatprep.mubr.f32.mxu0 0.0
      %1160 = vmatmul.mubr.f32.gmra.mrb[0].mxu0 %v1070
      %v1161 = vpop.f32.mrb[0].mxu0
      %v1162 = vadd.f32 %v1033, %v1161
      %v1163 = vpop.f32.mrb[0].mxu0
      %1164 = vmatprep.mubr.f32.mxu0 0.0
      %1165 = vmatmul.mubr.f32.gmra.mrb[0].mxu0 %v1073
      %v1166 = vpop.f32.mrb[0].mxu0
      %v1167 = vadd.f32 %v1038, %v1166
      %v1168 = vpop.f32.mrb[0].mxu0
      %1169 = vmatprep.mubr.f32.mxu0 0.0
      %1170 = vmatmul.mubr.f32.gmra.mrb[0].mxu0 %v1076
      %v1171 = vpop.f32.mrb[0].mxu0
      %v1172 = vadd.f32 %v1043, %v1171
      %v1173 = vpop.f32.mrb[0].mxu0
      %1174 = vmatprep.mubr.f32.mxu0 0.0
      %1175 = vmatmul.mubr.f32.gmra.mrb[0].mxu0 %v1079
      %v1176 = vpop.f32.mrb[0].mxu0
      %v1177 = vadd.f32 %v1048, %v1176
      %v1178 = vpop.f32.mrb[0].mxu0
      %1179 = vmatprep.mubr.f32.mxu0 0.0
      %1180 = vmatmul.mubr.f32.gmra.mrb[0].mxu0 %v1082
      %v1181 = vpop.f32.mrb[0].mxu0
      %v1182 = vadd.f32 %v1053, %v1181
      %v1183 = vpop.f32.mrb[0].mxu0
      %1184 = vmatprep.mubr.f32.mxu0 0.0
      %1185 = vmatmul.mubr.f32.gmra.mrb[0].mxu0 %v1085
      %v1186 = vpop.f32.mrb[0].mxu0
      %v1187 = vadd.f32 %v1058, %v1186
      %v1188 = vpop.f32.mrb[0].mxu0
      %1189 = vmatprep.mubr.f32.mxu0 0.0
      %1190 = vmatmul.mubr.f32.gmra.mrb[0].mxu0 %v1088
      %v1191 = vpop.f32.mrb[0].mxu0
      %v1192 = vadd.f32 %v1063, %v1191
      %v1193 = vpop.f32.mrb[0].mxu0
      %1194 = vdwg.mxu0
      %s1195 = scalar_lea.vmem %s5, 128
      %v1196 = vld [vmem:[%s1195] sm:$0xff]
      %v1197 = vld [vmem:[%s1195 + $0x8] sm:$0xff]
      %v1198 = vld [vmem:[%s1195 + $0x10] sm:$0xff]
      %v1199 = vld [vmem:[%s1195 + $0x18] sm:$0xff]
      %v1200 = vld [vmem:[%s1195 + $0x20] sm:$0xff]
      %v1201 = vld [vmem:[%s1195 + $0x28] sm:$0xff]
      %v1202 = vld [vmem:[%s1195 + $0x30] sm:$0xff]
      %v1203 = vld [vmem:[%s1195 + $0x38] sm:$0xff]
      %v1205 = vsel %vm936, %v911, 0
      %v1208 = vsel %vm936, %v912, 0
      %v1211 = vsel %vm936, %v913, 0
      %v1214 = vsel %vm936, %v914, 0
      %v1217 = vsel %vm936, %v915, 0
      %v1220 = vsel %vm936, %v916, 0
      %v1223 = vsel %vm936, %v917, 0
      %v1226 = vsel %vm936, %v918, 0
      %1228 = vmatprep.subr.mxu0 0.0
      %1229 = vmatpush1.msra.mxu0 %v1196
      %1230 = vmatprep.subr.mxu0 0.0
      %1231 = vmatpush1.msra.mxu0 %v1197
      %1232 = vmatprep.subr.mxu0 0.0
      %1233 = vmatpush1.msra.mxu0 %v1198
      %1234 = vmatprep.subr.mxu0 0.0
      %1235 = vmatpush1.msra.mxu0 %v1199
      %1236 = vmatprep.subr.mxu0 0.0
      %1237 = vmatpush1.msra.mxu0 %v1200
      %1238 = vmatprep.subr.mxu0 0.0
      %1239 = vmatpush1.msra.mxu0 %v1201
      %1240 = vmatprep.subr.mxu0 0.0
      %1241 = vmatpush1.msra.mxu0 %v1202
      %1242 = vmatprep.subr.mxu0 0.0
      %1243 = vmatpush1.msra.mxu0 %v1203
      %1244 = vmatprep.subr.mxu0 0.0
      %1245 = vmatpush1.msra.mxu0 0.0
      %1246 = vmatprep.subr.mxu0 0.0
      %1247 = vmatpush1.msra.mxu0 0.0
      %1248 = vmatprep.subr.mxu0 0.0
      %1249 = vmatpush1.msra.mxu0 0.0
      %1250 = vmatprep.subr.mxu0 0.0
      %1251 = vmatpush1.msra.mxu0 0.0
      %1252 = vmatprep.subr.mxu0 0.0
      %1253 = vmatpush1.msra.mxu0 0.0
      %1254 = vmatprep.subr.mxu0 0.0
      %1255 = vmatpush1.msra.mxu0 0.0
      %1256 = vmatprep.subr.mxu0 0.0
      %1257 = vmatpush1.msra.mxu0 0.0
      %1258 = vmatprep.subr.mxu0 0.0
      %1259 = vmatpush1.msra.mxu0 0.0
      %1260 = vmatprep.subr.mxu0 0.0
      %1261 = vmatpush1.msra.mxu0 0.0
      %1262 = vmatprep.subr.mxu0 0.0
      %1263 = vmatpush1.msra.mxu0 0.0
      %1264 = vmatprep.subr.mxu0 0.0
      %1265 = vmatpush1.msra.mxu0 0.0
      %1266 = vmatprep.subr.mxu0 0.0
      %1267 = vmatpush1.msra.mxu0 0.0
      %1268 = vmatprep.subr.mxu0 0.0
      %1269 = vmatpush1.msra.mxu0 0.0
      %1270 = vmatprep.subr.mxu0 0.0
      %1271 = vmatpush1.msra.mxu0 0.0
      %1272 = vmatprep.subr.mxu0 0.0
      %1273 = vmatpush1.msra.mxu0 0.0
      %1274 = vmatprep.subr.mxu0 0.0
      %1275 = vmatpush1.msra.mxu0 0.0
      %1276 = vmatprep.subr.mxu0 0.0
      %1277 = vmatpush1.msra.mxu0 0.0
      %1278 = vmatprep.subr.mxu0 0.0
      %1279 = vmatpush1.msra.mxu0 0.0
      %1280 = vmatprep.subr.mxu0 0.0
      %1281 = vmatpush1.msra.mxu0 0.0
      %1282 = vmatprep.subr.mxu0 0.0
      %1283 = vmatpush1.msra.mxu0 0.0
      %1284 = vmatprep.subr.mxu0 0.0
      %1285 = vmatpush1.msra.mxu0 0.0
      %1286 = vmatprep.subr.mxu0 0.0
      %1287 = vmatpush1.msra.mxu0 0.0
      %1288 = vmatprep.subr.mxu0 0.0
      %1289 = vmatpush1.msra.mxu0 0.0
      %1290 = vmatprep.subr.mxu0 0.0
      %1291 = vmatpush1.msra.mxu0 0.0
      %1292 = vmatprep.mubr.f32.mxu0 0.0
      %1293 = vmatmul.mubr.f32.gmra.mrb[0].mxu0 %v1205
      %v1294 = vpop.f32.mrb[0].mxu0
      %v1295 = vadd.f32 0.0, %v1294
      %v1296 = vpop.f32.mrb[0].mxu0
      %1297 = vmatprep.mubr.f32.mxu0 0.0
      %1298 = vmatmul.mubr.f32.gmra.mrb[0].mxu0 %v1208
      %v1299 = vpop.f32.mrb[0].mxu0
      %v1300 = vadd.f32 0.0, %v1299
      %v1301 = vpop.f32.mrb[0].mxu0
      %1302 = vmatprep.mubr.f32.mxu0 0.0
      %1303 = vmatmul.mubr.f32.gmra.mrb[0].mxu0 %v1211
      %v1304 = vpop.f32.mrb[0].mxu0
      %v1305 = vadd.f32 0.0, %v1304
      %v1306 = vpop.f32.mrb[0].mxu0
      %1307 = vmatprep.mubr.f32.mxu0 0.0
      %1308 = vmatmul.mubr.f32.gmra.mrb[0].mxu0 %v1214
      %v1309 = vpop.f32.mrb[0].mxu0
      %v1310 = vadd.f32 0.0, %v1309
      %v1311 = vpop.f32.mrb[0].mxu0
      %1312 = vmatprep.mubr.f32.mxu0 0.0
      %1313 = vmatmul.mubr.f32.gmra.mrb[0].mxu0 %v1217
      %v1314 = vpop.f32.mrb[0].mxu0
      %v1315 = vadd.f32 0.0, %v1314
      %v1316 = vpop.f32.mrb[0].mxu0
      %1317 = vmatprep.mubr.f32.mxu0 0.0
      %1318 = vmatmul.mubr.f32.gmra.mrb[0].mxu0 %v1220
      %v1319 = vpop.f32.mrb[0].mxu0
      %v1320 = vadd.f32 0.0, %v1319
      %v1321 = vpop.f32.mrb[0].mxu0
      %1322 = vmatprep.mubr.f32.mxu0 0.0
      %1323 = vmatmul.mubr.f32.gmra.mrb[0].mxu0 %v1223
      %v1324 = vpop.f32.mrb[0].mxu0
      %v1325 = vadd.f32 0.0, %v1324
      %v1326 = vpop.f32.mrb[0].mxu0
      %1327 = vmatprep.mubr.f32.mxu0 0.0
      %1328 = vmatmul.mubr.f32.gmra.mrb[0].mxu0 %v1226
      %v1329 = vpop.f32.mrb[0].mxu0
      %v1330 = vadd.f32 0.0, %v1329
      %v1331 = vpop.f32.mrb[0].mxu0
      %1332 = vdwg.mxu0
      %v1333 = vadd.f32 %v1157, %v1295
      %v1334 = vadd.f32 %v1162, %v1300
      %v1335 = vadd.f32 %v1167, %v1305
      %v1336 = vadd.f32 %v1172, %v1310
      %v1337 = vadd.f32 %v1177, %v1315
      %v1338 = vadd.f32 %v1182, %v1320
      %v1339 = vadd.f32 %v1187, %v1325
      %v1340 = vadd.f32 %v1192, %v1330
      %v1341 = vld [vmem:[%s6] sm:$0x1]
      %v1343 = vlaneseq
      %v1344 = vshrl.u32 %v1343, 7
      %v1345 = vsub.s32 0, %v1344
      %v1346 = vrot.slane %v1341, %v1345
      %v1348 = vadd.f32 %v1333, %v1346
      %v1349 = vadd.f32 %v1334, %v1346
      %v1350 = vadd.f32 %v1335, %v1346
      %v1351 = vadd.f32 %v1336, %v1346
      %v1352 = vadd.f32 %v1337, %v1346
      %v1353 = vadd.f32 %v1338, %v1346
      %v1354 = vadd.f32 %v1339, %v1346
      %v1355 = vadd.f32 %v1340, %v1346
      %v1356 = vadd.f32 %v1348, %v806
      %v1357 = vadd.f32 %v1349, %v811
      %v1358 = vadd.f32 %v1350, %v816
      %v1359 = vadd.f32 %v1351, %v821
      %v1360 = vadd.f32 %v1352, %v826
      %v1361 = vadd.f32 %v1353, %v831
      %v1362 = vadd.f32 %v1354, %v836
      %v1363 = vadd.f32 %v1355, %v841
      %v1364 = vmax.f32 %v1356, 0.0
      %v1365 = vmax.f32 %v1357, 0.0
      %v1366 = vmax.f32 %v1358, 0.0
      %v1367 = vmax.f32 %v1359, 0.0
      %v1368 = vmax.f32 %v1360, 0.0
      %v1369 = vmax.f32 %v1361, 0.0
      %v1370 = vmax.f32 %v1362, 0.0
      %v1371 = vmax.f32 %v1363, 0.0
      %1372 = vst.msk [vmem:[%s278] sm:$0xff] %vm936, %v1364
      %1373 = vst.msk [vmem:[%s278 + $0x8] sm:$0xff] %vm936, %v1365
      %1374 = vst.msk [vmem:[%s278 + $0x10] sm:$0xff] %vm936, %v1366
      %1375 = vst.msk [vmem:[%s278 + $0x18] sm:$0xff] %vm936, %v1367
      %1376 = vst.msk [vmem:[%s278 + $0x20] sm:$0xff] %vm936, %v1368
      %1377 = vst.msk [vmem:[%s278 + $0x28] sm:$0xff] %vm936, %v1369
      %1378 = vst.msk [vmem:[%s278 + $0x30] sm:$0xff] %vm936, %v1370
      %1379 = vst.msk [vmem:[%s278 + $0x38] sm:$0xff] %vm936, %v1371
      %p1380 = scmp.lt.s32.totalorder %s18, 1
      %s1381 = scalar_select %p1380, %s18, 1
      %s1382 = smul.addr %s1381, 8
      %s1383 = smul.addr %s1382, 8
      %s1384 = scalar_lea.vmem %s7, %s1383
      // Predicated region
      $region49: #{emg_encoder_transformer_forward.8} parent=47 // pred_check
        %p1385 = pneg %p188
      $region50: #{emg_encoder_transformer_forward.8} parent=47 // pred_check_branch
        %1387 = sbr.rel (%p1385) target = $region52
      $region51: #{emg_encoder_transformer_forward.8} parent=47 // pred_region
        _
      $region52: #{emg_encoder_transformer_forward.8} parent=47 // pred_fallthru
        _
    $region48: #{emg_encoder_transformer_forward.8} parent=5 // pred_fallthru
      _
    %p1388 = scmp.le.s32.totalorder 2, %s13
    // Predicated region
    $region53: #{emg_encoder_transformer_forward.8} parent=5 // pred_check
      %p1389 = pneg %p1388
    $region54: #{emg_encoder_transformer_forward.8} parent=5 // pred_check_branch
      %1391 = sbr.rel (%p1389) target = $region56
    $region55: #{emg_encoder_transformer_forward.8} parent=5 // pred_region
      %s1392 = ssub.s32 %s13, 2
      // Predicated region
      $region57: #{emg_encoder_transformer_forward.8} parent=55 // pred_check
        %p1393 = pneg %p194
      $region58: #{emg_encoder_transformer_forward.8} parent=55 // pred_check_branch
        %1395 = sbr.rel (%p1393) target = $region60
      $region59: #{emg_encoder_transformer_forward.8} parent=55 // pred_region
        %p1396 = scmp.lt.s32.totalorder %s19, 1
        %s1397 = scalar_select %p1396, %s19, 1
        %s1398 = smul.addr %s1397, 8
        %s1399 = smul.addr %s1398, 8
        %s1400 = scalar_lea.vmem %s7, %s1399
      $region60: #{emg_encoder_transformer_forward.8} parent=55 // pred_fallthru
        _
    $region56: #{emg_encoder_transformer_forward.8} parent=5 // pred_fallthru
      _
  $region6: #{emg_encoder_transformer_forward.8} parent=0 // loop_footer
    %s17 = sadd.s32 1, %s13
  $region7: #{emg_encoder_transformer_forward.8} parent=0 // loop_footer_branch
    %12 = sbr.rel target = $region3
  $region8: #{emg_encoder_transformer_forward.8} parent=0 // loop_exit
    _

// kernel: emg_encoder_transformer_forward.9
$region0: #{emg_encoder_transformer_forward.9}
  #allocation0 [shape = 'u32[]', space=smem, size = 0x4, offset = 0x4, fixed_abs, tag = 'smem constant byte address 0x4 - core index']
  #allocation1 [shape = 'u32[144,128]{1,0:T(1,128)}', space=vmem, size = 0x12000, scoped, tag = 'internal scratch']
  %s0 = inlined_call_operand.vmem [shape: f32[2,33,128], index: 0, kind: input, shape index: {}]
  %s1 = inlined_call_operand.vmem [shape: f32[3,64,64], index: 1, kind: input, shape index: {}]
  %s2 = inlined_call_operand.vmem [shape: f32[1,64], index: 2, kind: input, shape index: {}]
  %s3 = inlined_call_operand.vmem [shape: f32[64,64], index: 3, kind: input, shape index: {}]
  %s4 = inlined_call_operand.vmem [shape: f32[1,64], index: 4, kind: input, shape index: {}]
  %s5 = inlined_call_operand.vmem [shape: f32[3,64,64], index: 5, kind: input, shape index: {}]
  %s6 = inlined_call_operand.vmem [shape: f32[1,64], index: 6, kind: input, shape index: {}]
  %s7 = inlined_call_operand.vmem [shape: f32[2,32,64], index: 7, kind: output, shape index: {}]
  %s8 = sld [smem:[#allocation0]]
  $region61: #{emg_encoder_transformer_forward.9} parent=0
    _
  %s10 = ssub.s32 1, %s8
  %s11 = scalar_select 0, %s10, %s8
  loop: start=0, step=1, limit=4
  $region2: #{emg_encoder_transformer_forward.9} parent=0 // loop_pre_header
    _
  $region3: #{emg_encoder_transformer_forward.9} parent=0 // loop_header
    %s13 = sphi 0, %s17
    %p14 = scmp.ge.s32.totalorder %s13, 4
    %s23 = sphi 0, %s25
    %s26 = sphi 0, %s23
    %s27 = sphi 0, %s26
    %s43 = sphi 0, %s27
    %s47 = sphi 0, %s47
    %s49 = sphi 0, %s47
    %s50 = sphi 0, %s49
    %s64 = sphi 0, %s50
    %s68 = sphi 0, %s68
    %s70 = sphi 0, %s68
    %s71 = sphi 0, %s70
    %s85 = sphi 0, %s71
    %s89 = sphi 0, %s89
    %s91 = sphi 0, %s89
    %s92 = sphi 0, %s91
    %s106 = sphi 0, %s92
    %s110 = sphi 0, %s110
    %s112 = sphi 0, %s110
    %s113 = sphi 0, %s112
    %s127 = sphi 0, %s113
    %s131 = sphi 0, %s131
    %s133 = sphi 0, %s131
    %s134 = sphi 0, %s133
    %s148 = sphi 0, %s134
    %s152 = sphi 0, %s152
    %s154 = sphi 0, %s152
    %s155 = sphi 0, %s154
    %s169 = sphi 0, %s155
    %s175 = sphi 0, %s177
    %s178 = sphi 0, %s175
    %s179 = sphi 0, %s178
    %s195 = sphi 0, %s179
  $region4: #{emg_encoder_transformer_forward.9} parent=0 // loop_header_branch
    %16 = sbr.rel (%p14) target = $region8
  $region5: #{emg_encoder_transformer_forward.9} parent=0 // loop_body
    %s18 = ssub.s32 %s13, 1
    %s19 = ssub.s32 %s13, 2
    %s20 = sadd.s32 %s13, 1
    %s21 = ssub.s32 %s13, %s20
    %p22 = scmp.eq.s32.totalorder %s21, 0
    %s24 = sadd.s32 %s23, 1
    %s25 = scalar_select %p22, %s23, %s24
    %p28 = pneg %p22
    %p29 = scmp.eq.s32.totalorder %s13, 1
    %p30 = por %p28, %p29
    %p31 = scmp.ne.s32.totalorder %s23, %s26
    %p32 = scmp.eq.s32.totalorder %s13, 0
    %p33 = por %p31, %p32
    %p34 = scmp.ne.s32.totalorder %s23, %s26
    %p35 = scmp.eq.s32.totalorder %s18, 1
    %p36 = por %p34, %p35
    %p37 = scmp.ne.s32.totalorder %s26, %s27
    %p38 = scmp.eq.s32.totalorder %s18, 0
    %p39 = por %p37, %p38
    %p40 = scmp.ne.s32.totalorder %s26, %s27
    %p41 = scmp.eq.s32.totalorder %s19, 1
    %p42 = por %p40, %p41
    %p44 = scmp.ne.s32.totalorder %s27, %s43
    %p45 = scmp.eq.s32.totalorder %s19, 0
    %p46 = por %p44, %p45
    %s48 = sadd.s32 %s47, 1
    %p51 = scmp.eq.s32.totalorder %s13, 1
    %p52 = scmp.ne.s32.totalorder %s47, %s49
    %p53 = scmp.eq.s32.totalorder %s13, 0
    %p54 = por %p52, %p53
    %p55 = scmp.ne.s32.totalorder %s47, %s49
    %p56 = scmp.eq.s32.totalorder %s18, 1
    %p57 = por %p55, %p56
    %p58 = scmp.ne.s32.totalorder %s49, %s50
    %p59 = scmp.eq.s32.totalorder %s18, 0
    %p60 = por %p58, %p59
    %p61 = scmp.ne.s32.totalorder %s49, %s50
    %p62 = scmp.eq.s32.totalorder %s19, 1
    %p63 = por %p61, %p62
    %p65 = scmp.ne.s32.totalorder %s50, %s64
    %p66 = scmp.eq.s32.totalorder %s19, 0
    %p67 = por %p65, %p66
    %s69 = sadd.s32 %s68, 1
    %p72 = scmp.eq.s32.totalorder %s13, 1
    %p73 = scmp.ne.s32.totalorder %s68, %s70
    %p74 = scmp.eq.s32.totalorder %s13, 0
    %p75 = por %p73, %p74
    %p76 = scmp.ne.s32.totalorder %s68, %s70
    %p77 = scmp.eq.s32.totalorder %s18, 1
    %p78 = por %p76, %p77
    %p79 = scmp.ne.s32.totalorder %s70, %s71
    %p80 = scmp.eq.s32.totalorder %s18, 0
    %p81 = por %p79, %p80
    %p82 = scmp.ne.s32.totalorder %s70, %s71
    %p83 = scmp.eq.s32.totalorder %s19, 1
    %p84 = por %p82, %p83
    %p86 = scmp.ne.s32.totalorder %s71, %s85
    %p87 = scmp.eq.s32.totalorder %s19, 0
    %p88 = por %p86, %p87
    %s90 = sadd.s32 %s89, 1
    %p93 = scmp.eq.s32.totalorder %s13, 1
    %p94 = scmp.ne.s32.totalorder %s89, %s91
    %p95 = scmp.eq.s32.totalorder %s13, 0
    %p96 = por %p94, %p95
    %p97 = scmp.ne.s32.totalorder %s89, %s91
    %p98 = scmp.eq.s32.totalorder %s18, 1
    %p99 = por %p97, %p98
    %p100 = scmp.ne.s32.totalorder %s91, %s92
    %p101 = scmp.eq.s32.totalorder %s18, 0
    %p102 = por %p100, %p101
    %p103 = scmp.ne.s32.totalorder %s91, %s92
    %p104 = scmp.eq.s32.totalorder %s19, 1
    %p105 = por %p103, %p104
    %p107 = scmp.ne.s32.totalorder %s92, %s106
    %p108 = scmp.eq.s32.totalorder %s19, 0
    %p109 = por %p107, %p108
    %s111 = sadd.s32 %s110, 1
    %p114 = scmp.eq.s32.totalorder %s13, 1
    %p115 = scmp.ne.s32.totalorder %s110, %s112
    %p116 = scmp.eq.s32.totalorder %s13, 0
    %p117 = por %p115, %p116
    %p118 = scmp.ne.s32.totalorder %s110, %s112
    %p119 = scmp.eq.s32.totalorder %s18, 1
    %p120 = por %p118, %p119
    %p121 = scmp.ne.s32.totalorder %s112, %s113
    %p122 = scmp.eq.s32.totalorder %s18, 0
    %p123 = por %p121, %p122
    %p124 = scmp.ne.s32.totalorder %s112, %s113
    %p125 = scmp.eq.s32.totalorder %s19, 1
    %p126 = por %p124, %p125
    %p128 = scmp.ne.s32.totalorder %s113, %s127
    %p129 = scmp.eq.s32.totalorder %s19, 0
    %p130 = por %p128, %p129
    %s132 = sadd.s32 %s131, 1
    %p135 = scmp.eq.s32.totalorder %s13, 1
    %p136 = scmp.ne.s32.totalorder %s131, %s133
    %p137 = scmp.eq.s32.totalorder %s13, 0
    %p138 = por %p136, %p137
    %p139 = scmp.ne.s32.totalorder %s131, %s133
    %p140 = scmp.eq.s32.totalorder %s18, 1
    %p141 = por %p139, %p140
    %p142 = scmp.ne.s32.totalorder %s133, %s134
    %p143 = scmp.eq.s32.totalorder %s18, 0
    %p144 = por %p142, %p143
    %p145 = scmp.ne.s32.totalorder %s133, %s134
    %p146 = scmp.eq.s32.totalorder %s19, 1
    %p147 = por %p145, %p146
    %p149 = scmp.ne.s32.totalorder %s134, %s148
    %p150 = scmp.eq.s32.totalorder %s19, 0
    %p151 = por %p149, %p150
    %s153 = sadd.s32 %s152, 1
    %p156 = scmp.eq.s32.totalorder %s13, 1
    %p157 = scmp.ne.s32.totalorder %s152, %s154
    %p158 = scmp.eq.s32.totalorder %s13, 0
    %p159 = por %p157, %p158
    %p160 = scmp.ne.s32.totalorder %s152, %s154
    %p161 = scmp.eq.s32.totalorder %s18, 1
    %p162 = por %p160, %p161
    %p163 = scmp.ne.s32.totalorder %s154, %s155
    %p164 = scmp.eq.s32.totalorder %s18, 0
    %p165 = por %p163, %p164
    %p166 = scmp.ne.s32.totalorder %s154, %s155
    %p167 = scmp.eq.s32.totalorder %s19, 1
    %p168 = por %p166, %p167
    %p170 = scmp.ne.s32.totalorder %s155, %s169
    %p171 = scmp.eq.s32.totalorder %s19, 0
    %p172 = por %p170, %p171
    %s173 = ssub.s32 %s13, %s20
    %p174 = scmp.eq.s32.totalorder %s173, 0
    %s176 = sadd.s32 %s175, 1
    %s177 = scalar_select %p174, %s175, %s176
    %p180 = pneg %p174
    %p181 = scmp.eq.s32.totalorder %s13, 1
    %p182 = por %p180, %p181
    %p183 = scmp.ne.s32.totalorder %s175, %s178
    %p184 = scmp.eq.s32.totalorder %s13, 0
    %p185 = por %p183, %p184
    %p186 = scmp.ne.s32.totalorder %s175, %s178
    %p187 = scmp.eq.s32.totalorder %s18, 1
    %p188 = por %p186, %p187
    %p189 = scmp.ne.s32.totalorder %s178, %s179
    %p190 = scmp.eq.s32.totalorder %s18, 0
    %p191 = por %p189, %p190
    %p192 = scmp.ne.s32.totalorder %s178, %s179
    %p193 = scmp.eq.s32.totalorder %s19, 1
    %p194 = por %p192, %p193
    %p196 = scmp.ne.s32.totalorder %s179, %s195
    %p197 = scmp.eq.s32.totalorder %s19, 0
    %p198 = por %p196, %p197
    %p199 = scmp.le.s32.totalorder 1, %s13
    %p200 = scmp.lt.s32.totalorder %s13, 3
    %p201 = pnand %p199, %p200
    %p202 = pneg %p201
    // Predicated region
    $region9: #{emg_encoder_transformer_forward.9} parent=5 // pred_check
      _
    $region10: #{emg_encoder_transformer_forward.9} parent=5 // pred_check_branch
      %204 = sbr.rel (%p201) target = $region12
    $region11: #{emg_encoder_transformer_forward.9} parent=5 // pred_region
      %s205 = ssub.s32 %s13, 1
      // Predicated region
      $region13: #{emg_encoder_transformer_forward.9} parent=11 // pred_check
        %p206 = pneg %p60
      $region14: #{emg_encoder_transformer_forward.9} parent=11 // pred_check_branch
        %208 = sbr.rel (%p206) target = $region16
      $region15: #{emg_encoder_transformer_forward.9} parent=11 // pred_region
        _
      $region16: #{emg_encoder_transformer_forward.9} parent=11 // pred_fallthru
        _
      // Predicated region
      $region17: #{emg_encoder_transformer_forward.9} parent=11 // pred_check
        %p209 = pneg %p81
      $region18: #{emg_encoder_transformer_forward.9} parent=11 // pred_check_branch
        %211 = sbr.rel (%p209) target = $region20
      $region19: #{emg_encoder_transformer_forward.9} parent=11 // pred_region
        _
      $region20: #{emg_encoder_transformer_forward.9} parent=11 // pred_fallthru
        _
      // Predicated region
      $region21: #{emg_encoder_transformer_forward.9} parent=11 // pred_check
        %p212 = pneg %p102
      $region22: #{emg_encoder_transformer_forward.9} parent=11 // pred_check_branch
        %214 = sbr.rel (%p212) target = $region24
      $region23: #{emg_encoder_transformer_forward.9} parent=11 // pred_region
        _
      $region24: #{emg_encoder_transformer_forward.9} parent=11 // pred_fallthru
        _
      // Predicated region
      $region25: #{emg_encoder_transformer_forward.9} parent=11 // pred_check
        %p215 = pneg %p123
      $region26: #{emg_encoder_transformer_forward.9} parent=11 // pred_check_branch
        %217 = sbr.rel (%p215) target = $region28
      $region27: #{emg_encoder_transformer_forward.9} parent=11 // pred_region
        _
      $region28: #{emg_encoder_transformer_forward.9} parent=11 // pred_fallthru
        _
      // Predicated region
      $region29: #{emg_encoder_transformer_forward.9} parent=11 // pred_check
        %p218 = pneg %p144
      $region30: #{emg_encoder_transformer_forward.9} parent=11 // pred_check_branch
        %220 = sbr.rel (%p218) target = $region32
      $region31: #{emg_encoder_transformer_forward.9} parent=11 // pred_region
        _
      $region32: #{emg_encoder_transformer_forward.9} parent=11 // pred_fallthru
        _
      // Predicated region
      $region33: #{emg_encoder_transformer_forward.9} parent=11 // pred_check
        %p221 = pneg %p165
      $region34: #{emg_encoder_transformer_forward.9} parent=11 // pred_check_branch
        %223 = sbr.rel (%p221) target = $region36
      $region35: #{emg_encoder_transformer_forward.9} parent=11 // pred_region
        _
      $region36: #{emg_encoder_transformer_forward.9} parent=11 // pred_fallthru
        _
    $region12: #{emg_encoder_transformer_forward.9} parent=5 // pred_fallthru
      _
    %p224 = scmp.lt.s32.totalorder %s13, 2
    // Predicated region
    $region37: #{emg_encoder_transformer_forward.9} parent=5 // pred_check
      %p225 = pneg %p224
    $region38: #{emg_encoder_transformer_forward.9} parent=5 // pred_check_branch
      %227 = sbr.rel (%p225) target = $region40
    $region39: #{emg_encoder_transformer_forward.9} parent=5 // pred_region
      // Predicated region
      $region41: #{emg_encoder_transformer_forward.9} parent=39 // pred_check
        %p228 = pneg %p33
      $region42: #{emg_encoder_transformer_forward.9} parent=39 // pred_check_branch
        %230 = sbr.rel (%p228) target = $region44
      $region43: #{emg_encoder_transformer_forward.9} parent=39 // pred_region
        %p231 = scmp.lt.s32.totalorder %s13, 1
        %s232 = scalar_select %p231, %s13, 1
        %s233 = smul.addr %s232, 5
        %s234 = smul.addr %s233, 8
        %s235 = scalar_lea.vmem %s0, %s234
      $region44: #{emg_encoder_transformer_forward.9} parent=39 // pred_fallthru
        _
    $region40: #{emg_encoder_transformer_forward.9} parent=5 // pred_fallthru
      _
    %p236 = scmp.le.s32.totalorder 1, %s13
    %p237 = scmp.lt.s32.totalorder %s13, 3
    %p238 = pnand %p236, %p237
    %p239 = pneg %p238
    // Predicated region
    $region45: #{emg_encoder_transformer_forward.9} parent=5 // pred_check
      _
    $region46: #{emg_encoder_transformer_forward.9} parent=5 // pred_check_branch
      %241 = sbr.rel (%p238) target = $region48
    $region47: #{emg_encoder_transformer_forward.9} parent=5 // pred_region
      %s242 = ssub.s32 %s13, 1
      %p243 = scmp.lt.s32.totalorder %s18, 1
      %s244 = scalar_select %p243, %s18, 1
      %s245 = smul.addr %s244, 5
      %s246 = smul.addr %s245, 8
      %s247 = scalar_lea.vmem %s0, %s246
      %p248 = pneg %p39
      %p249 = pneg %p36
      %p250 = pneg %p60
      %p251 = pneg %p57
      %p252 = pneg %p81
      %p253 = pneg %p78
      %p254 = pneg %p102
      %p255 = pneg %p99
      %p256 = pneg %p123
      %p257 = pneg %p120
      %p258 = pneg %p144
      %p259 = pneg %p141
      %p260 = pneg %p165
      %p261 = pneg %p162
      %p262 = pneg %p191
      %p263 = pneg %p188
      %p264 = scmp.lt.s32.totalorder %s18, 1
      %s265 = scalar_select %p264, %s18, 1
      %s266 = smul.addr %s265, 4
      %s267 = smul.addr %s266, 8
      %s268 = scalar_lea.vmem %s7, %s267
      %p269 = scmp.lt.s32.totalorder %s18, 1
      %s270 = scalar_select %p269, %s18, 1
      %s271 = smul.addr %s270, 5
      %s272 = smul.addr %s271, 8
      %s273 = scalar_lea.vmem %s0, %s272
      %p274 = scmp.lt.s32.totalorder %s18, 1
      %s275 = scalar_select %p274, %s18, 1
      %s276 = smul.addr %s275, 4
      %s277 = smul.addr %s276, 8
      %s278 = scalar_lea.vmem %s7, %s277
      %v279 = vld [vmem:[%s273] sm:$0xff]
      %v280 = vld [vmem:[%s273 + $0x8] sm:$0xff]
      %v281 = vld [vmem:[%s273 + $0x10] sm:$0xff]
      %v282 = vld [vmem:[%s273 + $0x18] sm:$0xff]
      %v283 = vld [vmem:[%s273 + $0x20] sm:$0x1]
      %v284 = vld [vmem:[%s1] sm:$0xff]
      %v285 = vld [vmem:[%s1 + $0x8] sm:$0xff]
      %v286 = vld [vmem:[%s1 + $0x10] sm:$0xff]
      %v287 = vld [vmem:[%s1 + $0x18] sm:$0xff]
      %v288 = vld [vmem:[%s1 + $0x20] sm:$0xff]
      %v289 = vld [vmem:[%s1 + $0x28] sm:$0xff]
      %v290 = vld [vmem:[%s1 + $0x30] sm:$0xff]
      %v291 = vld [vmem:[%s1 + $0x38] sm:$0xff]
      %s292 = scalar_lea.vmem %s1, 64
      %v293 = vld [vmem:[%s292] sm:$0xff]
      %v294 = vld [vmem:[%s292 + $0x8] sm:$0xff]
      %v295 = vld [vmem:[%s292 + $0x10] sm:$0xff]
      %v296 = vld [vmem:[%s292 + $0x18] sm:$0xff]
      %v297 = vld [vmem:[%s292 + $0x20] sm:$0xff]
      %v298 = vld [vmem:[%s292 + $0x28] sm:$0xff]
      %v299 = vld [vmem:[%s292 + $0x30] sm:$0xff]
      %v300 = vld [vmem:[%s292 + $0x38] sm:$0xff]
      %305 = vrot.lane.b32.xlu0 %v279, 64
      %v306 = vpop.permute.xlu0 %305
      %307 = vrot.lane.b32.xlu0 %v280, 64
      %v308 = vpop.permute.xlu0 %307
      %309 = vrot.lane.b32.xlu0 %v281, 64
      %v310 = vpop.permute.xlu0 %309
      %311 = vrot.lane.b32.xlu0 %v282, 64
      %v312 = vpop.permute.xlu0 %311
      %vm313 = vcmask 523264
      %v314 = vsel %vm313, %v306, 0
      %v316 = vsel %vm313, %v308, 0
      %v318 = vsel %vm313, %v310, 0
      %v320 = vsel %vm313, %v312, 0
      %322 = vmatprep.subr.mxu0 0.0
      %323 = vmatpush1.msra.mxu0 %v293
      %324 = vmatprep.subr.mxu0 0.0
      %325 = vmatpush1.msra.mxu0 %v294
      %326 = vmatprep.subr.mxu0 0.0
      %327 = vmatpush1.msra.mxu0 %v295
      %328 = vmatprep.subr.mxu0 0.0
      %329 = vmatpush1.msra.mxu0 %v296
      %330 = vmatprep.subr.mxu0 0.0
      %331 = vmatpush1.msra.mxu0 %v297
      %332 = vmatprep.subr.mxu0 0.0
      %333 = vmatpush1.msra.mxu0 %v298
      %334 = vmatprep.subr.mxu0 0.0
      %335 = vmatpush1.msra.mxu0 %v299
      %336 = vmatprep.subr.mxu0 0.0
      %337 = vmatpush1.msra.mxu0 %v300
      %338 = vmatprep.subr.mxu0 0.0
      %339 = vmatpush1.msra.mxu0 0.0
      %340 = vmatprep.subr.mxu0 0.0
      %341 = vmatpush1.msra.mxu0 0.0
      %342 = vmatprep.subr.mxu0 0.0
      %343 = vmatpush1.msra.mxu0 0.0
      %344 = vmatprep.subr.mxu0 0.0
      %345 = vmatpush1.msra.mxu0 0.0
      %346 = vmatprep.subr.mxu0 0.0
      %347 = vmatpush1.msra.mxu0 0.0
      %348 = vmatprep.subr.mxu0 0.0
      %349 = vmatpush1.msra.mxu0 0.0
      %350 = vmatprep.subr.mxu0 0.0
      %351 = vmatpush1.msra.mxu0 0.0
      %352 = vmatprep.subr.mxu0 0.0
      %353 = vmatpush1.msra.mxu0 0.0
      %354 = vmatprep.subr.mxu0 0.0
      %355 = vmatpush1.msra.mxu0 0.0
      %356 = vmatprep.subr.mxu0 0.0
      %357 = vmatpush1.msra.mxu0 0.0
      %358 = vmatprep.subr.mxu0 0.0
      %359 = vmatpush1.msra.mxu0 0.0
      %360 = vmatprep.subr.mxu0 0.0
      %361 = vmatpush1.msra.mxu0 0.0
      %362 = vmatprep.subr.mxu0 0.0
      %363 = vmatpush1.msra.mxu0 0.0
      %364 = vmatprep.subr.mxu0 0.0
      %365 = vmatpush1.msra.mxu0 0.0
      %366 = vmatprep.subr.mxu0 0.0
      %367 = vmatpush1.msra.mxu0 0.0
      %368 = vmatprep.subr.mxu0 0.0
      %369 = vmatpush1.msra.mxu0 0.0
      %370 = vmatprep.subr.mxu0 0.0
      %371 = vmatpush1.msra.mxu0 0.0
      %372 = vmatprep.subr.mxu0 0.0
      %373 = vmatpush1.msra.mxu0 0.0
      %374 = vmatprep.subr.mxu0 0.0
      %375 = vmatpush1.msra.mxu0 0.0
      %376 = vmatprep.subr.mxu0 0.0
      %377 = vmatpush1.msra.mxu0 0.0
      %378 = vmatprep.subr.mxu0 0.0
      %379 = vmatpush1.msra.mxu0 0.0
      %380 = vmatprep.subr.mxu0 0.0
      %381 = vmatpush1.msra.mxu0 0.0
      %382 = vmatprep.subr.mxu0 0.0
      %383 = vmatpush1.msra.mxu0 0.0
      %384 = vmatprep.subr.mxu0 0.0
      %385 = vmatpush1.msra.mxu0 0.0
      %386 = vmatprep.mubr.f32.mxu0 0.0
      %387 = vmatmul.mubr.f32.gmra.mrb[0].mxu0 %v314
      %v388 = vpop.f32.mrb[0].mxu0
      %v389 = vadd.f32 0.0, %v388
      %v390 = vpop.f32.mrb[0].mxu0
      %391 = vmatprep.mubr.f32.mxu0 0.0
      %392 = vmatmul.mubr.f32.gmra.mrb[0].mxu0 %v316
      %v393 = vpop.f32.mrb[0].mxu0
      %v394 = vadd.f32 0.0, %v393
      %v395 = vpop.f32.mrb[0].mxu0
      %396 = vmatprep.mubr.f32.mxu0 0.0
      %397 = vmatmul.mubr.f32.gmra.mrb[0].mxu0 %v318
      %v398 = vpop.f32.mrb[0].mxu0
      %v399 = vadd.f32 0.0, %v398
      %v400 = vpop.f32.mrb[0].mxu0
      %401 = vmatprep.mubr.f32.mxu0 0.0
      %402 = vmatmul.mubr.f32.gmra.mrb[0].mxu0 %v320
      %v403 = vpop.f32.mrb[0].mxu0
      %v404 = vadd.f32 0.0, %v403
      %v405 = vpop.f32.mrb[0].mxu0
      %406 = vdwg.mxu0
      %v407 = vsel %vm313, %v279, 0
      %v409 = vsel %vm313, %v280, 0
      %v411 = vsel %vm313, %v281, 0
      %v413 = vsel %vm313, %v282, 0
      %415 = vmatprep.subr.mxu0 0.0
      %416 = vmatpush1.msra.mxu0 %v284
      %417 = vmatprep.subr.mxu0 0.0
      %418 = vmatpush1.msra.mxu0 %v285
      %419 = vmatprep.subr.mxu0 0.0
      %420 = vmatpush1.msra.mxu0 %v286
      %421 = vmatprep.subr.mxu0 0.0
      %422 = vmatpush1.msra.mxu0 %v287
      %423 = vmatprep.subr.mxu0 0.0
      %424 = vmatpush1.msra.mxu0 %v288
      %425 = vmatprep.subr.mxu0 0.0
      %426 = vmatpush1.msra.mxu0 %v289
      %427 = vmatprep.subr.mxu0 0.0
      %428 = vmatpush1.msra.mxu0 %v290
      %429 = vmatprep.subr.mxu0 0.0
      %430 = vmatpush1.msra.mxu0 %v291
      %431 = vmatprep.subr.mxu0 0.0
      %432 = vmatpush1.msra.mxu0 0.0
      %433 = vmatprep.subr.mxu0 0.0
      %434 = vmatpush1.msra.mxu0 0.0
      %435 = vmatprep.subr.mxu0 0.0
      %436 = vmatpush1.msra.mxu0 0.0
      %437 = vmatprep.subr.mxu0 0.0
      %438 = vmatpush1.msra.mxu0 0.0
      %439 = vmatprep.subr.mxu0 0.0
      %440 = vmatpush1.msra.mxu0 0.0
      %441 = vmatprep.subr.mxu0 0.0
      %442 = vmatpush1.msra.mxu0 0.0
      %443 = vmatprep.subr.mxu0 0.0
      %444 = vmatpush1.msra.mxu0 0.0
      %445 = vmatprep.subr.mxu0 0.0
      %446 = vmatpush1.msra.mxu0 0.0
      %447 = vmatprep.subr.mxu0 0.0
      %448 = vmatpush1.msra.mxu0 0.0
      %449 = vmatprep.subr.mxu0 0.0
      %450 = vmatpush1.msra.mxu0 0.0
      %451 = vmatprep.subr.mxu0 0.0
      %452 = vmatpush1.msra.mxu0 0.0
      %453 = vmatprep.subr.mxu0 0.0
      %454 = vmatpush1.msra.mxu0 0.0
      %455 = vmatprep.subr.mxu0 0.0
      %456 = vmatpush1.msra.mxu0 0.0
      %457 = vmatprep.subr.mxu0 0.0
      %458 = vmatpush1.msra.mxu0 0.0
      %459 = vmatprep.subr.mxu0 0.0
      %460 = vmatpush1.msra.mxu0 0.0
      %461 = vmatprep.subr.mxu0 0.0
      %462 = vmatpush1.msra.mxu0 0.0
      %463 = vmatprep.subr.mxu0 0.0
      %464 = vmatpush1.msra.mxu0 0.0
      %465 = vmatprep.subr.mxu0 0.0
      %466 = vmatpush1.msra.mxu0 0.0
      %467 = vmatprep.subr.mxu0 0.0
      %468 = vmatpush1.msra.mxu0 0.0
      %469 = vmatprep.subr.mxu0 0.0
      %470 = vmatpush1.msra.mxu0 0.0
      %471 = vmatprep.subr.mxu0 0.0
      %472 = vmatpush1.msra.mxu0 0.0
      %473 = vmatprep.subr.mxu0 0.0
      %474 = vmatpush1.msra.mxu0 0.0
      %475 = vmatprep.subr.mxu0 0.0
      %476 = vmatpush1.msra.mxu0 0.0
      %477 = vmatprep.subr.mxu0 0.0
      %478 = vmatpush1.msra.mxu0 0.0
      %479 = vmatprep.mubr.f32.mxu0 0.0
      %480 = vmatmul.mubr.f32.gmra.mrb[0].mxu0 %v407
      %v481 = vpop.f32.mrb[0].mxu0
      %v482 = vadd.f32 %v389, %v481
      %v483 = vpop.f32.mrb[0].mxu0
      %484 = vmatprep.mubr.f32.mxu0 0.0
      %485 = vmatmul.mubr.f32.gmra.mrb[0].mxu0 %v409
      %v486 = vpop.f32.mrb[0].mxu0
      %v487 = vadd.f32 %v394, %v486
      %v488 = vpop.f32.mrb[0].mxu0
      %489 = vmatprep.mubr.f32.mxu0 0.0
      %490 = vmatmul.mubr.f32.gmra.mrb[0].mxu0 %v411
      %v491 = vpop.f32.mrb[0].mxu0
      %v492 = vadd.f32 %v399, %v491
      %v493 = vpop.f32.mrb[0].mxu0
      %494 = vmatprep.mubr.f32.mxu0 0.0
      %495 = vmatmul.mubr.f32.gmra.mrb[0].mxu0 %v413
      %v496 = vpop.f32.mrb[0].mxu0
      %v497 = vadd.f32 %v404, %v496
      %v498 = vpop.f32.mrb[0].mxu0
      %499 = vdwg.mxu0
      %s500 = scalar_lea.vmem %s1, 128
      %v501 = vld [vmem:[%s500] sm:$0xff]
      %v502 = vld [vmem:[%s500 + $0x8] sm:$0xff]
      %v503 = vld [vmem:[%s500 + $0x10] sm:$0xff]
      %v504 = vld [vmem:[%s500 + $0x18] sm:$0xff]
      %v505 = vld [vmem:[%s500 + $0x20] sm:$0xff]
      %v506 = vld [vmem:[%s500 + $0x28] sm:$0xff]
      %v507 = vld [vmem:[%s500 + $0x30] sm:$0xff]
      %v508 = vld [vmem:[%s500 + $0x38] sm:$0xff]
      %vm510 = vcmask 1046528
      %v511 = vrot.slane %v279, 1
      %v512 = vrot.slane %v280, 1
      %v513 = vsel %vm510, %v511, %v512
      %v514 = vrot.slane %v281, 1
      %v515 = vsel %vm510, %v512, %v514
      %v516 = vrot.slane %v282, 1
      %v517 = vsel %vm510, %v514, %v516
      %v518 = vrot.slane %v283, 1
      %v519 = vsel %vm510, %v516, %v518
      %v520 = vsel %vm313, %v513, 0
      %v522 = vsel %vm313, %v515, 0
      %v524 = vsel %vm313, %v517, 0
      %v526 = vsel %vm313, %v519, 0
      %528 = vmatprep.subr.mxu0 0.0
      %529 = vmatpush1.msra.mxu0 %v501
      %530 = vmatprep.subr.mxu0 0.0
      %531 = vmatpush1.msra.mxu0 %v502
      %532 = vmatprep.subr.mxu0 0.0
      %533 = vmatpush1.msra.mxu0 %v503
      %534 = vmatprep.subr.mxu0 0.0
      %535 = vmatpush1.msra.mxu0 %v504
      %536 = vmatprep.subr.mxu0 0.0
      %537 = vmatpush1.msra.mxu0 %v505
      %538 = vmatprep.subr.mxu0 0.0
      %539 = vmatpush1.msra.mxu0 %v506
      %540 = vmatprep.subr.mxu0 0.0
      %541 = vmatpush1.msra.mxu0 %v507
      %542 = vmatprep.subr.mxu0 0.0
      %543 = vmatpush1.msra.mxu0 %v508
      %544 = vmatprep.subr.mxu0 0.0
      %545 = vmatpush1.msra.mxu0 0.0
      %546 = vmatprep.subr.mxu0 0.0
      %547 = vmatpush1.msra.mxu0 0.0
      %548 = vmatprep.subr.mxu0 0.0
      %549 = vmatpush1.msra.mxu0 0.0
      %550 = vmatprep.subr.mxu0 0.0
      %551 = vmatpush1.msra.mxu0 0.0
      %552 = vmatprep.subr.mxu0 0.0
      %553 = vmatpush1.msra.mxu0 0.0
      %554 = vmatprep.subr.mxu0 0.0
      %555 = vmatpush1.msra.mxu0 0.0
      %556 = vmatprep.subr.mxu0 0.0
      %557 = vmatpush1.msra.mxu0 0.0
      %558 = vmatprep.subr.mxu0 0.0
      %559 = vmatpush1.msra.mxu0 0.0
      %560 = vmatprep.subr.mxu0 0.0
      %561 = vmatpush1.msra.mxu0 0.0
      %562 = vmatprep.subr.mxu0 0.0
      %563 = vmatpush1.msra.mxu0 0.0
      %564 = vmatprep.subr.mxu0 0.0
      %565 = vmatpush1.msra.mxu0 0.0
      %566 = vmatprep.subr.mxu0 0.0
      %567 = vmatpush1.msra.mxu0 0.0
      %568 = vmatprep.subr.mxu0 0.0
      %569 = vmatpush1.msra.mxu0 0.0
      %570 = vmatprep.subr.mxu0 0.0
      %571 = vmatpush1.msra.mxu0 0.0
      %572 = vmatprep.subr.mxu0 0.0
      %573 = vmatpush1.msra.mxu0 0.0
      %574 = vmatprep.subr.mxu0 0.0
      %575 = vmatpush1.msra.mxu0 0.0
      %576 = vmatprep.subr.mxu0 0.0
      %577 = vmatpush1.msra.mxu0 0.0
      %578 = vmatprep.subr.mxu0 0.0
      %579 = vmatpush1.msra.mxu0 0.0
      %580 = vmatprep.subr.mxu0 0.0
      %581 = vmatpush1.msra.mxu0 0.0
      %582 = vmatprep.subr.mxu0 0.0
      %583 = vmatpush1.msra.mxu0 0.0
      %584 = vmatprep.subr.mxu0 0.0
      %585 = vmatpush1.msra.mxu0 0.0
      %586 = vmatprep.subr.mxu0 0.0
      %587 = vmatpush1.msra.mxu0 0.0
      %588 = vmatprep.subr.mxu0 0.0
      %589 = vmatpush1.msra.mxu0 0.0
      %590 = vmatprep.subr.mxu0 0.0
      %591 = vmatpush1.msra.mxu0 0.0
      %592 = vmatprep.mubr.f32.mxu0 0.0
      %593 = vmatmul.mubr.f32.gmra.mrb[0].mxu0 %v520
      %v594 = vpop.f32.mrb[0].mxu0
      %v595 = vadd.f32 0.0, %v594
      %v596 = vpop.f32.mrb[0].mxu0
      %597 = vmatprep.mubr.f32.mxu0 0.0
      %598 = vmatmul.mubr.f32.gmra.mrb[0].mxu0 %v522
      %v599 = vpop.f32.mrb[0].mxu0
      %v600 = vadd.f32 0.0, %v599
      %v601 = vpop.f32.mrb[0].mxu0
      %602 = vmatprep.mubr.f32.mxu0 0.0
      %603 = vmatmul.mubr.f32.gmra.mrb[0].mxu0 %v524
      %v604 = vpop.f32.mrb[0].mxu0
      %v605 = vadd.f32 0.0, %v604
      %v606 = vpop.f32.mrb[0].mxu0
      %607 = vmatprep.mubr.f32.mxu0 0.0
      %608 = vmatmul.mubr.f32.gmra.mrb[0].mxu0 %v526
      %v609 = vpop.f32.mrb[0].mxu0
      %v610 = vadd.f32 0.0, %v609
      %v611 = vpop.f32.mrb[0].mxu0
      %612 = vdwg.mxu0
      %v613 = vadd.f32 %v482, %v595
      %v614 = vadd.f32 %v487, %v600
      %v615 = vadd.f32 %v492, %v605
      %v616 = vadd.f32 %v497, %v610
      %v617 = vld [vmem:[%s2] sm:$0x1]
      %v619 = vlaneseq
      %v620 = vshrl.u32 %v619, 7
      %v621 = vsub.s32 0, %v620
      %v622 = vrot.slane %v617, %v621
      %v624 = vadd.f32 %v613, %v622
      %v625 = vadd.f32 %v614, %v622
      %v626 = vadd.f32 %v615, %v622
      %v627 = vadd.f32 %v616, %v622
      %v628 = vmax.f32 %v624, 0.0
      %v629 = vmax.f32 %v625, 0.0
      %v630 = vmax.f32 %v626, 0.0
      %v631 = vmax.f32 %v627, 0.0
      %v632 = vld [vmem:[%s3] sm:$0xff]
      %v633 = vld [vmem:[%s3 + $0x8] sm:$0xff]
      %v634 = vld [vmem:[%s3 + $0x10] sm:$0xff]
      %v635 = vld [vmem:[%s3 + $0x18] sm:$0xff]
      %v636 = vld [vmem:[%s3 + $0x20] sm:$0xff]
      %v637 = vld [vmem:[%s3 + $0x28] sm:$0xff]
      %v638 = vld [vmem:[%s3 + $0x30] sm:$0xff]
      %v639 = vld [vmem:[%s3 + $0x38] sm:$0xff]
      %v640 = vld [vmem:[%s4] sm:$0x1]
      %v642 = vlaneseq
      %v643 = vshrl.u32 %v642, 7
      %v644 = vsub.s32 0, %v643
      %v645 = vrot.slane %v640, %v644
      %647 = vmatprep.subr.mxu0 0.0
      %648 = vmatpush1.msra.mxu0 %v632
      %649 = vmatprep.subr.mxu0 0.0
      %650 = vmatpush1.msra.mxu0 %v633
      %651 = vmatprep.subr.mxu0 0.0
      %652 = vmatpush1.msra.mxu0 %v634
      %653 = vmatprep.subr.mxu0 0.0
      %654 = vmatpush1.msra.mxu0 %v635
      %655 = vmatprep.subr.mxu0 0.0
      %656 = vmatpush1.msra.mxu0 %v636
      %657 = vmatprep.subr.mxu0 0.0
      %658 = vmatpush1.msra.mxu0 %v637
      %659 = vmatprep.subr.mxu0 0.0
      %660 = vmatpush1.msra.mxu0 %v638
      %661 = vmatprep.subr.mxu0 0.0
      %662 = vmatpush1.msra.mxu0 %v639
      %663 = vmatprep.subr.mxu0 0.0
      %664 = vmatpush1.msra.mxu0 0.0
      %665 = vmatprep.subr.mxu0 0.0
      %666 = vmatpush1.msra.mxu0 0.0
      %667 = vmatprep.subr.mxu0 0.0
      %668 = vmatpush1.msra.mxu0 0.0
      %669 = vmatprep.subr.mxu0 0.0
      %670 = vmatpush1.msra.mxu0 0.0
      %671 = vmatprep.subr.mxu0 0.0
      %672 = vmatpush1.msra.mxu0 0.0
      %673 = vmatprep.subr.mxu0 0.0
      %674 = vmatpush1.msra.mxu0 0.0
      %675 = vmatprep.subr.mxu0 0.0
      %676 = vmatpush1.msra.mxu0 0.0
      %677 = vmatprep.subr.mxu0 0.0
      %678 = vmatpush1.msra.mxu0 0.0
      %679 = vmatprep.subr.mxu0 0.0
      %680 = vmatpush1.msra.mxu0 0.0
      %681 = vmatprep.subr.mxu0 0.0
      %682 = vmatpush1.msra.mxu0 0.0
      %683 = vmatprep.subr.mxu0 0.0
      %684 = vmatpush1.msra.mxu0 0.0
      %685 = vmatprep.subr.mxu0 0.0
      %686 = vmatpush1.msra.mxu0 0.0
      %687 = vmatprep.subr.mxu0 0.0
      %688 = vmatpush1.msra.mxu0 0.0
      %689 = vmatprep.subr.mxu0 0.0
      %690 = vmatpush1.msra.mxu0 0.0
      %691 = vmatprep.subr.mxu0 0.0
      %692 = vmatpush1.msra.mxu0 0.0
      %693 = vmatprep.subr.mxu0 0.0
      %694 = vmatpush1.msra.mxu0 0.0
      %695 = vmatprep.subr.mxu0 0.0
      %696 = vmatpush1.msra.mxu0 0.0
      %697 = vmatprep.subr.mxu0 0.0
      %698 = vmatpush1.msra.mxu0 0.0
      %699 = vmatprep.subr.mxu0 0.0
      %700 = vmatpush1.msra.mxu0 0.0
      %701 = vmatprep.subr.mxu0 0.0
      %702 = vmatpush1.msra.mxu0 0.0
      %703 = vmatprep.subr.mxu0 0.0
      %704 = vmatpush1.msra.mxu0 0.0
      %705 = vmatprep.subr.mxu0 0.0
      %706 = vmatpush1.msra.mxu0 0.0
      %707 = vmatprep.subr.mxu0 0.0
      %708 = vmatpush1.msra.mxu0 0.0
      %709 = vmatprep.subr.mxu0 0.0
      %710 = vmatpush1.msra.mxu0 0.0
      %711 = vmatprep.mubr.f32.mxu0 0.0
      %712 = vmatmul.mubr.f32.gmra.mrb[0].mxu0 %v314
      %v713 = vpop.f32.mrb[0].mxu0
      %v714 = vadd.f32 %v645, %v713
      %v715 = vpop.f32.mrb[0].mxu0
      %716 = vmatprep.mubr.f32.mxu0 0.0
      %717 = vmatmul.mubr.f32.gmra.mrb[0].mxu0 %v316
      %v718 = vpop.f32.mrb[0].mxu0
      %v719 = vadd.f32 %v645, %v718
      %v720 = vpop.f32.mrb[0].mxu0
      %721 = vmatprep.mubr.f32.mxu0 0.0
      %722 = vmatmul.mubr.f32.gmra.mrb[0].mxu0 %v318
      %v723 = vpop.f32.mrb[0].mxu0
      %v724 = vadd.f32 %v645, %v723
      %v725 = vpop.f32.mrb[0].mxu0
      %726 = vmatprep.mubr.f32.mxu0 0.0
      %727 = vmatmul.mubr.f32.gmra.mrb[0].mxu0 %v320
      %v728 = vpop.f32.mrb[0].mxu0
      %v729 = vadd.f32 %v645, %v728
      %v730 = vpop.f32.mrb[0].mxu0
      %731 = vdwg.mxu0
      %v732 = vlaneseq
      %v733 = vshrl.u32 %v732, 7
      %v734 = vadd.s32 %v733, 8
      %v735 = vadd.s32 %v733, 16
      %v736 = vadd.s32 %v733, 24
      %vm737 = vcmp.ge.s32.totalorder %v733, 1
      %vm738 = vcmp.ge.s32.totalorder %v734, 1
      %vm739 = vcmp.ge.s32.totalorder %v735, 1
      %vm740 = vcmp.ge.s32.totalorder %v736, 1
      %v741 = vrot.slane %v628, 7
      %v742 = vrot.slane %v629, 7
      %v743 = vrot.slane %v630, 7
      %v744 = vrot.slane %v631, 7
      %vm745 = vcmp.lt.s32.totalorder %v733, 1
      %v746 = vsel %vm745, %v743, %v744
      %v747 = vsel %vm745, %v742, %v743
      %v748 = vsel %vm745, %v741, %v742
      %v749 = vsel %vm745, %v744, %v741
      %v750 = vsel %vm737, %v749, 0.0
      %v751 = vsel %vm738, %v748, 0.0
      %v752 = vsel %vm739, %v747, 0.0
      %v753 = vsel %vm740, %v746, 0.0
      %vm754 = vcmp.le.s32.totalorder %v733, 30
      %vm755 = vcmp.le.s32.totalorder %v734, 30
      %vm756 = vcmp.le.s32.totalorder %v735, 30
      %vm757 = vcmp.le.s32.totalorder %v736, 30
      %v758 = vrot.slane %v628, 1
      %v759 = vrot.slane %v629, 1
      %v760 = vrot.slane %v630, 1
      %v761 = vrot.slane %v631, 1
      %vm762 = vcmp.lt.s32.totalorder %v733, 7
      %v763 = vsel %vm762, %v760, %v761
      %v764 = vsel %vm762, %v759, %v760
      %v765 = vsel %vm762, %v758, %v759
      %v766 = vsel %vm762, %v761, %v758
      %v767 = vsel %vm754, %v765, 0.0
      %v768 = vsel %vm755, %v764, 0.0
      %v769 = vsel %vm756, %v763, 0.0
      %v770 = vsel %vm757, %v766, 0.0
      %v771 = vld [vmem:[%s5] sm:$0xff]
      %v772 = vld [vmem:[%s5 + $0x8] sm:$0xff]
      %v773 = vld [vmem:[%s5 + $0x10] sm:$0xff]
      %v774 = vld [vmem:[%s5 + $0x18] sm:$0xff]
      %v775 = vld [vmem:[%s5 + $0x20] sm:$0xff]
      %v776 = vld [vmem:[%s5 + $0x28] sm:$0xff]
      %v777 = vld [vmem:[%s5 + $0x30] sm:$0xff]
      %v778 = vld [vmem:[%s5 + $0x38] sm:$0xff]
      %s779 = scalar_lea.vmem %s5, 64
      %v780 = vld [vmem:[%s779] sm:$0xff]
      %v781 = vld [vmem:[%s779 + $0x8] sm:$0xff]
      %v782 = vld [vmem:[%s779 + $0x10] sm:$0xff]
      %v783 = vld [vmem:[%s779 + $0x18] sm:$0xff]
      %v784 = vld [vmem:[%s779 + $0x20] sm:$0xff]
      %v785 = vld [vmem:[%s779 + $0x28] sm:$0xff]
      %v786 = vld [vmem:[%s779 + $0x30] sm:$0xff]
      %v787 = vld [vmem:[%s779 + $0x38] sm:$0xff]
      %v789 = vsel %vm313, %v628, 0
      %v792 = vsel %vm313, %v629, 0
      %v795 = vsel %vm313, %v630, 0
      %v798 = vsel %vm313, %v631, 0
      %800 = vmatprep.subr.mxu0 0.0
      %801 = vmatpush1.msra.mxu0 %v780
      %802 = vmatprep.subr.mxu0 0.0
      %803 = vmatpush1.msra.mxu0 %v781
      %804 = vmatprep.subr.mxu0 0.0
      %805 = vmatpush1.msra.mxu0 %v782
      %806 = vmatprep.subr.mxu0 0.0
      %807 = vmatpush1.msra.mxu0 %v783
      %808 = vmatprep.subr.mxu0 0.0
      %809 = vmatpush1.msra.mxu0 %v784
      %810 = vmatprep.subr.mxu0 0.0
      %811 = vmatpush1.msra.mxu0 %v785
      %812 = vmatprep.subr.mxu0 0.0
      %813 = vmatpush1.msra.mxu0 %v786
      %814 = vmatprep.subr.mxu0 0.0
      %815 = vmatpush1.msra.mxu0 %v787
      %816 = vmatprep.subr.mxu0 0.0
      %817 = vmatpush1.msra.mxu0 0.0
      %818 = vmatprep.subr.mxu0 0.0
      %819 = vmatpush1.msra.mxu0 0.0
      %820 = vmatprep.subr.mxu0 0.0
      %821 = vmatpush1.msra.mxu0 0.0
      %822 = vmatprep.subr.mxu0 0.0
      %823 = vmatpush1.msra.mxu0 0.0
      %824 = vmatprep.subr.mxu0 0.0
      %825 = vmatpush1.msra.mxu0 0.0
      %826 = vmatprep.subr.mxu0 0.0
      %827 = vmatpush1.msra.mxu0 0.0
      %828 = vmatprep.subr.mxu0 0.0
      %829 = vmatpush1.msra.mxu0 0.0
      %830 = vmatprep.subr.mxu0 0.0
      %831 = vmatpush1.msra.mxu0 0.0
      %832 = vmatprep.subr.mxu0 0.0
      %833 = vmatpush1.msra.mxu0 0.0
      %834 = vmatprep.subr.mxu0 0.0
      %835 = vmatpush1.msra.mxu0 0.0
      %836 = vmatprep.subr.mxu0 0.0
      %837 = vmatpush1.msra.mxu0 0.0
      %838 = vmatprep.subr.mxu0 0.0
      %839 = vmatpush1.msra.mxu0 0.0
      %840 = vmatprep.subr.mxu0 0.0
      %841 = vmatpush1.msra.mxu0 0.0
      %842 = vmatprep.subr.mxu0 0.0
      %843 = vmatpush1.msra.mxu0 0.0
      %844 = vmatprep.subr.mxu0 0.0
      %845 = vmatpush1.msra.mxu0 0.0
      %846 = vmatprep.subr.mxu0 0.0
      %847 = vmatpush1.msra.mxu0 0.0
      %848 = vmatprep.subr.mxu0 0.0
      %849 = vmatpush1.msra.mxu0 0.0
      %850 = vmatprep.subr.mxu0 0.0
      %851 = vmatpush1.msra.mxu0 0.0
      %852 = vmatprep.subr.mxu0 0.0
      %853 = vmatpush1.msra.mxu0 0.0
      %854 = vmatprep.subr.mxu0 0.0
      %855 = vmatpush1.msra.mxu0 0.0
      %856 = vmatprep.subr.mxu0 0.0
      %857 = vmatpush1.msra.mxu0 0.0
      %858 = vmatprep.subr.mxu0 0.0
      %859 = vmatpush1.msra.mxu0 0.0
      %860 = vmatprep.subr.mxu0 0.0
      %861 = vmatpush1.msra.mxu0 0.0
      %862 = vmatprep.subr.mxu0 0.0
      %863 = vmatpush1.msra.mxu0 0.0
      %864 = vmatprep.mubr.f32.mxu0 0.0
      %865 = vmatmul.mubr.f32.gmra.mrb[0].mxu0 %v789
      %v866 = vpop.f32.mrb[0].mxu0
      %v867 = vadd.f32 0.0, %v866
      %v868 = vpop.f32.mrb[0].mxu0
      %869 = vmatprep.mubr.f32.mxu0 0.0
      %870 = vmatmul.mubr.f32.gmra.mrb[0].mxu0 %v792
      %v871 = vpop.f32.mrb[0].mxu0
      %v872 = vadd.f32 0.0, %v871
      %v873 = vpop.f32.mrb[0].mxu0
      %874 = vmatprep.mubr.f32.mxu0 0.0
      %875 = vmatmul.mubr.f32.gmra.mrb[0].mxu0 %v795
      %v876 = vpop.f32.mrb[0].mxu0
      %v877 = vadd.f32 0.0, %v876
      %v878 = vpop.f32.mrb[0].mxu0
      %879 = vmatprep.mubr.f32.mxu0 0.0
      %880 = vmatmul.mubr.f32.gmra.mrb[0].mxu0 %v798
      %v881 = vpop.f32.mrb[0].mxu0
      %v882 = vadd.f32 0.0, %v881
      %v883 = vpop.f32.mrb[0].mxu0
      %884 = vdwg.mxu0
      %v886 = vsel %vm313, %v750, 0
      %v889 = vsel %vm313, %v751, 0
      %v892 = vsel %vm313, %v752, 0
      %v895 = vsel %vm313, %v753, 0
      %897 = vmatprep.subr.mxu0 0.0
      %898 = vmatpush1.msra.mxu0 %v771
      %899 = vmatprep.subr.mxu0 0.0
      %900 = vmatpush1.msra.mxu0 %v772
      %901 = vmatprep.subr.mxu0 0.0
      %902 = vmatpush1.msra.mxu0 %v773
      %903 = vmatprep.subr.mxu0 0.0
      %904 = vmatpush1.msra.mxu0 %v774
      %905 = vmatprep.subr.mxu0 0.0
      %906 = vmatpush1.msra.mxu0 %v775
      %907 = vmatprep.subr.mxu0 0.0
      %908 = vmatpush1.msra.mxu0 %v776
      %909 = vmatprep.subr.mxu0 0.0
      %910 = vmatpush1.msra.mxu0 %v777
      %911 = vmatprep.subr.mxu0 0.0
      %912 = vmatpush1.msra.mxu0 %v778
      %913 = vmatprep.subr.mxu0 0.0
      %914 = vmatpush1.msra.mxu0 0.0
      %915 = vmatprep.subr.mxu0 0.0
      %916 = vmatpush1.msra.mxu0 0.0
      %917 = vmatprep.subr.mxu0 0.0
      %918 = vmatpush1.msra.mxu0 0.0
      %919 = vmatprep.subr.mxu0 0.0
      %920 = vmatpush1.msra.mxu0 0.0
      %921 = vmatprep.subr.mxu0 0.0
      %922 = vmatpush1.msra.mxu0 0.0
      %923 = vmatprep.subr.mxu0 0.0
      %924 = vmatpush1.msra.mxu0 0.0
      %925 = vmatprep.subr.mxu0 0.0
      %926 = vmatpush1.msra.mxu0 0.0
      %927 = vmatprep.subr.mxu0 0.0
      %928 = vmatpush1.msra.mxu0 0.0
      %929 = vmatprep.subr.mxu0 0.0
      %930 = vmatpush1.msra.mxu0 0.0
      %931 = vmatprep.subr.mxu0 0.0
      %932 = vmatpush1.msra.mxu0 0.0
      %933 = vmatprep.subr.mxu0 0.0
      %934 = vmatpush1.msra.mxu0 0.0
      %935 = vmatprep.subr.mxu0 0.0
      %936 = vmatpush1.msra.mxu0 0.0
      %937 = vmatprep.subr.mxu0 0.0
      %938 = vmatpush1.msra.mxu0 0.0
      %939 = vmatprep.subr.mxu0 0.0
      %940 = vmatpush1.msra.mxu0 0.0
      %941 = vmatprep.subr.mxu0 0.0
      %942 = vmatpush1.msra.mxu0 0.0
      %943 = vmatprep.subr.mxu0 0.0
      %944 = vmatpush1.msra.mxu0 0.0
      %945 = vmatprep.subr.mxu0 0.0
      %946 = vmatpush1.msra.mxu0 0.0
      %947 = vmatprep.subr.mxu0 0.0
      %948 = vmatpush1.msra.mxu0 0.0
      %949 = vmatprep.subr.mxu0 0.0
      %950 = vmatpush1.msra.mxu0 0.0
      %951 = vmatprep.subr.mxu0 0.0
      %952 = vmatpush1.msra.mxu0 0.0
      %953 = vmatprep.subr.mxu0 0.0
      %954 = vmatpush1.msra.mxu0 0.0
      %955 = vmatprep.subr.mxu0 0.0
      %956 = vmatpush1.msra.mxu0 0.0
      %957 = vmatprep.subr.mxu0 0.0
      %958 = vmatpush1.msra.mxu0 0.0
      %959 = vmatprep.subr.mxu0 0.0
      %960 = vmatpush1.msra.mxu0 0.0
      %961 = vmatprep.mubr.f32.mxu0 0.0
      %962 = vmatmul.mubr.f32.gmra.mrb[0].mxu0 %v886
      %v963 = vpop.f32.mrb[0].mxu0
      %v964 = vadd.f32 %v867, %v963
      %v965 = vpop.f32.mrb[0].mxu0
      %966 = vmatprep.mubr.f32.mxu0 0.0
      %967 = vmatmul.mubr.f32.gmra.mrb[0].mxu0 %v889
      %v968 = vpop.f32.mrb[0].mxu0
      %v969 = vadd.f32 %v872, %v968
      %v970 = vpop.f32.mrb[0].mxu0
      %971 = vmatprep.mubr.f32.mxu0 0.0
      %972 = vmatmul.mubr.f32.gmra.mrb[0].mxu0 %v892
      %v973 = vpop.f32.mrb[0].mxu0
      %v974 = vadd.f32 %v877, %v973
      %v975 = vpop.f32.mrb[0].mxu0
      %976 = vmatprep.mubr.f32.mxu0 0.0
      %977 = vmatmul.mubr.f32.gmra.mrb[0].mxu0 %v895
      %v978 = vpop.f32.mrb[0].mxu0
      %v979 = vadd.f32 %v882, %v978
      %v980 = vpop.f32.mrb[0].mxu0
      %981 = vdwg.mxu0
      %s982 = scalar_lea.vmem %s5, 128
      %v983 = vld [vmem:[%s982] sm:$0xff]
      %v984 = vld [vmem:[%s982 + $0x8] sm:$0xff]
      %v985 = vld [vmem:[%s982 + $0x10] sm:$0xff]
      %v986 = vld [vmem:[%s982 + $0x18] sm:$0xff]
      %v987 = vld [vmem:[%s982 + $0x20] sm:$0xff]
      %v988 = vld [vmem:[%s982 + $0x28] sm:$0xff]
      %v989 = vld [vmem:[%s982 + $0x30] sm:$0xff]
      %v990 = vld [vmem:[%s982 + $0x38] sm:$0xff]
      %v992 = vsel %vm313, %v767, 0
      %v995 = vsel %vm313, %v768, 0
      %v998 = vsel %vm313, %v769, 0
      %v1001 = vsel %vm313, %v770, 0
      %1003 = vmatprep.subr.mxu0 0.0
      %1004 = vmatpush1.msra.mxu0 %v983
      %1005 = vmatprep.subr.mxu0 0.0
      %1006 = vmatpush1.msra.mxu0 %v984
      %1007 = vmatprep.subr.mxu0 0.0
      %1008 = vmatpush1.msra.mxu0 %v985
      %1009 = vmatprep.subr.mxu0 0.0
      %1010 = vmatpush1.msra.mxu0 %v986
      %1011 = vmatprep.subr.mxu0 0.0
      %1012 = vmatpush1.msra.mxu0 %v987
      %1013 = vmatprep.subr.mxu0 0.0
      %1014 = vmatpush1.msra.mxu0 %v988
      %1015 = vmatprep.subr.mxu0 0.0
      %1016 = vmatpush1.msra.mxu0 %v989
      %1017 = vmatprep.subr.mxu0 0.0
      %1018 = vmatpush1.msra.mxu0 %v990
      %1019 = vmatprep.subr.mxu0 0.0
      %1020 = vmatpush1.msra.mxu0 0.0
      %1021 = vmatprep.subr.mxu0 0.0
      %1022 = vmatpush1.msra.mxu0 0.0
      %1023 = vmatprep.subr.mxu0 0.0
      %1024 = vmatpush1.msra.mxu0 0.0
      %1025 = vmatprep.subr.mxu0 0.0
      %1026 = vmatpush1.msra.mxu0 0.0
      %1027 = vmatprep.subr.mxu0 0.0
      %1028 = vmatpush1.msra.mxu0 0.0
      %1029 = vmatprep.subr.mxu0 0.0
      %1030 = vmatpush1.msra.mxu0 0.0
      %1031 = vmatprep.subr.mxu0 0.0
      %1032 = vmatpush1.msra.mxu0 0.0
      %1033 = vmatprep.subr.mxu0 0.0
      %1034 = vmatpush1.msra.mxu0 0.0
      %1035 = vmatprep.subr.mxu0 0.0
      %1036 = vmatpush1.msra.mxu0 0.0
      %1037 = vmatprep.subr.mxu0 0.0
      %1038 = vmatpush1.msra.mxu0 0.0
      %1039 = vmatprep.subr.mxu0 0.0
      %1040 = vmatpush1.msra.mxu0 0.0
      %1041 = vmatprep.subr.mxu0 0.0
      %1042 = vmatpush1.msra.mxu0 0.0
      %1043 = vmatprep.subr.mxu0 0.0
      %1044 = vmatpush1.msra.mxu0 0.0
      %1045 = vmatprep.subr.mxu0 0.0
      %1046 = vmatpush1.msra.mxu0 0.0
      %1047 = vmatprep.subr.mxu0 0.0
      %1048 = vmatpush1.msra.mxu0 0.0
      %1049 = vmatprep.subr.mxu0 0.0
      %1050 = vmatpush1.msra.mxu0 0.0
      %1051 = vmatprep.subr.mxu0 0.0
      %1052 = vmatpush1.msra.mxu0 0.0
      %1053 = vmatprep.subr.mxu0 0.0
      %1054 = vmatpush1.msra.mxu0 0.0
      %1055 = vmatprep.subr.mxu0 0.0
      %1056 = vmatpush1.msra.mxu0 0.0
      %1057 = vmatprep.subr.mxu0 0.0
      %1058 = vmatpush1.msra.mxu0 0.0
      %1059 = vmatprep.subr.mxu0 0.0
      %1060 = vmatpush1.msra.mxu0 0.0
      %1061 = vmatprep.subr.mxu0 0.0
      %1062 = vmatpush1.msra.mxu0 0.0
      %1063 = vmatprep.subr.mxu0 0.0
      %1064 = vmatpush1.msra.mxu0 0.0
      %1065 = vmatprep.subr.mxu0 0.0
      %1066 = vmatpush1.msra.mxu0 0.0
      %1067 = vmatprep.mubr.f32.mxu0 0.0
      %1068 = vmatmul.mubr.f32.gmra.mrb[0].mxu0 %v992
      %v1069 = vpop.f32.mrb[0].mxu0
      %v1070 = vadd.f32 0.0, %v1069
      %v1071 = vpop.f32.mrb[0].mxu0
      %1072 = vmatprep.mubr.f32.mxu0 0.0
      %1073 = vmatmul.mubr.f32.gmra.mrb[0].mxu0 %v995
      %v1074 = vpop.f32.mrb[0].mxu0
      %v1075 = vadd.f32 0.0, %v1074
      %v1076 = vpop.f32.mrb[0].mxu0
      %1077 = vmatprep.mubr.f32.mxu0 0.0
      %1078 = vmatmul.mubr.f32.gmra.mrb[0].mxu0 %v998
      %v1079 = vpop.f32.mrb[0].mxu0
      %v1080 = vadd.f32 0.0, %v1079
      %v1081 = vpop.f32.mrb[0].mxu0
      %1082 = vmatprep.mubr.f32.mxu0 0.0
      %1083 = vmatmul.mubr.f32.gmra.mrb[0].mxu0 %v1001
      %v1084 = vpop.f32.mrb[0].mxu0
      %v1085 = vadd.f32 0.0, %v1084
      %v1086 = vpop.f32.mrb[0].mxu0
      %1087 = vdwg.mxu0
      %v1088 = vadd.f32 %v964, %v1070
      %v1089 = vadd.f32 %v969, %v1075
      %v1090 = vadd.f32 %v974, %v1080
      %v1091 = vadd.f32 %v979, %v1085
      %v1092 = vld [vmem:[%s6] sm:$0x1]
      %v1094 = vlaneseq
      %v1095 = vshrl.u32 %v1094, 7
      %v1096 = vsub.s32 0, %v1095
      %v1097 = vrot.slane %v1092, %v1096
      %v1099 = vadd.f32 %v1088, %v1097
      %v1100 = vadd.f32 %v1089, %v1097
      %v1101 = vadd.f32 %v1090, %v1097
      %v1102 = vadd.f32 %v1091, %v1097
      %v1103 = vadd.f32 %v1099, %v714
      %v1104 = vadd.f32 %v1100, %v719
      %v1105 = vadd.f32 %v1101, %v724
      %v1106 = vadd.f32 %v1102, %v729
      %v1107 = vmax.f32 %v1103, 0.0
      %v1108 = vmax.f32 %v1104, 0.0
      %v1109 = vmax.f32 %v1105, 0.0
      %v1110 = vmax.f32 %v1106, 0.0
      %1111 = vst.msk [vmem:[%s278] sm:$0xff] %vm313, %v1107
      %1112 = vst.msk [vmem:[%s278 + $0x8] sm:$0xff] %vm313, %v1108
      %1113 = vst.msk [vmem:[%s278 + $0x10] sm:$0xff] %vm313, %v1109
      %1114 = vst.msk [vmem:[%s278 + $0x18] sm:$0xff] %vm313, %v1110
      %p1115 = scmp.lt.s32.totalorder %s18, 1
      %s1116 = scalar_select %p1115, %s18, 1
      %s1117 = smul.addr %s1116, 4
      %s1118 = smul.addr %s1117, 8
      %s1119 = scalar_lea.vmem %s7, %s1118
      // Predicated region
      $region49: #{emg_encoder_transformer_forward.9} parent=47 // pred_check
        %p1120 = pneg %p188
      $region50: #{emg_encoder_transformer_forward.9} parent=47 // pred_check_branch
        %1122 = sbr.rel (%p1120) target = $region52
      $region51: #{emg_encoder_transformer_forward.9} parent=47 // pred_region
        _
      $region52: #{emg_encoder_transformer_forward.9} parent=47 // pred_fallthru
        _
    $region48: #{emg_encoder_transformer_forward.9} parent=5 // pred_fallthru
      _
    %p1123 = scmp.le.s32.totalorder 2, %s13
    // Predicated region
    $region53: #{emg_encoder_transformer_forward.9} parent=5 // pred_check
      %p1124 = pneg %p1123
    $region54: #{emg_encoder_transformer_forward.9} parent=5 // pred_check_branch
      %1126 = sbr.rel (%p1124) target = $region56
    $region55: #{emg_encoder_transformer_forward.9} parent=5 // pred_region
      %s1127 = ssub.s32 %s13, 2
      // Predicated region
      $region57: #{emg_encoder_transformer_forward.9} parent=55 // pred_check
        %p1128 = pneg %p194
      $region58: #{emg_encoder_transformer_forward.9} parent=55 // pred_check_branch
        %1130 = sbr.rel (%p1128) target = $region60
      $region59: #{emg_encoder_transformer_forward.9} parent=55 // pred_region
        %p1131 = scmp.lt.s32.totalorder %s19, 1
        %s1132 = scalar_select %p1131, %s19, 1
        %s1133 = smul.addr %s1132, 4
        %s1134 = smul.addr %s1133, 8
        %s1135 = scalar_lea.vmem %s7, %s1134
      $region60: #{emg_encoder_transformer_forward.9} parent=55 // pred_fallthru
        _
    $region56: #{emg_encoder_transformer_forward.9} parent=5 // pred_fallthru
      _
  $region6: #{emg_encoder_transformer_forward.9} parent=0 // loop_footer
    %s17 = sadd.s32 1, %s13
  $region7: #{emg_encoder_transformer_forward.9} parent=0 // loop_footer_branch
    %12 = sbr.rel target = $region3
  $region8: #{emg_encoder_transformer_forward.9} parent=0 // loop_exit
    _

// kernel: emg_encoder_transformer_forward.10
$region0: #{emg_encoder_transformer_forward.10}
  #allocation0 [shape = 'u32[]', space=smem, size = 0x4, offset = 0x4, fixed_abs, tag = 'smem constant byte address 0x4 - core index']
  #allocation1 [shape = 'u32[144,128]{1,0:T(1,128)}', space=vmem, size = 0x12000, scoped, tag = 'internal scratch']
  %s0 = inlined_call_operand.vmem [shape: f32[2,17,128], index: 0, kind: input, shape index: {}]
  %s1 = inlined_call_operand.vmem [shape: f32[3,64,64], index: 1, kind: input, shape index: {}]
  %s2 = inlined_call_operand.vmem [shape: f32[1,64], index: 2, kind: input, shape index: {}]
  %s3 = inlined_call_operand.vmem [shape: f32[64,64], index: 3, kind: input, shape index: {}]
  %s4 = inlined_call_operand.vmem [shape: f32[1,64], index: 4, kind: input, shape index: {}]
  %s5 = inlined_call_operand.vmem [shape: f32[3,64,64], index: 5, kind: input, shape index: {}]
  %s6 = inlined_call_operand.vmem [shape: f32[1,64], index: 6, kind: input, shape index: {}]
  %s7 = inlined_call_operand.vmem [shape: f32[2,16,64], index: 7, kind: output, shape index: {}]
  %s8 = sld [smem:[#allocation0]]
  $region61: #{emg_encoder_transformer_forward.10} parent=0
    _
  %s10 = ssub.s32 1, %s8
  %s11 = scalar_select 0, %s10, %s8
  loop: start=0, step=1, limit=4
  $region2: #{emg_encoder_transformer_forward.10} parent=0 // loop_pre_header
    _
  $region3: #{emg_encoder_transformer_forward.10} parent=0 // loop_header
    %s13 = sphi 0, %s17
    %p14 = scmp.ge.s32.totalorder %s13, 4
    %s23 = sphi 0, %s25
    %s26 = sphi 0, %s23
    %s27 = sphi 0, %s26
    %s43 = sphi 0, %s27
    %s47 = sphi 0, %s47
    %s49 = sphi 0, %s47
    %s50 = sphi 0, %s49
    %s64 = sphi 0, %s50
    %s68 = sphi 0, %s68
    %s70 = sphi 0, %s68
    %s71 = sphi 0, %s70
    %s85 = sphi 0, %s71
    %s89 = sphi 0, %s89
    %s91 = sphi 0, %s89
    %s92 = sphi 0, %s91
    %s106 = sphi 0, %s92
    %s110 = sphi 0, %s110
    %s112 = sphi 0, %s110
    %s113 = sphi 0, %s112
    %s127 = sphi 0, %s113
    %s131 = sphi 0, %s131
    %s133 = sphi 0, %s131
    %s134 = sphi 0, %s133
    %s148 = sphi 0, %s134
    %s152 = sphi 0, %s152
    %s154 = sphi 0, %s152
    %s155 = sphi 0, %s154
    %s169 = sphi 0, %s155
    %s175 = sphi 0, %s177
    %s178 = sphi 0, %s175
    %s179 = sphi 0, %s178
    %s195 = sphi 0, %s179
  $region4: #{emg_encoder_transformer_forward.10} parent=0 // loop_header_branch
    %16 = sbr.rel (%p14) target = $region8
  $region5: #{emg_encoder_transformer_forward.10} parent=0 // loop_body
    %s18 = ssub.s32 %s13, 1
    %s19 = ssub.s32 %s13, 2
    %s20 = sadd.s32 %s13, 1
    %s21 = ssub.s32 %s13, %s20
    %p22 = scmp.eq.s32.totalorder %s21, 0
    %s24 = sadd.s32 %s23, 1
    %s25 = scalar_select %p22, %s23, %s24
    %p28 = pneg %p22
    %p29 = scmp.eq.s32.totalorder %s13, 1
    %p30 = por %p28, %p29
    %p31 = scmp.ne.s32.totalorder %s23, %s26
    %p32 = scmp.eq.s32.totalorder %s13, 0
    %p33 = por %p31, %p32
    %p34 = scmp.ne.s32.totalorder %s23, %s26
    %p35 = scmp.eq.s32.totalorder %s18, 1
    %p36 = por %p34, %p35
    %p37 = scmp.ne.s32.totalorder %s26, %s27
    %p38 = scmp.eq.s32.totalorder %s18, 0
    %p39 = por %p37, %p38
    %p40 = scmp.ne.s32.totalorder %s26, %s27
    %p41 = scmp.eq.s32.totalorder %s19, 1
    %p42 = por %p40, %p41
    %p44 = scmp.ne.s32.totalorder %s27, %s43
    %p45 = scmp.eq.s32.totalorder %s19, 0
    %p46 = por %p44, %p45
    %s48 = sadd.s32 %s47, 1
    %p51 = scmp.eq.s32.totalorder %s13, 1
    %p52 = scmp.ne.s32.totalorder %s47, %s49
    %p53 = scmp.eq.s32.totalorder %s13, 0
    %p54 = por %p52, %p53
    %p55 = scmp.ne.s32.totalorder %s47, %s49
    %p56 = scmp.eq.s32.totalorder %s18, 1
    %p57 = por %p55, %p56
    %p58 = scmp.ne.s32.totalorder %s49, %s50
    %p59 = scmp.eq.s32.totalorder %s18, 0
    %p60 = por %p58, %p59
    %p61 = scmp.ne.s32.totalorder %s49, %s50
    %p62 = scmp.eq.s32.totalorder %s19, 1
    %p63 = por %p61, %p62
    %p65 = scmp.ne.s32.totalorder %s50, %s64
    %p66 = scmp.eq.s32.totalorder %s19, 0
    %p67 = por %p65, %p66
    %s69 = sadd.s32 %s68, 1
    %p72 = scmp.eq.s32.totalorder %s13, 1
    %p73 = scmp.ne.s32.totalorder %s68, %s70
    %p74 = scmp.eq.s32.totalorder %s13, 0
    %p75 = por %p73, %p74
    %p76 = scmp.ne.s32.totalorder %s68, %s70
    %p77 = scmp.eq.s32.totalorder %s18, 1
    %p78 = por %p76, %p77
    %p79 = scmp.ne.s32.totalorder %s70, %s71
    %p80 = scmp.eq.s32.totalorder %s18, 0
    %p81 = por %p79, %p80
    %p82 = scmp.ne.s32.totalorder %s70, %s71
    %p83 = scmp.eq.s32.totalorder %s19, 1
    %p84 = por %p82, %p83
    %p86 = scmp.ne.s32.totalorder %s71, %s85
    %p87 = scmp.eq.s32.totalorder %s19, 0
    %p88 = por %p86, %p87
    %s90 = sadd.s32 %s89, 1
    %p93 = scmp.eq.s32.totalorder %s13, 1
    %p94 = scmp.ne.s32.totalorder %s89, %s91
    %p95 = scmp.eq.s32.totalorder %s13, 0
    %p96 = por %p94, %p95
    %p97 = scmp.ne.s32.totalorder %s89, %s91
    %p98 = scmp.eq.s32.totalorder %s18, 1
    %p99 = por %p97, %p98
    %p100 = scmp.ne.s32.totalorder %s91, %s92
    %p101 = scmp.eq.s32.totalorder %s18, 0
    %p102 = por %p100, %p101
    %p103 = scmp.ne.s32.totalorder %s91, %s92
    %p104 = scmp.eq.s32.totalorder %s19, 1
    %p105 = por %p103, %p104
    %p107 = scmp.ne.s32.totalorder %s92, %s106
    %p108 = scmp.eq.s32.totalorder %s19, 0
    %p109 = por %p107, %p108
    %s111 = sadd.s32 %s110, 1
    %p114 = scmp.eq.s32.totalorder %s13, 1
    %p115 = scmp.ne.s32.totalorder %s110, %s112
    %p116 = scmp.eq.s32.totalorder %s13, 0
    %p117 = por %p115, %p116
    %p118 = scmp.ne.s32.totalorder %s110, %s112
    %p119 = scmp.eq.s32.totalorder %s18, 1
    %p120 = por %p118, %p119
    %p121 = scmp.ne.s32.totalorder %s112, %s113
    %p122 = scmp.eq.s32.totalorder %s18, 0
    %p123 = por %p121, %p122
    %p124 = scmp.ne.s32.totalorder %s112, %s113
    %p125 = scmp.eq.s32.totalorder %s19, 1
    %p126 = por %p124, %p125
    %p128 = scmp.ne.s32.totalorder %s113, %s127
    %p129 = scmp.eq.s32.totalorder %s19, 0
    %p130 = por %p128, %p129
    %s132 = sadd.s32 %s131, 1
    %p135 = scmp.eq.s32.totalorder %s13, 1
    %p136 = scmp.ne.s32.totalorder %s131, %s133
    %p137 = scmp.eq.s32.totalorder %s13, 0
    %p138 = por %p136, %p137
    %p139 = scmp.ne.s32.totalorder %s131, %s133
    %p140 = scmp.eq.s32.totalorder %s18, 1
    %p141 = por %p139, %p140
    %p142 = scmp.ne.s32.totalorder %s133, %s134
    %p143 = scmp.eq.s32.totalorder %s18, 0
    %p144 = por %p142, %p143
    %p145 = scmp.ne.s32.totalorder %s133, %s134
    %p146 = scmp.eq.s32.totalorder %s19, 1
    %p147 = por %p145, %p146
    %p149 = scmp.ne.s32.totalorder %s134, %s148
    %p150 = scmp.eq.s32.totalorder %s19, 0
    %p151 = por %p149, %p150
    %s153 = sadd.s32 %s152, 1
    %p156 = scmp.eq.s32.totalorder %s13, 1
    %p157 = scmp.ne.s32.totalorder %s152, %s154
    %p158 = scmp.eq.s32.totalorder %s13, 0
    %p159 = por %p157, %p158
    %p160 = scmp.ne.s32.totalorder %s152, %s154
    %p161 = scmp.eq.s32.totalorder %s18, 1
    %p162 = por %p160, %p161
    %p163 = scmp.ne.s32.totalorder %s154, %s155
    %p164 = scmp.eq.s32.totalorder %s18, 0
    %p165 = por %p163, %p164
    %p166 = scmp.ne.s32.totalorder %s154, %s155
    %p167 = scmp.eq.s32.totalorder %s19, 1
    %p168 = por %p166, %p167
    %p170 = scmp.ne.s32.totalorder %s155, %s169
    %p171 = scmp.eq.s32.totalorder %s19, 0
    %p172 = por %p170, %p171
    %s173 = ssub.s32 %s13, %s20
    %p174 = scmp.eq.s32.totalorder %s173, 0
    %s176 = sadd.s32 %s175, 1
    %s177 = scalar_select %p174, %s175, %s176
    %p180 = pneg %p174
    %p181 = scmp.eq.s32.totalorder %s13, 1
    %p182 = por %p180, %p181
    %p183 = scmp.ne.s32.totalorder %s175, %s178
    %p184 = scmp.eq.s32.totalorder %s13, 0
    %p185 = por %p183, %p184
    %p186 = scmp.ne.s32.totalorder %s175, %s178
    %p187 = scmp.eq.s32.totalorder %s18, 1
    %p188 = por %p186, %p187
    %p189 = scmp.ne.s32.totalorder %s178, %s179
    %p190 = scmp.eq.s32.totalorder %s18, 0
    %p191 = por %p189, %p190
    %p192 = scmp.ne.s32.totalorder %s178, %s179
    %p193 = scmp.eq.s32.totalorder %s19, 1
    %p194 = por %p192, %p193
    %p196 = scmp.ne.s32.totalorder %s179, %s195
    %p197 = scmp.eq.s32.totalorder %s19, 0
    %p198 = por %p196, %p197
    %p199 = scmp.le.s32.totalorder 1, %s13
    %p200 = scmp.lt.s32.totalorder %s13, 3
    %p201 = pnand %p199, %p200
    %p202 = pneg %p201
    // Predicated region
    $region9: #{emg_encoder_transformer_forward.10} parent=5 // pred_check
      _
    $region10: #{emg_encoder_transformer_forward.10} parent=5 // pred_check_branch
      %204 = sbr.rel (%p201) target = $region12
    $region11: #{emg_encoder_transformer_forward.10} parent=5 // pred_region
      %s205 = ssub.s32 %s13, 1
      // Predicated region
      $region13: #{emg_encoder_transformer_forward.10} parent=11 // pred_check
        %p206 = pneg %p60
      $region14: #{emg_encoder_transformer_forward.10} parent=11 // pred_check_branch
        %208 = sbr.rel (%p206) target = $region16
      $region15: #{emg_encoder_transformer_forward.10} parent=11 // pred_region
        _
      $region16: #{emg_encoder_transformer_forward.10} parent=11 // pred_fallthru
        _
      // Predicated region
      $region17: #{emg_encoder_transformer_forward.10} parent=11 // pred_check
        %p209 = pneg %p81
      $region18: #{emg_encoder_transformer_forward.10} parent=11 // pred_check_branch
        %211 = sbr.rel (%p209) target = $region20
      $region19: #{emg_encoder_transformer_forward.10} parent=11 // pred_region
        _
      $region20: #{emg_encoder_transformer_forward.10} parent=11 // pred_fallthru
        _
      // Predicated region
      $region21: #{emg_encoder_transformer_forward.10} parent=11 // pred_check
        %p212 = pneg %p102
      $region22: #{emg_encoder_transformer_forward.10} parent=11 // pred_check_branch
        %214 = sbr.rel (%p212) target = $region24
      $region23: #{emg_encoder_transformer_forward.10} parent=11 // pred_region
        _
      $region24: #{emg_encoder_transformer_forward.10} parent=11 // pred_fallthru
        _
      // Predicated region
      $region25: #{emg_encoder_transformer_forward.10} parent=11 // pred_check
        %p215 = pneg %p123
      $region26: #{emg_encoder_transformer_forward.10} parent=11 // pred_check_branch
        %217 = sbr.rel (%p215) target = $region28
      $region27: #{emg_encoder_transformer_forward.10} parent=11 // pred_region
        _
      $region28: #{emg_encoder_transformer_forward.10} parent=11 // pred_fallthru
        _
      // Predicated region
      $region29: #{emg_encoder_transformer_forward.10} parent=11 // pred_check
        %p218 = pneg %p144
      $region30: #{emg_encoder_transformer_forward.10} parent=11 // pred_check_branch
        %220 = sbr.rel (%p218) target = $region32
      $region31: #{emg_encoder_transformer_forward.10} parent=11 // pred_region
        _
      $region32: #{emg_encoder_transformer_forward.10} parent=11 // pred_fallthru
        _
      // Predicated region
      $region33: #{emg_encoder_transformer_forward.10} parent=11 // pred_check
        %p221 = pneg %p165
      $region34: #{emg_encoder_transformer_forward.10} parent=11 // pred_check_branch
        %223 = sbr.rel (%p221) target = $region36
      $region35: #{emg_encoder_transformer_forward.10} parent=11 // pred_region
        _
      $region36: #{emg_encoder_transformer_forward.10} parent=11 // pred_fallthru
        _
    $region12: #{emg_encoder_transformer_forward.10} parent=5 // pred_fallthru
      _
    %p224 = scmp.lt.s32.totalorder %s13, 2
    // Predicated region
    $region37: #{emg_encoder_transformer_forward.10} parent=5 // pred_check
      %p225 = pneg %p224
    $region38: #{emg_encoder_transformer_forward.10} parent=5 // pred_check_branch
      %227 = sbr.rel (%p225) target = $region40
    $region39: #{emg_encoder_transformer_forward.10} parent=5 // pred_region
      // Predicated region
      $region41: #{emg_encoder_transformer_forward.10} parent=39 // pred_check
        %p228 = pneg %p33
      $region42: #{emg_encoder_transformer_forward.10} parent=39 // pred_check_branch
        %230 = sbr.rel (%p228) target = $region44
      $region43: #{emg_encoder_transformer_forward.10} parent=39 // pred_region
        %p231 = scmp.lt.s32.totalorder %s13, 1
        %s232 = scalar_select %p231, %s13, 1
        %s233 = smul.addr %s232, 3
        %s234 = smul.addr %s233, 8
        %s235 = scalar_lea.vmem %s0, %s234
      $region44: #{emg_encoder_transformer_forward.10} parent=39 // pred_fallthru
        _
    $region40: #{emg_encoder_transformer_forward.10} parent=5 // pred_fallthru
      _
    %p236 = scmp.le.s32.totalorder 1, %s13
    %p237 = scmp.lt.s32.totalorder %s13, 3
    %p238 = pnand %p236, %p237
    %p239 = pneg %p238
    // Predicated region
    $region45: #{emg_encoder_transformer_forward.10} parent=5 // pred_check
      _
    $region46: #{emg_encoder_transformer_forward.10} parent=5 // pred_check_branch
      %241 = sbr.rel (%p238) target = $region48
    $region47: #{emg_encoder_transformer_forward.10} parent=5 // pred_region
      %s242 = ssub.s32 %s13, 1
      %p243 = scmp.lt.s32.totalorder %s18, 1
      %s244 = scalar_select %p243, %s18, 1
      %s245 = smul.addr %s244, 3
      %s246 = smul.addr %s245, 8
      %s247 = scalar_lea.vmem %s0, %s246
      %p248 = pneg %p39
      %p249 = pneg %p36
      %p250 = pneg %p60
      %p251 = pneg %p57
      %p252 = pneg %p81
      %p253 = pneg %p78
      %p254 = pneg %p102
      %p255 = pneg %p99
      %p256 = pneg %p123
      %p257 = pneg %p120
      %p258 = pneg %p144
      %p259 = pneg %p141
      %p260 = pneg %p165
      %p261 = pneg %p162
      %p262 = pneg %p191
      %p263 = pneg %p188
      %p264 = scmp.lt.s32.totalorder %s18, 1
      %s265 = scalar_select %p264, %s18, 1
      %s266 = smul.addr %s265, 2
      %s267 = smul.addr %s266, 8
      %s268 = scalar_lea.vmem %s7, %s267
      %p269 = scmp.lt.s32.totalorder %s18, 1
      %s270 = scalar_select %p269, %s18, 1
      %s271 = smul.addr %s270, 3
      %s272 = smul.addr %s271, 8
      %s273 = scalar_lea.vmem %s0, %s272
      %p274 = scmp.lt.s32.totalorder %s18, 1
      %s275 = scalar_select %p274, %s18, 1
      %s276 = smul.addr %s275, 2
      %s277 = smul.addr %s276, 8
      %s278 = scalar_lea.vmem %s7, %s277
      %v279 = vld [vmem:[%s273] sm:$0xff]
      %v280 = vld [vmem:[%s273 + $0x8] sm:$0xff]
      %v281 = vld [vmem:[%s273 + $0x10] sm:$0x1]
      %v282 = vld [vmem:[%s1] sm:$0xff]
      %v283 = vld [vmem:[%s1 + $0x8] sm:$0xff]
      %v284 = vld [vmem:[%s1 + $0x10] sm:$0xff]
      %v285 = vld [vmem:[%s1 + $0x18] sm:$0xff]
      %v286 = vld [vmem:[%s1 + $0x20] sm:$0xff]
      %v287 = vld [vmem:[%s1 + $0x28] sm:$0xff]
      %v288 = vld [vmem:[%s1 + $0x30] sm:$0xff]
      %v289 = vld [vmem:[%s1 + $0x38] sm:$0xff]
      %s290 = scalar_lea.vmem %s1, 64
      %v291 = vld [vmem:[%s290] sm:$0xff]
      %v292 = vld [vmem:[%s290 + $0x8] sm:$0xff]
      %v293 = vld [vmem:[%s290 + $0x10] sm:$0xff]
      %v294 = vld [vmem:[%s290 + $0x18] sm:$0xff]
      %v295 = vld [vmem:[%s290 + $0x20] sm:$0xff]
      %v296 = vld [vmem:[%s290 + $0x28] sm:$0xff]
      %v297 = vld [vmem:[%s290 + $0x30] sm:$0xff]
      %v298 = vld [vmem:[%s290 + $0x38] sm:$0xff]
      %301 = vrot.lane.b32.xlu0 %v279, 64
      %v302 = vpop.permute.xlu0 %301
      %303 = vrot.lane.b32.xlu0 %v280, 64
      %v304 = vpop.permute.xlu0 %303
      %vm305 = vcmask 523264
      %v306 = vsel %vm305, %v302, 0
      %v308 = vsel %vm305, %v304, 0
      %310 = vmatprep.subr.mxu0 0.0
      %311 = vmatpush1.msra.mxu0 %v291
      %312 = vmatprep.subr.mxu0 0.0
      %313 = vmatpush1.msra.mxu0 %v292
      %314 = vmatprep.subr.mxu0 0.0
      %315 = vmatpush1.msra.mxu0 %v293
      %316 = vmatprep.subr.mxu0 0.0
      %317 = vmatpush1.msra.mxu0 %v294
      %318 = vmatprep.subr.mxu0 0.0
      %319 = vmatpush1.msra.mxu0 %v295
      %320 = vmatprep.subr.mxu0 0.0
      %321 = vmatpush1.msra.mxu0 %v296
      %322 = vmatprep.subr.mxu0 0.0
      %323 = vmatpush1.msra.mxu0 %v297
      %324 = vmatprep.subr.mxu0 0.0
      %325 = vmatpush1.msra.mxu0 %v298
      %326 = vmatprep.subr.mxu0 0.0
      %327 = vmatpush1.msra.mxu0 0.0
      %328 = vmatprep.subr.mxu0 0.0
      %329 = vmatpush1.msra.mxu0 0.0
      %330 = vmatprep.subr.mxu0 0.0
      %331 = vmatpush1.msra.mxu0 0.0
      %332 = vmatprep.subr.mxu0 0.0
      %333 = vmatpush1.msra.mxu0 0.0
      %334 = vmatprep.subr.mxu0 0.0
      %335 = vmatpush1.msra.mxu0 0.0
      %336 = vmatprep.subr.mxu0 0.0
      %337 = vmatpush1.msra.mxu0 0.0
      %338 = vmatprep.subr.mxu0 0.0
      %339 = vmatpush1.msra.mxu0 0.0
      %340 = vmatprep.subr.mxu0 0.0
      %341 = vmatpush1.msra.mxu0 0.0
      %342 = vmatprep.subr.mxu0 0.0
      %343 = vmatpush1.msra.mxu0 0.0
      %344 = vmatprep.subr.mxu0 0.0
      %345 = vmatpush1.msra.mxu0 0.0
      %346 = vmatprep.subr.mxu0 0.0
      %347 = vmatpush1.msra.mxu0 0.0
      %348 = vmatprep.subr.mxu0 0.0
      %349 = vmatpush1.msra.mxu0 0.0
      %350 = vmatprep.subr.mxu0 0.0
      %351 = vmatpush1.msra.mxu0 0.0
      %352 = vmatprep.subr.mxu0 0.0
      %353 = vmatpush1.msra.mxu0 0.0
      %354 = vmatprep.subr.mxu0 0.0
      %355 = vmatpush1.msra.mxu0 0.0
      %356 = vmatprep.subr.mxu0 0.0
      %357 = vmatpush1.msra.mxu0 0.0
      %358 = vmatprep.subr.mxu0 0.0
      %359 = vmatpush1.msra.mxu0 0.0
      %360 = vmatprep.subr.mxu0 0.0
      %361 = vmatpush1.msra.mxu0 0.0
      %362 = vmatprep.subr.mxu0 0.0
      %363 = vmatpush1.msra.mxu0 0.0
      %364 = vmatprep.subr.mxu0 0.0
      %365 = vmatpush1.msra.mxu0 0.0
      %366 = vmatprep.subr.mxu0 0.0
      %367 = vmatpush1.msra.mxu0 0.0
      %368 = vmatprep.subr.mxu0 0.0
      %369 = vmatpush1.msra.mxu0 0.0
      %370 = vmatprep.subr.mxu0 0.0
      %371 = vmatpush1.msra.mxu0 0.0
      %372 = vmatprep.subr.mxu0 0.0
      %373 = vmatpush1.msra.mxu0 0.0
      %374 = vmatprep.mubr.f32.mxu0 0.0
      %375 = vmatmul.mubr.f32.gmra.mrb[0].mxu0 %v306
      %v376 = vpop.f32.mrb[0].mxu0
      %v377 = vadd.f32 0.0, %v376
      %v378 = vpop.f32.mrb[0].mxu0
      %379 = vmatprep.mubr.f32.mxu0 0.0
      %380 = vmatmul.mubr.f32.gmra.mrb[0].mxu0 %v308
      %v381 = vpop.f32.mrb[0].mxu0
      %v382 = vadd.f32 0.0, %v381
      %v383 = vpop.f32.mrb[0].mxu0
      %384 = vdwg.mxu0
      %v385 = vsel %vm305, %v279, 0
      %v387 = vsel %vm305, %v280, 0
      %389 = vmatprep.subr.mxu0 0.0
      %390 = vmatpush1.msra.mxu0 %v282
      %391 = vmatprep.subr.mxu0 0.0
      %392 = vmatpush1.msra.mxu0 %v283
      %393 = vmatprep.subr.mxu0 0.0
      %394 = vmatpush1.msra.mxu0 %v284
      %395 = vmatprep.subr.mxu0 0.0
      %396 = vmatpush1.msra.mxu0 %v285
      %397 = vmatprep.subr.mxu0 0.0
      %398 = vmatpush1.msra.mxu0 %v286
      %399 = vmatprep.subr.mxu0 0.0
      %400 = vmatpush1.msra.mxu0 %v287
      %401 = vmatprep.subr.mxu0 0.0
      %402 = vmatpush1.msra.mxu0 %v288
      %403 = vmatprep.subr.mxu0 0.0
      %404 = vmatpush1.msra.mxu0 %v289
      %405 = vmatprep.subr.mxu0 0.0
      %406 = vmatpush1.msra.mxu0 0.0
      %407 = vmatprep.subr.mxu0 0.0
      %408 = vmatpush1.msra.mxu0 0.0
      %409 = vmatprep.subr.mxu0 0.0
      %410 = vmatpush1.msra.mxu0 0.0
      %411 = vmatprep.subr.mxu0 0.0
      %412 = vmatpush1.msra.mxu0 0.0
      %413 = vmatprep.subr.mxu0 0.0
      %414 = vmatpush1.msra.mxu0 0.0
      %415 = vmatprep.subr.mxu0 0.0
      %416 = vmatpush1.msra.mxu0 0.0
      %417 = vmatprep.subr.mxu0 0.0
      %418 = vmatpush1.msra.mxu0 0.0
      %419 = vmatprep.subr.mxu0 0.0
      %420 = vmatpush1.msra.mxu0 0.0
      %421 = vmatprep.subr.mxu0 0.0
      %422 = vmatpush1.msra.mxu0 0.0
      %423 = vmatprep.subr.mxu0 0.0
      %424 = vmatpush1.msra.mxu0 0.0
      %425 = vmatprep.subr.mxu0 0.0
      %426 = vmatpush1.msra.mxu0 0.0
      %427 = vmatprep.subr.mxu0 0.0
      %428 = vmatpush1.msra.mxu0 0.0
      %429 = vmatprep.subr.mxu0 0.0
      %430 = vmatpush1.msra.mxu0 0.0
      %431 = vmatprep.subr.mxu0 0.0
      %432 = vmatpush1.msra.mxu0 0.0
      %433 = vmatprep.subr.mxu0 0.0
      %434 = vmatpush1.msra.mxu0 0.0
      %435 = vmatprep.subr.mxu0 0.0
      %436 = vmatpush1.msra.mxu0 0.0
      %437 = vmatprep.subr.mxu0 0.0
      %438 = vmatpush1.msra.mxu0 0.0
      %439 = vmatprep.subr.mxu0 0.0
      %440 = vmatpush1.msra.mxu0 0.0
      %441 = vmatprep.subr.mxu0 0.0
      %442 = vmatpush1.msra.mxu0 0.0
      %443 = vmatprep.subr.mxu0 0.0
      %444 = vmatpush1.msra.mxu0 0.0
      %445 = vmatprep.subr.mxu0 0.0
      %446 = vmatpush1.msra.mxu0 0.0
      %447 = vmatprep.subr.mxu0 0.0
      %448 = vmatpush1.msra.mxu0 0.0
      %449 = vmatprep.subr.mxu0 0.0
      %450 = vmatpush1.msra.mxu0 0.0
      %451 = vmatprep.subr.mxu0 0.0
      %452 = vmatpush1.msra.mxu0 0.0
      %453 = vmatprep.mubr.f32.mxu0 0.0
      %454 = vmatmul.mubr.f32.gmra.mrb[0].mxu0 %v385
      %v455 = vpop.f32.mrb[0].mxu0
      %v456 = vadd.f32 %v377, %v455
      %v457 = vpop.f32.mrb[0].mxu0
      %458 = vmatprep.mubr.f32.mxu0 0.0
      %459 = vmatmul.mubr.f32.gmra.mrb[0].mxu0 %v387
      %v460 = vpop.f32.mrb[0].mxu0
      %v461 = vadd.f32 %v382, %v460
      %v462 = vpop.f32.mrb[0].mxu0
      %463 = vdwg.mxu0
      %s464 = scalar_lea.vmem %s1, 128
      %v465 = vld [vmem:[%s464] sm:$0xff]
      %v466 = vld [vmem:[%s464 + $0x8] sm:$0xff]
      %v467 = vld [vmem:[%s464 + $0x10] sm:$0xff]
      %v468 = vld [vmem:[%s464 + $0x18] sm:$0xff]
      %v469 = vld [vmem:[%s464 + $0x20] sm:$0xff]
      %v470 = vld [vmem:[%s464 + $0x28] sm:$0xff]
      %v471 = vld [vmem:[%s464 + $0x30] sm:$0xff]
      %v472 = vld [vmem:[%s464 + $0x38] sm:$0xff]
      %vm474 = vcmask 1046528
      %v475 = vrot.slane %v279, 1
      %v476 = vrot.slane %v280, 1
      %v477 = vsel %vm474, %v475, %v476
      %v478 = vrot.slane %v281, 1
      %v479 = vsel %vm474, %v476, %v478
      %v480 = vsel %vm305, %v477, 0
      %v482 = vsel %vm305, %v479, 0
      %484 = vmatprep.subr.mxu0 0.0
      %485 = vmatpush1.msra.mxu0 %v465
      %486 = vmatprep.subr.mxu0 0.0
      %487 = vmatpush1.msra.mxu0 %v466
      %488 = vmatprep.subr.mxu0 0.0
      %489 = vmatpush1.msra.mxu0 %v467
      %490 = vmatprep.subr.mxu0 0.0
      %491 = vmatpush1.msra.mxu0 %v468
      %492 = vmatprep.subr.mxu0 0.0
      %493 = vmatpush1.msra.mxu0 %v469
      %494 = vmatprep.subr.mxu0 0.0
      %495 = vmatpush1.msra.mxu0 %v470
      %496 = vmatprep.subr.mxu0 0.0
      %497 = vmatpush1.msra.mxu0 %v471
      %498 = vmatprep.subr.mxu0 0.0
      %499 = vmatpush1.msra.mxu0 %v472
      %500 = vmatprep.subr.mxu0 0.0
      %501 = vmatpush1.msra.mxu0 0.0
      %502 = vmatprep.subr.mxu0 0.0
      %503 = vmatpush1.msra.mxu0 0.0
      %504 = vmatprep.subr.mxu0 0.0
      %505 = vmatpush1.msra.mxu0 0.0
      %506 = vmatprep.subr.mxu0 0.0
      %507 = vmatpush1.msra.mxu0 0.0
      %508 = vmatprep.subr.mxu0 0.0
      %509 = vmatpush1.msra.mxu0 0.0
      %510 = vmatprep.subr.mxu0 0.0
      %511 = vmatpush1.msra.mxu0 0.0
      %512 = vmatprep.subr.mxu0 0.0
      %513 = vmatpush1.msra.mxu0 0.0
      %514 = vmatprep.subr.mxu0 0.0
      %515 = vmatpush1.msra.mxu0 0.0
      %516 = vmatprep.subr.mxu0 0.0
      %517 = vmatpush1.msra.mxu0 0.0
      %518 = vmatprep.subr.mxu0 0.0
      %519 = vmatpush1.msra.mxu0 0.0
      %520 = vmatprep.subr.mxu0 0.0
      %521 = vmatpush1.msra.mxu0 0.0
      %522 = vmatprep.subr.mxu0 0.0
      %523 = vmatpush1.msra.mxu0 0.0
      %524 = vmatprep.subr.mxu0 0.0
      %525 = vmatpush1.msra.mxu0 0.0
      %526 = vmatprep.subr.mxu0 0.0
      %527 = vmatpush1.msra.mxu0 0.0
      %528 = vmatprep.subr.mxu0 0.0
      %529 = vmatpush1.msra.mxu0 0.0
      %530 = vmatprep.subr.mxu0 0.0
      %531 = vmatpush1.msra.mxu0 0.0
      %532 = vmatprep.subr.mxu0 0.0
      %533 = vmatpush1.msra.mxu0 0.0
      %534 = vmatprep.subr.mxu0 0.0
      %535 = vmatpush1.msra.mxu0 0.0
      %536 = vmatprep.subr.mxu0 0.0
      %537 = vmatpush1.msra.mxu0 0.0
      %538 = vmatprep.subr.mxu0 0.0
      %539 = vmatpush1.msra.mxu0 0.0
      %540 = vmatprep.subr.mxu0 0.0
      %541 = vmatpush1.msra.mxu0 0.0
      %542 = vmatprep.subr.mxu0 0.0
      %543 = vmatpush1.msra.mxu0 0.0
      %544 = vmatprep.subr.mxu0 0.0
      %545 = vmatpush1.msra.mxu0 0.0
      %546 = vmatprep.subr.mxu0 0.0
      %547 = vmatpush1.msra.mxu0 0.0
      %548 = vmatprep.mubr.f32.mxu0 0.0
      %549 = vmatmul.mubr.f32.gmra.mrb[0].mxu0 %v480
      %v550 = vpop.f32.mrb[0].mxu0
      %v551 = vadd.f32 0.0, %v550
      %v552 = vpop.f32.mrb[0].mxu0
      %553 = vmatprep.mubr.f32.mxu0 0.0
      %554 = vmatmul.mubr.f32.gmra.mrb[0].mxu0 %v482
      %v555 = vpop.f32.mrb[0].mxu0
      %v556 = vadd.f32 0.0, %v555
      %v557 = vpop.f32.mrb[0].mxu0
      %558 = vdwg.mxu0
      %v559 = vadd.f32 %v456, %v551
      %v560 = vadd.f32 %v461, %v556
      %v561 = vld [vmem:[%s2] sm:$0x1]
      %v563 = vlaneseq
      %v564 = vshrl.u32 %v563, 7
      %v565 = vsub.s32 0, %v564
      %v566 = vrot.slane %v561, %v565
      %v568 = vadd.f32 %v559, %v566
      %v569 = vadd.f32 %v560, %v566
      %v570 = vmax.f32 %v568, 0.0
      %v571 = vmax.f32 %v569, 0.0
      %v572 = vld [vmem:[%s3] sm:$0xff]
      %v573 = vld [vmem:[%s3 + $0x8] sm:$0xff]
      %v574 = vld [vmem:[%s3 + $0x10] sm:$0xff]
      %v575 = vld [vmem:[%s3 + $0x18] sm:$0xff]
      %v576 = vld [vmem:[%s3 + $0x20] sm:$0xff]
      %v577 = vld [vmem:[%s3 + $0x28] sm:$0xff]
      %v578 = vld [vmem:[%s3 + $0x30] sm:$0xff]
      %v579 = vld [vmem:[%s3 + $0x38] sm:$0xff]
      %v580 = vld [vmem:[%s4] sm:$0x1]
      %v582 = vlaneseq
      %v583 = vshrl.u32 %v582, 7
      %v584 = vsub.s32 0, %v583
      %v585 = vrot.slane %v580, %v584
      %587 = vmatprep.subr.mxu0 0.0
      %588 = vmatpush1.msra.mxu0 %v572
      %589 = vmatprep.subr.mxu0 0.0
      %590 = vmatpush1.msra.mxu0 %v573
      %591 = vmatprep.subr.mxu0 0.0
      %592 = vmatpush1.msra.mxu0 %v574
      %593 = vmatprep.subr.mxu0 0.0
      %594 = vmatpush1.msra.mxu0 %v575
      %595 = vmatprep.subr.mxu0 0.0
      %596 = vmatpush1.msra.mxu0 %v576
      %597 = vmatprep.subr.mxu0 0.0
      %598 = vmatpush1.msra.mxu0 %v577
      %599 = vmatprep.subr.mxu0 0.0
      %600 = vmatpush1.msra.mxu0 %v578
      %601 = vmatprep.subr.mxu0 0.0
      %602 = vmatpush1.msra.mxu0 %v579
      %603 = vmatprep.subr.mxu0 0.0
      %604 = vmatpush1.msra.mxu0 0.0
      %605 = vmatprep.subr.mxu0 0.0
      %606 = vmatpush1.msra.mxu0 0.0
      %607 = vmatprep.subr.mxu0 0.0
      %608 = vmatpush1.msra.mxu0 0.0
      %609 = vmatprep.subr.mxu0 0.0
      %610 = vmatpush1.msra.mxu0 0.0
      %611 = vmatprep.subr.mxu0 0.0
      %612 = vmatpush1.msra.mxu0 0.0
      %613 = vmatprep.subr.mxu0 0.0
      %614 = vmatpush1.msra.mxu0 0.0
      %615 = vmatprep.subr.mxu0 0.0
      %616 = vmatpush1.msra.mxu0 0.0
      %617 = vmatprep.subr.mxu0 0.0
      %618 = vmatpush1.msra.mxu0 0.0
      %619 = vmatprep.subr.mxu0 0.0
      %620 = vmatpush1.msra.mxu0 0.0
      %621 = vmatprep.subr.mxu0 0.0
      %622 = vmatpush1.msra.mxu0 0.0
      %623 = vmatprep.subr.mxu0 0.0
      %624 = vmatpush1.msra.mxu0 0.0
      %625 = vmatprep.subr.mxu0 0.0
      %626 = vmatpush1.msra.mxu0 0.0
      %627 = vmatprep.subr.mxu0 0.0
      %628 = vmatpush1.msra.mxu0 0.0
      %629 = vmatprep.subr.mxu0 0.0
      %630 = vmatpush1.msra.mxu0 0.0
      %631 = vmatprep.subr.mxu0 0.0
      %632 = vmatpush1.msra.mxu0 0.0
      %633 = vmatprep.subr.mxu0 0.0
      %634 = vmatpush1.msra.mxu0 0.0
      %635 = vmatprep.subr.mxu0 0.0
      %636 = vmatpush1.msra.mxu0 0.0
      %637 = vmatprep.subr.mxu0 0.0
      %638 = vmatpush1.msra.mxu0 0.0
      %639 = vmatprep.subr.mxu0 0.0
      %640 = vmatpush1.msra.mxu0 0.0
      %641 = vmatprep.subr.mxu0 0.0
      %642 = vmatpush1.msra.mxu0 0.0
      %643 = vmatprep.subr.mxu0 0.0
      %644 = vmatpush1.msra.mxu0 0.0
      %645 = vmatprep.subr.mxu0 0.0
      %646 = vmatpush1.msra.mxu0 0.0
      %647 = vmatprep.subr.mxu0 0.0
      %648 = vmatpush1.msra.mxu0 0.0
      %649 = vmatprep.subr.mxu0 0.0
      %650 = vmatpush1.msra.mxu0 0.0
      %651 = vmatprep.mubr.f32.mxu0 0.0
      %652 = vmatmul.mubr.f32.gmra.mrb[0].mxu0 %v306
      %v653 = vpop.f32.mrb[0].mxu0
      %v654 = vadd.f32 %v585, %v653
      %v655 = vpop.f32.mrb[0].mxu0
      %656 = vmatprep.mubr.f32.mxu0 0.0
      %657 = vmatmul.mubr.f32.gmra.mrb[0].mxu0 %v308
      %v658 = vpop.f32.mrb[0].mxu0
      %v659 = vadd.f32 %v585, %v658
      %v660 = vpop.f32.mrb[0].mxu0
      %661 = vdwg.mxu0
      %v662 = vlaneseq
      %v663 = vshrl.u32 %v662, 7
      %v664 = vadd.s32 %v663, 8
      %vm665 = vcmp.ge.s32.totalorder %v663, 1
      %vm666 = vcmp.ge.s32.totalorder %v664, 1
      %v667 = vrot.slane %v570, 7
      %v668 = vrot.slane %v571, 7
      %vm669 = vcmp.lt.s32.totalorder %v663, 1
      %v670 = vsel %vm669, %v667, %v668
      %v671 = vsel %vm669, %v668, %v667
      %v672 = vsel %vm665, %v671, 0.0
      %v673 = vsel %vm666, %v670, 0.0
      %vm674 = vcmp.le.s32.totalorder %v663, 14
      %vm675 = vcmp.le.s32.totalorder %v664, 14
      %v676 = vrot.slane %v570, 1
      %v677 = vrot.slane %v571, 1
      %vm678 = vcmp.lt.s32.totalorder %v663, 7
      %v679 = vsel %vm678, %v676, %v677
      %v680 = vsel %vm678, %v677, %v676
      %v681 = vsel %vm674, %v679, 0.0
      %v682 = vsel %vm675, %v680, 0.0
      %v683 = vld [vmem:[%s5] sm:$0xff]
      %v684 = vld [vmem:[%s5 + $0x8] sm:$0xff]
      %v685 = vld [vmem:[%s5 + $0x10] sm:$0xff]
      %v686 = vld [vmem:[%s5 + $0x18] sm:$0xff]
      %v687 = vld [vmem:[%s5 + $0x20] sm:$0xff]
      %v688 = vld [vmem:[%s5 + $0x28] sm:$0xff]
      %v689 = vld [vmem:[%s5 + $0x30] sm:$0xff]
      %v690 = vld [vmem:[%s5 + $0x38] sm:$0xff]
      %s691 = scalar_lea.vmem %s5, 64
      %v692 = vld [vmem:[%s691] sm:$0xff]
      %v693 = vld [vmem:[%s691 + $0x8] sm:$0xff]
      %v694 = vld [vmem:[%s691 + $0x10] sm:$0xff]
      %v695 = vld [vmem:[%s691 + $0x18] sm:$0xff]
      %v696 = vld [vmem:[%s691 + $0x20] sm:$0xff]
      %v697 = vld [vmem:[%s691 + $0x28] sm:$0xff]
      %v698 = vld [vmem:[%s691 + $0x30] sm:$0xff]
      %v699 = vld [vmem:[%s691 + $0x38] sm:$0xff]
      %v701 = vsel %vm305, %v570, 0
      %v704 = vsel %vm305, %v571, 0
      %706 = vmatprep.subr.mxu0 0.0
      %707 = vmatpush1.msra.mxu0 %v692
      %708 = vmatprep.subr.mxu0 0.0
      %709 = vmatpush1.msra.mxu0 %v693
      %710 = vmatprep.subr.mxu0 0.0
      %711 = vmatpush1.msra.mxu0 %v694
      %712 = vmatprep.subr.mxu0 0.0
      %713 = vmatpush1.msra.mxu0 %v695
      %714 = vmatprep.subr.mxu0 0.0
      %715 = vmatpush1.msra.mxu0 %v696
      %716 = vmatprep.subr.mxu0 0.0
      %717 = vmatpush1.msra.mxu0 %v697
      %718 = vmatprep.subr.mxu0 0.0
      %719 = vmatpush1.msra.mxu0 %v698
      %720 = vmatprep.subr.mxu0 0.0
      %721 = vmatpush1.msra.mxu0 %v699
      %722 = vmatprep.subr.mxu0 0.0
      %723 = vmatpush1.msra.mxu0 0.0
      %724 = vmatprep.subr.mxu0 0.0
      %725 = vmatpush1.msra.mxu0 0.0
      %726 = vmatprep.subr.mxu0 0.0
      %727 = vmatpush1.msra.mxu0 0.0
      %728 = vmatprep.subr.mxu0 0.0
      %729 = vmatpush1.msra.mxu0 0.0
      %730 = vmatprep.subr.mxu0 0.0
      %731 = vmatpush1.msra.mxu0 0.0
      %732 = vmatprep.subr.mxu0 0.0
      %733 = vmatpush1.msra.mxu0 0.0
      %734 = vmatprep.subr.mxu0 0.0
      %735 = vmatpush1.msra.mxu0 0.0
      %736 = vmatprep.subr.mxu0 0.0
      %737 = vmatpush1.msra.mxu0 0.0
      %738 = vmatprep.subr.mxu0 0.0
      %739 = vmatpush1.msra.mxu0 0.0
      %740 = vmatprep.subr.mxu0 0.0
      %741 = vmatpush1.msra.mxu0 0.0
      %742 = vmatprep.subr.mxu0 0.0
      %743 = vmatpush1.msra.mxu0 0.0
      %744 = vmatprep.subr.mxu0 0.0
      %745 = vmatpush1.msra.mxu0 0.0
      %746 = vmatprep.subr.mxu0 0.0
      %747 = vmatpush1.msra.mxu0 0.0
      %748 = vmatprep.subr.mxu0 0.0
      %749 = vmatpush1.msra.mxu0 0.0
      %750 = vmatprep.subr.mxu0 0.0
      %751 = vmatpush1.msra.mxu0 0.0
      %752 = vmatprep.subr.mxu0 0.0
      %753 = vmatpush1.msra.mxu0 0.0
      %754 = vmatprep.subr.mxu0 0.0
      %755 = vmatpush1.msra.mxu0 0.0
      %756 = vmatprep.subr.mxu0 0.0
      %757 = vmatpush1.msra.mxu0 0.0
      %758 = vmatprep.subr.mxu0 0.0
      %759 = vmatpush1.msra.mxu0 0.0
      %760 = vmatprep.subr.mxu0 0.0
      %761 = vmatpush1.msra.mxu0 0.0
      %762 = vmatprep.subr.mxu0 0.0
      %763 = vmatpush1.msra.mxu0 0.0
      %764 = vmatprep.subr.mxu0 0.0
      %765 = vmatpush1.msra.mxu0 0.0
      %766 = vmatprep.subr.mxu0 0.0
      %767 = vmatpush1.msra.mxu0 0.0
      %768 = vmatprep.subr.mxu0 0.0
      %769 = vmatpush1.msra.mxu0 0.0
      %770 = vmatprep.mubr.f32.mxu0 0.0
      %771 = vmatmul.mubr.f32.gmra.mrb[0].mxu0 %v701
      %v772 = vpop.f32.mrb[0].mxu0
      %v773 = vadd.f32 0.0, %v772
      %v774 = vpop.f32.mrb[0].mxu0
      %775 = vmatprep.mubr.f32.mxu0 0.0
      %776 = vmatmul.mubr.f32.gmra.mrb[0].mxu0 %v704
      %v777 = vpop.f32.mrb[0].mxu0
      %v778 = vadd.f32 0.0, %v777
      %v779 = vpop.f32.mrb[0].mxu0
      %780 = vdwg.mxu0
      %v782 = vsel %vm305, %v672, 0
      %v785 = vsel %vm305, %v673, 0
      %787 = vmatprep.subr.mxu0 0.0
      %788 = vmatpush1.msra.mxu0 %v683
      %789 = vmatprep.subr.mxu0 0.0
      %790 = vmatpush1.msra.mxu0 %v684
      %791 = vmatprep.subr.mxu0 0.0
      %792 = vmatpush1.msra.mxu0 %v685
      %793 = vmatprep.subr.mxu0 0.0
      %794 = vmatpush1.msra.mxu0 %v686
      %795 = vmatprep.subr.mxu0 0.0
      %796 = vmatpush1.msra.mxu0 %v687
      %797 = vmatprep.subr.mxu0 0.0
      %798 = vmatpush1.msra.mxu0 %v688
      %799 = vmatprep.subr.mxu0 0.0
      %800 = vmatpush1.msra.mxu0 %v689
      %801 = vmatprep.subr.mxu0 0.0
      %802 = vmatpush1.msra.mxu0 %v690
      %803 = vmatprep.subr.mxu0 0.0
      %804 = vmatpush1.msra.mxu0 0.0
      %805 = vmatprep.subr.mxu0 0.0
      %806 = vmatpush1.msra.mxu0 0.0
      %807 = vmatprep.subr.mxu0 0.0
      %808 = vmatpush1.msra.mxu0 0.0
      %809 = vmatprep.subr.mxu0 0.0
      %810 = vmatpush1.msra.mxu0 0.0
      %811 = vmatprep.subr.mxu0 0.0
      %812 = vmatpush1.msra.mxu0 0.0
      %813 = vmatprep.subr.mxu0 0.0
      %814 = vmatpush1.msra.mxu0 0.0
      %815 = vmatprep.subr.mxu0 0.0
      %816 = vmatpush1.msra.mxu0 0.0
      %817 = vmatprep.subr.mxu0 0.0
      %818 = vmatpush1.msra.mxu0 0.0
      %819 = vmatprep.subr.mxu0 0.0
      %820 = vmatpush1.msra.mxu0 0.0
      %821 = vmatprep.subr.mxu0 0.0
      %822 = vmatpush1.msra.mxu0 0.0
      %823 = vmatprep.subr.mxu0 0.0
      %824 = vmatpush1.msra.mxu0 0.0
      %825 = vmatprep.subr.mxu0 0.0
      %826 = vmatpush1.msra.mxu0 0.0
      %827 = vmatprep.subr.mxu0 0.0
      %828 = vmatpush1.msra.mxu0 0.0
      %829 = vmatprep.subr.mxu0 0.0
      %830 = vmatpush1.msra.mxu0 0.0
      %831 = vmatprep.subr.mxu0 0.0
      %832 = vmatpush1.msra.mxu0 0.0
      %833 = vmatprep.subr.mxu0 0.0
      %834 = vmatpush1.msra.mxu0 0.0
      %835 = vmatprep.subr.mxu0 0.0
      %836 = vmatpush1.msra.mxu0 0.0
      %837 = vmatprep.subr.mxu0 0.0
      %838 = vmatpush1.msra.mxu0 0.0
      %839 = vmatprep.subr.mxu0 0.0
      %840 = vmatpush1.msra.mxu0 0.0
      %841 = vmatprep.subr.mxu0 0.0
      %842 = vmatpush1.msra.mxu0 0.0
      %843 = vmatprep.subr.mxu0 0.0
      %844 = vmatpush1.msra.mxu0 0.0
      %845 = vmatprep.subr.mxu0 0.0
      %846 = vmatpush1.msra.mxu0 0.0
      %847 = vmatprep.subr.mxu0 0.0
      %848 = vmatpush1.msra.mxu0 0.0
      %849 = vmatprep.subr.mxu0 0.0
      %850 = vmatpush1.msra.mxu0 0.0
      %851 = vmatprep.mubr.f32.mxu0 0.0
      %852 = vmatmul.mubr.f32.gmra.mrb[0].mxu0 %v782
      %v853 = vpop.f32.mrb[0].mxu0
      %v854 = vadd.f32 %v773, %v853
      %v855 = vpop.f32.mrb[0].mxu0
      %856 = vmatprep.mubr.f32.mxu0 0.0
      %857 = vmatmul.mubr.f32.gmra.mrb[0].mxu0 %v785
      %v858 = vpop.f32.mrb[0].mxu0
      %v859 = vadd.f32 %v778, %v858
      %v860 = vpop.f32.mrb[0].mxu0
      %861 = vdwg.mxu0
      %s862 = scalar_lea.vmem %s5, 128
      %v863 = vld [vmem:[%s862] sm:$0xff]
      %v864 = vld [vmem:[%s862 + $0x8] sm:$0xff]
      %v865 = vld [vmem:[%s862 + $0x10] sm:$0xff]
      %v866 = vld [vmem:[%s862 + $0x18] sm:$0xff]
      %v867 = vld [vmem:[%s862 + $0x20] sm:$0xff]
      %v868 = vld [vmem:[%s862 + $0x28] sm:$0xff]
      %v869 = vld [vmem:[%s862 + $0x30] sm:$0xff]
      %v870 = vld [vmem:[%s862 + $0x38] sm:$0xff]
      %v872 = vsel %vm305, %v681, 0
      %v875 = vsel %vm305, %v682, 0
      %877 = vmatprep.subr.mxu0 0.0
      %878 = vmatpush1.msra.mxu0 %v863
      %879 = vmatprep.subr.mxu0 0.0
      %880 = vmatpush1.msra.mxu0 %v864
      %881 = vmatprep.subr.mxu0 0.0
      %882 = vmatpush1.msra.mxu0 %v865
      %883 = vmatprep.subr.mxu0 0.0
      %884 = vmatpush1.msra.mxu0 %v866
      %885 = vmatprep.subr.mxu0 0.0
      %886 = vmatpush1.msra.mxu0 %v867
      %887 = vmatprep.subr.mxu0 0.0
      %888 = vmatpush1.msra.mxu0 %v868
      %889 = vmatprep.subr.mxu0 0.0
      %890 = vmatpush1.msra.mxu0 %v869
      %891 = vmatprep.subr.mxu0 0.0
      %892 = vmatpush1.msra.mxu0 %v870
      %893 = vmatprep.subr.mxu0 0.0
      %894 = vmatpush1.msra.mxu0 0.0
      %895 = vmatprep.subr.mxu0 0.0
      %896 = vmatpush1.msra.mxu0 0.0
      %897 = vmatprep.subr.mxu0 0.0
      %898 = vmatpush1.msra.mxu0 0.0
      %899 = vmatprep.subr.mxu0 0.0
      %900 = vmatpush1.msra.mxu0 0.0
      %901 = vmatprep.subr.mxu0 0.0
      %902 = vmatpush1.msra.mxu0 0.0
      %903 = vmatprep.subr.mxu0 0.0
      %904 = vmatpush1.msra.mxu0 0.0
      %905 = vmatprep.subr.mxu0 0.0
      %906 = vmatpush1.msra.mxu0 0.0
      %907 = vmatprep.subr.mxu0 0.0
      %908 = vmatpush1.msra.mxu0 0.0
      %909 = vmatprep.subr.mxu0 0.0
      %910 = vmatpush1.msra.mxu0 0.0
      %911 = vmatprep.subr.mxu0 0.0
      %912 = vmatpush1.msra.mxu0 0.0
      %913 = vmatprep.subr.mxu0 0.0
      %914 = vmatpush1.msra.mxu0 0.0
      %915 = vmatprep.subr.mxu0 0.0
      %916 = vmatpush1.msra.mxu0 0.0
      %917 = vmatprep.subr.mxu0 0.0
      %918 = vmatpush1.msra.mxu0 0.0
      %919 = vmatprep.subr.mxu0 0.0
      %920 = vmatpush1.msra.mxu0 0.0
      %921 = vmatprep.subr.mxu0 0.0
      %922 = vmatpush1.msra.mxu0 0.0
      %923 = vmatprep.subr.mxu0 0.0
      %924 = vmatpush1.msra.mxu0 0.0
      %925 = vmatprep.subr.mxu0 0.0
      %926 = vmatpush1.msra.mxu0 0.0
      %927 = vmatprep.subr.mxu0 0.0
      %928 = vmatpush1.msra.mxu0 0.0
      %929 = vmatprep.subr.mxu0 0.0
      %930 = vmatpush1.msra.mxu0 0.0
      %931 = vmatprep.subr.mxu0 0.0
      %932 = vmatpush1.msra.mxu0 0.0
      %933 = vmatprep.subr.mxu0 0.0
      %934 = vmatpush1.msra.mxu0 0.0
      %935 = vmatprep.subr.mxu0 0.0
      %936 = vmatpush1.msra.mxu0 0.0
      %937 = vmatprep.subr.mxu0 0.0
      %938 = vmatpush1.msra.mxu0 0.0
      %939 = vmatprep.subr.mxu0 0.0
      %940 = vmatpush1.msra.mxu0 0.0
      %941 = vmatprep.mubr.f32.mxu0 0.0
      %942 = vmatmul.mubr.f32.gmra.mrb[0].mxu0 %v872
      %v943 = vpop.f32.mrb[0].mxu0
      %v944 = vadd.f32 0.0, %v943
      %v945 = vpop.f32.mrb[0].mxu0
      %946 = vmatprep.mubr.f32.mxu0 0.0
      %947 = vmatmul.mubr.f32.gmra.mrb[0].mxu0 %v875
      %v948 = vpop.f32.mrb[0].mxu0
      %v949 = vadd.f32 0.0, %v948
      %v950 = vpop.f32.mrb[0].mxu0
      %951 = vdwg.mxu0
      %v952 = vadd.f32 %v854, %v944
      %v953 = vadd.f32 %v859, %v949
      %v954 = vld [vmem:[%s6] sm:$0x1]
      %v956 = vlaneseq
      %v957 = vshrl.u32 %v956, 7
      %v958 = vsub.s32 0, %v957
      %v959 = vrot.slane %v954, %v958
      %v961 = vadd.f32 %v952, %v959
      %v962 = vadd.f32 %v953, %v959
      %v963 = vadd.f32 %v961, %v654
      %v964 = vadd.f32 %v962, %v659
      %v965 = vmax.f32 %v963, 0.0
      %v966 = vmax.f32 %v964, 0.0
      %967 = vst.msk [vmem:[%s278] sm:$0xff] %vm305, %v965
      %968 = vst.msk [vmem:[%s278 + $0x8] sm:$0xff] %vm305, %v966
      %p969 = scmp.lt.s32.totalorder %s18, 1
      %s970 = scalar_select %p969, %s18, 1
      %s971 = smul.addr %s970, 2
      %s972 = smul.addr %s971, 8
      %s973 = scalar_lea.vmem %s7, %s972
      // Predicated region
      $region49: #{emg_encoder_transformer_forward.10} parent=47 // pred_check
        %p974 = pneg %p188
      $region50: #{emg_encoder_transformer_forward.10} parent=47 // pred_check_branch
        %976 = sbr.rel (%p974) target = $region52
      $region51: #{emg_encoder_transformer_forward.10} parent=47 // pred_region
        _
      $region52: #{emg_encoder_transformer_forward.10} parent=47 // pred_fallthru
        _
    $region48: #{emg_encoder_transformer_forward.10} parent=5 // pred_fallthru
      _
    %p977 = scmp.le.s32.totalorder 2, %s13
    // Predicated region
    $region53: #{emg_encoder_transformer_forward.10} parent=5 // pred_check
      %p978 = pneg %p977
    $region54: #{emg_encoder_transformer_forward.10} parent=5 // pred_check_branch
      %980 = sbr.rel (%p978) target = $region56
    $region55: #{emg_encoder_transformer_forward.10} parent=5 // pred_region
      %s981 = ssub.s32 %s13, 2
      // Predicated region
      $region57: #{emg_encoder_transformer_forward.10} parent=55 // pred_check
        %p982 = pneg %p194
      $region58: #{emg_encoder_transformer_forward.10} parent=55 // pred_check_branch
        %984 = sbr.rel (%p982) target = $region60
      $region59: #{emg_encoder_transformer_forward.10} parent=55 // pred_region
        %p985 = scmp.lt.s32.totalorder %s19, 1
        %s986 = scalar_select %p985, %s19, 1
        %s987 = smul.addr %s986, 2
        %s988 = smul.addr %s987, 8
        %s989 = scalar_lea.vmem %s7, %s988
      $region60: #{emg_encoder_transformer_forward.10} parent=55 // pred_fallthru
        _
    $region56: #{emg_encoder_transformer_forward.10} parent=5 // pred_fallthru
      _
  $region6: #{emg_encoder_transformer_forward.10} parent=0 // loop_footer
    %s17 = sadd.s32 1, %s13
  $region7: #{emg_encoder_transformer_forward.10} parent=0 // loop_footer_branch
    %12 = sbr.rel target = $region3
  $region8: #{emg_encoder_transformer_forward.10} parent=0 // loop_exit
    _

// kernel: emg_encoder_transformer_forward.11
$region0: #{emg_encoder_transformer_forward.11}
  #allocation0 [shape = 'u32[]', space=smem, size = 0x4, offset = 0x4, fixed_abs, tag = 'smem constant byte address 0x4 - core index']
  #allocation1 [shape = 'u32[144,128]{1,0:T(1,128)}', space=vmem, size = 0x12000, scoped, tag = 'internal scratch']
  %s0 = inlined_call_operand.vmem [shape: f32[2,9,128], index: 0, kind: input, shape index: {}]
  %s1 = inlined_call_operand.vmem [shape: f32[3,64,64], index: 1, kind: input, shape index: {}]
  %s2 = inlined_call_operand.vmem [shape: f32[1,64], index: 2, kind: input, shape index: {}]
  %s3 = inlined_call_operand.vmem [shape: f32[64,64], index: 3, kind: input, shape index: {}]
  %s4 = inlined_call_operand.vmem [shape: f32[1,64], index: 4, kind: input, shape index: {}]
  %s5 = inlined_call_operand.vmem [shape: f32[3,64,64], index: 5, kind: input, shape index: {}]
  %s6 = inlined_call_operand.vmem [shape: f32[1,64], index: 6, kind: input, shape index: {}]
  %s7 = inlined_call_operand.vmem [shape: f32[2,8,64], index: 7, kind: output, shape index: {}]
  %s8 = sld [smem:[#allocation0]]
  $region61: #{emg_encoder_transformer_forward.11} parent=0
    _
  %s10 = ssub.s32 1, %s8
  %s11 = scalar_select 0, %s10, %s8
  loop: start=0, step=1, limit=4
  $region2: #{emg_encoder_transformer_forward.11} parent=0 // loop_pre_header
    _
  $region3: #{emg_encoder_transformer_forward.11} parent=0 // loop_header
    %s13 = sphi 0, %s17
    %p14 = scmp.ge.s32.totalorder %s13, 4
    %s23 = sphi 0, %s25
    %s26 = sphi 0, %s23
    %s27 = sphi 0, %s26
    %s43 = sphi 0, %s27
    %s47 = sphi 0, %s47
    %s49 = sphi 0, %s47
    %s50 = sphi 0, %s49
    %s64 = sphi 0, %s50
    %s68 = sphi 0, %s68
    %s70 = sphi 0, %s68
    %s71 = sphi 0, %s70
    %s85 = sphi 0, %s71
    %s89 = sphi 0, %s89
    %s91 = sphi 0, %s89
    %s92 = sphi 0, %s91
    %s106 = sphi 0, %s92
    %s110 = sphi 0, %s110
    %s112 = sphi 0, %s110
    %s113 = sphi 0, %s112
    %s127 = sphi 0, %s113
    %s131 = sphi 0, %s131
    %s133 = sphi 0, %s131
    %s134 = sphi 0, %s133
    %s148 = sphi 0, %s134
    %s152 = sphi 0, %s152
    %s154 = sphi 0, %s152
    %s155 = sphi 0, %s154
    %s169 = sphi 0, %s155
    %s175 = sphi 0, %s177
    %s178 = sphi 0, %s175
    %s179 = sphi 0, %s178
    %s195 = sphi 0, %s179
  $region4: #{emg_encoder_transformer_forward.11} parent=0 // loop_header_branch
    %16 = sbr.rel (%p14) target = $region8
  $region5: #{emg_encoder_transformer_forward.11} parent=0 // loop_body
    %s18 = ssub.s32 %s13, 1
    %s19 = ssub.s32 %s13, 2
    %s20 = sadd.s32 %s13, 1
    %s21 = ssub.s32 %s13, %s20
    %p22 = scmp.eq.s32.totalorder %s21, 0
    %s24 = sadd.s32 %s23, 1
    %s25 = scalar_select %p22, %s23, %s24
    %p28 = pneg %p22
    %p29 = scmp.eq.s32.totalorder %s13, 1
    %p30 = por %p28, %p29
    %p31 = scmp.ne.s32.totalorder %s23, %s26
    %p32 = scmp.eq.s32.totalorder %s13, 0
    %p33 = por %p31, %p32
    %p34 = scmp.ne.s32.totalorder %s23, %s26
    %p35 = scmp.eq.s32.totalorder %s18, 1
    %p36 = por %p34, %p35
    %p37 = scmp.ne.s32.totalorder %s26, %s27
    %p38 = scmp.eq.s32.totalorder %s18, 0
    %p39 = por %p37, %p38
    %p40 = scmp.ne.s32.totalorder %s26, %s27
    %p41 = scmp.eq.s32.totalorder %s19, 1
    %p42 = por %p40, %p41
    %p44 = scmp.ne.s32.totalorder %s27, %s43
    %p45 = scmp.eq.s32.totalorder %s19, 0
    %p46 = por %p44, %p45
    %s48 = sadd.s32 %s47, 1
    %p51 = scmp.eq.s32.totalorder %s13, 1
    %p52 = scmp.ne.s32.totalorder %s47, %s49
    %p53 = scmp.eq.s32.totalorder %s13, 0
    %p54 = por %p52, %p53
    %p55 = scmp.ne.s32.totalorder %s47, %s49
    %p56 = scmp.eq.s32.totalorder %s18, 1
    %p57 = por %p55, %p56
    %p58 = scmp.ne.s32.totalorder %s49, %s50
    %p59 = scmp.eq.s32.totalorder %s18, 0
    %p60 = por %p58, %p59
    %p61 = scmp.ne.s32.totalorder %s49, %s50
    %p62 = scmp.eq.s32.totalorder %s19, 1
    %p63 = por %p61, %p62
    %p65 = scmp.ne.s32.totalorder %s50, %s64
    %p66 = scmp.eq.s32.totalorder %s19, 0
    %p67 = por %p65, %p66
    %s69 = sadd.s32 %s68, 1
    %p72 = scmp.eq.s32.totalorder %s13, 1
    %p73 = scmp.ne.s32.totalorder %s68, %s70
    %p74 = scmp.eq.s32.totalorder %s13, 0
    %p75 = por %p73, %p74
    %p76 = scmp.ne.s32.totalorder %s68, %s70
    %p77 = scmp.eq.s32.totalorder %s18, 1
    %p78 = por %p76, %p77
    %p79 = scmp.ne.s32.totalorder %s70, %s71
    %p80 = scmp.eq.s32.totalorder %s18, 0
    %p81 = por %p79, %p80
    %p82 = scmp.ne.s32.totalorder %s70, %s71
    %p83 = scmp.eq.s32.totalorder %s19, 1
    %p84 = por %p82, %p83
    %p86 = scmp.ne.s32.totalorder %s71, %s85
    %p87 = scmp.eq.s32.totalorder %s19, 0
    %p88 = por %p86, %p87
    %s90 = sadd.s32 %s89, 1
    %p93 = scmp.eq.s32.totalorder %s13, 1
    %p94 = scmp.ne.s32.totalorder %s89, %s91
    %p95 = scmp.eq.s32.totalorder %s13, 0
    %p96 = por %p94, %p95
    %p97 = scmp.ne.s32.totalorder %s89, %s91
    %p98 = scmp.eq.s32.totalorder %s18, 1
    %p99 = por %p97, %p98
    %p100 = scmp.ne.s32.totalorder %s91, %s92
    %p101 = scmp.eq.s32.totalorder %s18, 0
    %p102 = por %p100, %p101
    %p103 = scmp.ne.s32.totalorder %s91, %s92
    %p104 = scmp.eq.s32.totalorder %s19, 1
    %p105 = por %p103, %p104
    %p107 = scmp.ne.s32.totalorder %s92, %s106
    %p108 = scmp.eq.s32.totalorder %s19, 0
    %p109 = por %p107, %p108
    %s111 = sadd.s32 %s110, 1
    %p114 = scmp.eq.s32.totalorder %s13, 1
    %p115 = scmp.ne.s32.totalorder %s110, %s112
    %p116 = scmp.eq.s32.totalorder %s13, 0
    %p117 = por %p115, %p116
    %p118 = scmp.ne.s32.totalorder %s110, %s112
    %p119 = scmp.eq.s32.totalorder %s18, 1
    %p120 = por %p118, %p119
    %p121 = scmp.ne.s32.totalorder %s112, %s113
    %p122 = scmp.eq.s32.totalorder %s18, 0
    %p123 = por %p121, %p122
    %p124 = scmp.ne.s32.totalorder %s112, %s113
    %p125 = scmp.eq.s32.totalorder %s19, 1
    %p126 = por %p124, %p125
    %p128 = scmp.ne.s32.totalorder %s113, %s127
    %p129 = scmp.eq.s32.totalorder %s19, 0
    %p130 = por %p128, %p129
    %s132 = sadd.s32 %s131, 1
    %p135 = scmp.eq.s32.totalorder %s13, 1
    %p136 = scmp.ne.s32.totalorder %s131, %s133
    %p137 = scmp.eq.s32.totalorder %s13, 0
    %p138 = por %p136, %p137
    %p139 = scmp.ne.s32.totalorder %s131, %s133
    %p140 = scmp.eq.s32.totalorder %s18, 1
    %p141 = por %p139, %p140
    %p142 = scmp.ne.s32.totalorder %s133, %s134
    %p143 = scmp.eq.s32.totalorder %s18, 0
    %p144 = por %p142, %p143
    %p145 = scmp.ne.s32.totalorder %s133, %s134
    %p146 = scmp.eq.s32.totalorder %s19, 1
    %p147 = por %p145, %p146
    %p149 = scmp.ne.s32.totalorder %s134, %s148
    %p150 = scmp.eq.s32.totalorder %s19, 0
    %p151 = por %p149, %p150
    %s153 = sadd.s32 %s152, 1
    %p156 = scmp.eq.s32.totalorder %s13, 1
    %p157 = scmp.ne.s32.totalorder %s152, %s154
    %p158 = scmp.eq.s32.totalorder %s13, 0
    %p159 = por %p157, %p158
    %p160 = scmp.ne.s32.totalorder %s152, %s154
    %p161 = scmp.eq.s32.totalorder %s18, 1
    %p162 = por %p160, %p161
    %p163 = scmp.ne.s32.totalorder %s154, %s155
    %p164 = scmp.eq.s32.totalorder %s18, 0
    %p165 = por %p163, %p164
    %p166 = scmp.ne.s32.totalorder %s154, %s155
    %p167 = scmp.eq.s32.totalorder %s19, 1
    %p168 = por %p166, %p167
    %p170 = scmp.ne.s32.totalorder %s155, %s169
    %p171 = scmp.eq.s32.totalorder %s19, 0
    %p172 = por %p170, %p171
    %s173 = ssub.s32 %s13, %s20
    %p174 = scmp.eq.s32.totalorder %s173, 0
    %s176 = sadd.s32 %s175, 1
    %s177 = scalar_select %p174, %s175, %s176
    %p180 = pneg %p174
    %p181 = scmp.eq.s32.totalorder %s13, 1
    %p182 = por %p180, %p181
    %p183 = scmp.ne.s32.totalorder %s175, %s178
    %p184 = scmp.eq.s32.totalorder %s13, 0
    %p185 = por %p183, %p184
    %p186 = scmp.ne.s32.totalorder %s175, %s178
    %p187 = scmp.eq.s32.totalorder %s18, 1
    %p188 = por %p186, %p187
    %p189 = scmp.ne.s32.totalorder %s178, %s179
    %p190 = scmp.eq.s32.totalorder %s18, 0
    %p191 = por %p189, %p190
    %p192 = scmp.ne.s32.totalorder %s178, %s179
    %p193 = scmp.eq.s32.totalorder %s19, 1
    %p194 = por %p192, %p193
    %p196 = scmp.ne.s32.totalorder %s179, %s195
    %p197 = scmp.eq.s32.totalorder %s19, 0
    %p198 = por %p196, %p197
    %p199 = scmp.le.s32.totalorder 1, %s13
    %p200 = scmp.lt.s32.totalorder %s13, 3
    %p201 = pnand %p199, %p200
    %p202 = pneg %p201
    // Predicated region
    $region9: #{emg_encoder_transformer_forward.11} parent=5 // pred_check
      _
    $region10: #{emg_encoder_transformer_forward.11} parent=5 // pred_check_branch
      %204 = sbr.rel (%p201) target = $region12
    $region11: #{emg_encoder_transformer_forward.11} parent=5 // pred_region
      %s205 = ssub.s32 %s13, 1
      // Predicated region
      $region13: #{emg_encoder_transformer_forward.11} parent=11 // pred_check
        %p206 = pneg %p60
      $region14: #{emg_encoder_transformer_forward.11} parent=11 // pred_check_branch
        %208 = sbr.rel (%p206) target = $region16
      $region15: #{emg_encoder_transformer_forward.11} parent=11 // pred_region
        _
      $region16: #{emg_encoder_transformer_forward.11} parent=11 // pred_fallthru
        _
      // Predicated region
      $region17: #{emg_encoder_transformer_forward.11} parent=11 // pred_check
        %p209 = pneg %p81
      $region18: #{emg_encoder_transformer_forward.11} parent=11 // pred_check_branch
        %211 = sbr.rel (%p209) target = $region20
      $region19: #{emg_encoder_transformer_forward.11} parent=11 // pred_region
        _
      $region20: #{emg_encoder_transformer_forward.11} parent=11 // pred_fallthru
        _
      // Predicated region
      $region21: #{emg_encoder_transformer_forward.11} parent=11 // pred_check
        %p212 = pneg %p102
      $region22: #{emg_encoder_transformer_forward.11} parent=11 // pred_check_branch
        %214 = sbr.rel (%p212) target = $region24
      $region23: #{emg_encoder_transformer_forward.11} parent=11 // pred_region
        _
      $region24: #{emg_encoder_transformer_forward.11} parent=11 // pred_fallthru
        _
      // Predicated region
      $region25: #{emg_encoder_transformer_forward.11} parent=11 // pred_check
        %p215 = pneg %p123
      $region26: #{emg_encoder_transformer_forward.11} parent=11 // pred_check_branch
        %217 = sbr.rel (%p215) target = $region28
      $region27: #{emg_encoder_transformer_forward.11} parent=11 // pred_region
        _
      $region28: #{emg_encoder_transformer_forward.11} parent=11 // pred_fallthru
        _
      // Predicated region
      $region29: #{emg_encoder_transformer_forward.11} parent=11 // pred_check
        %p218 = pneg %p144
      $region30: #{emg_encoder_transformer_forward.11} parent=11 // pred_check_branch
        %220 = sbr.rel (%p218) target = $region32
      $region31: #{emg_encoder_transformer_forward.11} parent=11 // pred_region
        _
      $region32: #{emg_encoder_transformer_forward.11} parent=11 // pred_fallthru
        _
      // Predicated region
      $region33: #{emg_encoder_transformer_forward.11} parent=11 // pred_check
        %p221 = pneg %p165
      $region34: #{emg_encoder_transformer_forward.11} parent=11 // pred_check_branch
        %223 = sbr.rel (%p221) target = $region36
      $region35: #{emg_encoder_transformer_forward.11} parent=11 // pred_region
        _
      $region36: #{emg_encoder_transformer_forward.11} parent=11 // pred_fallthru
        _
    $region12: #{emg_encoder_transformer_forward.11} parent=5 // pred_fallthru
      _
    %p224 = scmp.lt.s32.totalorder %s13, 2
    // Predicated region
    $region37: #{emg_encoder_transformer_forward.11} parent=5 // pred_check
      %p225 = pneg %p224
    $region38: #{emg_encoder_transformer_forward.11} parent=5 // pred_check_branch
      %227 = sbr.rel (%p225) target = $region40
    $region39: #{emg_encoder_transformer_forward.11} parent=5 // pred_region
      // Predicated region
      $region41: #{emg_encoder_transformer_forward.11} parent=39 // pred_check
        %p228 = pneg %p33
      $region42: #{emg_encoder_transformer_forward.11} parent=39 // pred_check_branch
        %230 = sbr.rel (%p228) target = $region44
      $region43: #{emg_encoder_transformer_forward.11} parent=39 // pred_region
        %p231 = scmp.lt.s32.totalorder %s13, 1
        %s232 = scalar_select %p231, %s13, 1
        %s233 = smul.addr %s232, 2
        %s234 = smul.addr %s233, 8
        %s235 = scalar_lea.vmem %s0, %s234
      $region44: #{emg_encoder_transformer_forward.11} parent=39 // pred_fallthru
        _
    $region40: #{emg_encoder_transformer_forward.11} parent=5 // pred_fallthru
      _
    %p236 = scmp.le.s32.totalorder 1, %s13
    %p237 = scmp.lt.s32.totalorder %s13, 3
    %p238 = pnand %p236, %p237
    %p239 = pneg %p238
    // Predicated region
    $region45: #{emg_encoder_transformer_forward.11} parent=5 // pred_check
      _
    $region46: #{emg_encoder_transformer_forward.11} parent=5 // pred_check_branch
      %241 = sbr.rel (%p238) target = $region48
    $region47: #{emg_encoder_transformer_forward.11} parent=5 // pred_region
      %s242 = ssub.s32 %s13, 1
      %p243 = scmp.lt.s32.totalorder %s18, 1
      %s244 = scalar_select %p243, %s18, 1
      %s245 = smul.addr %s244, 2
      %s246 = smul.addr %s245, 8
      %s247 = scalar_lea.vmem %s0, %s246
      %p248 = pneg %p39
      %p249 = pneg %p36
      %p250 = pneg %p60
      %p251 = pneg %p57
      %p252 = pneg %p81
      %p253 = pneg %p78
      %p254 = pneg %p102
      %p255 = pneg %p99
      %p256 = pneg %p123
      %p257 = pneg %p120
      %p258 = pneg %p144
      %p259 = pneg %p141
      %p260 = pneg %p165
      %p261 = pneg %p162
      %p262 = pneg %p191
      %p263 = pneg %p188
      %p264 = scmp.lt.s32.totalorder %s18, 1
      %s265 = scalar_select %p264, %s18, 1
      %s266 = smul.addr %s265, 8
      %s267 = scalar_lea.vmem %s7, %s266
      %p268 = scmp.lt.s32.totalorder %s18, 1
      %s269 = scalar_select %p268, %s18, 1
      %s270 = smul.addr %s269, 2
      %s271 = smul.addr %s270, 8
      %s272 = scalar_lea.vmem %s0, %s271
      %p273 = scmp.lt.s32.totalorder %s18, 1
      %s274 = scalar_select %p273, %s18, 1
      %s275 = smul.addr %s274, 8
      %s276 = scalar_lea.vmem %s7, %s275
      %v277 = vld [vmem:[%s272] sm:$0xff]
      %v278 = vld [vmem:[%s272 + $0x8] sm:$0x1]
      %v279 = vld [vmem:[%s1] sm:$0xff]
      %v280 = vld [vmem:[%s1 + $0x8] sm:$0xff]
      %v281 = vld [vmem:[%s1 + $0x10] sm:$0xff]
      %v282 = vld [vmem:[%s1 + $0x18] sm:$0xff]
      %v283 = vld [vmem:[%s1 + $0x20] sm:$0xff]
      %v284 = vld [vmem:[%s1 + $0x28] sm:$0xff]
      %v285 = vld [vmem:[%s1 + $0x30] sm:$0xff]
      %v286 = vld [vmem:[%s1 + $0x38] sm:$0xff]
      %s287 = scalar_lea.vmem %s1, 64
      %v288 = vld [vmem:[%s287] sm:$0xff]
      %v289 = vld [vmem:[%s287 + $0x8] sm:$0xff]
      %v290 = vld [vmem:[%s287 + $0x10] sm:$0xff]
      %v291 = vld [vmem:[%s287 + $0x18] sm:$0xff]
      %v292 = vld [vmem:[%s287 + $0x20] sm:$0xff]
      %v293 = vld [vmem:[%s287 + $0x28] sm:$0xff]
      %v294 = vld [vmem:[%s287 + $0x30] sm:$0xff]
      %v295 = vld [vmem:[%s287 + $0x38] sm:$0xff]
      %297 = vrot.lane.b32.xlu0 %v277, 64
      %v298 = vpop.permute.xlu0 %297
      %vm299 = vcmask 523264
      %v300 = vsel %vm299, %v298, 0
      %302 = vmatprep.subr.mxu0 0.0
      %303 = vmatpush1.msra.mxu0 %v288
      %304 = vmatprep.subr.mxu0 0.0
      %305 = vmatpush1.msra.mxu0 %v289
      %306 = vmatprep.subr.mxu0 0.0
      %307 = vmatpush1.msra.mxu0 %v290
      %308 = vmatprep.subr.mxu0 0.0
      %309 = vmatpush1.msra.mxu0 %v291
      %310 = vmatprep.subr.mxu0 0.0
      %311 = vmatpush1.msra.mxu0 %v292
      %312 = vmatprep.subr.mxu0 0.0
      %313 = vmatpush1.msra.mxu0 %v293
      %314 = vmatprep.subr.mxu0 0.0
      %315 = vmatpush1.msra.mxu0 %v294
      %316 = vmatprep.subr.mxu0 0.0
      %317 = vmatpush1.msra.mxu0 %v295
      %318 = vmatprep.subr.mxu0 0.0
      %319 = vmatpush1.msra.mxu0 0.0
      %320 = vmatprep.subr.mxu0 0.0
      %321 = vmatpush1.msra.mxu0 0.0
      %322 = vmatprep.subr.mxu0 0.0
      %323 = vmatpush1.msra.mxu0 0.0
      %324 = vmatprep.subr.mxu0 0.0
      %325 = vmatpush1.msra.mxu0 0.0
      %326 = vmatprep.subr.mxu0 0.0
      %327 = vmatpush1.msra.mxu0 0.0
      %328 = vmatprep.subr.mxu0 0.0
      %329 = vmatpush1.msra.mxu0 0.0
      %330 = vmatprep.subr.mxu0 0.0
      %331 = vmatpush1.msra.mxu0 0.0
      %332 = vmatprep.subr.mxu0 0.0
      %333 = vmatpush1.msra.mxu0 0.0
      %334 = vmatprep.subr.mxu0 0.0
      %335 = vmatpush1.msra.mxu0 0.0
      %336 = vmatprep.subr.mxu0 0.0
      %337 = vmatpush1.msra.mxu0 0.0
      %338 = vmatprep.subr.mxu0 0.0
      %339 = vmatpush1.msra.mxu0 0.0
      %340 = vmatprep.subr.mxu0 0.0
      %341 = vmatpush1.msra.mxu0 0.0
      %342 = vmatprep.subr.mxu0 0.0
      %343 = vmatpush1.msra.mxu0 0.0
      %344 = vmatprep.subr.mxu0 0.0
      %345 = vmatpush1.msra.mxu0 0.0
      %346 = vmatprep.subr.mxu0 0.0
      %347 = vmatpush1.msra.mxu0 0.0
      %348 = vmatprep.subr.mxu0 0.0
      %349 = vmatpush1.msra.mxu0 0.0
      %350 = vmatprep.subr.mxu0 0.0
      %351 = vmatpush1.msra.mxu0 0.0
      %352 = vmatprep.subr.mxu0 0.0
      %353 = vmatpush1.msra.mxu0 0.0
      %354 = vmatprep.subr.mxu0 0.0
      %355 = vmatpush1.msra.mxu0 0.0
      %356 = vmatprep.subr.mxu0 0.0
      %357 = vmatpush1.msra.mxu0 0.0
      %358 = vmatprep.subr.mxu0 0.0
      %359 = vmatpush1.msra.mxu0 0.0
      %360 = vmatprep.subr.mxu0 0.0
      %361 = vmatpush1.msra.mxu0 0.0
      %362 = vmatprep.subr.mxu0 0.0
      %363 = vmatpush1.msra.mxu0 0.0
      %364 = vmatprep.subr.mxu0 0.0
      %365 = vmatpush1.msra.mxu0 0.0
      %366 = vmatprep.mubr.f32.mxu0 0.0
      %367 = vmatmul.mubr.f32.gmra.mrb[0].mxu0 %v300
      %v368 = vpop.f32.mrb[0].mxu0
      %v369 = vadd.f32 0.0, %v368
      %v370 = vpop.f32.mrb[0].mxu0
      %371 = vdwg.mxu0
      %v372 = vsel %vm299, %v277, 0
      %374 = vmatprep.subr.mxu0 0.0
      %375 = vmatpush1.msra.mxu0 %v279
      %376 = vmatprep.subr.mxu0 0.0
      %377 = vmatpush1.msra.mxu0 %v280
      %378 = vmatprep.subr.mxu0 0.0
      %379 = vmatpush1.msra.mxu0 %v281
      %380 = vmatprep.subr.mxu0 0.0
      %381 = vmatpush1.msra.mxu0 %v282
      %382 = vmatprep.subr.mxu0 0.0
      %383 = vmatpush1.msra.mxu0 %v283
      %384 = vmatprep.subr.mxu0 0.0
      %385 = vmatpush1.msra.mxu0 %v284
      %386 = vmatprep.subr.mxu0 0.0
      %387 = vmatpush1.msra.mxu0 %v285
      %388 = vmatprep.subr.mxu0 0.0
      %389 = vmatpush1.msra.mxu0 %v286
      %390 = vmatprep.subr.mxu0 0.0
      %391 = vmatpush1.msra.mxu0 0.0
      %392 = vmatprep.subr.mxu0 0.0
      %393 = vmatpush1.msra.mxu0 0.0
      %394 = vmatprep.subr.mxu0 0.0
      %395 = vmatpush1.msra.mxu0 0.0
      %396 = vmatprep.subr.mxu0 0.0
      %397 = vmatpush1.msra.mxu0 0.0
      %398 = vmatprep.subr.mxu0 0.0
      %399 = vmatpush1.msra.mxu0 0.0
      %400 = vmatprep.subr.mxu0 0.0
      %401 = vmatpush1.msra.mxu0 0.0
      %402 = vmatprep.subr.mxu0 0.0
      %403 = vmatpush1.msra.mxu0 0.0
      %404 = vmatprep.subr.mxu0 0.0
      %405 = vmatpush1.msra.mxu0 0.0
      %406 = vmatprep.subr.mxu0 0.0
      %407 = vmatpush1.msra.mxu0 0.0
      %408 = vmatprep.subr.mxu0 0.0
      %409 = vmatpush1.msra.mxu0 0.0
      %410 = vmatprep.subr.mxu0 0.0
      %411 = vmatpush1.msra.mxu0 0.0
      %412 = vmatprep.subr.mxu0 0.0
      %413 = vmatpush1.msra.mxu0 0.0
      %414 = vmatprep.subr.mxu0 0.0
      %415 = vmatpush1.msra.mxu0 0.0
      %416 = vmatprep.subr.mxu0 0.0
      %417 = vmatpush1.msra.mxu0 0.0
      %418 = vmatprep.subr.mxu0 0.0
      %419 = vmatpush1.msra.mxu0 0.0
      %420 = vmatprep.subr.mxu0 0.0
      %421 = vmatpush1.msra.mxu0 0.0
      %422 = vmatprep.subr.mxu0 0.0
      %423 = vmatpush1.msra.mxu0 0.0
      %424 = vmatprep.subr.mxu0 0.0
      %425 = vmatpush1.msra.mxu0 0.0
      %426 = vmatprep.subr.mxu0 0.0
      %427 = vmatpush1.msra.mxu0 0.0
      %428 = vmatprep.subr.mxu0 0.0
      %429 = vmatpush1.msra.mxu0 0.0
      %430 = vmatprep.subr.mxu0 0.0
      %431 = vmatpush1.msra.mxu0 0.0
      %432 = vmatprep.subr.mxu0 0.0
      %433 = vmatpush1.msra.mxu0 0.0
      %434 = vmatprep.subr.mxu0 0.0
      %435 = vmatpush1.msra.mxu0 0.0
      %436 = vmatprep.subr.mxu0 0.0
      %437 = vmatpush1.msra.mxu0 0.0
      %438 = vmatprep.mubr.f32.mxu0 0.0
      %439 = vmatmul.mubr.f32.gmra.mrb[0].mxu0 %v372
      %v440 = vpop.f32.mrb[0].mxu0
      %v441 = vadd.f32 %v369, %v440
      %v442 = vpop.f32.mrb[0].mxu0
      %443 = vdwg.mxu0
      %s444 = scalar_lea.vmem %s1, 128
      %v445 = vld [vmem:[%s444] sm:$0xff]
      %v446 = vld [vmem:[%s444 + $0x8] sm:$0xff]
      %v447 = vld [vmem:[%s444 + $0x10] sm:$0xff]
      %v448 = vld [vmem:[%s444 + $0x18] sm:$0xff]
      %v449 = vld [vmem:[%s444 + $0x20] sm:$0xff]
      %v450 = vld [vmem:[%s444 + $0x28] sm:$0xff]
      %v451 = vld [vmem:[%s444 + $0x30] sm:$0xff]
      %v452 = vld [vmem:[%s444 + $0x38] sm:$0xff]
      %vm454 = vcmask 1046528
      %v455 = vrot.slane %v277, 1
      %v456 = vrot.slane %v278, 1
      %v457 = vsel %vm454, %v455, %v456
      %v458 = vsel %vm299, %v457, 0
      %460 = vmatprep.subr.mxu0 0.0
      %461 = vmatpush1.msra.mxu0 %v445
      %462 = vmatprep.subr.mxu0 0.0
      %463 = vmatpush1.msra.mxu0 %v446
      %464 = vmatprep.subr.mxu0 0.0
      %465 = vmatpush1.msra.mxu0 %v447
      %466 = vmatprep.subr.mxu0 0.0
      %467 = vmatpush1.msra.mxu0 %v448
      %468 = vmatprep.subr.mxu0 0.0
      %469 = vmatpush1.msra.mxu0 %v449
      %470 = vmatprep.subr.mxu0 0.0
      %471 = vmatpush1.msra.mxu0 %v450
      %472 = vmatprep.subr.mxu0 0.0
      %473 = vmatpush1.msra.mxu0 %v451
      %474 = vmatprep.subr.mxu0 0.0
      %475 = vmatpush1.msra.mxu0 %v452
      %476 = vmatprep.subr.mxu0 0.0
      %477 = vmatpush1.msra.mxu0 0.0
      %478 = vmatprep.subr.mxu0 0.0
      %479 = vmatpush1.msra.mxu0 0.0
      %480 = vmatprep.subr.mxu0 0.0
      %481 = vmatpush1.msra.mxu0 0.0
      %482 = vmatprep.subr.mxu0 0.0
      %483 = vmatpush1.msra.mxu0 0.0
      %484 = vmatprep.subr.mxu0 0.0
      %485 = vmatpush1.msra.mxu0 0.0
      %486 = vmatprep.subr.mxu0 0.0
      %487 = vmatpush1.msra.mxu0 0.0
      %488 = vmatprep.subr.mxu0 0.0
      %489 = vmatpush1.msra.mxu0 0.0
      %490 = vmatprep.subr.mxu0 0.0
      %491 = vmatpush1.msra.mxu0 0.0
      %492 = vmatprep.subr.mxu0 0.0
      %493 = vmatpush1.msra.mxu0 0.0
      %494 = vmatprep.subr.mxu0 0.0
      %495 = vmatpush1.msra.mxu0 0.0
      %496 = vmatprep.subr.mxu0 0.0
      %497 = vmatpush1.msra.mxu0 0.0
      %498 = vmatprep.subr.mxu0 0.0
      %499 = vmatpush1.msra.mxu0 0.0
      %500 = vmatprep.subr.mxu0 0.0
      %501 = vmatpush1.msra.mxu0 0.0
      %502 = vmatprep.subr.mxu0 0.0
      %503 = vmatpush1.msra.mxu0 0.0
      %504 = vmatprep.subr.mxu0 0.0
      %505 = vmatpush1.msra.mxu0 0.0
      %506 = vmatprep.subr.mxu0 0.0
      %507 = vmatpush1.msra.mxu0 0.0
      %508 = vmatprep.subr.mxu0 0.0
      %509 = vmatpush1.msra.mxu0 0.0
      %510 = vmatprep.subr.mxu0 0.0
      %511 = vmatpush1.msra.mxu0 0.0
      %512 = vmatprep.subr.mxu0 0.0
      %513 = vmatpush1.msra.mxu0 0.0
      %514 = vmatprep.subr.mxu0 0.0
      %515 = vmatpush1.msra.mxu0 0.0
      %516 = vmatprep.subr.mxu0 0.0
      %517 = vmatpush1.msra.mxu0 0.0
      %518 = vmatprep.subr.mxu0 0.0
      %519 = vmatpush1.msra.mxu0 0.0
      %520 = vmatprep.subr.mxu0 0.0
      %521 = vmatpush1.msra.mxu0 0.0
      %522 = vmatprep.subr.mxu0 0.0
      %523 = vmatpush1.msra.mxu0 0.0
      %524 = vmatprep.mubr.f32.mxu0 0.0
      %525 = vmatmul.mubr.f32.gmra.mrb[0].mxu0 %v458
      %v526 = vpop.f32.mrb[0].mxu0
      %v527 = vadd.f32 0.0, %v526
      %v528 = vpop.f32.mrb[0].mxu0
      %529 = vdwg.mxu0
      %v530 = vadd.f32 %v441, %v527
      %v531 = vld [vmem:[%s2] sm:$0x1]
      %v533 = vlaneseq
      %v534 = vshrl.u32 %v533, 7
      %v535 = vsub.s32 0, %v534
      %v536 = vrot.slane %v531, %v535
      %v538 = vadd.f32 %v530, %v536
      %v539 = vmax.f32 %v538, 0.0
      %v540 = vld [vmem:[%s3] sm:$0xff]
      %v541 = vld [vmem:[%s3 + $0x8] sm:$0xff]
      %v542 = vld [vmem:[%s3 + $0x10] sm:$0xff]
      %v543 = vld [vmem:[%s3 + $0x18] sm:$0xff]
      %v544 = vld [vmem:[%s3 + $0x20] sm:$0xff]
      %v545 = vld [vmem:[%s3 + $0x28] sm:$0xff]
      %v546 = vld [vmem:[%s3 + $0x30] sm:$0xff]
      %v547 = vld [vmem:[%s3 + $0x38] sm:$0xff]
      %v548 = vld [vmem:[%s4] sm:$0x1]
      %v550 = vlaneseq
      %v551 = vshrl.u32 %v550, 7
      %v552 = vsub.s32 0, %v551
      %v553 = vrot.slane %v548, %v552
      %555 = vmatprep.subr.mxu0 0.0
      %556 = vmatpush1.msra.mxu0 %v540
      %557 = vmatprep.subr.mxu0 0.0
      %558 = vmatpush1.msra.mxu0 %v541
      %559 = vmatprep.subr.mxu0 0.0
      %560 = vmatpush1.msra.mxu0 %v542
      %561 = vmatprep.subr.mxu0 0.0
      %562 = vmatpush1.msra.mxu0 %v543
      %563 = vmatprep.subr.mxu0 0.0
      %564 = vmatpush1.msra.mxu0 %v544
      %565 = vmatprep.subr.mxu0 0.0
      %566 = vmatpush1.msra.mxu0 %v545
      %567 = vmatprep.subr.mxu0 0.0
      %568 = vmatpush1.msra.mxu0 %v546
      %569 = vmatprep.subr.mxu0 0.0
      %570 = vmatpush1.msra.mxu0 %v547
      %571 = vmatprep.subr.mxu0 0.0
      %572 = vmatpush1.msra.mxu0 0.0
      %573 = vmatprep.subr.mxu0 0.0
      %574 = vmatpush1.msra.mxu0 0.0
      %575 = vmatprep.subr.mxu0 0.0
      %576 = vmatpush1.msra.mxu0 0.0
      %577 = vmatprep.subr.mxu0 0.0
      %578 = vmatpush1.msra.mxu0 0.0
      %579 = vmatprep.subr.mxu0 0.0
      %580 = vmatpush1.msra.mxu0 0.0
      %581 = vmatprep.subr.mxu0 0.0
      %582 = vmatpush1.msra.mxu0 0.0
      %583 = vmatprep.subr.mxu0 0.0
      %584 = vmatpush1.msra.mxu0 0.0
      %585 = vmatprep.subr.mxu0 0.0
      %586 = vmatpush1.msra.mxu0 0.0
      %587 = vmatprep.subr.mxu0 0.0
      %588 = vmatpush1.msra.mxu0 0.0
      %589 = vmatprep.subr.mxu0 0.0
      %590 = vmatpush1.msra.mxu0 0.0
      %591 = vmatprep.subr.mxu0 0.0
      %592 = vmatpush1.msra.mxu0 0.0
      %593 = vmatprep.subr.mxu0 0.0
      %594 = vmatpush1.msra.mxu0 0.0
      %595 = vmatprep.subr.mxu0 0.0
      %596 = vmatpush1.msra.mxu0 0.0
      %597 = vmatprep.subr.mxu0 0.0
      %598 = vmatpush1.msra.mxu0 0.0
      %599 = vmatprep.subr.mxu0 0.0
      %600 = vmatpush1.msra.mxu0 0.0
      %601 = vmatprep.subr.mxu0 0.0
      %602 = vmatpush1.msra.mxu0 0.0
      %603 = vmatprep.subr.mxu0 0.0
      %604 = vmatpush1.msra.mxu0 0.0
      %605 = vmatprep.subr.mxu0 0.0
      %606 = vmatpush1.msra.mxu0 0.0
      %607 = vmatprep.subr.mxu0 0.0
      %608 = vmatpush1.msra.mxu0 0.0
      %609 = vmatprep.subr.mxu0 0.0
      %610 = vmatpush1.msra.mxu0 0.0
      %611 = vmatprep.subr.mxu0 0.0
      %612 = vmatpush1.msra.mxu0 0.0
      %613 = vmatprep.subr.mxu0 0.0
      %614 = vmatpush1.msra.mxu0 0.0
      %615 = vmatprep.subr.mxu0 0.0
      %616 = vmatpush1.msra.mxu0 0.0
      %617 = vmatprep.subr.mxu0 0.0
      %618 = vmatpush1.msra.mxu0 0.0
      %619 = vmatprep.mubr.f32.mxu0 0.0
      %620 = vmatmul.mubr.f32.gmra.mrb[0].mxu0 %v300
      %v621 = vpop.f32.mrb[0].mxu0
      %v622 = vadd.f32 %v553, %v621
      %v623 = vpop.f32.mrb[0].mxu0
      %624 = vdwg.mxu0
      %v625 = vlaneseq
      %v626 = vshrl.u32 %v625, 7
      %vm627 = vcmp.ge.s32.totalorder %v626, 1
      %v628 = vrot.slane %v539, 7
      %v629 = vsel %vm627, %v628, 0.0
      %vm630 = vcmp.le.s32.totalorder %v626, 6
      %v631 = vrot.slane %v539, 1
      %v632 = vsel %vm630, %v631, 0.0
      %v633 = vld [vmem:[%s5] sm:$0xff]
      %v634 = vld [vmem:[%s5 + $0x8] sm:$0xff]
      %v635 = vld [vmem:[%s5 + $0x10] sm:$0xff]
      %v636 = vld [vmem:[%s5 + $0x18] sm:$0xff]
      %v637 = vld [vmem:[%s5 + $0x20] sm:$0xff]
      %v638 = vld [vmem:[%s5 + $0x28] sm:$0xff]
      %v639 = vld [vmem:[%s5 + $0x30] sm:$0xff]
      %v640 = vld [vmem:[%s5 + $0x38] sm:$0xff]
      %s641 = scalar_lea.vmem %s5, 64
      %v642 = vld [vmem:[%s641] sm:$0xff]
      %v643 = vld [vmem:[%s641 + $0x8] sm:$0xff]
      %v644 = vld [vmem:[%s641 + $0x10] sm:$0xff]
      %v645 = vld [vmem:[%s641 + $0x18] sm:$0xff]
      %v646 = vld [vmem:[%s641 + $0x20] sm:$0xff]
      %v647 = vld [vmem:[%s641 + $0x28] sm:$0xff]
      %v648 = vld [vmem:[%s641 + $0x30] sm:$0xff]
      %v649 = vld [vmem:[%s641 + $0x38] sm:$0xff]
      %v651 = vsel %vm299, %v539, 0
      %653 = vmatprep.subr.mxu0 0.0
      %654 = vmatpush1.msra.mxu0 %v642
      %655 = vmatprep.subr.mxu0 0.0
      %656 = vmatpush1.msra.mxu0 %v643
      %657 = vmatprep.subr.mxu0 0.0
      %658 = vmatpush1.msra.mxu0 %v644
      %659 = vmatprep.subr.mxu0 0.0
      %660 = vmatpush1.msra.mxu0 %v645
      %661 = vmatprep.subr.mxu0 0.0
      %662 = vmatpush1.msra.mxu0 %v646
      %663 = vmatprep.subr.mxu0 0.0
      %664 = vmatpush1.msra.mxu0 %v647
      %665 = vmatprep.subr.mxu0 0.0
      %666 = vmatpush1.msra.mxu0 %v648
      %667 = vmatprep.subr.mxu0 0.0
      %668 = vmatpush1.msra.mxu0 %v649
      %669 = vmatprep.subr.mxu0 0.0
      %670 = vmatpush1.msra.mxu0 0.0
      %671 = vmatprep.subr.mxu0 0.0
      %672 = vmatpush1.msra.mxu0 0.0
      %673 = vmatprep.subr.mxu0 0.0
      %674 = vmatpush1.msra.mxu0 0.0
      %675 = vmatprep.subr.mxu0 0.0
      %676 = vmatpush1.msra.mxu0 0.0
      %677 = vmatprep.subr.mxu0 0.0
      %678 = vmatpush1.msra.mxu0 0.0
      %679 = vmatprep.subr.mxu0 0.0
      %680 = vmatpush1.msra.mxu0 0.0
      %681 = vmatprep.subr.mxu0 0.0
      %682 = vmatpush1.msra.mxu0 0.0
      %683 = vmatprep.subr.mxu0 0.0
      %684 = vmatpush1.msra.mxu0 0.0
      %685 = vmatprep.subr.mxu0 0.0
      %686 = vmatpush1.msra.mxu0 0.0
      %687 = vmatprep.subr.mxu0 0.0
      %688 = vmatpush1.msra.mxu0 0.0
      %689 = vmatprep.subr.mxu0 0.0
      %690 = vmatpush1.msra.mxu0 0.0
      %691 = vmatprep.subr.mxu0 0.0
      %692 = vmatpush1.msra.mxu0 0.0
      %693 = vmatprep.subr.mxu0 0.0
      %694 = vmatpush1.msra.mxu0 0.0
      %695 = vmatprep.subr.mxu0 0.0
      %696 = vmatpush1.msra.mxu0 0.0
      %697 = vmatprep.subr.mxu0 0.0
      %698 = vmatpush1.msra.mxu0 0.0
      %699 = vmatprep.subr.mxu0 0.0
      %700 = vmatpush1.msra.mxu0 0.0
      %701 = vmatprep.subr.mxu0 0.0
      %702 = vmatpush1.msra.mxu0 0.0
      %703 = vmatprep.subr.mxu0 0.0
      %704 = vmatpush1.msra.mxu0 0.0
      %705 = vmatprep.subr.mxu0 0.0
      %706 = vmatpush1.msra.mxu0 0.0
      %707 = vmatprep.subr.mxu0 0.0
      %708 = vmatpush1.msra.mxu0 0.0
      %709 = vmatprep.subr.mxu0 0.0
      %710 = vmatpush1.msra.mxu0 0.0
      %711 = vmatprep.subr.mxu0 0.0
      %712 = vmatpush1.msra.mxu0 0.0
      %713 = vmatprep.subr.mxu0 0.0
      %714 = vmatpush1.msra.mxu0 0.0
      %715 = vmatprep.subr.mxu0 0.0
      %716 = vmatpush1.msra.mxu0 0.0
      %717 = vmatprep.mubr.f32.mxu0 0.0
      %718 = vmatmul.mubr.f32.gmra.mrb[0].mxu0 %v651
      %v719 = vpop.f32.mrb[0].mxu0
      %v720 = vadd.f32 0.0, %v719
      %v721 = vpop.f32.mrb[0].mxu0
      %722 = vdwg.mxu0
      %v724 = vsel %vm299, %v629, 0
      %726 = vmatprep.subr.mxu0 0.0
      %727 = vmatpush1.msra.mxu0 %v633
      %728 = vmatprep.subr.mxu0 0.0
      %729 = vmatpush1.msra.mxu0 %v634
      %730 = vmatprep.subr.mxu0 0.0
      %731 = vmatpush1.msra.mxu0 %v635
      %732 = vmatprep.subr.mxu0 0.0
      %733 = vmatpush1.msra.mxu0 %v636
      %734 = vmatprep.subr.mxu0 0.0
      %735 = vmatpush1.msra.mxu0 %v637
      %736 = vmatprep.subr.mxu0 0.0
      %737 = vmatpush1.msra.mxu0 %v638
      %738 = vmatprep.subr.mxu0 0.0
      %739 = vmatpush1.msra.mxu0 %v639
      %740 = vmatprep.subr.mxu0 0.0
      %741 = vmatpush1.msra.mxu0 %v640
      %742 = vmatprep.subr.mxu0 0.0
      %743 = vmatpush1.msra.mxu0 0.0
      %744 = vmatprep.subr.mxu0 0.0
      %745 = vmatpush1.msra.mxu0 0.0
      %746 = vmatprep.subr.mxu0 0.0
      %747 = vmatpush1.msra.mxu0 0.0
      %748 = vmatprep.subr.mxu0 0.0
      %749 = vmatpush1.msra.mxu0 0.0
      %750 = vmatprep.subr.mxu0 0.0
      %751 = vmatpush1.msra.mxu0 0.0
      %752 = vmatprep.subr.mxu0 0.0
      %753 = vmatpush1.msra.mxu0 0.0
      %754 = vmatprep.subr.mxu0 0.0
      %755 = vmatpush1.msra.mxu0 0.0
      %756 = vmatprep.subr.mxu0 0.0
      %757 = vmatpush1.msra.mxu0 0.0
      %758 = vmatprep.subr.mxu0 0.0
      %759 = vmatpush1.msra.mxu0 0.0
      %760 = vmatprep.subr.mxu0 0.0
      %761 = vmatpush1.msra.mxu0 0.0
      %762 = vmatprep.subr.mxu0 0.0
      %763 = vmatpush1.msra.mxu0 0.0
      %764 = vmatprep.subr.mxu0 0.0
      %765 = vmatpush1.msra.mxu0 0.0
      %766 = vmatprep.subr.mxu0 0.0
      %767 = vmatpush1.msra.mxu0 0.0
      %768 = vmatprep.subr.mxu0 0.0
      %769 = vmatpush1.msra.mxu0 0.0
      %770 = vmatprep.subr.mxu0 0.0
      %771 = vmatpush1.msra.mxu0 0.0
      %772 = vmatprep.subr.mxu0 0.0
      %773 = vmatpush1.msra.mxu0 0.0
      %774 = vmatprep.subr.mxu0 0.0
      %775 = vmatpush1.msra.mxu0 0.0
      %776 = vmatprep.subr.mxu0 0.0
      %777 = vmatpush1.msra.mxu0 0.0
      %778 = vmatprep.subr.mxu0 0.0
      %779 = vmatpush1.msra.mxu0 0.0
      %780 = vmatprep.subr.mxu0 0.0
      %781 = vmatpush1.msra.mxu0 0.0
      %782 = vmatprep.subr.mxu0 0.0
      %783 = vmatpush1.msra.mxu0 0.0
      %784 = vmatprep.subr.mxu0 0.0
      %785 = vmatpush1.msra.mxu0 0.0
      %786 = vmatprep.subr.mxu0 0.0
      %787 = vmatpush1.msra.mxu0 0.0
      %788 = vmatprep.subr.mxu0 0.0
      %789 = vmatpush1.msra.mxu0 0.0
      %790 = vmatprep.mubr.f32.mxu0 0.0
      %791 = vmatmul.mubr.f32.gmra.mrb[0].mxu0 %v724
      %v792 = vpop.f32.mrb[0].mxu0
      %v793 = vadd.f32 %v720, %v792
      %v794 = vpop.f32.mrb[0].mxu0
      %795 = vdwg.mxu0
      %s796 = scalar_lea.vmem %s5, 128
      %v797 = vld [vmem:[%s796] sm:$0xff]
      %v798 = vld [vmem:[%s796 + $0x8] sm:$0xff]
      %v799 = vld [vmem:[%s796 + $0x10] sm:$0xff]
      %v800 = vld [vmem:[%s796 + $0x18] sm:$0xff]
      %v801 = vld [vmem:[%s796 + $0x20] sm:$0xff]
      %v802 = vld [vmem:[%s796 + $0x28] sm:$0xff]
      %v803 = vld [vmem:[%s796 + $0x30] sm:$0xff]
      %v804 = vld [vmem:[%s796 + $0x38] sm:$0xff]
      %v806 = vsel %vm299, %v632, 0
      %808 = vmatprep.subr.mxu0 0.0
      %809 = vmatpush1.msra.mxu0 %v797
      %810 = vmatprep.subr.mxu0 0.0
      %811 = vmatpush1.msra.mxu0 %v798
      %812 = vmatprep.subr.mxu0 0.0
      %813 = vmatpush1.msra.mxu0 %v799
      %814 = vmatprep.subr.mxu0 0.0
      %815 = vmatpush1.msra.mxu0 %v800
      %816 = vmatprep.subr.mxu0 0.0
      %817 = vmatpush1.msra.mxu0 %v801
      %818 = vmatprep.subr.mxu0 0.0
      %819 = vmatpush1.msra.mxu0 %v802
      %820 = vmatprep.subr.mxu0 0.0
      %821 = vmatpush1.msra.mxu0 %v803
      %822 = vmatprep.subr.mxu0 0.0
      %823 = vmatpush1.msra.mxu0 %v804
      %824 = vmatprep.subr.mxu0 0.0
      %825 = vmatpush1.msra.mxu0 0.0
      %826 = vmatprep.subr.mxu0 0.0
      %827 = vmatpush1.msra.mxu0 0.0
      %828 = vmatprep.subr.mxu0 0.0
      %829 = vmatpush1.msra.mxu0 0.0
      %830 = vmatprep.subr.mxu0 0.0
      %831 = vmatpush1.msra.mxu0 0.0
      %832 = vmatprep.subr.mxu0 0.0
      %833 = vmatpush1.msra.mxu0 0.0
      %834 = vmatprep.subr.mxu0 0.0
      %835 = vmatpush1.msra.mxu0 0.0
      %836 = vmatprep.subr.mxu0 0.0
      %837 = vmatpush1.msra.mxu0 0.0
      %838 = vmatprep.subr.mxu0 0.0
      %839 = vmatpush1.msra.mxu0 0.0
      %840 = vmatprep.subr.mxu0 0.0
      %841 = vmatpush1.msra.mxu0 0.0
      %842 = vmatprep.subr.mxu0 0.0
      %843 = vmatpush1.msra.mxu0 0.0
      %844 = vmatprep.subr.mxu0 0.0
      %845 = vmatpush1.msra.mxu0 0.0
      %846 = vmatprep.subr.mxu0 0.0
      %847 = vmatpush1.msra.mxu0 0.0
      %848 = vmatprep.subr.mxu0 0.0
      %849 = vmatpush1.msra.mxu0 0.0
      %850 = vmatprep.subr.mxu0 0.0
      %851 = vmatpush1.msra.mxu0 0.0
      %852 = vmatprep.subr.mxu0 0.0
      %853 = vmatpush1.msra.mxu0 0.0
      %854 = vmatprep.subr.mxu0 0.0
      %855 = vmatpush1.msra.mxu0 0.0
      %856 = vmatprep.subr.mxu0 0.0
      %857 = vmatpush1.msra.mxu0 0.0
      %858 = vmatprep.subr.mxu0 0.0
      %859 = vmatpush1.msra.mxu0 0.0
      %860 = vmatprep.subr.mxu0 0.0
      %861 = vmatpush1.msra.mxu0 0.0
      %862 = vmatprep.subr.mxu0 0.0
      %863 = vmatpush1.msra.mxu0 0.0
      %864 = vmatprep.subr.mxu0 0.0
      %865 = vmatpush1.msra.mxu0 0.0
      %866 = vmatprep.subr.mxu0 0.0
      %867 = vmatpush1.msra.mxu0 0.0
      %868 = vmatprep.subr.mxu0 0.0
      %869 = vmatpush1.msra.mxu0 0.0
      %870 = vmatprep.subr.mxu0 0.0
      %871 = vmatpush1.msra.mxu0 0.0
      %872 = vmatprep.mubr.f32.mxu0 0.0
      %873 = vmatmul.mubr.f32.gmra.mrb[0].mxu0 %v806
      %v874 = vpop.f32.mrb[0].mxu0
      %v875 = vadd.f32 0.0, %v874
      %v876 = vpop.f32.mrb[0].mxu0
      %877 = vdwg.mxu0
      %v878 = vadd.f32 %v793, %v875
      %v879 = vld [vmem:[%s6] sm:$0x1]
      %v881 = vlaneseq
      %v882 = vshrl.u32 %v881, 7
      %v883 = vsub.s32 0, %v882
      %v884 = vrot.slane %v879, %v883
      %v886 = vadd.f32 %v878, %v884
      %v887 = vadd.f32 %v886, %v622
      %v888 = vmax.f32 %v887, 0.0
      %889 = vst.msk [vmem:[%s276] sm:$0xff] %vm299, %v888
      %p890 = scmp.lt.s32.totalorder %s18, 1
      %s891 = scalar_select %p890, %s18, 1
      %s892 = smul.addr %s891, 8
      %s893 = scalar_lea.vmem %s7, %s892
      // Predicated region
      $region49: #{emg_encoder_transformer_forward.11} parent=47 // pred_check
        %p894 = pneg %p188
      $region50: #{emg_encoder_transformer_forward.11} parent=47 // pred_check_branch
        %896 = sbr.rel (%p894) target = $region52
      $region51: #{emg_encoder_transformer_forward.11} parent=47 // pred_region
        _
      $region52: #{emg_encoder_transformer_forward.11} parent=47 // pred_fallthru
        _
    $region48: #{emg_encoder_transformer_forward.11} parent=5 // pred_fallthru
      _
    %p897 = scmp.le.s32.totalorder 2, %s13
    // Predicated region
    $region53: #{emg_encoder_transformer_forward.11} parent=5 // pred_check
      %p898 = pneg %p897
    $region54: #{emg_encoder_transformer_forward.11} parent=5 // pred_check_branch
      %900 = sbr.rel (%p898) target = $region56
    $region55: #{emg_encoder_transformer_forward.11} parent=5 // pred_region
      %s901 = ssub.s32 %s13, 2
      // Predicated region
      $region57: #{emg_encoder_transformer_forward.11} parent=55 // pred_check
        %p902 = pneg %p194
      $region58: #{emg_encoder_transformer_forward.11} parent=55 // pred_check_branch
        %904 = sbr.rel (%p902) target = $region60
      $region59: #{emg_encoder_transformer_forward.11} parent=55 // pred_region
        %p905 = scmp.lt.s32.totalorder %s19, 1
        %s906 = scalar_select %p905, %s19, 1
        %s907 = smul.addr %s906, 8
        %s908 = scalar_lea.vmem %s7, %s907
      $region60: #{emg_encoder_transformer_forward.11} parent=55 // pred_fallthru
        _
    $region56: #{emg_encoder_transformer_forward.11} parent=5 // pred_fallthru
      _
  $region6: #{emg_encoder_transformer_forward.11} parent=0 // loop_footer
    %s17 = sadd.s32 1, %s13
  $region7: #{emg_encoder_transformer_forward.11} parent=0 // loop_footer_branch
    %12 = sbr.rel target = $region3
  $region8: #{emg_encoder_transformer_forward.11} parent=0 // loop_exit
    _

// kernel: emg_encoder_transformer_forward.12
$region0: #{emg_encoder_transformer_forward.12}
  #allocation0 [shape = 'u32[]', space=smem, size = 0x4, offset = 0x4, fixed_abs, tag = 'smem constant byte address 0x4 - core index']
  #allocation1 [shape = 'u32[144,128]{1,0:T(1,128)}', space=vmem, size = 0x12000, scoped, tag = 'internal scratch']
  %s0 = inlined_call_operand.vmem [shape: f32[16,64], index: 0, kind: input, shape index: {}]
  %s1 = inlined_call_operand.vmem [shape: f32[64,64], index: 1, kind: input, shape index: {}]
  %s2 = inlined_call_operand.vmem [shape: f32[1,64], index: 2, kind: input, shape index: {}]
  %s3 = inlined_call_operand.vmem [shape: f32[16,64], index: 3, kind: output, shape index: {}]
  %s4 = sld [smem:[#allocation0]]
  $region22: #{emg_encoder_transformer_forward.12} parent=0
    _
  %s6 = ssub.s32 1, %s4
  %s7 = scalar_select 0, %s6, %s4
  // Predicated region
  $region2: #{emg_encoder_transformer_forward.12} parent=0 // pred_check
    _
  $region3: #{emg_encoder_transformer_forward.12} parent=0 // pred_check_branch
    %9 = sbr.rel (0) target = $region5
  $region4: #{emg_encoder_transformer_forward.12} parent=0 // pred_region
    _
  $region5: #{emg_encoder_transformer_forward.12} parent=0 // pred_fallthru
    _
  // Predicated region
  $region6: #{emg_encoder_transformer_forward.12} parent=0 // pred_check
    _
  $region7: #{emg_encoder_transformer_forward.12} parent=0 // pred_check_branch
    %11 = sbr.rel (0) target = $region9
  $region8: #{emg_encoder_transformer_forward.12} parent=0 // pred_region
    _
  $region9: #{emg_encoder_transformer_forward.12} parent=0 // pred_fallthru
    _
  // Predicated region
  $region10: #{emg_encoder_transformer_forward.12} parent=0 // pred_check
    _
  $region11: #{emg_encoder_transformer_forward.12} parent=0 // pred_check_branch
    %13 = sbr.rel (0) target = $region13
  $region12: #{emg_encoder_transformer_forward.12} parent=0 // pred_region
    _
  $region13: #{emg_encoder_transformer_forward.12} parent=0 // pred_fallthru
    _
  %v14 = vld [vmem:[%s0] sm:$0xff]
  %v15 = vld [vmem:[%s0 + $0x8] sm:$0xff]
  %v16 = vld [vmem:[%s1] sm:$0xff]
  %v17 = vld [vmem:[%s1 + $0x8] sm:$0xff]
  %v18 = vld [vmem:[%s1 + $0x10] sm:$0xff]
  %v19 = vld [vmem:[%s1 + $0x18] sm:$0xff]
  %v20 = vld [vmem:[%s1 + $0x20] sm:$0xff]
  %v21 = vld [vmem:[%s1 + $0x28] sm:$0xff]
  %v22 = vld [vmem:[%s1 + $0x30] sm:$0xff]
  %v23 = vld [vmem:[%s1 + $0x38] sm:$0xff]
  %v24 = vld [vmem:[%s2] sm:$0x1]
  %v26 = vlaneseq
  %v27 = vshrl.u32 %v26, 7
  %v28 = vsub.s32 0, %v27
  %v29 = vrot.slane %v24, %v28
  %vm31 = vcmask 523264
  %v33 = vsel %vm31, %v14, 0
  %v36 = vsel %vm31, %v15, 0
  %38 = vmatprep.subr.mxu0 0.0
  %39 = vmatpush1.msra.mxu0 %v16
  %40 = vmatprep.subr.mxu0 0.0
  %41 = vmatpush1.msra.mxu0 %v17
  %42 = vmatprep.subr.mxu0 0.0
  %43 = vmatpush1.msra.mxu0 %v18
  %44 = vmatprep.subr.mxu0 0.0
  %45 = vmatpush1.msra.mxu0 %v19
  %46 = vmatprep.subr.mxu0 0.0
  %47 = vmatpush1.msra.mxu0 %v20
  %48 = vmatprep.subr.mxu0 0.0
  %49 = vmatpush1.msra.mxu0 %v21
  %50 = vmatprep.subr.mxu0 0.0
  %51 = vmatpush1.msra.mxu0 %v22
  %52 = vmatprep.subr.mxu0 0.0
  %53 = vmatpush1.msra.mxu0 %v23
  %54 = vmatprep.subr.mxu0 0.0
  %55 = vmatpush1.msra.mxu0 0.0
  %56 = vmatprep.subr.mxu0 0.0
  %57 = vmatpush1.msra.mxu0 0.0
  %58 = vmatprep.subr.mxu0 0.0
  %59 = vmatpush1.msra.mxu0 0.0
  %60 = vmatprep.subr.mxu0 0.0
  %61 = vmatpush1.msra.mxu0 0.0
  %62 = vmatprep.subr.mxu0 0.0
  %63 = vmatpush1.msra.mxu0 0.0
  %64 = vmatprep.subr.mxu0 0.0
  %65 = vmatpush1.msra.mxu0 0.0
  %66 = vmatprep.subr.mxu0 0.0
  %67 = vmatpush1.msra.mxu0 0.0
  %68 = vmatprep.subr.mxu0 0.0
  %69 = vmatpush1.msra.mxu0 0.0
  %70 = vmatprep.subr.mxu0 0.0
  %71 = vmatpush1.msra.mxu0 0.0
  %72 = vmatprep.subr.mxu0 0.0
  %73 = vmatpush1.msra.mxu0 0.0
  %74 = vmatprep.subr.mxu0 0.0
  %75 = vmatpush1.msra.mxu0 0.0
  %76 = vmatprep.subr.mxu0 0.0
  %77 = vmatpush1.msra.mxu0 0.0
  %78 = vmatprep.subr.mxu0 0.0
  %79 = vmatpush1.msra.mxu0 0.0
  %80 = vmatprep.subr.mxu0 0.0
  %81 = vmatpush1.msra.mxu0 0.0
  %82 = vmatprep.subr.mxu0 0.0
  %83 = vmatpush1.msra.mxu0 0.0
  %84 = vmatprep.subr.mxu0 0.0
  %85 = vmatpush1.msra.mxu0 0.0
  %86 = vmatprep.subr.mxu0 0.0
  %87 = vmatpush1.msra.mxu0 0.0
  %88 = vmatprep.subr.mxu0 0.0
  %89 = vmatpush1.msra.mxu0 0.0
  %90 = vmatprep.subr.mxu0 0.0
  %91 = vmatpush1.msra.mxu0 0.0
  %92 = vmatprep.subr.mxu0 0.0
  %93 = vmatpush1.msra.mxu0 0.0
  %94 = vmatprep.subr.mxu0 0.0
  %95 = vmatpush1.msra.mxu0 0.0
  %96 = vmatprep.subr.mxu0 0.0
  %97 = vmatpush1.msra.mxu0 0.0
  %98 = vmatprep.subr.mxu0 0.0
  %99 = vmatpush1.msra.mxu0 0.0
  %100 = vmatprep.subr.mxu0 0.0
  %101 = vmatpush1.msra.mxu0 0.0
  %102 = vmatprep.mubr.f32.mxu0 0.0
  %103 = vmatmul.mubr.f32.gmra.mrb[0].mxu0 %v33
  %v104 = vpop.f32.mrb[0].mxu0
  %v105 = vadd.f32 %v29, %v104
  %v106 = vpop.f32.mrb[0].mxu0
  %107 = vmatprep.mubr.f32.mxu0 0.0
  %108 = vmatmul.mubr.f32.gmra.mrb[0].mxu0 %v36
  %v109 = vpop.f32.mrb[0].mxu0
  %v110 = vadd.f32 %v29, %v109
  %v111 = vpop.f32.mrb[0].mxu0
  %112 = vdwg.mxu0
  %113 = vst.msk [vmem:[%s3] sm:$0xff] %vm31, %v105
  %114 = vst.msk [vmem:[%s3 + $0x8] sm:$0xff] %vm31, %v110
  // Predicated region
  $region14: #{emg_encoder_transformer_forward.12} parent=0 // pred_check
    _
  $region15: #{emg_encoder_transformer_forward.12} parent=0 // pred_check_branch
    %116 = sbr.rel (0) target = $region17
  $region16: #{emg_encoder_transformer_forward.12} parent=0 // pred_region
    _
  $region17: #{emg_encoder_transformer_forward.12} parent=0 // pred_fallthru
    _
  // Predicated region
  $region18: #{emg_encoder_transformer_forward.12} parent=0 // pred_check
    _
  $region19: #{emg_encoder_transformer_forward.12} parent=0 // pred_check_branch
    %118 = sbr.rel (0) target = $region21
  $region20: #{emg_encoder_transformer_forward.12} parent=0 // pred_region
    _
  $region21: #{emg_encoder_transformer_forward.12} parent=0 // pred_fallthru
    _

// kernel: emg_encoder_transformer_forward.15
$region0: #{emg_encoder_transformer_forward.15}
  #allocation0 [shape = 'u32[]', space=smem, size = 0x4, offset = 0x4, fixed_abs, tag = 'smem constant byte address 0x4 - core index']
  #allocation1 [shape = 'u32[144,128]{1,0:T(1,128)}', space=vmem, size = 0x12000, scoped, tag = 'internal scratch']
  %s0 = inlined_call_operand.vmem [shape: f32[16,64], index: 0, kind: input, shape index: {}]
  %s1 = inlined_call_operand.vmem [shape: f32[64,24], index: 1, kind: input, shape index: {}]
  %s2 = inlined_call_operand.vmem [shape: f32[1,24], index: 2, kind: input, shape index: {}]
  %s3 = inlined_call_operand.vmem [shape: f32[16,24], index: 3, kind: output, shape index: {}]
  %s4 = sld [smem:[#allocation0]]
  $region22: #{emg_encoder_transformer_forward.15} parent=0
    _
  %s6 = ssub.s32 1, %s4
  %s7 = scalar_select 0, %s6, %s4
  // Predicated region
  $region2: #{emg_encoder_transformer_forward.15} parent=0 // pred_check
    _
  $region3: #{emg_encoder_transformer_forward.15} parent=0 // pred_check_branch
    %9 = sbr.rel (0) target = $region5
  $region4: #{emg_encoder_transformer_forward.15} parent=0 // pred_region
    _
  $region5: #{emg_encoder_transformer_forward.15} parent=0 // pred_fallthru
    _
  // Predicated region
  $region6: #{emg_encoder_transformer_forward.15} parent=0 // pred_check
    _
  $region7: #{emg_encoder_transformer_forward.15} parent=0 // pred_check_branch
    %11 = sbr.rel (0) target = $region9
  $region8: #{emg_encoder_transformer_forward.15} parent=0 // pred_region
    _
  $region9: #{emg_encoder_transformer_forward.15} parent=0 // pred_fallthru
    _
  // Predicated region
  $region10: #{emg_encoder_transformer_forward.15} parent=0 // pred_check
    _
  $region11: #{emg_encoder_transformer_forward.15} parent=0 // pred_check_branch
    %13 = sbr.rel (0) target = $region13
  $region12: #{emg_encoder_transformer_forward.15} parent=0 // pred_region
    _
  $region13: #{emg_encoder_transformer_forward.15} parent=0 // pred_fallthru
    _
  %v14 = vld [vmem:[%s0] sm:$0xff]
  %v15 = vld [vmem:[%s0 + $0x8] sm:$0xff]
  %v16 = vld [vmem:[%s1] sm:$0xff]
  %v17 = vld [vmem:[%s1 + $0x8] sm:$0xff]
  %v18 = vld [vmem:[%s1 + $0x10] sm:$0xff]
  %v19 = vld [vmem:[%s1 + $0x18] sm:$0xff]
  %v20 = vld [vmem:[%s1 + $0x20] sm:$0xff]
  %v21 = vld [vmem:[%s1 + $0x28] sm:$0xff]
  %v22 = vld [vmem:[%s1 + $0x30] sm:$0xff]
  %v23 = vld [vmem:[%s1 + $0x38] sm:$0xff]
  %v24 = vld [vmem:[%s2] sm:$0x1]
  %v26 = vlaneseq
  %v27 = vshrl.u32 %v26, 7
  %v28 = vsub.s32 0, %v27
  %v29 = vrot.slane %v24, %v28
  %vm31 = vcmask 523264
  %v33 = vsel %vm31, %v14, 0
  %v36 = vsel %vm31, %v15, 0
  %38 = vmatprep.subr.mxu0 0.0
  %39 = vmatpush1.msra.mxu0 %v16
  %40 = vmatprep.subr.mxu0 0.0
  %41 = vmatpush1.msra.mxu0 %v17
  %42 = vmatprep.subr.mxu0 0.0
  %43 = vmatpush1.msra.mxu0 %v18
  %44 = vmatprep.subr.mxu0 0.0
  %45 = vmatpush1.msra.mxu0 %v19
  %46 = vmatprep.subr.mxu0 0.0
  %47 = vmatpush1.msra.mxu0 %v20
  %48 = vmatprep.subr.mxu0 0.0
  %49 = vmatpush1.msra.mxu0 %v21
  %50 = vmatprep.subr.mxu0 0.0
  %51 = vmatpush1.msra.mxu0 %v22
  %52 = vmatprep.subr.mxu0 0.0
  %53 = vmatpush1.msra.mxu0 %v23
  %54 = vmatprep.subr.mxu0 0.0
  %55 = vmatpush1.msra.mxu0 0.0
  %56 = vmatprep.subr.mxu0 0.0
  %57 = vmatpush1.msra.mxu0 0.0
  %58 = vmatprep.subr.mxu0 0.0
  %59 = vmatpush1.msra.mxu0 0.0
  %60 = vmatprep.subr.mxu0 0.0
  %61 = vmatpush1.msra.mxu0 0.0
  %62 = vmatprep.subr.mxu0 0.0
  %63 = vmatpush1.msra.mxu0 0.0
  %64 = vmatprep.subr.mxu0 0.0
  %65 = vmatpush1.msra.mxu0 0.0
  %66 = vmatprep.subr.mxu0 0.0
  %67 = vmatpush1.msra.mxu0 0.0
  %68 = vmatprep.subr.mxu0 0.0
  %69 = vmatpush1.msra.mxu0 0.0
  %70 = vmatprep.subr.mxu0 0.0
  %71 = vmatpush1.msra.mxu0 0.0
  %72 = vmatprep.subr.mxu0 0.0
  %73 = vmatpush1.msra.mxu0 0.0
  %74 = vmatprep.subr.mxu0 0.0
  %75 = vmatpush1.msra.mxu0 0.0
  %76 = vmatprep.subr.mxu0 0.0
  %77 = vmatpush1.msra.mxu0 0.0
  %78 = vmatprep.subr.mxu0 0.0
  %79 = vmatpush1.msra.mxu0 0.0
  %80 = vmatprep.subr.mxu0 0.0
  %81 = vmatpush1.msra.mxu0 0.0
  %82 = vmatprep.subr.mxu0 0.0
  %83 = vmatpush1.msra.mxu0 0.0
  %84 = vmatprep.subr.mxu0 0.0
  %85 = vmatpush1.msra.mxu0 0.0
  %86 = vmatprep.subr.mxu0 0.0
  %87 = vmatpush1.msra.mxu0 0.0
  %88 = vmatprep.subr.mxu0 0.0
  %89 = vmatpush1.msra.mxu0 0.0
  %90 = vmatprep.subr.mxu0 0.0
  %91 = vmatpush1.msra.mxu0 0.0
  %92 = vmatprep.subr.mxu0 0.0
  %93 = vmatpush1.msra.mxu0 0.0
  %94 = vmatprep.subr.mxu0 0.0
  %95 = vmatpush1.msra.mxu0 0.0
  %96 = vmatprep.subr.mxu0 0.0
  %97 = vmatpush1.msra.mxu0 0.0
  %98 = vmatprep.subr.mxu0 0.0
  %99 = vmatpush1.msra.mxu0 0.0
  %100 = vmatprep.subr.mxu0 0.0
  %101 = vmatpush1.msra.mxu0 0.0
  %102 = vmatprep.mubr.f32.mxu0 0.0
  %103 = vmatmul.mubr.f32.gmra.mrb[0].mxu0 %v33
  %v104 = vpop.f32.mrb[0].mxu0
  %v105 = vadd.f32 %v29, %v104
  %v106 = vpop.f32.mrb[0].mxu0
  %107 = vmatprep.mubr.f32.mxu0 0.0
  %108 = vmatmul.mubr.f32.gmra.mrb[0].mxu0 %v36
  %v109 = vpop.f32.mrb[0].mxu0
  %v110 = vadd.f32 %v29, %v109
  %v111 = vpop.f32.mrb[0].mxu0
  %112 = vdwg.mxu0
  %vm113 = vcmask 195584
  %114 = vst.msk [vmem:[%s3] sm:$0xff] %vm113, %v105
  %115 = vst.msk [vmem:[%s3 + $0x8] sm:$0xff] %vm113, %v110
  // Predicated region
  $region14: #{emg_encoder_transformer_forward.15} parent=0 // pred_check
    _
  $region15: #{emg_encoder_transformer_forward.15} parent=0 // pred_check_branch
    %117 = sbr.rel (0) target = $region17
  $region16: #{emg_encoder_transformer_forward.15} parent=0 // pred_region
    _
  $region17: #{emg_encoder_transformer_forward.15} parent=0 // pred_fallthru
    _
  // Predicated region
  $region18: #{emg_encoder_transformer_forward.15} parent=0 // pred_check
    _
  $region19: #{emg_encoder_transformer_forward.15} parent=0 // pred_check_branch
    %119 = sbr.rel (0) target = $region21
  $region20: #{emg_encoder_transformer_forward.15} parent=0 // pred_region
    _
  $region21: #{emg_encoder_transformer_forward.15} parent=0 // pred_fallthru
    _

// kernel: emg_encoder_transformer_forward.13
$region0: #{emg_encoder_transformer_forward.13}
  #allocation0 [shape = 'u32[]', space=smem, size = 0x4, offset = 0x4, fixed_abs, tag = 'smem constant byte address 0x4 - core index']
  #allocation1 [shape = 'u32[144,128]{1,0:T(1,128)}', space=vmem, size = 0x12000, scoped, tag = 'internal scratch']
  %s0 = inlined_call_operand.vmem [shape: f32[16,64], index: 0, kind: input, shape index: {}]
  %s1 = inlined_call_operand.vmem [shape: f32[64,192], index: 1, kind: input, shape index: {}]
  %s2 = inlined_call_operand.vmem [shape: f32[64,64], index: 2, kind: input, shape index: {}]
  %s3 = inlined_call_operand.vmem [shape: f32[8,8,128], index: 3, kind: input, shape index: {}]
  %s4 = inlined_call_operand.vmem [shape: f32[1,64], index: 4, kind: input, shape index: {}, may-alias: {4,10}]
  %s5 = inlined_call_operand.vmem [shape: f32[1,64], index: 5, kind: input, shape index: {}, may-alias: {5,11}]
  %s6 = inlined_call_operand.vmem [shape: f32[64,256], index: 6, kind: input, shape index: {}]
  %s7 = inlined_call_operand.vmem [shape: f32[1,256], index: 7, kind: input, shape index: {}]
  %s8 = inlined_call_operand.vmem [shape: f32[256,64], index: 8, kind: input, shape index: {}]
  %s9 = inlined_call_operand.vmem [shape: f32[1,64], index: 9, kind: input, shape index: {}]
  %s10 = inlined_call_operand.vmem [shape: f32[1,64], index: 10, kind: input, shape index: {}, may-alias: {4,10}]
  %s11 = inlined_call_operand.vmem [shape: f32[1,64], index: 11, kind: input, shape index: {}, may-alias: {5,11}]
  %s12 = inlined_call_operand.vmem [shape: f32[16,64], index: 12, kind: output, shape index: {}]
  %s13 = sld [smem:[#allocation0]]
  $region58: #{emg_encoder_transformer_forward.13} parent=0
    _
  %s15 = ssub.s32 1, %s13
  %s16 = scalar_select 0, %s15, %s13
  // Predicated region
  $region2: #{emg_encoder_transformer_forward.13} parent=0 // pred_check
    _
  $region3: #{emg_encoder_transformer_forward.13} parent=0 // pred_check_branch
    %18 = sbr.rel (0) target = $region5
  $region4: #{emg_encoder_transformer_forward.13} parent=0 // pred_region
    _
  $region5: #{emg_encoder_transformer_forward.13} parent=0 // pred_fallthru
    _
  // Predicated region
  $region6: #{emg_encoder_transformer_forward.13} parent=0 // pred_check
    _
  $region7: #{emg_encoder_transformer_forward.13} parent=0 // pred_check_branch
    %20 = sbr.rel (0) target = $region9
  $region8: #{emg_encoder_transformer_forward.13} parent=0 // pred_region
    _
  $region9: #{emg_encoder_transformer_forward.13} parent=0 // pred_fallthru
    _
  // Predicated region
  $region10: #{emg_encoder_transformer_forward.13} parent=0 // pred_check
    _
  $region11: #{emg_encoder_transformer_forward.13} parent=0 // pred_check_branch
    %22 = sbr.rel (0) target = $region13
  $region12: #{emg_encoder_transformer_forward.13} parent=0 // pred_region
    _
  $region13: #{emg_encoder_transformer_forward.13} parent=0 // pred_fallthru
    _
  // Predicated region
  $region14: #{emg_encoder_transformer_forward.13} parent=0 // pred_check
    _
  $region15: #{emg_encoder_transformer_forward.13} parent=0 // pred_check_branch
    %24 = sbr.rel (0) target = $region17
  $region16: #{emg_encoder_transformer_forward.13} parent=0 // pred_region
    _
  $region17: #{emg_encoder_transformer_forward.13} parent=0 // pred_fallthru
    _
  // Predicated region
  $region18: #{emg_encoder_transformer_forward.13} parent=0 // pred_check
    _
  $region19: #{emg_encoder_transformer_forward.13} parent=0 // pred_check_branch
    %26 = sbr.rel (0) target = $region21
  $region20: #{emg_encoder_transformer_forward.13} parent=0 // pred_region
    _
  $region21: #{emg_encoder_transformer_forward.13} parent=0 // pred_fallthru
    _
  // Predicated region
  $region22: #{emg_encoder_transformer_forward.13} parent=0 // pred_check
    _
  $region23: #{emg_encoder_transformer_forward.13} parent=0 // pred_check_branch
    %28 = sbr.rel (0) target = $region25
  $region24: #{emg_encoder_transformer_forward.13} parent=0 // pred_region
    _
  $region25: #{emg_encoder_transformer_forward.13} parent=0 // pred_fallthru
    _
  // Predicated region
  $region26: #{emg_encoder_transformer_forward.13} parent=0 // pred_check
    _
  $region27: #{emg_encoder_transformer_forward.13} parent=0 // pred_check_branch
    %30 = sbr.rel (0) target = $region29
  $region28: #{emg_encoder_transformer_forward.13} parent=0 // pred_region
    _
  $region29: #{emg_encoder_transformer_forward.13} parent=0 // pred_fallthru
    _
  // Predicated region
  $region30: #{emg_encoder_transformer_forward.13} parent=0 // pred_check
    _
  $region31: #{emg_encoder_transformer_forward.13} parent=0 // pred_check_branch
    %32 = sbr.rel (0) target = $region33
  $region32: #{emg_encoder_transformer_forward.13} parent=0 // pred_region
    _
  $region33: #{emg_encoder_transformer_forward.13} parent=0 // pred_fallthru
    _
  // Predicated region
  $region34: #{emg_encoder_transformer_forward.13} parent=0 // pred_check
    _
  $region35: #{emg_encoder_transformer_forward.13} parent=0 // pred_check_branch
    %34 = sbr.rel (0) target = $region37
  $region36: #{emg_encoder_transformer_forward.13} parent=0 // pred_region
    _
  $region37: #{emg_encoder_transformer_forward.13} parent=0 // pred_fallthru
    _
  // Predicated region
  $region38: #{emg_encoder_transformer_forward.13} parent=0 // pred_check
    _
  $region39: #{emg_encoder_transformer_forward.13} parent=0 // pred_check_branch
    %36 = sbr.rel (0) target = $region41
  $region40: #{emg_encoder_transformer_forward.13} parent=0 // pred_region
    _
  $region41: #{emg_encoder_transformer_forward.13} parent=0 // pred_fallthru
    _
  // Predicated region
  $region42: #{emg_encoder_transformer_forward.13} parent=0 // pred_check
    _
  $region43: #{emg_encoder_transformer_forward.13} parent=0 // pred_check_branch
    %38 = sbr.rel (0) target = $region45
  $region44: #{emg_encoder_transformer_forward.13} parent=0 // pred_region
    _
  $region45: #{emg_encoder_transformer_forward.13} parent=0 // pred_fallthru
    _
  // Predicated region
  $region46: #{emg_encoder_transformer_forward.13} parent=0 // pred_check
    _
  $region47: #{emg_encoder_transformer_forward.13} parent=0 // pred_check_branch
    %40 = sbr.rel (0) target = $region49
  $region48: #{emg_encoder_transformer_forward.13} parent=0 // pred_region
    _
  $region49: #{emg_encoder_transformer_forward.13} parent=0 // pred_fallthru
    _
  %v41 = vld [vmem:[%s0] sm:$0xff]
  %v42 = vld [vmem:[%s0 + $0x8] sm:$0xff]
  %v43 = vld [vmem:[%s1] sm:$0xff]
  %v44 = vld [vmem:[%s1 + $0x8] sm:$0xff]
  %v45 = vld [vmem:[%s1 + $0x10] sm:$0xff]
  %v46 = vld [vmem:[%s1 + $0x18] sm:$0xff]
  %v47 = vld [vmem:[%s1 + $0x20] sm:$0xff]
  %v48 = vld [vmem:[%s1 + $0x28] sm:$0xff]
  %v49 = vld [vmem:[%s1 + $0x30] sm:$0xff]
  %v50 = vld [vmem:[%s1 + $0x38] sm:$0xff]
  %v51 = vld [vmem:[%s1 + $0x40] sm:$0xff]
  %v52 = vld [vmem:[%s1 + $0x48] sm:$0xff]
  %v53 = vld [vmem:[%s1 + $0x50] sm:$0xff]
  %v54 = vld [vmem:[%s1 + $0x58] sm:$0xff]
  %v55 = vld [vmem:[%s1 + $0x60] sm:$0xff]
  %v56 = vld [vmem:[%s1 + $0x68] sm:$0xff]
  %v57 = vld [vmem:[%s1 + $0x70] sm:$0xff]
  %v58 = vld [vmem:[%s1 + $0x78] sm:$0xff]
  %vm59 = vcmask 523264
  %v61 = vsel %vm59, %v41, 0
  %v64 = vsel %vm59, %v42, 0
  %66 = vmatprep.subr.mxu0 %v44
  %67 = vmatpush1.msra.mxu0 %v43
  %68 = vmatprep.subr.mxu0 %v46
  %69 = vmatpush1.msra.mxu0 %v45
  %70 = vmatprep.subr.mxu0 %v48
  %71 = vmatpush1.msra.mxu0 %v47
  %72 = vmatprep.subr.mxu0 %v50
  %73 = vmatpush1.msra.mxu0 %v49
  %74 = vmatprep.subr.mxu0 %v52
  %75 = vmatpush1.msra.mxu0 %v51
  %76 = vmatprep.subr.mxu0 %v54
  %77 = vmatpush1.msra.mxu0 %v53
  %78 = vmatprep.subr.mxu0 %v56
  %79 = vmatpush1.msra.mxu0 %v55
  %80 = vmatprep.subr.mxu0 %v58
  %81 = vmatpush1.msra.mxu0 %v57
  %82 = vmatprep.subr.mxu0 0.0
  %83 = vmatpush1.msra.mxu0 0.0
  %84 = vmatprep.subr.mxu0 0.0
  %85 = vmatpush1.msra.mxu0 0.0
  %86 = vmatprep.subr.mxu0 0.0
  %87 = vmatpush1.msra.mxu0 0.0
  %88 = vmatprep.subr.mxu0 0.0
  %89 = vmatpush1.msra.mxu0 0.0
  %90 = vmatprep.subr.mxu0 0.0
  %91 = vmatpush1.msra.mxu0 0.0
  %92 = vmatprep.subr.mxu0 0.0
  %93 = vmatpush1.msra.mxu0 0.0
  %94 = vmatprep.subr.mxu0 0.0
  %95 = vmatpush1.msra.mxu0 0.0
  %96 = vmatprep.subr.mxu0 0.0
  %97 = vmatpush1.msra.mxu0 0.0
  %98 = vmatprep.subr.mxu0 0.0
  %99 = vmatpush1.msra.mxu0 0.0
  %100 = vmatprep.subr.mxu0 0.0
  %101 = vmatpush1.msra.mxu0 0.0
  %102 = vmatprep.subr.mxu0 0.0
  %103 = vmatpush1.msra.mxu0 0.0
  %104 = vmatprep.subr.mxu0 0.0
  %105 = vmatpush1.msra.mxu0 0.0
  %106 = vmatprep.subr.mxu0 0.0
  %107 = vmatpush1.msra.mxu0 0.0
  %108 = vmatprep.subr.mxu0 0.0
  %109 = vmatpush1.msra.mxu0 0.0
  %110 = vmatprep.subr.mxu0 0.0
  %111 = vmatpush1.msra.mxu0 0.0
  %112 = vmatprep.subr.mxu0 0.0
  %113 = vmatpush1.msra.mxu0 0.0
  %114 = vmatprep.subr.mxu0 0.0
  %115 = vmatpush1.msra.mxu0 0.0
  %116 = vmatprep.subr.mxu0 0.0
  %117 = vmatpush1.msra.mxu0 0.0
  %118 = vmatprep.subr.mxu0 0.0
  %119 = vmatpush1.msra.mxu0 0.0
  %120 = vmatprep.subr.mxu0 0.0
  %121 = vmatpush1.msra.mxu0 0.0
  %122 = vmatprep.subr.mxu0 0.0
  %123 = vmatpush1.msra.mxu0 0.0
  %124 = vmatprep.subr.mxu0 0.0
  %125 = vmatpush1.msra.mxu0 0.0
  %126 = vmatprep.subr.mxu0 0.0
  %127 = vmatpush1.msra.mxu0 0.0
  %128 = vmatprep.subr.mxu0 0.0
  %129 = vmatpush1.msra.mxu0 0.0
  %130 = vmatprep.mubr.f32.mxu0 0.0
  %131 = vmatmul.mubr.f32.gmra.mrb[0].mxu0 %v61
  %v132 = vpop.f32.mrb[0].mxu0
  %v133 = vadd.f32 0.0, %v132
  %v134 = vpop.f32.mrb[0].mxu0
  %v135 = vadd.f32 0.0, %v134
  %136 = vmatprep.mubr.f32.mxu0 0.0
  %137 = vmatmul.mubr.f32.gmra.mrb[0].mxu0 %v64
  %v138 = vpop.f32.mrb[0].mxu0
  %v139 = vadd.f32 0.0, %v138
  %v140 = vpop.f32.mrb[0].mxu0
  %v141 = vadd.f32 0.0, %v140
  %142 = vdwg.mxu0
  %144 = vrot.lane.b32.xlu0 %v133, 64
  %v145 = vpop.permute.xlu0 %144
  %vm146 = vcmask 64512
  %v147 = vsel %vm146, %v133, 0
  %v149 = vsel %vm146, %v145, 0
  %151 = vmatprep.subr.mxu0 0.0
  %152 = vmatpush1.xpose.msra.mxu0 %v149
  %153 = vmatprep.subr.mxu0 0.0
  %154 = vmatpush1.xpose.msra.mxu0 0.0
  %155 = vmatprep.subr.mxu0 0.0
  %156 = vmatpush1.xpose.msra.mxu0 0.0
  %157 = vmatprep.subr.mxu0 0.0
  %158 = vmatpush1.xpose.msra.mxu0 0.0
  %159 = vmatprep.subr.mxu0 0.0
  %160 = vmatpush1.xpose.msra.mxu0 0.0
  %161 = vmatprep.subr.mxu0 0.0
  %162 = vmatpush1.xpose.msra.mxu0 0.0
  %163 = vmatprep.subr.mxu0 0.0
  %164 = vmatpush1.xpose.msra.mxu0 0.0
  %165 = vmatprep.subr.mxu0 0.0
  %166 = vmatpush1.xpose.msra.mxu0 0.0
  %167 = vmatprep.subr.mxu0 0.0
  %168 = vmatpush1.xpose.msra.mxu0 0.0
  %169 = vmatprep.subr.mxu0 0.0
  %170 = vmatpush1.xpose.msra.mxu0 0.0
  %171 = vmatprep.subr.mxu0 0.0
  %172 = vmatpush1.xpose.msra.mxu0 0.0
  %173 = vmatprep.subr.mxu0 0.0
  %174 = vmatpush1.xpose.msra.mxu0 0.0
  %175 = vmatprep.subr.mxu0 0.0
  %176 = vmatpush1.xpose.msra.mxu0 0.0
  %177 = vmatprep.subr.mxu0 0.0
  %178 = vmatpush1.xpose.msra.mxu0 0.0
  %179 = vmatprep.subr.mxu0 0.0
  %180 = vmatpush1.xpose.msra.mxu0 0.0
  %181 = vmatprep.subr.mxu0 0.0
  %182 = vmatpush1.xpose.msra.mxu0 0.0
  %183 = vmatprep.subr.mxu0 0.0
  %184 = vmatpush1.xpose.msra.mxu0 0.0
  %185 = vmatprep.subr.mxu0 0.0
  %186 = vmatpush1.xpose.msra.mxu0 0.0
  %187 = vmatprep.subr.mxu0 0.0
  %188 = vmatpush1.xpose.msra.mxu0 0.0
  %189 = vmatprep.subr.mxu0 0.0
  %190 = vmatpush1.xpose.msra.mxu0 0.0
  %191 = vmatprep.subr.mxu0 0.0
  %192 = vmatpush1.xpose.msra.mxu0 0.0
  %193 = vmatprep.subr.mxu0 0.0
  %194 = vmatpush1.xpose.msra.mxu0 0.0
  %195 = vmatprep.subr.mxu0 0.0
  %196 = vmatpush1.xpose.msra.mxu0 0.0
  %197 = vmatprep.subr.mxu0 0.0
  %198 = vmatpush1.xpose.msra.mxu0 0.0
  %199 = vmatprep.subr.mxu0 0.0
  %200 = vmatpush1.xpose.msra.mxu0 0.0
  %201 = vmatprep.subr.mxu0 0.0
  %202 = vmatpush1.xpose.msra.mxu0 0.0
  %203 = vmatprep.subr.mxu0 0.0
  %204 = vmatpush1.xpose.msra.mxu0 0.0
  %205 = vmatprep.subr.mxu0 0.0
  %206 = vmatpush1.xpose.msra.mxu0 0.0
  %207 = vmatprep.subr.mxu0 0.0
  %208 = vmatpush1.xpose.msra.mxu0 0.0
  %209 = vmatprep.subr.mxu0 0.0
  %210 = vmatpush1.xpose.msra.mxu0 0.0
  %211 = vmatprep.subr.mxu0 0.0
  %212 = vmatpush1.xpose.msra.mxu0 0.0
  %213 = vmatprep.subr.mxu0 0.0
  %214 = vmatpush1.xpose.msra.mxu0 0.0
  %215 = vmatprep.mubr.f32.mxu0 0.0
  %216 = vmatmul.mubr.f32.gmra.mrb[0].mxu0 %v147
  %v217 = vpop.f32.mrb[0].mxu0
  %v218 = vadd.f32 0.0, %v217
  %v219 = vpop.f32.mrb[0].mxu0
  %220 = vdwg.mxu0
  %v221 = vmul.f32 %v218, 0.35355338
  %v222 = vld [vmem:[%s3] sm:$0xff]
  %223 = vmatprep.subr.mxu0 0.0
  %224 = vmatpush1.msra.mxu0 %v222
  %225 = vmatprep.subr.mxu0 0.0
  %226 = vmatpush1.msra.mxu0 0.0
  %227 = vmatprep.subr.mxu0 0.0
  %228 = vmatpush1.msra.mxu0 0.0
  %229 = vmatprep.subr.mxu0 0.0
  %230 = vmatpush1.msra.mxu0 0.0
  %231 = vmatprep.subr.mxu0 0.0
  %232 = vmatpush1.msra.mxu0 0.0
  %233 = vmatprep.subr.mxu0 0.0
  %234 = vmatpush1.msra.mxu0 0.0
  %235 = vmatprep.subr.mxu0 0.0
  %236 = vmatpush1.msra.mxu0 0.0
  %237 = vmatprep.subr.mxu0 0.0
  %238 = vmatpush1.msra.mxu0 0.0
  %239 = vmatprep.subr.mxu0 0.0
  %240 = vmatpush1.msra.mxu0 0.0
  %241 = vmatprep.subr.mxu0 0.0
  %242 = vmatpush1.msra.mxu0 0.0
  %243 = vmatprep.subr.mxu0 0.0
  %244 = vmatpush1.msra.mxu0 0.0
  %245 = vmatprep.subr.mxu0 0.0
  %246 = vmatpush1.msra.mxu0 0.0
  %247 = vmatprep.subr.mxu0 0.0
  %248 = vmatpush1.msra.mxu0 0.0
  %249 = vmatprep.subr.mxu0 0.0
  %250 = vmatpush1.msra.mxu0 0.0
  %251 = vmatprep.subr.mxu0 0.0
  %252 = vmatpush1.msra.mxu0 0.0
  %253 = vmatprep.subr.mxu0 0.0
  %254 = vmatpush1.msra.mxu0 0.0
  %255 = vmatprep.subr.mxu0 0.0
  %256 = vmatpush1.msra.mxu0 0.0
  %257 = vmatprep.subr.mxu0 0.0
  %258 = vmatpush1.msra.mxu0 0.0
  %259 = vmatprep.subr.mxu0 0.0
  %260 = vmatpush1.msra.mxu0 0.0
  %261 = vmatprep.subr.mxu0 0.0
  %262 = vmatpush1.msra.mxu0 0.0
  %263 = vmatprep.subr.mxu0 0.0
  %264 = vmatpush1.msra.mxu0 0.0
  %265 = vmatprep.subr.mxu0 0.0
  %266 = vmatpush1.msra.mxu0 0.0
  %267 = vmatprep.subr.mxu0 0.0
  %268 = vmatpush1.msra.mxu0 0.0
  %269 = vmatprep.subr.mxu0 0.0
  %270 = vmatpush1.msra.mxu0 0.0
  %271 = vmatprep.subr.mxu0 0.0
  %272 = vmatpush1.msra.mxu0 0.0
  %273 = vmatprep.subr.mxu0 0.0
  %274 = vmatpush1.msra.mxu0 0.0
  %275 = vmatprep.subr.mxu0 0.0
  %276 = vmatpush1.msra.mxu0 0.0
  %277 = vmatprep.subr.mxu0 0.0
  %278 = vmatpush1.msra.mxu0 0.0
  %279 = vmatprep.subr.mxu0 0.0
  %280 = vmatpush1.msra.mxu0 0.0
  %281 = vmatprep.subr.mxu0 0.0
  %282 = vmatpush1.msra.mxu0 0.0
  %283 = vmatprep.subr.mxu0 0.0
  %284 = vmatpush1.msra.mxu0 0.0
  %285 = vmatprep.subr.mxu0 0.0
  %286 = vmatpush1.msra.mxu0 0.0
  %287 = vmatprep.mubr.f32.mxu0 0.0
  %288 = vmatmul.mubr.f32.gmra.mrb[0].mxu0 %v147
  %v289 = vpop.f32.mrb[0].mxu0
  %v290 = vadd.f32 0.0, %v289
  %v291 = vpop.f32.mrb[0].mxu0
  %292 = vdwg.mxu0
  %s294 = sor.u32 256, 121
  %295 = vrot.lane.b32.xlu0 %v290, %s294
  %v296 = vpop.permute.xlu0 %295
  %v297 = vadd.f32 %v221, %v296
  %v298 = vsel %vm146, %v297, -inf
  %299 = vmax.xlane.f32.xlu0 %v298
  %v300 = vpop.xlane.xlu0 %299
  %v301 = vsub.f32 %v297, %v300
  %v302 = vmul.f32 %v301, 1.442695
  %v303 = vpow.pop %v302
  %v304 = vsel %vm146, %v303, 0.0
  %305 = vadd.xlane.f32.xlu0 %v304
  %v306 = vpop.xlane.xlu0 %305
  %v307 = vrcp.pop %v306
  %v308 = vmul.f32 %v303, %v307
  %v310 = vsel %vm146, %v308, 0
  %312 = vmatprep.subr.mxu0 0.0
  %313 = vmatpush1.msra.mxu0 %v135
  %314 = vmatprep.subr.mxu0 0.0
  %315 = vmatpush1.msra.mxu0 0.0
  %316 = vmatprep.subr.mxu0 0.0
  %317 = vmatpush1.msra.mxu0 0.0
  %318 = vmatprep.subr.mxu0 0.0
  %319 = vmatpush1.msra.mxu0 0.0
  %320 = vmatprep.subr.mxu0 0.0
  %321 = vmatpush1.msra.mxu0 0.0
  %322 = vmatprep.subr.mxu0 0.0
  %323 = vmatpush1.msra.mxu0 0.0
  %324 = vmatprep.subr.mxu0 0.0
  %325 = vmatpush1.msra.mxu0 0.0
  %326 = vmatprep.subr.mxu0 0.0
  %327 = vmatpush1.msra.mxu0 0.0
  %328 = vmatprep.subr.mxu0 0.0
  %329 = vmatpush1.msra.mxu0 0.0
  %330 = vmatprep.subr.mxu0 0.0
  %331 = vmatpush1.msra.mxu0 0.0
  %332 = vmatprep.subr.mxu0 0.0
  %333 = vmatpush1.msra.mxu0 0.0
  %334 = vmatprep.subr.mxu0 0.0
  %335 = vmatpush1.msra.mxu0 0.0
  %336 = vmatprep.subr.mxu0 0.0
  %337 = vmatpush1.msra.mxu0 0.0
  %338 = vmatprep.subr.mxu0 0.0
  %339 = vmatpush1.msra.mxu0 0.0
  %340 = vmatprep.subr.mxu0 0.0
  %341 = vmatpush1.msra.mxu0 0.0
  %342 = vmatprep.subr.mxu0 0.0
  %343 = vmatpush1.msra.mxu0 0.0
  %344 = vmatprep.subr.mxu0 0.0
  %345 = vmatpush1.msra.mxu0 0.0
  %346 = vmatprep.subr.mxu0 0.0
  %347 = vmatpush1.msra.mxu0 0.0
  %348 = vmatprep.subr.mxu0 0.0
  %349 = vmatpush1.msra.mxu0 0.0
  %350 = vmatprep.subr.mxu0 0.0
  %351 = vmatpush1.msra.mxu0 0.0
  %352 = vmatprep.subr.mxu0 0.0
  %353 = vmatpush1.msra.mxu0 0.0
  %354 = vmatprep.subr.mxu0 0.0
  %355 = vmatpush1.msra.mxu0 0.0
  %356 = vmatprep.subr.mxu0 0.0
  %357 = vmatpush1.msra.mxu0 0.0
  %358 = vmatprep.subr.mxu0 0.0
  %359 = vmatpush1.msra.mxu0 0.0
  %360 = vmatprep.subr.mxu0 0.0
  %361 = vmatpush1.msra.mxu0 0.0
  %362 = vmatprep.subr.mxu0 0.0
  %363 = vmatpush1.msra.mxu0 0.0
  %364 = vmatprep.subr.mxu0 0.0
  %365 = vmatpush1.msra.mxu0 0.0
  %366 = vmatprep.subr.mxu0 0.0
  %367 = vmatpush1.msra.mxu0 0.0
  %368 = vmatprep.subr.mxu0 0.0
  %369 = vmatpush1.msra.mxu0 0.0
  %370 = vmatprep.subr.mxu0 0.0
  %371 = vmatpush1.msra.mxu0 0.0
  %372 = vmatprep.subr.mxu0 0.0
  %373 = vmatpush1.msra.mxu0 0.0
  %374 = vmatprep.subr.mxu0 0.0
  %375 = vmatpush1.msra.mxu0 0.0
  %376 = vmatprep.mubr.f32.mxu0 0.0
  %377 = vmatmul.mubr.f32.gmra.mrb[0].mxu0 %v310
  %v378 = vpop.f32.mrb[0].mxu0
  %v379 = vadd.f32 0.0, %v378
  %v380 = vpop.f32.mrb[0].mxu0
  %381 = vdwg.mxu0
  %382 = vrot.lane.b32.xlu0 %v133, 120
  %v383 = vpop.permute.xlu0 %382
  %384 = vrot.lane.b32.xlu0 %v133, 56
  %v385 = vpop.permute.xlu0 %384
  %v386 = vsel %vm146, %v383, 0
  %v388 = vsel %vm146, %v385, 0
  %390 = vmatprep.subr.mxu0 0.0
  %391 = vmatpush1.xpose.msra.mxu0 %v388
  %392 = vmatprep.subr.mxu0 0.0
  %393 = vmatpush1.xpose.msra.mxu0 0.0
  %394 = vmatprep.subr.mxu0 0.0
  %395 = vmatpush1.xpose.msra.mxu0 0.0
  %396 = vmatprep.subr.mxu0 0.0
  %397 = vmatpush1.xpose.msra.mxu0 0.0
  %398 = vmatprep.subr.mxu0 0.0
  %399 = vmatpush1.xpose.msra.mxu0 0.0
  %400 = vmatprep.subr.mxu0 0.0
  %401 = vmatpush1.xpose.msra.mxu0 0.0
  %402 = vmatprep.subr.mxu0 0.0
  %403 = vmatpush1.xpose.msra.mxu0 0.0
  %404 = vmatprep.subr.mxu0 0.0
  %405 = vmatpush1.xpose.msra.mxu0 0.0
  %406 = vmatprep.subr.mxu0 0.0
  %407 = vmatpush1.xpose.msra.mxu0 0.0
  %408 = vmatprep.subr.mxu0 0.0
  %409 = vmatpush1.xpose.msra.mxu0 0.0
  %410 = vmatprep.subr.mxu0 0.0
  %411 = vmatpush1.xpose.msra.mxu0 0.0
  %412 = vmatprep.subr.mxu0 0.0
  %413 = vmatpush1.xpose.msra.mxu0 0.0
  %414 = vmatprep.subr.mxu0 0.0
  %415 = vmatpush1.xpose.msra.mxu0 0.0
  %416 = vmatprep.subr.mxu0 0.0
  %417 = vmatpush1.xpose.msra.mxu0 0.0
  %418 = vmatprep.subr.mxu0 0.0
  %419 = vmatpush1.xpose.msra.mxu0 0.0
  %420 = vmatprep.subr.mxu0 0.0
  %421 = vmatpush1.xpose.msra.mxu0 0.0
  %422 = vmatprep.subr.mxu0 0.0
  %423 = vmatpush1.xpose.msra.mxu0 0.0
  %424 = vmatprep.subr.mxu0 0.0
  %425 = vmatpush1.xpose.msra.mxu0 0.0
  %426 = vmatprep.subr.mxu0 0.0
  %427 = vmatpush1.xpose.msra.mxu0 0.0
  %428 = vmatprep.subr.mxu0 0.0
  %429 = vmatpush1.xpose.msra.mxu0 0.0
  %430 = vmatprep.subr.mxu0 0.0
  %431 = vmatpush1.xpose.msra.mxu0 0.0
  %432 = vmatprep.subr.mxu0 0.0
  %433 = vmatpush1.xpose.msra.mxu0 0.0
  %434 = vmatprep.subr.mxu0 0.0
  %435 = vmatpush1.xpose.msra.mxu0 0.0
  %436 = vmatprep.subr.mxu0 0.0
  %437 = vmatpush1.xpose.msra.mxu0 0.0
  %438 = vmatprep.subr.mxu0 0.0
  %439 = vmatpush1.xpose.msra.mxu0 0.0
  %440 = vmatprep.subr.mxu0 0.0
  %441 = vmatpush1.xpose.msra.mxu0 0.0
  %442 = vmatprep.subr.mxu0 0.0
  %443 = vmatpush1.xpose.msra.mxu0 0.0
  %444 = vmatprep.subr.mxu0 0.0
  %445 = vmatpush1.xpose.msra.mxu0 0.0
  %446 = vmatprep.subr.mxu0 0.0
  %447 = vmatpush1.xpose.msra.mxu0 0.0
  %448 = vmatprep.subr.mxu0 0.0
  %449 = vmatpush1.xpose.msra.mxu0 0.0
  %450 = vmatprep.subr.mxu0 0.0
  %451 = vmatpush1.xpose.msra.mxu0 0.0
  %452 = vmatprep.subr.mxu0 0.0
  %453 = vmatpush1.xpose.msra.mxu0 0.0
  %454 = vmatprep.mubr.f32.mxu0 0.0
  %455 = vmatmul.mubr.f32.gmra.mrb[0].mxu0 %v386
  %v456 = vpop.f32.mrb[0].mxu0
  %v457 = vadd.f32 0.0, %v456
  %v458 = vpop.f32.mrb[0].mxu0
  %459 = vdwg.mxu0
  %v460 = vmul.f32 %v457, 0.35355338
  %s461 = scalar_lea.vmem %s3, 8
  %v462 = vld [vmem:[%s461] sm:$0xff]
  %463 = vmatprep.subr.mxu0 0.0
  %464 = vmatpush1.msra.mxu0 %v462
  %465 = vmatprep.subr.mxu0 0.0
  %466 = vmatpush1.msra.mxu0 0.0
  %467 = vmatprep.subr.mxu0 0.0
  %468 = vmatpush1.msra.mxu0 0.0
  %469 = vmatprep.subr.mxu0 0.0
  %470 = vmatpush1.msra.mxu0 0.0
  %471 = vmatprep.subr.mxu0 0.0
  %472 = vmatpush1.msra.mxu0 0.0
  %473 = vmatprep.subr.mxu0 0.0
  %474 = vmatpush1.msra.mxu0 0.0
  %475 = vmatprep.subr.mxu0 0.0
  %476 = vmatpush1.msra.mxu0 0.0
  %477 = vmatprep.subr.mxu0 0.0
  %478 = vmatpush1.msra.mxu0 0.0
  %479 = vmatprep.subr.mxu0 0.0
  %480 = vmatpush1.msra.mxu0 0.0
  %481 = vmatprep.subr.mxu0 0.0
  %482 = vmatpush1.msra.mxu0 0.0
  %483 = vmatprep.subr.mxu0 0.0
  %484 = vmatpush1.msra.mxu0 0.0
  %485 = vmatprep.subr.mxu0 0.0
  %486 = vmatpush1.msra.mxu0 0.0
  %487 = vmatprep.subr.mxu0 0.0
  %488 = vmatpush1.msra.mxu0 0.0
  %489 = vmatprep.subr.mxu0 0.0
  %490 = vmatpush1.msra.mxu0 0.0
  %491 = vmatprep.subr.mxu0 0.0
  %492 = vmatpush1.msra.mxu0 0.0
  %493 = vmatprep.subr.mxu0 0.0
  %494 = vmatpush1.msra.mxu0 0.0
  %495 = vmatprep.subr.mxu0 0.0
  %496 = vmatpush1.msra.mxu0 0.0
  %497 = vmatprep.subr.mxu0 0.0
  %498 = vmatpush1.msra.mxu0 0.0
  %499 = vmatprep.subr.mxu0 0.0
  %500 = vmatpush1.msra.mxu0 0.0
  %501 = vmatprep.subr.mxu0 0.0
  %502 = vmatpush1.msra.mxu0 0.0
  %503 = vmatprep.subr.mxu0 0.0
  %504 = vmatpush1.msra.mxu0 0.0
  %505 = vmatprep.subr.mxu0 0.0
  %506 = vmatpush1.msra.mxu0 0.0
  %507 = vmatprep.subr.mxu0 0.0
  %508 = vmatpush1.msra.mxu0 0.0
  %509 = vmatprep.subr.mxu0 0.0
  %510 = vmatpush1.msra.mxu0 0.0
  %511 = vmatprep.subr.mxu0 0.0
  %512 = vmatpush1.msra.mxu0 0.0
  %513 = vmatprep.subr.mxu0 0.0
  %514 = vmatpush1.msra.mxu0 0.0
  %515 = vmatprep.subr.mxu0 0.0
  %516 = vmatpush1.msra.mxu0 0.0
  %517 = vmatprep.subr.mxu0 0.0
  %518 = vmatpush1.msra.mxu0 0.0
  %519 = vmatprep.subr.mxu0 0.0
  %520 = vmatpush1.msra.mxu0 0.0
  %521 = vmatprep.subr.mxu0 0.0
  %522 = vmatpush1.msra.mxu0 0.0
  %523 = vmatprep.subr.mxu0 0.0
  %524 = vmatpush1.msra.mxu0 0.0
  %525 = vmatprep.subr.mxu0 0.0
  %526 = vmatpush1.msra.mxu0 0.0
  %527 = vmatprep.mubr.f32.mxu0 0.0
  %528 = vmatmul.mubr.f32.gmra.mrb[0].mxu0 %v386
  %v529 = vpop.f32.mrb[0].mxu0
  %v530 = vadd.f32 0.0, %v529
  %v531 = vpop.f32.mrb[0].mxu0
  %532 = vdwg.mxu0
  %s534 = sor.u32 256, 121
  %535 = vrot.lane.b32.xlu0 %v530, %s534
  %v536 = vpop.permute.xlu0 %535
  %v537 = vadd.f32 %v460, %v536
  %v538 = vsel %vm146, %v537, -inf
  %539 = vmax.xlane.f32.xlu0 %v538
  %v540 = vpop.xlane.xlu0 %539
  %v541 = vsub.f32 %v537, %v540
  %v542 = vmul.f32 %v541, 1.442695
  %v543 = vpow.pop %v542
  %v544 = vsel %vm146, %v543, 0.0
  %545 = vadd.xlane.f32.xlu0 %v544
  %v546 = vpop.xlane.xlu0 %545
  %v547 = vrcp.pop %v546
  %v548 = vmul.f32 %v543, %v547
  %550 = vrot.lane.b32.xlu0 %v135, 120
  %v551 = vpop.permute.xlu0 %550
  %v554 = vsel %vm146, %v548, 0
  %556 = vmatprep.subr.mxu0 0.0
  %557 = vmatpush1.msra.mxu0 %v551
  %558 = vmatprep.subr.mxu0 0.0
  %559 = vmatpush1.msra.mxu0 0.0
  %560 = vmatprep.subr.mxu0 0.0
  %561 = vmatpush1.msra.mxu0 0.0
  %562 = vmatprep.subr.mxu0 0.0
  %563 = vmatpush1.msra.mxu0 0.0
  %564 = vmatprep.subr.mxu0 0.0
  %565 = vmatpush1.msra.mxu0 0.0
  %566 = vmatprep.subr.mxu0 0.0
  %567 = vmatpush1.msra.mxu0 0.0
  %568 = vmatprep.subr.mxu0 0.0
  %569 = vmatpush1.msra.mxu0 0.0
  %570 = vmatprep.subr.mxu0 0.0
  %571 = vmatpush1.msra.mxu0 0.0
  %572 = vmatprep.subr.mxu0 0.0
  %573 = vmatpush1.msra.mxu0 0.0
  %574 = vmatprep.subr.mxu0 0.0
  %575 = vmatpush1.msra.mxu0 0.0
  %576 = vmatprep.subr.mxu0 0.0
  %577 = vmatpush1.msra.mxu0 0.0
  %578 = vmatprep.subr.mxu0 0.0
  %579 = vmatpush1.msra.mxu0 0.0
  %580 = vmatprep.subr.mxu0 0.0
  %581 = vmatpush1.msra.mxu0 0.0
  %582 = vmatprep.subr.mxu0 0.0
  %583 = vmatpush1.msra.mxu0 0.0
  %584 = vmatprep.subr.mxu0 0.0
  %585 = vmatpush1.msra.mxu0 0.0
  %586 = vmatprep.subr.mxu0 0.0
  %587 = vmatpush1.msra.mxu0 0.0
  %588 = vmatprep.subr.mxu0 0.0
  %589 = vmatpush1.msra.mxu0 0.0
  %590 = vmatprep.subr.mxu0 0.0
  %591 = vmatpush1.msra.mxu0 0.0
  %592 = vmatprep.subr.mxu0 0.0
  %593 = vmatpush1.msra.mxu0 0.0
  %594 = vmatprep.subr.mxu0 0.0
  %595 = vmatpush1.msra.mxu0 0.0
  %596 = vmatprep.subr.mxu0 0.0
  %597 = vmatpush1.msra.mxu0 0.0
  %598 = vmatprep.subr.mxu0 0.0
  %599 = vmatpush1.msra.mxu0 0.0
  %600 = vmatprep.subr.mxu0 0.0
  %601 = vmatpush1.msra.mxu0 0.0
  %602 = vmatprep.subr.mxu0 0.0
  %603 = vmatpush1.msra.mxu0 0.0
  %604 = vmatprep.subr.mxu0 0.0
  %605 = vmatpush1.msra.mxu0 0.0
  %606 = vmatprep.subr.mxu0 0.0
  %607 = vmatpush1.msra.mxu0 0.0
  %608 = vmatprep.subr.mxu0 0.0
  %609 = vmatpush1.msra.mxu0 0.0
  %610 = vmatprep.subr.mxu0 0.0
  %611 = vmatpush1.msra.mxu0 0.0
  %612 = vmatprep.subr.mxu0 0.0
  %613 = vmatpush1.msra.mxu0 0.0
  %614 = vmatprep.subr.mxu0 0.0
  %615 = vmatpush1.msra.mxu0 0.0
  %616 = vmatprep.subr.mxu0 0.0
  %617 = vmatpush1.msra.mxu0 0.0
  %618 = vmatprep.subr.mxu0 0.0
  %619 = vmatpush1.msra.mxu0 0.0
  %620 = vmatprep.mubr.f32.mxu0 0.0
  %621 = vmatmul.mubr.f32.gmra.mrb[0].mxu0 %v554
  %v622 = vpop.f32.mrb[0].mxu0
  %v623 = vadd.f32 0.0, %v622
  %v624 = vpop.f32.mrb[0].mxu0
  %625 = vdwg.mxu0
  %626 = vrot.lane.b32.xlu0 %v133, 112
  %v627 = vpop.permute.xlu0 %626
  %628 = vrot.lane.b32.xlu0 %v133, 48
  %v629 = vpop.permute.xlu0 %628
  %v630 = vsel %vm146, %v627, 0
  %v632 = vsel %vm146, %v629, 0
  %634 = vmatprep.subr.mxu0 0.0
  %635 = vmatpush1.xpose.msra.mxu0 %v632
  %636 = vmatprep.subr.mxu0 0.0
  %637 = vmatpush1.xpose.msra.mxu0 0.0
  %638 = vmatprep.subr.mxu0 0.0
  %639 = vmatpush1.xpose.msra.mxu0 0.0
  %640 = vmatprep.subr.mxu0 0.0
  %641 = vmatpush1.xpose.msra.mxu0 0.0
  %642 = vmatprep.subr.mxu0 0.0
  %643 = vmatpush1.xpose.msra.mxu0 0.0
  %644 = vmatprep.subr.mxu0 0.0
  %645 = vmatpush1.xpose.msra.mxu0 0.0
  %646 = vmatprep.subr.mxu0 0.0
  %647 = vmatpush1.xpose.msra.mxu0 0.0
  %648 = vmatprep.subr.mxu0 0.0
  %649 = vmatpush1.xpose.msra.mxu0 0.0
  %650 = vmatprep.subr.mxu0 0.0
  %651 = vmatpush1.xpose.msra.mxu0 0.0
  %652 = vmatprep.subr.mxu0 0.0
  %653 = vmatpush1.xpose.msra.mxu0 0.0
  %654 = vmatprep.subr.mxu0 0.0
  %655 = vmatpush1.xpose.msra.mxu0 0.0
  %656 = vmatprep.subr.mxu0 0.0
  %657 = vmatpush1.xpose.msra.mxu0 0.0
  %658 = vmatprep.subr.mxu0 0.0
  %659 = vmatpush1.xpose.msra.mxu0 0.0
  %660 = vmatprep.subr.mxu0 0.0
  %661 = vmatpush1.xpose.msra.mxu0 0.0
  %662 = vmatprep.subr.mxu0 0.0
  %663 = vmatpush1.xpose.msra.mxu0 0.0
  %664 = vmatprep.subr.mxu0 0.0
  %665 = vmatpush1.xpose.msra.mxu0 0.0
  %666 = vmatprep.subr.mxu0 0.0
  %667 = vmatpush1.xpose.msra.mxu0 0.0
  %668 = vmatprep.subr.mxu0 0.0
  %669 = vmatpush1.xpose.msra.mxu0 0.0
  %670 = vmatprep.subr.mxu0 0.0
  %671 = vmatpush1.xpose.msra.mxu0 0.0
  %672 = vmatprep.subr.mxu0 0.0
  %673 = vmatpush1.xpose.msra.mxu0 0.0
  %674 = vmatprep.subr.mxu0 0.0
  %675 = vmatpush1.xpose.msra.mxu0 0.0
  %676 = vmatprep.subr.mxu0 0.0
  %677 = vmatpush1.xpose.msra.mxu0 0.0
  %678 = vmatprep.subr.mxu0 0.0
  %679 = vmatpush1.xpose.msra.mxu0 0.0
  %680 = vmatprep.subr.mxu0 0.0
  %681 = vmatpush1.xpose.msra.mxu0 0.0
  %682 = vmatprep.subr.mxu0 0.0
  %683 = vmatpush1.xpose.msra.mxu0 0.0
  %684 = vmatprep.subr.mxu0 0.0
  %685 = vmatpush1.xpose.msra.mxu0 0.0
  %686 = vmatprep.subr.mxu0 0.0
  %687 = vmatpush1.xpose.msra.mxu0 0.0
  %688 = vmatprep.subr.mxu0 0.0
  %689 = vmatpush1.xpose.msra.mxu0 0.0
  %690 = vmatprep.subr.mxu0 0.0
  %691 = vmatpush1.xpose.msra.mxu0 0.0
  %692 = vmatprep.subr.mxu0 0.0
  %693 = vmatpush1.xpose.msra.mxu0 0.0
  %694 = vmatprep.subr.mxu0 0.0
  %695 = vmatpush1.xpose.msra.mxu0 0.0
  %696 = vmatprep.subr.mxu0 0.0
  %697 = vmatpush1.xpose.msra.mxu0 0.0
  %698 = vmatprep.mubr.f32.mxu0 0.0
  %699 = vmatmul.mubr.f32.gmra.mrb[0].mxu0 %v630
  %v700 = vpop.f32.mrb[0].mxu0
  %v701 = vadd.f32 0.0, %v700
  %v702 = vpop.f32.mrb[0].mxu0
  %703 = vdwg.mxu0
  %v704 = vmul.f32 %v701, 0.35355338
  %s705 = scalar_lea.vmem %s3, 16
  %v706 = vld [vmem:[%s705] sm:$0xff]
  %707 = vmatprep.subr.mxu0 0.0
  %708 = vmatpush1.msra.mxu0 %v706
  %709 = vmatprep.subr.mxu0 0.0
  %710 = vmatpush1.msra.mxu0 0.0
  %711 = vmatprep.subr.mxu0 0.0
  %712 = vmatpush1.msra.mxu0 0.0
  %713 = vmatprep.subr.mxu0 0.0
  %714 = vmatpush1.msra.mxu0 0.0
  %715 = vmatprep.subr.mxu0 0.0
  %716 = vmatpush1.msra.mxu0 0.0
  %717 = vmatprep.subr.mxu0 0.0
  %718 = vmatpush1.msra.mxu0 0.0
  %719 = vmatprep.subr.mxu0 0.0
  %720 = vmatpush1.msra.mxu0 0.0
  %721 = vmatprep.subr.mxu0 0.0
  %722 = vmatpush1.msra.mxu0 0.0
  %723 = vmatprep.subr.mxu0 0.0
  %724 = vmatpush1.msra.mxu0 0.0
  %725 = vmatprep.subr.mxu0 0.0
  %726 = vmatpush1.msra.mxu0 0.0
  %727 = vmatprep.subr.mxu0 0.0
  %728 = vmatpush1.msra.mxu0 0.0
  %729 = vmatprep.subr.mxu0 0.0
  %730 = vmatpush1.msra.mxu0 0.0
  %731 = vmatprep.subr.mxu0 0.0
  %732 = vmatpush1.msra.mxu0 0.0
  %733 = vmatprep.subr.mxu0 0.0
  %734 = vmatpush1.msra.mxu0 0.0
  %735 = vmatprep.subr.mxu0 0.0
  %736 = vmatpush1.msra.mxu0 0.0
  %737 = vmatprep.subr.mxu0 0.0
  %738 = vmatpush1.msra.mxu0 0.0
  %739 = vmatprep.subr.mxu0 0.0
  %740 = vmatpush1.msra.mxu0 0.0
  %741 = vmatprep.subr.mxu0 0.0
  %742 = vmatpush1.msra.mxu0 0.0
  %743 = vmatprep.subr.mxu0 0.0
  %744 = vmatpush1.msra.mxu0 0.0
  %745 = vmatprep.subr.mxu0 0.0
  %746 = vmatpush1.msra.mxu0 0.0
  %747 = vmatprep.subr.mxu0 0.0
  %748 = vmatpush1.msra.mxu0 0.0
  %749 = vmatprep.subr.mxu0 0.0
  %750 = vmatpush1.msra.mxu0 0.0
  %751 = vmatprep.subr.mxu0 0.0
  %752 = vmatpush1.msra.mxu0 0.0
  %753 = vmatprep.subr.mxu0 0.0
  %754 = vmatpush1.msra.mxu0 0.0
  %755 = vmatprep.subr.mxu0 0.0
  %756 = vmatpush1.msra.mxu0 0.0
  %757 = vmatprep.subr.mxu0 0.0
  %758 = vmatpush1.msra.mxu0 0.0
  %759 = vmatprep.subr.mxu0 0.0
  %760 = vmatpush1.msra.mxu0 0.0
  %761 = vmatprep.subr.mxu0 0.0
  %762 = vmatpush1.msra.mxu0 0.0
  %763 = vmatprep.subr.mxu0 0.0
  %764 = vmatpush1.msra.mxu0 0.0
  %765 = vmatprep.subr.mxu0 0.0
  %766 = vmatpush1.msra.mxu0 0.0
  %767 = vmatprep.subr.mxu0 0.0
  %768 = vmatpush1.msra.mxu0 0.0
  %769 = vmatprep.subr.mxu0 0.0
  %770 = vmatpush1.msra.mxu0 0.0
  %771 = vmatprep.mubr.f32.mxu0 0.0
  %772 = vmatmul.mubr.f32.gmra.mrb[0].mxu0 %v630
  %v773 = vpop.f32.mrb[0].mxu0
  %v774 = vadd.f32 0.0, %v773
  %v775 = vpop.f32.mrb[0].mxu0
  %776 = vdwg.mxu0
  %s778 = sor.u32 256, 121
  %779 = vrot.lane.b32.xlu0 %v774, %s778
  %v780 = vpop.permute.xlu0 %779
  %v781 = vadd.f32 %v704, %v780
  %v782 = vsel %vm146, %v781, -inf
  %783 = vmax.xlane.f32.xlu0 %v782
  %v784 = vpop.xlane.xlu0 %783
  %v785 = vsub.f32 %v781, %v784
  %v786 = vmul.f32 %v785, 1.442695
  %v787 = vpow.pop %v786
  %v788 = vsel %vm146, %v787, 0.0
  %789 = vadd.xlane.f32.xlu0 %v788
  %v790 = vpop.xlane.xlu0 %789
  %v791 = vrcp.pop %v790
  %v792 = vmul.f32 %v787, %v791
  %793 = vrot.lane.b32.xlu0 %v135, 112
  %v794 = vpop.permute.xlu0 %793
  %v797 = vsel %vm146, %v792, 0
  %799 = vmatprep.subr.mxu0 0.0
  %800 = vmatpush1.msra.mxu0 %v794
  %801 = vmatprep.subr.mxu0 0.0
  %802 = vmatpush1.msra.mxu0 0.0
  %803 = vmatprep.subr.mxu0 0.0
  %804 = vmatpush1.msra.mxu0 0.0
  %805 = vmatprep.subr.mxu0 0.0
  %806 = vmatpush1.msra.mxu0 0.0
  %807 = vmatprep.subr.mxu0 0.0
  %808 = vmatpush1.msra.mxu0 0.0
  %809 = vmatprep.subr.mxu0 0.0
  %810 = vmatpush1.msra.mxu0 0.0
  %811 = vmatprep.subr.mxu0 0.0
  %812 = vmatpush1.msra.mxu0 0.0
  %813 = vmatprep.subr.mxu0 0.0
  %814 = vmatpush1.msra.mxu0 0.0
  %815 = vmatprep.subr.mxu0 0.0
  %816 = vmatpush1.msra.mxu0 0.0
  %817 = vmatprep.subr.mxu0 0.0
  %818 = vmatpush1.msra.mxu0 0.0
  %819 = vmatprep.subr.mxu0 0.0
  %820 = vmatpush1.msra.mxu0 0.0
  %821 = vmatprep.subr.mxu0 0.0
  %822 = vmatpush1.msra.mxu0 0.0
  %823 = vmatprep.subr.mxu0 0.0
  %824 = vmatpush1.msra.mxu0 0.0
  %825 = vmatprep.subr.mxu0 0.0
  %826 = vmatpush1.msra.mxu0 0.0
  %827 = vmatprep.subr.mxu0 0.0
  %828 = vmatpush1.msra.mxu0 0.0
  %829 = vmatprep.subr.mxu0 0.0
  %830 = vmatpush1.msra.mxu0 0.0
  %831 = vmatprep.subr.mxu0 0.0
  %832 = vmatpush1.msra.mxu0 0.0
  %833 = vmatprep.subr.mxu0 0.0
  %834 = vmatpush1.msra.mxu0 0.0
  %835 = vmatprep.subr.mxu0 0.0
  %836 = vmatpush1.msra.mxu0 0.0
  %837 = vmatprep.subr.mxu0 0.0
  %838 = vmatpush1.msra.mxu0 0.0
  %839 = vmatprep.subr.mxu0 0.0
  %840 = vmatpush1.msra.mxu0 0.0
  %841 = vmatprep.subr.mxu0 0.0
  %842 = vmatpush1.msra.mxu0 0.0
  %843 = vmatprep.subr.mxu0 0.0
  %844 = vmatpush1.msra.mxu0 0.0
  %845 = vmatprep.subr.mxu0 0.0
  %846 = vmatpush1.msra.mxu0 0.0
  %847 = vmatprep.subr.mxu0 0.0
  %848 = vmatpush1.msra.mxu0 0.0
  %849 = vmatprep.subr.mxu0 0.0
  %850 = vmatpush1.msra.mxu0 0.0
  %851 = vmatprep.subr.mxu0 0.0
  %852 = vmatpush1.msra.mxu0 0.0
  %853 = vmatprep.subr.mxu0 0.0
  %854 = vmatpush1.msra.mxu0 0.0
  %855 = vmatprep.subr.mxu0 0.0
  %856 = vmatpush1.msra.mxu0 0.0
  %857 = vmatprep.subr.mxu0 0.0
  %858 = vmatpush1.msra.mxu0 0.0
  %859 = vmatprep.subr.mxu0 0.0
  %860 = vmatpush1.msra.mxu0 0.0
  %861 = vmatprep.subr.mxu0 0.0
  %862 = vmatpush1.msra.mxu0 0.0
  %863 = vmatprep.mubr.f32.mxu0 0.0
  %864 = vmatmul.mubr.f32.gmra.mrb[0].mxu0 %v797
  %v865 = vpop.f32.mrb[0].mxu0
  %v866 = vadd.f32 0.0, %v865
  %v867 = vpop.f32.mrb[0].mxu0
  %868 = vdwg.mxu0
  %869 = vrot.lane.b32.xlu0 %v133, 104
  %v870 = vpop.permute.xlu0 %869
  %871 = vrot.lane.b32.xlu0 %v133, 40
  %v872 = vpop.permute.xlu0 %871
  %v873 = vsel %vm146, %v870, 0
  %v875 = vsel %vm146, %v872, 0
  %877 = vmatprep.subr.mxu0 0.0
  %878 = vmatpush1.xpose.msra.mxu0 %v875
  %879 = vmatprep.subr.mxu0 0.0
  %880 = vmatpush1.xpose.msra.mxu0 0.0
  %881 = vmatprep.subr.mxu0 0.0
  %882 = vmatpush1.xpose.msra.mxu0 0.0
  %883 = vmatprep.subr.mxu0 0.0
  %884 = vmatpush1.xpose.msra.mxu0 0.0
  %885 = vmatprep.subr.mxu0 0.0
  %886 = vmatpush1.xpose.msra.mxu0 0.0
  %887 = vmatprep.subr.mxu0 0.0
  %888 = vmatpush1.xpose.msra.mxu0 0.0
  %889 = vmatprep.subr.mxu0 0.0
  %890 = vmatpush1.xpose.msra.mxu0 0.0
  %891 = vmatprep.subr.mxu0 0.0
  %892 = vmatpush1.xpose.msra.mxu0 0.0
  %893 = vmatprep.subr.mxu0 0.0
  %894 = vmatpush1.xpose.msra.mxu0 0.0
  %895 = vmatprep.subr.mxu0 0.0
  %896 = vmatpush1.xpose.msra.mxu0 0.0
  %897 = vmatprep.subr.mxu0 0.0
  %898 = vmatpush1.xpose.msra.mxu0 0.0
  %899 = vmatprep.subr.mxu0 0.0
  %900 = vmatpush1.xpose.msra.mxu0 0.0
  %901 = vmatprep.subr.mxu0 0.0
  %902 = vmatpush1.xpose.msra.mxu0 0.0
  %903 = vmatprep.subr.mxu0 0.0
  %904 = vmatpush1.xpose.msra.mxu0 0.0
  %905 = vmatprep.subr.mxu0 0.0
  %906 = vmatpush1.xpose.msra.mxu0 0.0
  %907 = vmatprep.subr.mxu0 0.0
  %908 = vmatpush1.xpose.msra.mxu0 0.0
  %909 = vmatprep.subr.mxu0 0.0
  %910 = vmatpush1.xpose.msra.mxu0 0.0
  %911 = vmatprep.subr.mxu0 0.0
  %912 = vmatpush1.xpose.msra.mxu0 0.0
  %913 = vmatprep.subr.mxu0 0.0
  %914 = vmatpush1.xpose.msra.mxu0 0.0
  %915 = vmatprep.subr.mxu0 0.0
  %916 = vmatpush1.xpose.msra.mxu0 0.0
  %917 = vmatprep.subr.mxu0 0.0
  %918 = vmatpush1.xpose.msra.mxu0 0.0
  %919 = vmatprep.subr.mxu0 0.0
  %920 = vmatpush1.xpose.msra.mxu0 0.0
  %921 = vmatprep.subr.mxu0 0.0
  %922 = vmatpush1.xpose.msra.mxu0 0.0
  %923 = vmatprep.subr.mxu0 0.0
  %924 = vmatpush1.xpose.msra.mxu0 0.0
  %925 = vmatprep.subr.mxu0 0.0
  %926 = vmatpush1.xpose.msra.mxu0 0.0
  %927 = vmatprep.subr.mxu0 0.0
  %928 = vmatpush1.xpose.msra.mxu0 0.0
  %929 = vmatprep.subr.mxu0 0.0
  %930 = vmatpush1.xpose.msra.mxu0 0.0
  %931 = vmatprep.subr.mxu0 0.0
  %932 = vmatpush1.xpose.msra.mxu0 0.0
  %933 = vmatprep.subr.mxu0 0.0
  %934 = vmatpush1.xpose.msra.mxu0 0.0
  %935 = vmatprep.subr.mxu0 0.0
  %936 = vmatpush1.xpose.msra.mxu0 0.0
  %937 = vmatprep.subr.mxu0 0.0
  %938 = vmatpush1.xpose.msra.mxu0 0.0
  %939 = vmatprep.subr.mxu0 0.0
  %940 = vmatpush1.xpose.msra.mxu0 0.0
  %941 = vmatprep.mubr.f32.mxu0 0.0
  %942 = vmatmul.mubr.f32.gmra.mrb[0].mxu0 %v873
  %v943 = vpop.f32.mrb[0].mxu0
  %v944 = vadd.f32 0.0, %v943
  %v945 = vpop.f32.mrb[0].mxu0
  %946 = vdwg.mxu0
  %v947 = vmul.f32 %v944, 0.35355338
  %s948 = scalar_lea.vmem %s3, 24
  %v949 = vld [vmem:[%s948] sm:$0xff]
  %950 = vmatprep.subr.mxu0 0.0
  %951 = vmatpush1.msra.mxu0 %v949
  %952 = vmatprep.subr.mxu0 0.0
  %953 = vmatpush1.msra.mxu0 0.0
  %954 = vmatprep.subr.mxu0 0.0
  %955 = vmatpush1.msra.mxu0 0.0
  %956 = vmatprep.subr.mxu0 0.0
  %957 = vmatpush1.msra.mxu0 0.0
  %958 = vmatprep.subr.mxu0 0.0
  %959 = vmatpush1.msra.mxu0 0.0
  %960 = vmatprep.subr.mxu0 0.0
  %961 = vmatpush1.msra.mxu0 0.0
  %962 = vmatprep.subr.mxu0 0.0
  %963 = vmatpush1.msra.mxu0 0.0
  %964 = vmatprep.subr.mxu0 0.0
  %965 = vmatpush1.msra.mxu0 0.0
  %966 = vmatprep.subr.mxu0 0.0
  %967 = vmatpush1.msra.mxu0 0.0
  %968 = vmatprep.subr.mxu0 0.0
  %969 = vmatpush1.msra.mxu0 0.0
  %970 = vmatprep.subr.mxu0 0.0
  %971 = vmatpush1.msra.mxu0 0.0
  %972 = vmatprep.subr.mxu0 0.0
  %973 = vmatpush1.msra.mxu0 0.0
  %974 = vmatprep.subr.mxu0 0.0
  %975 = vmatpush1.msra.mxu0 0.0
  %976 = vmatprep.subr.mxu0 0.0
  %977 = vmatpush1.msra.mxu0 0.0
  %978 = vmatprep.subr.mxu0 0.0
  %979 = vmatpush1.msra.mxu0 0.0
  %980 = vmatprep.subr.mxu0 0.0
  %981 = vmatpush1.msra.mxu0 0.0
  %982 = vmatprep.subr.mxu0 0.0
  %983 = vmatpush1.msra.mxu0 0.0
  %984 = vmatprep.subr.mxu0 0.0
  %985 = vmatpush1.msra.mxu0 0.0
  %986 = vmatprep.subr.mxu0 0.0
  %987 = vmatpush1.msra.mxu0 0.0
  %988 = vmatprep.subr.mxu0 0.0
  %989 = vmatpush1.msra.mxu0 0.0
  %990 = vmatprep.subr.mxu0 0.0
  %991 = vmatpush1.msra.mxu0 0.0
  %992 = vmatprep.subr.mxu0 0.0
  %993 = vmatpush1.msra.mxu0 0.0
  %994 = vmatprep.subr.mxu0 0.0
  %995 = vmatpush1.msra.mxu0 0.0
  %996 = vmatprep.subr.mxu0 0.0
  %997 = vmatpush1.msra.mxu0 0.0
  %998 = vmatprep.subr.mxu0 0.0
  %999 = vmatpush1.msra.mxu0 0.0
  %1000 = vmatprep.subr.mxu0 0.0
  %1001 = vmatpush1.msra.mxu0 0.0
  %1002 = vmatprep.subr.mxu0 0.0
  %1003 = vmatpush1.msra.mxu0 0.0
  %1004 = vmatprep.subr.mxu0 0.0
  %1005 = vmatpush1.msra.mxu0 0.0
  %1006 = vmatprep.subr.mxu0 0.0
  %1007 = vmatpush1.msra.mxu0 0.0
  %1008 = vmatprep.subr.mxu0 0.0
  %1009 = vmatpush1.msra.mxu0 0.0
  %1010 = vmatprep.subr.mxu0 0.0
  %1011 = vmatpush1.msra.mxu0 0.0
  %1012 = vmatprep.subr.mxu0 0.0
  %1013 = vmatpush1.msra.mxu0 0.0
  %1014 = vmatprep.mubr.f32.mxu0 0.0
  %1015 = vmatmul.mubr.f32.gmra.mrb[0].mxu0 %v873
  %v1016 = vpop.f32.mrb[0].mxu0
  %v1017 = vadd.f32 0.0, %v1016
  %v1018 = vpop.f32.mrb[0].mxu0
  %1019 = vdwg.mxu0
  %s1021 = sor.u32 256, 121
  %1022 = vrot.lane.b32.xlu0 %v1017, %s1021
  %v1023 = vpop.permute.xlu0 %1022
  %v1024 = vadd.f32 %v947, %v1023
  %v1025 = vsel %vm146, %v1024, -inf
  %1026 = vmax.xlane.f32.xlu0 %v1025
  %v1027 = vpop.xlane.xlu0 %1026
  %v1028 = vsub.f32 %v1024, %v1027
  %v1029 = vmul.f32 %v1028, 1.442695
  %v1030 = vpow.pop %v1029
  %v1031 = vsel %vm146, %v1030, 0.0
  %1032 = vadd.xlane.f32.xlu0 %v1031
  %v1033 = vpop.xlane.xlu0 %1032
  %v1034 = vrcp.pop %v1033
  %v1035 = vmul.f32 %v1030, %v1034
  %1036 = vrot.lane.b32.xlu0 %v135, 104
  %v1037 = vpop.permute.xlu0 %1036
  %v1040 = vsel %vm146, %v1035, 0
  %1042 = vmatprep.subr.mxu0 0.0
  %1043 = vmatpush1.msra.mxu0 %v1037
  %1044 = vmatprep.subr.mxu0 0.0
  %1045 = vmatpush1.msra.mxu0 0.0
  %1046 = vmatprep.subr.mxu0 0.0
  %1047 = vmatpush1.msra.mxu0 0.0
  %1048 = vmatprep.subr.mxu0 0.0
  %1049 = vmatpush1.msra.mxu0 0.0
  %1050 = vmatprep.subr.mxu0 0.0
  %1051 = vmatpush1.msra.mxu0 0.0
  %1052 = vmatprep.subr.mxu0 0.0
  %1053 = vmatpush1.msra.mxu0 0.0
  %1054 = vmatprep.subr.mxu0 0.0
  %1055 = vmatpush1.msra.mxu0 0.0
  %1056 = vmatprep.subr.mxu0 0.0
  %1057 = vmatpush1.msra.mxu0 0.0
  %1058 = vmatprep.subr.mxu0 0.0
  %1059 = vmatpush1.msra.mxu0 0.0
  %1060 = vmatprep.subr.mxu0 0.0
  %1061 = vmatpush1.msra.mxu0 0.0
  %1062 = vmatprep.subr.mxu0 0.0
  %1063 = vmatpush1.msra.mxu0 0.0
  %1064 = vmatprep.subr.mxu0 0.0
  %1065 = vmatpush1.msra.mxu0 0.0
  %1066 = vmatprep.subr.mxu0 0.0
  %1067 = vmatpush1.msra.mxu0 0.0
  %1068 = vmatprep.subr.mxu0 0.0
  %1069 = vmatpush1.msra.mxu0 0.0
  %1070 = vmatprep.subr.mxu0 0.0
  %1071 = vmatpush1.msra.mxu0 0.0
  %1072 = vmatprep.subr.mxu0 0.0
  %1073 = vmatpush1.msra.mxu0 0.0
  %1074 = vmatprep.subr.mxu0 0.0
  %1075 = vmatpush1.msra.mxu0 0.0
  %1076 = vmatprep.subr.mxu0 0.0
  %1077 = vmatpush1.msra.mxu0 0.0
  %1078 = vmatprep.subr.mxu0 0.0
  %1079 = vmatpush1.msra.mxu0 0.0
  %1080 = vmatprep.subr.mxu0 0.0
  %1081 = vmatpush1.msra.mxu0 0.0
  %1082 = vmatprep.subr.mxu0 0.0
  %1083 = vmatpush1.msra.mxu0 0.0
  %1084 = vmatprep.subr.mxu0 0.0
  %1085 = vmatpush1.msra.mxu0 0.0
  %1086 = vmatprep.subr.mxu0 0.0
  %1087 = vmatpush1.msra.mxu0 0.0
  %1088 = vmatprep.subr.mxu0 0.0
  %1089 = vmatpush1.msra.mxu0 0.0
  %1090 = vmatprep.subr.mxu0 0.0
  %1091 = vmatpush1.msra.mxu0 0.0
  %1092 = vmatprep.subr.mxu0 0.0
  %1093 = vmatpush1.msra.mxu0 0.0
  %1094 = vmatprep.subr.mxu0 0.0
  %1095 = vmatpush1.msra.mxu0 0.0
  %1096 = vmatprep.subr.mxu0 0.0
  %1097 = vmatpush1.msra.mxu0 0.0
  %1098 = vmatprep.subr.mxu0 0.0
  %1099 = vmatpush1.msra.mxu0 0.0
  %1100 = vmatprep.subr.mxu0 0.0
  %1101 = vmatpush1.msra.mxu0 0.0
  %1102 = vmatprep.subr.mxu0 0.0
  %1103 = vmatpush1.msra.mxu0 0.0
  %1104 = vmatprep.subr.mxu0 0.0
  %1105 = vmatpush1.msra.mxu0 0.0
  %1106 = vmatprep.mubr.f32.mxu0 0.0
  %1107 = vmatmul.mubr.f32.gmra.mrb[0].mxu0 %v1040
  %v1108 = vpop.f32.mrb[0].mxu0
  %v1109 = vadd.f32 0.0, %v1108
  %v1110 = vpop.f32.mrb[0].mxu0
  %1111 = vdwg.mxu0
  %1112 = vrot.lane.b32.xlu0 %v133, 96
  %v1113 = vpop.permute.xlu0 %1112
  %1114 = vrot.lane.b32.xlu0 %v133, 32
  %v1115 = vpop.permute.xlu0 %1114
  %v1116 = vsel %vm146, %v1113, 0
  %v1118 = vsel %vm146, %v1115, 0
  %1120 = vmatprep.subr.mxu0 0.0
  %1121 = vmatpush1.xpose.msra.mxu0 %v1118
  %1122 = vmatprep.subr.mxu0 0.0
  %1123 = vmatpush1.xpose.msra.mxu0 0.0
  %1124 = vmatprep.subr.mxu0 0.0
  %1125 = vmatpush1.xpose.msra.mxu0 0.0
  %1126 = vmatprep.subr.mxu0 0.0
  %1127 = vmatpush1.xpose.msra.mxu0 0.0
  %1128 = vmatprep.subr.mxu0 0.0
  %1129 = vmatpush1.xpose.msra.mxu0 0.0
  %1130 = vmatprep.subr.mxu0 0.0
  %1131 = vmatpush1.xpose.msra.mxu0 0.0
  %1132 = vmatprep.subr.mxu0 0.0
  %1133 = vmatpush1.xpose.msra.mxu0 0.0
  %1134 = vmatprep.subr.mxu0 0.0
  %1135 = vmatpush1.xpose.msra.mxu0 0.0
  %1136 = vmatprep.subr.mxu0 0.0
  %1137 = vmatpush1.xpose.msra.mxu0 0.0
  %1138 = vmatprep.subr.mxu0 0.0
  %1139 = vmatpush1.xpose.msra.mxu0 0.0
  %1140 = vmatprep.subr.mxu0 0.0
  %1141 = vmatpush1.xpose.msra.mxu0 0.0
  %1142 = vmatprep.subr.mxu0 0.0
  %1143 = vmatpush1.xpose.msra.mxu0 0.0
  %1144 = vmatprep.subr.mxu0 0.0
  %1145 = vmatpush1.xpose.msra.mxu0 0.0
  %1146 = vmatprep.subr.mxu0 0.0
  %1147 = vmatpush1.xpose.msra.mxu0 0.0
  %1148 = vmatprep.subr.mxu0 0.0
  %1149 = vmatpush1.xpose.msra.mxu0 0.0
  %1150 = vmatprep.subr.mxu0 0.0
  %1151 = vmatpush1.xpose.msra.mxu0 0.0
  %1152 = vmatprep.subr.mxu0 0.0
  %1153 = vmatpush1.xpose.msra.mxu0 0.0
  %1154 = vmatprep.subr.mxu0 0.0
  %1155 = vmatpush1.xpose.msra.mxu0 0.0
  %1156 = vmatprep.subr.mxu0 0.0
  %1157 = vmatpush1.xpose.msra.mxu0 0.0
  %1158 = vmatprep.subr.mxu0 0.0
  %1159 = vmatpush1.xpose.msra.mxu0 0.0
  %1160 = vmatprep.subr.mxu0 0.0
  %1161 = vmatpush1.xpose.msra.mxu0 0.0
  %1162 = vmatprep.subr.mxu0 0.0
  %1163 = vmatpush1.xpose.msra.mxu0 0.0
  %1164 = vmatprep.subr.mxu0 0.0
  %1165 = vmatpush1.xpose.msra.mxu0 0.0
  %1166 = vmatprep.subr.mxu0 0.0
  %1167 = vmatpush1.xpose.msra.mxu0 0.0
  %1168 = vmatprep.subr.mxu0 0.0
  %1169 = vmatpush1.xpose.msra.mxu0 0.0
  %1170 = vmatprep.subr.mxu0 0.0
  %1171 = vmatpush1.xpose.msra.mxu0 0.0
  %1172 = vmatprep.subr.mxu0 0.0
  %1173 = vmatpush1.xpose.msra.mxu0 0.0
  %1174 = vmatprep.subr.mxu0 0.0
  %1175 = vmatpush1.xpose.msra.mxu0 0.0
  %1176 = vmatprep.subr.mxu0 0.0
  %1177 = vmatpush1.xpose.msra.mxu0 0.0
  %1178 = vmatprep.subr.mxu0 0.0
  %1179 = vmatpush1.xpose.msra.mxu0 0.0
  %1180 = vmatprep.subr.mxu0 0.0
  %1181 = vmatpush1.xpose.msra.mxu0 0.0
  %1182 = vmatprep.subr.mxu0 0.0
  %1183 = vmatpush1.xpose.msra.mxu0 0.0
  %1184 = vmatprep.mubr.f32.mxu0 0.0
  %1185 = vmatmul.mubr.f32.gmra.mrb[0].mxu0 %v1116
  %v1186 = vpop.f32.mrb[0].mxu0
  %v1187 = vadd.f32 0.0, %v1186
  %v1188 = vpop.f32.mrb[0].mxu0
  %1189 = vdwg.mxu0
  %v1190 = vmul.f32 %v1187, 0.35355338
  %s1191 = scalar_lea.vmem %s3, 32
  %v1192 = vld [vmem:[%s1191] sm:$0xff]
  %1193 = vmatprep.subr.mxu0 0.0
  %1194 = vmatpush1.msra.mxu0 %v1192
  %1195 = vmatprep.subr.mxu0 0.0
  %1196 = vmatpush1.msra.mxu0 0.0
  %1197 = vmatprep.subr.mxu0 0.0
  %1198 = vmatpush1.msra.mxu0 0.0
  %1199 = vmatprep.subr.mxu0 0.0
  %1200 = vmatpush1.msra.mxu0 0.0
  %1201 = vmatprep.subr.mxu0 0.0
  %1202 = vmatpush1.msra.mxu0 0.0
  %1203 = vmatprep.subr.mxu0 0.0
  %1204 = vmatpush1.msra.mxu0 0.0
  %1205 = vmatprep.subr.mxu0 0.0
  %1206 = vmatpush1.msra.mxu0 0.0
  %1207 = vmatprep.subr.mxu0 0.0
  %1208 = vmatpush1.msra.mxu0 0.0
  %1209 = vmatprep.subr.mxu0 0.0
  %1210 = vmatpush1.msra.mxu0 0.0
  %1211 = vmatprep.subr.mxu0 0.0
  %1212 = vmatpush1.msra.mxu0 0.0
  %1213 = vmatprep.subr.mxu0 0.0
  %1214 = vmatpush1.msra.mxu0 0.0
  %1215 = vmatprep.subr.mxu0 0.0
  %1216 = vmatpush1.msra.mxu0 0.0
  %1217 = vmatprep.subr.mxu0 0.0
  %1218 = vmatpush1.msra.mxu0 0.0
  %1219 = vmatprep.subr.mxu0 0.0
  %1220 = vmatpush1.msra.mxu0 0.0
  %1221 = vmatprep.subr.mxu0 0.0
  %1222 = vmatpush1.msra.mxu0 0.0
  %1223 = vmatprep.subr.mxu0 0.0
  %1224 = vmatpush1.msra.mxu0 0.0
  %1225 = vmatprep.subr.mxu0 0.0
  %1226 = vmatpush1.msra.mxu0 0.0
  %1227 = vmatprep.subr.mxu0 0.0
  %1228 = vmatpush1.msra.mxu0 0.0
  %1229 = vmatprep.subr.mxu0 0.0
  %1230 = vmatpush1.msra.mxu0 0.0
  %1231 = vmatprep.subr.mxu0 0.0
  %1232 = vmatpush1.msra.mxu0 0.0
  %1233 = vmatprep.subr.mxu0 0.0
  %1234 = vmatpush1.msra.mxu0 0.0
  %1235 = vmatprep.subr.mxu0 0.0
  %1236 = vmatpush1.msra.mxu0 0.0
  %1237 = vmatprep.subr.mxu0 0.0
  %1238 = vmatpush1.msra.mxu0 0.0
  %1239 = vmatprep.subr.mxu0 0.0
  %1240 = vmatpush1.msra.mxu0 0.0
  %1241 = vmatprep.subr.mxu0 0.0
  %1242 = vmatpush1.msra.mxu0 0.0
  %1243 = vmatprep.subr.mxu0 0.0
  %1244 = vmatpush1.msra.mxu0 0.0
  %1245 = vmatprep.subr.mxu0 0.0
  %1246 = vmatpush1.msra.mxu0 0.0
  %1247 = vmatprep.subr.mxu0 0.0
  %1248 = vmatpush1.msra.mxu0 0.0
  %1249 = vmatprep.subr.mxu0 0.0
  %1250 = vmatpush1.msra.mxu0 0.0
  %1251 = vmatprep.subr.mxu0 0.0
  %1252 = vmatpush1.msra.mxu0 0.0
  %1253 = vmatprep.subr.mxu0 0.0
  %1254 = vmatpush1.msra.mxu0 0.0
  %1255 = vmatprep.subr.mxu0 0.0
  %1256 = vmatpush1.msra.mxu0 0.0
  %1257 = vmatprep.mubr.f32.mxu0 0.0
  %1258 = vmatmul.mubr.f32.gmra.mrb[0].mxu0 %v1116
  %v1259 = vpop.f32.mrb[0].mxu0
  %v1260 = vadd.f32 0.0, %v1259
  %v1261 = vpop.f32.mrb[0].mxu0
  %1262 = vdwg.mxu0
  %s1264 = sor.u32 256, 121
  %1265 = vrot.lane.b32.xlu0 %v1260, %s1264
  %v1266 = vpop.permute.xlu0 %1265
  %v1267 = vadd.f32 %v1190, %v1266
  %v1268 = vsel %vm146, %v1267, -inf
  %1269 = vmax.xlane.f32.xlu0 %v1268
  %v1270 = vpop.xlane.xlu0 %1269
  %v1271 = vsub.f32 %v1267, %v1270
  %v1272 = vmul.f32 %v1271, 1.442695
  %v1273 = vpow.pop %v1272
  %v1274 = vsel %vm146, %v1273, 0.0
  %1275 = vadd.xlane.f32.xlu0 %v1274
  %v1276 = vpop.xlane.xlu0 %1275
  %v1277 = vrcp.pop %v1276
  %v1278 = vmul.f32 %v1273, %v1277
  %1279 = vrot.lane.b32.xlu0 %v135, 96
  %v1280 = vpop.permute.xlu0 %1279
  %v1283 = vsel %vm146, %v1278, 0
  %1285 = vmatprep.subr.mxu0 0.0
  %1286 = vmatpush1.msra.mxu0 %v1280
  %1287 = vmatprep.subr.mxu0 0.0
  %1288 = vmatpush1.msra.mxu0 0.0
  %1289 = vmatprep.subr.mxu0 0.0
  %1290 = vmatpush1.msra.mxu0 0.0
  %1291 = vmatprep.subr.mxu0 0.0
  %1292 = vmatpush1.msra.mxu0 0.0
  %1293 = vmatprep.subr.mxu0 0.0
  %1294 = vmatpush1.msra.mxu0 0.0
  %1295 = vmatprep.subr.mxu0 0.0
  %1296 = vmatpush1.msra.mxu0 0.0
  %1297 = vmatprep.subr.mxu0 0.0
  %1298 = vmatpush1.msra.mxu0 0.0
  %1299 = vmatprep.subr.mxu0 0.0
  %1300 = vmatpush1.msra.mxu0 0.0
  %1301 = vmatprep.subr.mxu0 0.0
  %1302 = vmatpush1.msra.mxu0 0.0
  %1303 = vmatprep.subr.mxu0 0.0
  %1304 = vmatpush1.msra.mxu0 0.0
  %1305 = vmatprep.subr.mxu0 0.0
  %1306 = vmatpush1.msra.mxu0 0.0
  %1307 = vmatprep.subr.mxu0 0.0
  %1308 = vmatpush1.msra.mxu0 0.0
  %1309 = vmatprep.subr.mxu0 0.0
  %1310 = vmatpush1.msra.mxu0 0.0
  %1311 = vmatprep.subr.mxu0 0.0
  %1312 = vmatpush1.msra.mxu0 0.0
  %1313 = vmatprep.subr.mxu0 0.0
  %1314 = vmatpush1.msra.mxu0 0.0
  %1315 = vmatprep.subr.mxu0 0.0
  %1316 = vmatpush1.msra.mxu0 0.0
  %1317 = vmatprep.subr.mxu0 0.0
  %1318 = vmatpush1.msra.mxu0 0.0
  %1319 = vmatprep.subr.mxu0 0.0
  %1320 = vmatpush1.msra.mxu0 0.0
  %1321 = vmatprep.subr.mxu0 0.0
  %1322 = vmatpush1.msra.mxu0 0.0
  %1323 = vmatprep.subr.mxu0 0.0
  %1324 = vmatpush1.msra.mxu0 0.0
  %1325 = vmatprep.subr.mxu0 0.0
  %1326 = vmatpush1.msra.mxu0 0.0
  %1327 = vmatprep.subr.mxu0 0.0
  %1328 = vmatpush1.msra.mxu0 0.0
  %1329 = vmatprep.subr.mxu0 0.0
  %1330 = vmatpush1.msra.mxu0 0.0
  %1331 = vmatprep.subr.mxu0 0.0
  %1332 = vmatpush1.msra.mxu0 0.0
  %1333 = vmatprep.subr.mxu0 0.0
  %1334 = vmatpush1.msra.mxu0 0.0
  %1335 = vmatprep.subr.mxu0 0.0
  %1336 = vmatpush1.msra.mxu0 0.0
  %1337 = vmatprep.subr.mxu0 0.0
  %1338 = vmatpush1.msra.mxu0 0.0
  %1339 = vmatprep.subr.mxu0 0.0
  %1340 = vmatpush1.msra.mxu0 0.0
  %1341 = vmatprep.subr.mxu0 0.0
  %1342 = vmatpush1.msra.mxu0 0.0
  %1343 = vmatprep.subr.mxu0 0.0
  %1344 = vmatpush1.msra.mxu0 0.0
  %1345 = vmatprep.subr.mxu0 0.0
  %1346 = vmatpush1.msra.mxu0 0.0
  %1347 = vmatprep.subr.mxu0 0.0
  %1348 = vmatpush1.msra.mxu0 0.0
  %1349 = vmatprep.mubr.f32.mxu0 0.0
  %1350 = vmatmul.mubr.f32.gmra.mrb[0].mxu0 %v1283
  %v1351 = vpop.f32.mrb[0].mxu0
  %v1352 = vadd.f32 0.0, %v1351
  %v1353 = vpop.f32.mrb[0].mxu0
  %1354 = vdwg.mxu0
  %1355 = vrot.lane.b32.xlu0 %v133, 88
  %v1356 = vpop.permute.xlu0 %1355
  %1357 = vrot.lane.b32.xlu0 %v133, 24
  %v1358 = vpop.permute.xlu0 %1357
  %v1359 = vsel %vm146, %v1356, 0
  %v1361 = vsel %vm146, %v1358, 0
  %1363 = vmatprep.subr.mxu0 0.0
  %1364 = vmatpush1.xpose.msra.mxu0 %v1361
  %1365 = vmatprep.subr.mxu0 0.0
  %1366 = vmatpush1.xpose.msra.mxu0 0.0
  %1367 = vmatprep.subr.mxu0 0.0
  %1368 = vmatpush1.xpose.msra.mxu0 0.0
  %1369 = vmatprep.subr.mxu0 0.0
  %1370 = vmatpush1.xpose.msra.mxu0 0.0
  %1371 = vmatprep.subr.mxu0 0.0
  %1372 = vmatpush1.xpose.msra.mxu0 0.0
  %1373 = vmatprep.subr.mxu0 0.0
  %1374 = vmatpush1.xpose.msra.mxu0 0.0
  %1375 = vmatprep.subr.mxu0 0.0
  %1376 = vmatpush1.xpose.msra.mxu0 0.0
  %1377 = vmatprep.subr.mxu0 0.0
  %1378 = vmatpush1.xpose.msra.mxu0 0.0
  %1379 = vmatprep.subr.mxu0 0.0
  %1380 = vmatpush1.xpose.msra.mxu0 0.0
  %1381 = vmatprep.subr.mxu0 0.0
  %1382 = vmatpush1.xpose.msra.mxu0 0.0
  %1383 = vmatprep.subr.mxu0 0.0
  %1384 = vmatpush1.xpose.msra.mxu0 0.0
  %1385 = vmatprep.subr.mxu0 0.0
  %1386 = vmatpush1.xpose.msra.mxu0 0.0
  %1387 = vmatprep.subr.mxu0 0.0
  %1388 = vmatpush1.xpose.msra.mxu0 0.0
  %1389 = vmatprep.subr.mxu0 0.0
  %1390 = vmatpush1.xpose.msra.mxu0 0.0
  %1391 = vmatprep.subr.mxu0 0.0
  %1392 = vmatpush1.xpose.msra.mxu0 0.0
  %1393 = vmatprep.subr.mxu0 0.0
  %1394 = vmatpush1.xpose.msra.mxu0 0.0
  %1395 = vmatprep.subr.mxu0 0.0
  %1396 = vmatpush1.xpose.msra.mxu0 0.0
  %1397 = vmatprep.subr.mxu0 0.0
  %1398 = vmatpush1.xpose.msra.mxu0 0.0
  %1399 = vmatprep.subr.mxu0 0.0
  %1400 = vmatpush1.xpose.msra.mxu0 0.0
  %1401 = vmatprep.subr.mxu0 0.0
  %1402 = vmatpush1.xpose.msra.mxu0 0.0
  %1403 = vmatprep.subr.mxu0 0.0
  %1404 = vmatpush1.xpose.msra.mxu0 0.0
  %1405 = vmatprep.subr.mxu0 0.0
  %1406 = vmatpush1.xpose.msra.mxu0 0.0
  %1407 = vmatprep.subr.mxu0 0.0
  %1408 = vmatpush1.xpose.msra.mxu0 0.0
  %1409 = vmatprep.subr.mxu0 0.0
  %1410 = vmatpush1.xpose.msra.mxu0 0.0
  %1411 = vmatprep.subr.mxu0 0.0
  %1412 = vmatpush1.xpose.msra.mxu0 0.0
  %1413 = vmatprep.subr.mxu0 0.0
  %1414 = vmatpush1.xpose.msra.mxu0 0.0
  %1415 = vmatprep.subr.mxu0 0.0
  %1416 = vmatpush1.xpose.msra.mxu0 0.0
  %1417 = vmatprep.subr.mxu0 0.0
  %1418 = vmatpush1.xpose.msra.mxu0 0.0
  %1419 = vmatprep.subr.mxu0 0.0
  %1420 = vmatpush1.xpose.msra.mxu0 0.0
  %1421 = vmatprep.subr.mxu0 0.0
  %1422 = vmatpush1.xpose.msra.mxu0 0.0
  %1423 = vmatprep.subr.mxu0 0.0
  %1424 = vmatpush1.xpose.msra.mxu0 0.0
  %1425 = vmatprep.subr.mxu0 0.0
  %1426 = vmatpush1.xpose.msra.mxu0 0.0
  %1427 = vmatprep.mubr.f32.mxu0 0.0
  %1428 = vmatmul.mubr.f32.gmra.mrb[0].mxu0 %v1359
  %v1429 = vpop.f32.mrb[0].mxu0
  %v1430 = vadd.f32 0.0, %v1429
  %v1431 = vpop.f32.mrb[0].mxu0
  %1432 = vdwg.mxu0
  %v1433 = vmul.f32 %v1430, 0.35355338
  %s1434 = scalar_lea.vmem %s3, 40
  %v1435 = vld [vmem:[%s1434] sm:$0xff]
  %1436 = vmatprep.subr.mxu0 0.0
  %1437 = vmatpush1.msra.mxu0 %v1435
  %1438 = vmatprep.subr.mxu0 0.0
  %1439 = vmatpush1.msra.mxu0 0.0
  %1440 = vmatprep.subr.mxu0 0.0
  %1441 = vmatpush1.msra.mxu0 0.0
  %1442 = vmatprep.subr.mxu0 0.0
  %1443 = vmatpush1.msra.mxu0 0.0
  %1444 = vmatprep.subr.mxu0 0.0
  %1445 = vmatpush1.msra.mxu0 0.0
  %1446 = vmatprep.subr.mxu0 0.0
  %1447 = vmatpush1.msra.mxu0 0.0
  %1448 = vmatprep.subr.mxu0 0.0
  %1449 = vmatpush1.msra.mxu0 0.0
  %1450 = vmatprep.subr.mxu0 0.0
  %1451 = vmatpush1.msra.mxu0 0.0
  %1452 = vmatprep.subr.mxu0 0.0
  %1453 = vmatpush1.msra.mxu0 0.0
  %1454 = vmatprep.subr.mxu0 0.0
  %1455 = vmatpush1.msra.mxu0 0.0
  %1456 = vmatprep.subr.mxu0 0.0
  %1457 = vmatpush1.msra.mxu0 0.0
  %1458 = vmatprep.subr.mxu0 0.0
  %1459 = vmatpush1.msra.mxu0 0.0
  %1460 = vmatprep.subr.mxu0 0.0
  %1461 = vmatpush1.msra.mxu0 0.0
  %1462 = vmatprep.subr.mxu0 0.0
  %1463 = vmatpush1.msra.mxu0 0.0
  %1464 = vmatprep.subr.mxu0 0.0
  %1465 = vmatpush1.msra.mxu0 0.0
  %1466 = vmatprep.subr.mxu0 0.0
  %1467 = vmatpush1.msra.mxu0 0.0
  %1468 = vmatprep.subr.mxu0 0.0
  %1469 = vmatpush1.msra.mxu0 0.0
  %1470 = vmatprep.subr.mxu0 0.0
  %1471 = vmatpush1.msra.mxu0 0.0
  %1472 = vmatprep.subr.mxu0 0.0
  %1473 = vmatpush1.msra.mxu0 0.0
  %1474 = vmatprep.subr.mxu0 0.0
  %1475 = vmatpush1.msra.mxu0 0.0
  %1476 = vmatprep.subr.mxu0 0.0
  %1477 = vmatpush1.msra.mxu0 0.0
  %1478 = vmatprep.subr.mxu0 0.0
  %1479 = vmatpush1.msra.mxu0 0.0
  %1480 = vmatprep.subr.mxu0 0.0
  %1481 = vmatpush1.msra.mxu0 0.0
  %1482 = vmatprep.subr.mxu0 0.0
  %1483 = vmatpush1.msra.mxu0 0.0
  %1484 = vmatprep.subr.mxu0 0.0
  %1485 = vmatpush1.msra.mxu0 0.0
  %1486 = vmatprep.subr.mxu0 0.0
  %1487 = vmatpush1.msra.mxu0 0.0
  %1488 = vmatprep.subr.mxu0 0.0
  %1489 = vmatpush1.msra.mxu0 0.0
  %1490 = vmatprep.subr.mxu0 0.0
  %1491 = vmatpush1.msra.mxu0 0.0
  %1492 = vmatprep.subr.mxu0 0.0
  %1493 = vmatpush1.msra.mxu0 0.0
  %1494 = vmatprep.subr.mxu0 0.0
  %1495 = vmatpush1.msra.mxu0 0.0
  %1496 = vmatprep.subr.mxu0 0.0
  %1497 = vmatpush1.msra.mxu0 0.0
  %1498 = vmatprep.subr.mxu0 0.0
  %1499 = vmatpush1.msra.mxu0 0.0
  %1500 = vmatprep.mubr.f32.mxu0 0.0
  %1501 = vmatmul.mubr.f32.gmra.mrb[0].mxu0 %v1359
  %v1502 = vpop.f32.mrb[0].mxu0
  %v1503 = vadd.f32 0.0, %v1502
  %v1504 = vpop.f32.mrb[0].mxu0
  %1505 = vdwg.mxu0
  %s1507 = sor.u32 256, 121
  %1508 = vrot.lane.b32.xlu0 %v1503, %s1507
  %v1509 = vpop.permute.xlu0 %1508
  %v1510 = vadd.f32 %v1433, %v1509
  %v1511 = vsel %vm146, %v1510, -inf
  %1512 = vmax.xlane.f32.xlu0 %v1511
  %v1513 = vpop.xlane.xlu0 %1512
  %v1514 = vsub.f32 %v1510, %v1513
  %v1515 = vmul.f32 %v1514, 1.442695
  %v1516 = vpow.pop %v1515
  %v1517 = vsel %vm146, %v1516, 0.0
  %1518 = vadd.xlane.f32.xlu0 %v1517
  %v1519 = vpop.xlane.xlu0 %1518
  %v1520 = vrcp.pop %v1519
  %v1521 = vmul.f32 %v1516, %v1520
  %1522 = vrot.lane.b32.xlu0 %v135, 88
  %v1523 = vpop.permute.xlu0 %1522
  %v1526 = vsel %vm146, %v1521, 0
  %1528 = vmatprep.subr.mxu0 0.0
  %1529 = vmatpush1.msra.mxu0 %v1523
  %1530 = vmatprep.subr.mxu0 0.0
  %1531 = vmatpush1.msra.mxu0 0.0
  %1532 = vmatprep.subr.mxu0 0.0
  %1533 = vmatpush1.msra.mxu0 0.0
  %1534 = vmatprep.subr.mxu0 0.0
  %1535 = vmatpush1.msra.mxu0 0.0
  %1536 = vmatprep.subr.mxu0 0.0
  %1537 = vmatpush1.msra.mxu0 0.0
  %1538 = vmatprep.subr.mxu0 0.0
  %1539 = vmatpush1.msra.mxu0 0.0
  %1540 = vmatprep.subr.mxu0 0.0
  %1541 = vmatpush1.msra.mxu0 0.0
  %1542 = vmatprep.subr.mxu0 0.0
  %1543 = vmatpush1.msra.mxu0 0.0
  %1544 = vmatprep.subr.mxu0 0.0
  %1545 = vmatpush1.msra.mxu0 0.0
  %1546 = vmatprep.subr.mxu0 0.0
  %1547 = vmatpush1.msra.mxu0 0.0
  %1548 = vmatprep.subr.mxu0 0.0
  %1549 = vmatpush1.msra.mxu0 0.0
  %1550 = vmatprep.subr.mxu0 0.0
  %1551 = vmatpush1.msra.mxu0 0.0
  %1552 = vmatprep.subr.mxu0 0.0
  %1553 = vmatpush1.msra.mxu0 0.0
  %1554 = vmatprep.subr.mxu0 0.0
  %1555 = vmatpush1.msra.mxu0 0.0
  %1556 = vmatprep.subr.mxu0 0.0
  %1557 = vmatpush1.msra.mxu0 0.0
  %1558 = vmatprep.subr.mxu0 0.0
  %1559 = vmatpush1.msra.mxu0 0.0
  %1560 = vmatprep.subr.mxu0 0.0
  %1561 = vmatpush1.msra.mxu0 0.0
  %1562 = vmatprep.subr.mxu0 0.0
  %1563 = vmatpush1.msra.mxu0 0.0
  %1564 = vmatprep.subr.mxu0 0.0
  %1565 = vmatpush1.msra.mxu0 0.0
  %1566 = vmatprep.subr.mxu0 0.0
  %1567 = vmatpush1.msra.mxu0 0.0
  %1568 = vmatprep.subr.mxu0 0.0
  %1569 = vmatpush1.msra.mxu0 0.0
  %1570 = vmatprep.subr.mxu0 0.0
  %1571 = vmatpush1.msra.mxu0 0.0
  %1572 = vmatprep.subr.mxu0 0.0
  %1573 = vmatpush1.msra.mxu0 0.0
  %1574 = vmatprep.subr.mxu0 0.0
  %1575 = vmatpush1.msra.mxu0 0.0
  %1576 = vmatprep.subr.mxu0 0.0
  %1577 = vmatpush1.msra.mxu0 0.0
  %1578 = vmatprep.subr.mxu0 0.0
  %1579 = vmatpush1.msra.mxu0 0.0
  %1580 = vmatprep.subr.mxu0 0.0
  %1581 = vmatpush1.msra.mxu0 0.0
  %1582 = vmatprep.subr.mxu0 0.0
  %1583 = vmatpush1.msra.mxu0 0.0
  %1584 = vmatprep.subr.mxu0 0.0
  %1585 = vmatpush1.msra.mxu0 0.0
  %1586 = vmatprep.subr.mxu0 0.0
  %1587 = vmatpush1.msra.mxu0 0.0
  %1588 = vmatprep.subr.mxu0 0.0
  %1589 = vmatpush1.msra.mxu0 0.0
  %1590 = vmatprep.subr.mxu0 0.0
  %1591 = vmatpush1.msra.mxu0 0.0
  %1592 = vmatprep.mubr.f32.mxu0 0.0
  %1593 = vmatmul.mubr.f32.gmra.mrb[0].mxu0 %v1526
  %v1594 = vpop.f32.mrb[0].mxu0
  %v1595 = vadd.f32 0.0, %v1594
  %v1596 = vpop.f32.mrb[0].mxu0
  %1597 = vdwg.mxu0
  %1598 = vrot.lane.b32.xlu0 %v133, 80
  %v1599 = vpop.permute.xlu0 %1598
  %1600 = vrot.lane.b32.xlu0 %v133, 16
  %v1601 = vpop.permute.xlu0 %1600
  %v1602 = vsel %vm146, %v1599, 0
  %v1604 = vsel %vm146, %v1601, 0
  %1606 = vmatprep.subr.mxu0 0.0
  %1607 = vmatpush1.xpose.msra.mxu0 %v1604
  %1608 = vmatprep.subr.mxu0 0.0
  %1609 = vmatpush1.xpose.msra.mxu0 0.0
  %1610 = vmatprep.subr.mxu0 0.0
  %1611 = vmatpush1.xpose.msra.mxu0 0.0
  %1612 = vmatprep.subr.mxu0 0.0
  %1613 = vmatpush1.xpose.msra.mxu0 0.0
  %1614 = vmatprep.subr.mxu0 0.0
  %1615 = vmatpush1.xpose.msra.mxu0 0.0
  %1616 = vmatprep.subr.mxu0 0.0
  %1617 = vmatpush1.xpose.msra.mxu0 0.0
  %1618 = vmatprep.subr.mxu0 0.0
  %1619 = vmatpush1.xpose.msra.mxu0 0.0
  %1620 = vmatprep.subr.mxu0 0.0
  %1621 = vmatpush1.xpose.msra.mxu0 0.0
  %1622 = vmatprep.subr.mxu0 0.0
  %1623 = vmatpush1.xpose.msra.mxu0 0.0
  %1624 = vmatprep.subr.mxu0 0.0
  %1625 = vmatpush1.xpose.msra.mxu0 0.0
  %1626 = vmatprep.subr.mxu0 0.0
  %1627 = vmatpush1.xpose.msra.mxu0 0.0
  %1628 = vmatprep.subr.mxu0 0.0
  %1629 = vmatpush1.xpose.msra.mxu0 0.0
  %1630 = vmatprep.subr.mxu0 0.0
  %1631 = vmatpush1.xpose.msra.mxu0 0.0
  %1632 = vmatprep.subr.mxu0 0.0
  %1633 = vmatpush1.xpose.msra.mxu0 0.0
  %1634 = vmatprep.subr.mxu0 0.0
  %1635 = vmatpush1.xpose.msra.mxu0 0.0
  %1636 = vmatprep.subr.mxu0 0.0
  %1637 = vmatpush1.xpose.msra.mxu0 0.0
  %1638 = vmatprep.subr.mxu0 0.0
  %1639 = vmatpush1.xpose.msra.mxu0 0.0
  %1640 = vmatprep.subr.mxu0 0.0
  %1641 = vmatpush1.xpose.msra.mxu0 0.0
  %1642 = vmatprep.subr.mxu0 0.0
  %1643 = vmatpush1.xpose.msra.mxu0 0.0
  %1644 = vmatprep.subr.mxu0 0.0
  %1645 = vmatpush1.xpose.msra.mxu0 0.0
  %1646 = vmatprep.subr.mxu0 0.0
  %1647 = vmatpush1.xpose.msra.mxu0 0.0
  %1648 = vmatprep.subr.mxu0 0.0
  %1649 = vmatpush1.xpose.msra.mxu0 0.0
  %1650 = vmatprep.subr.mxu0 0.0
  %1651 = vmatpush1.xpose.msra.mxu0 0.0
  %1652 = vmatprep.subr.mxu0 0.0
  %1653 = vmatpush1.xpose.msra.mxu0 0.0
  %1654 = vmatprep.subr.mxu0 0.0
  %1655 = vmatpush1.xpose.msra.mxu0 0.0
  %1656 = vmatprep.subr.mxu0 0.0
  %1657 = vmatpush1.xpose.msra.mxu0 0.0
  %1658 = vmatprep.subr.mxu0 0.0
  %1659 = vmatpush1.xpose.msra.mxu0 0.0
  %1660 = vmatprep.subr.mxu0 0.0
  %1661 = vmatpush1.xpose.msra.mxu0 0.0
  %1662 = vmatprep.subr.mxu0 0.0
  %1663 = vmatpush1.xpose.msra.mxu0 0.0
  %1664 = vmatprep.subr.mxu0 0.0
  %1665 = vmatpush1.xpose.msra.mxu0 0.0
  %1666 = vmatprep.subr.mxu0 0.0
  %1667 = vmatpush1.xpose.msra.mxu0 0.0
  %1668 = vmatprep.subr.mxu0 0.0
  %1669 = vmatpush1.xpose.msra.mxu0 0.0
  %1670 = vmatprep.mubr.f32.mxu0 0.0
  %1671 = vmatmul.mubr.f32.gmra.mrb[0].mxu0 %v1602
  %v1672 = vpop.f32.mrb[0].mxu0
  %v1673 = vadd.f32 0.0, %v1672
  %v1674 = vpop.f32.mrb[0].mxu0
  %1675 = vdwg.mxu0
  %v1676 = vmul.f32 %v1673, 0.35355338
  %s1677 = scalar_lea.vmem %s3, 48
  %v1678 = vld [vmem:[%s1677] sm:$0xff]
  %1679 = vmatprep.subr.mxu0 0.0
  %1680 = vmatpush1.msra.mxu0 %v1678
  %1681 = vmatprep.subr.mxu0 0.0
  %1682 = vmatpush1.msra.mxu0 0.0
  %1683 = vmatprep.subr.mxu0 0.0
  %1684 = vmatpush1.msra.mxu0 0.0
  %1685 = vmatprep.subr.mxu0 0.0
  %1686 = vmatpush1.msra.mxu0 0.0
  %1687 = vmatprep.subr.mxu0 0.0
  %1688 = vmatpush1.msra.mxu0 0.0
  %1689 = vmatprep.subr.mxu0 0.0
  %1690 = vmatpush1.msra.mxu0 0.0
  %1691 = vmatprep.subr.mxu0 0.0
  %1692 = vmatpush1.msra.mxu0 0.0
  %1693 = vmatprep.subr.mxu0 0.0
  %1694 = vmatpush1.msra.mxu0 0.0
  %1695 = vmatprep.subr.mxu0 0.0
  %1696 = vmatpush1.msra.mxu0 0.0
  %1697 = vmatprep.subr.mxu0 0.0
  %1698 = vmatpush1.msra.mxu0 0.0
  %1699 = vmatprep.subr.mxu0 0.0
  %1700 = vmatpush1.msra.mxu0 0.0
  %1701 = vmatprep.subr.mxu0 0.0
  %1702 = vmatpush1.msra.mxu0 0.0
  %1703 = vmatprep.subr.mxu0 0.0
  %1704 = vmatpush1.msra.mxu0 0.0
  %1705 = vmatprep.subr.mxu0 0.0
  %1706 = vmatpush1.msra.mxu0 0.0
  %1707 = vmatprep.subr.mxu0 0.0
  %1708 = vmatpush1.msra.mxu0 0.0
  %1709 = vmatprep.subr.mxu0 0.0
  %1710 = vmatpush1.msra.mxu0 0.0
  %1711 = vmatprep.subr.mxu0 0.0
  %1712 = vmatpush1.msra.mxu0 0.0
  %1713 = vmatprep.subr.mxu0 0.0
  %1714 = vmatpush1.msra.mxu0 0.0
  %1715 = vmatprep.subr.mxu0 0.0
  %1716 = vmatpush1.msra.mxu0 0.0
  %1717 = vmatprep.subr.mxu0 0.0
  %1718 = vmatpush1.msra.mxu0 0.0
  %1719 = vmatprep.subr.mxu0 0.0
  %1720 = vmatpush1.msra.mxu0 0.0
  %1721 = vmatprep.subr.mxu0 0.0
  %1722 = vmatpush1.msra.mxu0 0.0
  %1723 = vmatprep.subr.mxu0 0.0
  %1724 = vmatpush1.msra.mxu0 0.0
  %1725 = vmatprep.subr.mxu0 0.0
  %1726 = vmatpush1.msra.mxu0 0.0
  %1727 = vmatprep.subr.mxu0 0.0
  %1728 = vmatpush1.msra.mxu0 0.0
  %1729 = vmatprep.subr.mxu0 0.0
  %1730 = vmatpush1.msra.mxu0 0.0
  %1731 = vmatprep.subr.mxu0 0.0
  %1732 = vmatpush1.msra.mxu0 0.0
  %1733 = vmatprep.subr.mxu0 0.0
  %1734 = vmatpush1.msra.mxu0 0.0
  %1735 = vmatprep.subr.mxu0 0.0
  %1736 = vmatpush1.msra.mxu0 0.0
  %1737 = vmatprep.subr.mxu0 0.0
  %1738 = vmatpush1.msra.mxu0 0.0
  %1739 = vmatprep.subr.mxu0 0.0
  %1740 = vmatpush1.msra.mxu0 0.0
  %1741 = vmatprep.subr.mxu0 0.0
  %1742 = vmatpush1.msra.mxu0 0.0
  %1743 = vmatprep.mubr.f32.mxu0 0.0
  %1744 = vmatmul.mubr.f32.gmra.mrb[0].mxu0 %v1602
  %v1745 = vpop.f32.mrb[0].mxu0
  %v1746 = vadd.f32 0.0, %v1745
  %v1747 = vpop.f32.mrb[0].mxu0
  %1748 = vdwg.mxu0
  %s1750 = sor.u32 256, 121
  %1751 = vrot.lane.b32.xlu0 %v1746, %s1750
  %v1752 = vpop.permute.xlu0 %1751
  %v1753 = vadd.f32 %v1676, %v1752
  %v1754 = vsel %vm146, %v1753, -inf
  %1755 = vmax.xlane.f32.xlu0 %v1754
  %v1756 = vpop.xlane.xlu0 %1755
  %v1757 = vsub.f32 %v1753, %v1756
  %v1758 = vmul.f32 %v1757, 1.442695
  %v1759 = vpow.pop %v1758
  %v1760 = vsel %vm146, %v1759, 0.0
  %1761 = vadd.xlane.f32.xlu0 %v1760
  %v1762 = vpop.xlane.xlu0 %1761
  %v1763 = vrcp.pop %v1762
  %v1764 = vmul.f32 %v1759, %v1763
  %1765 = vrot.lane.b32.xlu0 %v135, 80
  %v1766 = vpop.permute.xlu0 %1765
  %v1769 = vsel %vm146, %v1764, 0
  %1771 = vmatprep.subr.mxu0 0.0
  %1772 = vmatpush1.msra.mxu0 %v1766
  %1773 = vmatprep.subr.mxu0 0.0
  %1774 = vmatpush1.msra.mxu0 0.0
  %1775 = vmatprep.subr.mxu0 0.0
  %1776 = vmatpush1.msra.mxu0 0.0
  %1777 = vmatprep.subr.mxu0 0.0
  %1778 = vmatpush1.msra.mxu0 0.0
  %1779 = vmatprep.subr.mxu0 0.0
  %1780 = vmatpush1.msra.mxu0 0.0
  %1781 = vmatprep.subr.mxu0 0.0
  %1782 = vmatpush1.msra.mxu0 0.0
  %1783 = vmatprep.subr.mxu0 0.0
  %1784 = vmatpush1.msra.mxu0 0.0
  %1785 = vmatprep.subr.mxu0 0.0
  %1786 = vmatpush1.msra.mxu0 0.0
  %1787 = vmatprep.subr.mxu0 0.0
  %1788 = vmatpush1.msra.mxu0 0.0
  %1789 = vmatprep.subr.mxu0 0.0
  %1790 = vmatpush1.msra.mxu0 0.0
  %1791 = vmatprep.subr.mxu0 0.0
  %1792 = vmatpush1.msra.mxu0 0.0
  %1793 = vmatprep.subr.mxu0 0.0
  %1794 = vmatpush1.msra.mxu0 0.0
  %1795 = vmatprep.subr.mxu0 0.0
  %1796 = vmatpush1.msra.mxu0 0.0
  %1797 = vmatprep.subr.mxu0 0.0
  %1798 = vmatpush1.msra.mxu0 0.0
  %1799 = vmatprep.subr.mxu0 0.0
  %1800 = vmatpush1.msra.mxu0 0.0
  %1801 = vmatprep.subr.mxu0 0.0
  %1802 = vmatpush1.msra.mxu0 0.0
  %1803 = vmatprep.subr.mxu0 0.0
  %1804 = vmatpush1.msra.mxu0 0.0
  %1805 = vmatprep.subr.mxu0 0.0
  %1806 = vmatpush1.msra.mxu0 0.0
  %1807 = vmatprep.subr.mxu0 0.0
  %1808 = vmatpush1.msra.mxu0 0.0
  %1809 = vmatprep.subr.mxu0 0.0
  %1810 = vmatpush1.msra.mxu0 0.0
  %1811 = vmatprep.subr.mxu0 0.0
  %1812 = vmatpush1.msra.mxu0 0.0
  %1813 = vmatprep.subr.mxu0 0.0
  %1814 = vmatpush1.msra.mxu0 0.0
  %1815 = vmatprep.subr.mxu0 0.0
  %1816 = vmatpush1.msra.mxu0 0.0
  %1817 = vmatprep.subr.mxu0 0.0
  %1818 = vmatpush1.msra.mxu0 0.0
  %1819 = vmatprep.subr.mxu0 0.0
  %1820 = vmatpush1.msra.mxu0 0.0
  %1821 = vmatprep.subr.mxu0 0.0
  %1822 = vmatpush1.msra.mxu0 0.0
  %1823 = vmatprep.subr.mxu0 0.0
  %1824 = vmatpush1.msra.mxu0 0.0
  %1825 = vmatprep.subr.mxu0 0.0
  %1826 = vmatpush1.msra.mxu0 0.0
  %1827 = vmatprep.subr.mxu0 0.0
  %1828 = vmatpush1.msra.mxu0 0.0
  %1829 = vmatprep.subr.mxu0 0.0
  %1830 = vmatpush1.msra.mxu0 0.0
  %1831 = vmatprep.subr.mxu0 0.0
  %1832 = vmatpush1.msra.mxu0 0.0
  %1833 = vmatprep.subr.mxu0 0.0
  %1834 = vmatpush1.msra.mxu0 0.0
  %1835 = vmatprep.mubr.f32.mxu0 0.0
  %1836 = vmatmul.mubr.f32.gmra.mrb[0].mxu0 %v1769
  %v1837 = vpop.f32.mrb[0].mxu0
  %v1838 = vadd.f32 0.0, %v1837
  %v1839 = vpop.f32.mrb[0].mxu0
  %1840 = vdwg.mxu0
  %1841 = vrot.lane.b32.xlu0 %v133, 72
  %v1842 = vpop.permute.xlu0 %1841
  %1843 = vrot.lane.b32.xlu0 %v133, 8
  %v1844 = vpop.permute.xlu0 %1843
  %v1845 = vsel %vm146, %v1842, 0
  %v1847 = vsel %vm146, %v1844, 0
  %1849 = vmatprep.subr.mxu0 0.0
  %1850 = vmatpush1.xpose.msra.mxu0 %v1847
  %1851 = vmatprep.subr.mxu0 0.0
  %1852 = vmatpush1.xpose.msra.mxu0 0.0
  %1853 = vmatprep.subr.mxu0 0.0
  %1854 = vmatpush1.xpose.msra.mxu0 0.0
  %1855 = vmatprep.subr.mxu0 0.0
  %1856 = vmatpush1.xpose.msra.mxu0 0.0
  %1857 = vmatprep.subr.mxu0 0.0
  %1858 = vmatpush1.xpose.msra.mxu0 0.0
  %1859 = vmatprep.subr.mxu0 0.0
  %1860 = vmatpush1.xpose.msra.mxu0 0.0
  %1861 = vmatprep.subr.mxu0 0.0
  %1862 = vmatpush1.xpose.msra.mxu0 0.0
  %1863 = vmatprep.subr.mxu0 0.0
  %1864 = vmatpush1.xpose.msra.mxu0 0.0
  %1865 = vmatprep.subr.mxu0 0.0
  %1866 = vmatpush1.xpose.msra.mxu0 0.0
  %1867 = vmatprep.subr.mxu0 0.0
  %1868 = vmatpush1.xpose.msra.mxu0 0.0
  %1869 = vmatprep.subr.mxu0 0.0
  %1870 = vmatpush1.xpose.msra.mxu0 0.0
  %1871 = vmatprep.subr.mxu0 0.0
  %1872 = vmatpush1.xpose.msra.mxu0 0.0
  %1873 = vmatprep.subr.mxu0 0.0
  %1874 = vmatpush1.xpose.msra.mxu0 0.0
  %1875 = vmatprep.subr.mxu0 0.0
  %1876 = vmatpush1.xpose.msra.mxu0 0.0
  %1877 = vmatprep.subr.mxu0 0.0
  %1878 = vmatpush1.xpose.msra.mxu0 0.0
  %1879 = vmatprep.subr.mxu0 0.0
  %1880 = vmatpush1.xpose.msra.mxu0 0.0
  %1881 = vmatprep.subr.mxu0 0.0
  %1882 = vmatpush1.xpose.msra.mxu0 0.0
  %1883 = vmatprep.subr.mxu0 0.0
  %1884 = vmatpush1.xpose.msra.mxu0 0.0
  %1885 = vmatprep.subr.mxu0 0.0
  %1886 = vmatpush1.xpose.msra.mxu0 0.0
  %1887 = vmatprep.subr.mxu0 0.0
  %1888 = vmatpush1.xpose.msra.mxu0 0.0
  %1889 = vmatprep.subr.mxu0 0.0
  %1890 = vmatpush1.xpose.msra.mxu0 0.0
  %1891 = vmatprep.subr.mxu0 0.0
  %1892 = vmatpush1.xpose.msra.mxu0 0.0
  %1893 = vmatprep.subr.mxu0 0.0
  %1894 = vmatpush1.xpose.msra.mxu0 0.0
  %1895 = vmatprep.subr.mxu0 0.0
  %1896 = vmatpush1.xpose.msra.mxu0 0.0
  %1897 = vmatprep.subr.mxu0 0.0
  %1898 = vmatpush1.xpose.msra.mxu0 0.0
  %1899 = vmatprep.subr.mxu0 0.0
  %1900 = vmatpush1.xpose.msra.mxu0 0.0
  %1901 = vmatprep.subr.mxu0 0.0
  %1902 = vmatpush1.xpose.msra.mxu0 0.0
  %1903 = vmatprep.subr.mxu0 0.0
  %1904 = vmatpush1.xpose.msra.mxu0 0.0
  %1905 = vmatprep.subr.mxu0 0.0
  %1906 = vmatpush1.xpose.msra.mxu0 0.0
  %1907 = vmatprep.subr.mxu0 0.0
  %1908 = vmatpush1.xpose.msra.mxu0 0.0
  %1909 = vmatprep.subr.mxu0 0.0
  %1910 = vmatpush1.xpose.msra.mxu0 0.0
  %1911 = vmatprep.subr.mxu0 0.0
  %1912 = vmatpush1.xpose.msra.mxu0 0.0
  %1913 = vmatprep.mubr.f32.mxu0 0.0
  %1914 = vmatmul.mubr.f32.gmra.mrb[0].mxu0 %v1845
  %v1915 = vpop.f32.mrb[0].mxu0
  %v1916 = vadd.f32 0.0, %v1915
  %v1917 = vpop.f32.mrb[0].mxu0
  %1918 = vdwg.mxu0
  %v1919 = vmul.f32 %v1916, 0.35355338
  %s1920 = scalar_lea.vmem %s3, 56
  %v1921 = vld [vmem:[%s1920] sm:$0xff]
  %1922 = vmatprep.subr.mxu0 0.0
  %1923 = vmatpush1.msra.mxu0 %v1921
  %1924 = vmatprep.subr.mxu0 0.0
  %1925 = vmatpush1.msra.mxu0 0.0
  %1926 = vmatprep.subr.mxu0 0.0
  %1927 = vmatpush1.msra.mxu0 0.0
  %1928 = vmatprep.subr.mxu0 0.0
  %1929 = vmatpush1.msra.mxu0 0.0
  %1930 = vmatprep.subr.mxu0 0.0
  %1931 = vmatpush1.msra.mxu0 0.0
  %1932 = vmatprep.subr.mxu0 0.0
  %1933 = vmatpush1.msra.mxu0 0.0
  %1934 = vmatprep.subr.mxu0 0.0
  %1935 = vmatpush1.msra.mxu0 0.0
  %1936 = vmatprep.subr.mxu0 0.0
  %1937 = vmatpush1.msra.mxu0 0.0
  %1938 = vmatprep.subr.mxu0 0.0
  %1939 = vmatpush1.msra.mxu0 0.0
  %1940 = vmatprep.subr.mxu0 0.0
  %1941 = vmatpush1.msra.mxu0 0.0
  %1942 = vmatprep.subr.mxu0 0.0
  %1943 = vmatpush1.msra.mxu0 0.0
  %1944 = vmatprep.subr.mxu0 0.0
  %1945 = vmatpush1.msra.mxu0 0.0
  %1946 = vmatprep.subr.mxu0 0.0
  %1947 = vmatpush1.msra.mxu0 0.0
  %1948 = vmatprep.subr.mxu0 0.0
  %1949 = vmatpush1.msra.mxu0 0.0
  %1950 = vmatprep.subr.mxu0 0.0
  %1951 = vmatpush1.msra.mxu0 0.0
  %1952 = vmatprep.subr.mxu0 0.0
  %1953 = vmatpush1.msra.mxu0 0.0
  %1954 = vmatprep.subr.mxu0 0.0
  %1955 = vmatpush1.msra.mxu0 0.0
  %1956 = vmatprep.subr.mxu0 0.0
  %1957 = vmatpush1.msra.mxu0 0.0
  %1958 = vmatprep.subr.mxu0 0.0
  %1959 = vmatpush1.msra.mxu0 0.0
  %1960 = vmatprep.subr.mxu0 0.0
  %1961 = vmatpush1.msra.mxu0 0.0
  %1962 = vmatprep.subr.mxu0 0.0
  %1963 = vmatpush1.msra.mxu0 0.0
  %1964 = vmatprep.subr.mxu0 0.0
  %1965 = vmatpush1.msra.mxu0 0.0
  %1966 = vmatprep.subr.mxu0 0.0
  %1967 = vmatpush1.msra.mxu0 0.0
  %1968 = vmatprep.subr.mxu0 0.0
  %1969 = vmatpush1.msra.mxu0 0.0
  %1970 = vmatprep.subr.mxu0 0.0
  %1971 = vmatpush1.msra.mxu0 0.0
  %1972 = vmatprep.subr.mxu0 0.0
  %1973 = vmatpush1.msra.mxu0 0.0
  %1974 = vmatprep.subr.mxu0 0.0
  %1975 = vmatpush1.msra.mxu0 0.0
  %1976 = vmatprep.subr.mxu0 0.0
  %1977 = vmatpush1.msra.mxu0 0.0
  %1978 = vmatprep.subr.mxu0 0.0
  %1979 = vmatpush1.msra.mxu0 0.0
  %1980 = vmatprep.subr.mxu0 0.0
  %1981 = vmatpush1.msra.mxu0 0.0
  %1982 = vmatprep.subr.mxu0 0.0
  %1983 = vmatpush1.msra.mxu0 0.0
  %1984 = vmatprep.subr.mxu0 0.0
  %1985 = vmatpush1.msra.mxu0 0.0
  %1986 = vmatprep.mubr.f32.mxu0 0.0
  %1987 = vmatmul.mubr.f32.gmra.mrb[0].mxu0 %v1845
  %v1988 = vpop.f32.mrb[0].mxu0
  %v1989 = vadd.f32 0.0, %v1988
  %v1990 = vpop.f32.mrb[0].mxu0
  %1991 = vdwg.mxu0
  %s1993 = sor.u32 256, 121
  %1994 = vrot.lane.b32.xlu0 %v1989, %s1993
  %v1995 = vpop.permute.xlu0 %1994
  %v1996 = vadd.f32 %v1919, %v1995
  %v1997 = vsel %vm146, %v1996, -inf
  %1998 = vmax.xlane.f32.xlu0 %v1997
  %v1999 = vpop.xlane.xlu0 %1998
  %v2000 = vsub.f32 %v1996, %v1999
  %v2001 = vmul.f32 %v2000, 1.442695
  %v2002 = vpow.pop %v2001
  %v2003 = vsel %vm146, %v2002, 0.0
  %2004 = vadd.xlane.f32.xlu0 %v2003
  %v2005 = vpop.xlane.xlu0 %2004
  %v2006 = vrcp.pop %v2005
  %v2007 = vmul.f32 %v2002, %v2006
  %2008 = vrot.lane.b32.xlu0 %v135, 72
  %v2009 = vpop.permute.xlu0 %2008
  %v2012 = vsel %vm146, %v2007, 0
  %2014 = vmatprep.subr.mxu0 0.0
  %2015 = vmatpush1.msra.mxu0 %v2009
  %2016 = vmatprep.subr.mxu0 0.0
  %2017 = vmatpush1.msra.mxu0 0.0
  %2018 = vmatprep.subr.mxu0 0.0
  %2019 = vmatpush1.msra.mxu0 0.0
  %2020 = vmatprep.subr.mxu0 0.0
  %2021 = vmatpush1.msra.mxu0 0.0
  %2022 = vmatprep.subr.mxu0 0.0
  %2023 = vmatpush1.msra.mxu0 0.0
  %2024 = vmatprep.subr.mxu0 0.0
  %2025 = vmatpush1.msra.mxu0 0.0
  %2026 = vmatprep.subr.mxu0 0.0
  %2027 = vmatpush1.msra.mxu0 0.0
  %2028 = vmatprep.subr.mxu0 0.0
  %2029 = vmatpush1.msra.mxu0 0.0
  %2030 = vmatprep.subr.mxu0 0.0
  %2031 = vmatpush1.msra.mxu0 0.0
  %2032 = vmatprep.subr.mxu0 0.0
  %2033 = vmatpush1.msra.mxu0 0.0
  %2034 = vmatprep.subr.mxu0 0.0
  %2035 = vmatpush1.msra.mxu0 0.0
  %2036 = vmatprep.subr.mxu0 0.0
  %2037 = vmatpush1.msra.mxu0 0.0
  %2038 = vmatprep.subr.mxu0 0.0
  %2039 = vmatpush1.msra.mxu0 0.0
  %2040 = vmatprep.subr.mxu0 0.0
  %2041 = vmatpush1.msra.mxu0 0.0
  %2042 = vmatprep.subr.mxu0 0.0
  %2043 = vmatpush1.msra.mxu0 0.0
  %2044 = vmatprep.subr.mxu0 0.0
  %2045 = vmatpush1.msra.mxu0 0.0
  %2046 = vmatprep.subr.mxu0 0.0
  %2047 = vmatpush1.msra.mxu0 0.0
  %2048 = vmatprep.subr.mxu0 0.0
  %2049 = vmatpush1.msra.mxu0 0.0
  %2050 = vmatprep.subr.mxu0 0.0
  %2051 = vmatpush1.msra.mxu0 0.0
  %2052 = vmatprep.subr.mxu0 0.0
  %2053 = vmatpush1.msra.mxu0 0.0
  %2054 = vmatprep.subr.mxu0 0.0
  %2055 = vmatpush1.msra.mxu0 0.0
  %2056 = vmatprep.subr.mxu0 0.0
  %2057 = vmatpush1.msra.mxu0 0.0
  %2058 = vmatprep.subr.mxu0 0.0
  %2059 = vmatpush1.msra.mxu0 0.0
  %2060 = vmatprep.subr.mxu0 0.0
  %2061 = vmatpush1.msra.mxu0 0.0
  %2062 = vmatprep.subr.mxu0 0.0
  %2063 = vmatpush1.msra.mxu0 0.0
  %2064 = vmatprep.subr.mxu0 0.0
  %2065 = vmatpush1.msra.mxu0 0.0
  %2066 = vmatprep.subr.mxu0 0.0
  %2067 = vmatpush1.msra.mxu0 0.0
  %2068 = vmatprep.subr.mxu0 0.0
  %2069 = vmatpush1.msra.mxu0 0.0
  %2070 = vmatprep.subr.mxu0 0.0
  %2071 = vmatpush1.msra.mxu0 0.0
  %2072 = vmatprep.subr.mxu0 0.0
  %2073 = vmatpush1.msra.mxu0 0.0
  %2074 = vmatprep.subr.mxu0 0.0
  %2075 = vmatpush1.msra.mxu0 0.0
  %2076 = vmatprep.subr.mxu0 0.0
  %2077 = vmatpush1.msra.mxu0 0.0
  %2078 = vmatprep.mubr.f32.mxu0 0.0
  %2079 = vmatmul.mubr.f32.gmra.mrb[0].mxu0 %v2012
  %v2080 = vpop.f32.mrb[0].mxu0
  %v2081 = vadd.f32 0.0, %v2080
  %v2082 = vpop.f32.mrb[0].mxu0
  %2083 = vdwg.mxu0
  %2085 = vrot.lane.b32.xlu0 %v623, 8
  %v2086 = vpop.permute.xlu0 %2085
  %2089 = vrot.lane.b32.xlu0 %v866, 16
  %v2090 = vpop.permute.xlu0 %2089
  %2093 = vrot.lane.b32.xlu0 %v1109, 24
  %v2094 = vpop.permute.xlu0 %2093
  %2097 = vrot.lane.b32.xlu0 %v1352, 32
  %v2098 = vpop.permute.xlu0 %2097
  %2101 = vrot.lane.b32.xlu0 %v1595, 40
  %v2102 = vpop.permute.xlu0 %2101
  %2105 = vrot.lane.b32.xlu0 %v1838, 48
  %v2106 = vpop.permute.xlu0 %2105
  %2109 = vrot.lane.b32.xlu0 %v2081, 56
  %v2110 = vpop.permute.xlu0 %2109
  %v2112 = vsel %vm146, %v379, %v2086
  %vm2113 = vcmask 130048
  %v2114 = vsel %vm2113, %v2112, %v2090
  %vm2115 = vcmask 195584
  %v2116 = vsel %vm2115, %v2114, %v2094
  %vm2117 = vcmask 261120
  %v2118 = vsel %vm2117, %v2116, %v2098
  %vm2119 = vcmask 326656
  %v2120 = vsel %vm2119, %v2118, %v2102
  %vm2121 = vcmask 392192
  %v2122 = vsel %vm2121, %v2120, %v2106
  %vm2123 = vcmask 457728
  %v2124 = vsel %vm2123, %v2122, %v2110
  %2126 = vrot.lane.b32.xlu0 %v139, 64
  %v2127 = vpop.permute.xlu0 %2126
  %v2128 = vsel %vm146, %v139, 0
  %v2130 = vsel %vm146, %v2127, 0
  %2132 = vmatprep.subr.mxu0 0.0
  %2133 = vmatpush1.xpose.msra.mxu0 %v2130
  %2134 = vmatprep.subr.mxu0 0.0
  %2135 = vmatpush1.xpose.msra.mxu0 0.0
  %2136 = vmatprep.subr.mxu0 0.0
  %2137 = vmatpush1.xpose.msra.mxu0 0.0
  %2138 = vmatprep.subr.mxu0 0.0
  %2139 = vmatpush1.xpose.msra.mxu0 0.0
  %2140 = vmatprep.subr.mxu0 0.0
  %2141 = vmatpush1.xpose.msra.mxu0 0.0
  %2142 = vmatprep.subr.mxu0 0.0
  %2143 = vmatpush1.xpose.msra.mxu0 0.0
  %2144 = vmatprep.subr.mxu0 0.0
  %2145 = vmatpush1.xpose.msra.mxu0 0.0
  %2146 = vmatprep.subr.mxu0 0.0
  %2147 = vmatpush1.xpose.msra.mxu0 0.0
  %2148 = vmatprep.subr.mxu0 0.0
  %2149 = vmatpush1.xpose.msra.mxu0 0.0
  %2150 = vmatprep.subr.mxu0 0.0
  %2151 = vmatpush1.xpose.msra.mxu0 0.0
  %2152 = vmatprep.subr.mxu0 0.0
  %2153 = vmatpush1.xpose.msra.mxu0 0.0
  %2154 = vmatprep.subr.mxu0 0.0
  %2155 = vmatpush1.xpose.msra.mxu0 0.0
  %2156 = vmatprep.subr.mxu0 0.0
  %2157 = vmatpush1.xpose.msra.mxu0 0.0
  %2158 = vmatprep.subr.mxu0 0.0
  %2159 = vmatpush1.xpose.msra.mxu0 0.0
  %2160 = vmatprep.subr.mxu0 0.0
  %2161 = vmatpush1.xpose.msra.mxu0 0.0
  %2162 = vmatprep.subr.mxu0 0.0
  %2163 = vmatpush1.xpose.msra.mxu0 0.0
  %2164 = vmatprep.subr.mxu0 0.0
  %2165 = vmatpush1.xpose.msra.mxu0 0.0
  %2166 = vmatprep.subr.mxu0 0.0
  %2167 = vmatpush1.xpose.msra.mxu0 0.0
  %2168 = vmatprep.subr.mxu0 0.0
  %2169 = vmatpush1.xpose.msra.mxu0 0.0
  %2170 = vmatprep.subr.mxu0 0.0
  %2171 = vmatpush1.xpose.msra.mxu0 0.0
  %2172 = vmatprep.subr.mxu0 0.0
  %2173 = vmatpush1.xpose.msra.mxu0 0.0
  %2174 = vmatprep.subr.mxu0 0.0
  %2175 = vmatpush1.xpose.msra.mxu0 0.0
  %2176 = vmatprep.subr.mxu0 0.0
  %2177 = vmatpush1.xpose.msra.mxu0 0.0
  %2178 = vmatprep.subr.mxu0 0.0
  %2179 = vmatpush1.xpose.msra.mxu0 0.0
  %2180 = vmatprep.subr.mxu0 0.0
  %2181 = vmatpush1.xpose.msra.mxu0 0.0
  %2182 = vmatprep.subr.mxu0 0.0
  %2183 = vmatpush1.xpose.msra.mxu0 0.0
  %2184 = vmatprep.subr.mxu0 0.0
  %2185 = vmatpush1.xpose.msra.mxu0 0.0
  %2186 = vmatprep.subr.mxu0 0.0
  %2187 = vmatpush1.xpose.msra.mxu0 0.0
  %2188 = vmatprep.subr.mxu0 0.0
  %2189 = vmatpush1.xpose.msra.mxu0 0.0
  %2190 = vmatprep.subr.mxu0 0.0
  %2191 = vmatpush1.xpose.msra.mxu0 0.0
  %2192 = vmatprep.subr.mxu0 0.0
  %2193 = vmatpush1.xpose.msra.mxu0 0.0
  %2194 = vmatprep.subr.mxu0 0.0
  %2195 = vmatpush1.xpose.msra.mxu0 0.0
  %2196 = vmatprep.mubr.f32.mxu0 0.0
  %2197 = vmatmul.mubr.f32.gmra.mrb[0].mxu0 %v2128
  %v2198 = vpop.f32.mrb[0].mxu0
  %v2199 = vadd.f32 0.0, %v2198
  %v2200 = vpop.f32.mrb[0].mxu0
  %2201 = vdwg.mxu0
  %v2202 = vmul.f32 %v2199, 0.35355338
  %2203 = vmatprep.subr.mxu0 0.0
  %2204 = vmatpush1.msra.mxu0 %v222
  %2205 = vmatprep.subr.mxu0 0.0
  %2206 = vmatpush1.msra.mxu0 0.0
  %2207 = vmatprep.subr.mxu0 0.0
  %2208 = vmatpush1.msra.mxu0 0.0
  %2209 = vmatprep.subr.mxu0 0.0
  %2210 = vmatpush1.msra.mxu0 0.0
  %2211 = vmatprep.subr.mxu0 0.0
  %2212 = vmatpush1.msra.mxu0 0.0
  %2213 = vmatprep.subr.mxu0 0.0
  %2214 = vmatpush1.msra.mxu0 0.0
  %2215 = vmatprep.subr.mxu0 0.0
  %2216 = vmatpush1.msra.mxu0 0.0
  %2217 = vmatprep.subr.mxu0 0.0
  %2218 = vmatpush1.msra.mxu0 0.0
  %2219 = vmatprep.subr.mxu0 0.0
  %2220 = vmatpush1.msra.mxu0 0.0
  %2221 = vmatprep.subr.mxu0 0.0
  %2222 = vmatpush1.msra.mxu0 0.0
  %2223 = vmatprep.subr.mxu0 0.0
  %2224 = vmatpush1.msra.mxu0 0.0
  %2225 = vmatprep.subr.mxu0 0.0
  %2226 = vmatpush1.msra.mxu0 0.0
  %2227 = vmatprep.subr.mxu0 0.0
  %2228 = vmatpush1.msra.mxu0 0.0
  %2229 = vmatprep.subr.mxu0 0.0
  %2230 = vmatpush1.msra.mxu0 0.0
  %2231 = vmatprep.subr.mxu0 0.0
  %2232 = vmatpush1.msra.mxu0 0.0
  %2233 = vmatprep.subr.mxu0 0.0
  %2234 = vmatpush1.msra.mxu0 0.0
  %2235 = vmatprep.subr.mxu0 0.0
  %2236 = vmatpush1.msra.mxu0 0.0
  %2237 = vmatprep.subr.mxu0 0.0
  %2238 = vmatpush1.msra.mxu0 0.0
  %2239 = vmatprep.subr.mxu0 0.0
  %2240 = vmatpush1.msra.mxu0 0.0
  %2241 = vmatprep.subr.mxu0 0.0
  %2242 = vmatpush1.msra.mxu0 0.0
  %2243 = vmatprep.subr.mxu0 0.0
  %2244 = vmatpush1.msra.mxu0 0.0
  %2245 = vmatprep.subr.mxu0 0.0
  %2246 = vmatpush1.msra.mxu0 0.0
  %2247 = vmatprep.subr.mxu0 0.0
  %2248 = vmatpush1.msra.mxu0 0.0
  %2249 = vmatprep.subr.mxu0 0.0
  %2250 = vmatpush1.msra.mxu0 0.0
  %2251 = vmatprep.subr.mxu0 0.0
  %2252 = vmatpush1.msra.mxu0 0.0
  %2253 = vmatprep.subr.mxu0 0.0
  %2254 = vmatpush1.msra.mxu0 0.0
  %2255 = vmatprep.subr.mxu0 0.0
  %2256 = vmatpush1.msra.mxu0 0.0
  %2257 = vmatprep.subr.mxu0 0.0
  %2258 = vmatpush1.msra.mxu0 0.0
  %2259 = vmatprep.subr.mxu0 0.0
  %2260 = vmatpush1.msra.mxu0 0.0
  %2261 = vmatprep.subr.mxu0 0.0
  %2262 = vmatpush1.msra.mxu0 0.0
  %2263 = vmatprep.subr.mxu0 0.0
  %2264 = vmatpush1.msra.mxu0 0.0
  %2265 = vmatprep.subr.mxu0 0.0
  %2266 = vmatpush1.msra.mxu0 0.0
  %2267 = vmatprep.mubr.f32.mxu0 0.0
  %2268 = vmatmul.mubr.f32.gmra.mrb[0].mxu0 %v2128
  %v2269 = vpop.f32.mrb[0].mxu0
  %v2270 = vadd.f32 0.0, %v2269
  %v2271 = vpop.f32.mrb[0].mxu0
  %2272 = vdwg.mxu0
  %s2274 = sor.u32 256, 121
  %2275 = vrot.lane.b32.xlu0 %v2270, %s2274
  %v2276 = vpop.permute.xlu0 %2275
  %v2277 = vadd.f32 %v2202, %v2276
  %v2278 = vsel %vm146, %v2277, -inf
  %2279 = vmax.xlane.f32.xlu0 %v2278
  %v2280 = vpop.xlane.xlu0 %2279
  %v2281 = vsub.f32 %v2277, %v2280
  %v2282 = vmul.f32 %v2281, 1.442695
  %v2283 = vpow.pop %v2282
  %v2284 = vsel %vm146, %v2283, 0.0
  %2285 = vadd.xlane.f32.xlu0 %v2284
  %v2286 = vpop.xlane.xlu0 %2285
  %v2287 = vrcp.pop %v2286
  %v2288 = vmul.f32 %v2283, %v2287
  %v2290 = vsel %vm146, %v2288, 0
  %2292 = vmatprep.subr.mxu0 0.0
  %2293 = vmatpush1.msra.mxu0 %v141
  %2294 = vmatprep.subr.mxu0 0.0
  %2295 = vmatpush1.msra.mxu0 0.0
  %2296 = vmatprep.subr.mxu0 0.0
  %2297 = vmatpush1.msra.mxu0 0.0
  %2298 = vmatprep.subr.mxu0 0.0
  %2299 = vmatpush1.msra.mxu0 0.0
  %2300 = vmatprep.subr.mxu0 0.0
  %2301 = vmatpush1.msra.mxu0 0.0
  %2302 = vmatprep.subr.mxu0 0.0
  %2303 = vmatpush1.msra.mxu0 0.0
  %2304 = vmatprep.subr.mxu0 0.0
  %2305 = vmatpush1.msra.mxu0 0.0
  %2306 = vmatprep.subr.mxu0 0.0
  %2307 = vmatpush1.msra.mxu0 0.0
  %2308 = vmatprep.subr.mxu0 0.0
  %2309 = vmatpush1.msra.mxu0 0.0
  %2310 = vmatprep.subr.mxu0 0.0
  %2311 = vmatpush1.msra.mxu0 0.0
  %2312 = vmatprep.subr.mxu0 0.0
  %2313 = vmatpush1.msra.mxu0 0.0
  %2314 = vmatprep.subr.mxu0 0.0
  %2315 = vmatpush1.msra.mxu0 0.0
  %2316 = vmatprep.subr.mxu0 0.0
  %2317 = vmatpush1.msra.mxu0 0.0
  %2318 = vmatprep.subr.mxu0 0.0
  %2319 = vmatpush1.msra.mxu0 0.0
  %2320 = vmatprep.subr.mxu0 0.0
  %2321 = vmatpush1.msra.mxu0 0.0
  %2322 = vmatprep.subr.mxu0 0.0
  %2323 = vmatpush1.msra.mxu0 0.0
  %2324 = vmatprep.subr.mxu0 0.0
  %2325 = vmatpush1.msra.mxu0 0.0
  %2326 = vmatprep.subr.mxu0 0.0
  %2327 = vmatpush1.msra.mxu0 0.0
  %2328 = vmatprep.subr.mxu0 0.0
  %2329 = vmatpush1.msra.mxu0 0.0
  %2330 = vmatprep.subr.mxu0 0.0
  %2331 = vmatpush1.msra.mxu0 0.0
  %2332 = vmatprep.subr.mxu0 0.0
  %2333 = vmatpush1.msra.mxu0 0.0
  %2334 = vmatprep.subr.mxu0 0.0
  %2335 = vmatpush1.msra.mxu0 0.0
  %2336 = vmatprep.subr.mxu0 0.0
  %2337 = vmatpush1.msra.mxu0 0.0
  %2338 = vmatprep.subr.mxu0 0.0
  %2339 = vmatpush1.msra.mxu0 0.0
  %2340 = vmatprep.subr.mxu0 0.0
  %2341 = vmatpush1.msra.mxu0 0.0
  %2342 = vmatprep.subr.mxu0 0.0
  %2343 = vmatpush1.msra.mxu0 0.0
  %2344 = vmatprep.subr.mxu0 0.0
  %2345 = vmatpush1.msra.mxu0 0.0
  %2346 = vmatprep.subr.mxu0 0.0
  %2347 = vmatpush1.msra.mxu0 0.0
  %2348 = vmatprep.subr.mxu0 0.0
  %2349 = vmatpush1.msra.mxu0 0.0
  %2350 = vmatprep.subr.mxu0 0.0
  %2351 = vmatpush1.msra.mxu0 0.0
  %2352 = vmatprep.subr.mxu0 0.0
  %2353 = vmatpush1.msra.mxu0 0.0
  %2354 = vmatprep.subr.mxu0 0.0
  %2355 = vmatpush1.msra.mxu0 0.0
  %2356 = vmatprep.mubr.f32.mxu0 0.0
  %2357 = vmatmul.mubr.f32.gmra.mrb[0].mxu0 %v2290
  %v2358 = vpop.f32.mrb[0].mxu0
  %v2359 = vadd.f32 0.0, %v2358
  %v2360 = vpop.f32.mrb[0].mxu0
  %2361 = vdwg.mxu0
  %2362 = vrot.lane.b32.xlu0 %v139, 120
  %v2363 = vpop.permute.xlu0 %2362
  %2364 = vrot.lane.b32.xlu0 %v139, 56
  %v2365 = vpop.permute.xlu0 %2364
  %v2366 = vsel %vm146, %v2363, 0
  %v2368 = vsel %vm146, %v2365, 0
  %2370 = vmatprep.subr.mxu0 0.0
  %2371 = vmatpush1.xpose.msra.mxu0 %v2368
  %2372 = vmatprep.subr.mxu0 0.0
  %2373 = vmatpush1.xpose.msra.mxu0 0.0
  %2374 = vmatprep.subr.mxu0 0.0
  %2375 = vmatpush1.xpose.msra.mxu0 0.0
  %2376 = vmatprep.subr.mxu0 0.0
  %2377 = vmatpush1.xpose.msra.mxu0 0.0
  %2378 = vmatprep.subr.mxu0 0.0
  %2379 = vmatpush1.xpose.msra.mxu0 0.0
  %2380 = vmatprep.subr.mxu0 0.0
  %2381 = vmatpush1.xpose.msra.mxu0 0.0
  %2382 = vmatprep.subr.mxu0 0.0
  %2383 = vmatpush1.xpose.msra.mxu0 0.0
  %2384 = vmatprep.subr.mxu0 0.0
  %2385 = vmatpush1.xpose.msra.mxu0 0.0
  %2386 = vmatprep.subr.mxu0 0.0
  %2387 = vmatpush1.xpose.msra.mxu0 0.0
  %2388 = vmatprep.subr.mxu0 0.0
  %2389 = vmatpush1.xpose.msra.mxu0 0.0
  %2390 = vmatprep.subr.mxu0 0.0
  %2391 = vmatpush1.xpose.msra.mxu0 0.0
  %2392 = vmatprep.subr.mxu0 0.0
  %2393 = vmatpush1.xpose.msra.mxu0 0.0
  %2394 = vmatprep.subr.mxu0 0.0
  %2395 = vmatpush1.xpose.msra.mxu0 0.0
  %2396 = vmatprep.subr.mxu0 0.0
  %2397 = vmatpush1.xpose.msra.mxu0 0.0
  %2398 = vmatprep.subr.mxu0 0.0
  %2399 = vmatpush1.xpose.msra.mxu0 0.0
  %2400 = vmatprep.subr.mxu0 0.0
  %2401 = vmatpush1.xpose.msra.mxu0 0.0
  %2402 = vmatprep.subr.mxu0 0.0
  %2403 = vmatpush1.xpose.msra.mxu0 0.0
  %2404 = vmatprep.subr.mxu0 0.0
  %2405 = vmatpush1.xpose.msra.mxu0 0.0
  %2406 = vmatprep.subr.mxu0 0.0
  %2407 = vmatpush1.xpose.msra.mxu0 0.0
  %2408 = vmatprep.subr.mxu0 0.0
  %2409 = vmatpush1.xpose.msra.mxu0 0.0
  %2410 = vmatprep.subr.mxu0 0.0
  %2411 = vmatpush1.xpose.msra.mxu0 0.0
  %2412 = vmatprep.subr.mxu0 0.0
  %2413 = vmatpush1.xpose.msra.mxu0 0.0
  %2414 = vmatprep.subr.mxu0 0.0
  %2415 = vmatpush1.xpose.msra.mxu0 0.0
  %2416 = vmatprep.subr.mxu0 0.0
  %2417 = vmatpush1.xpose.msra.mxu0 0.0
  %2418 = vmatprep.subr.mxu0 0.0
  %2419 = vmatpush1.xpose.msra.mxu0 0.0
  %2420 = vmatprep.subr.mxu0 0.0
  %2421 = vmatpush1.xpose.msra.mxu0 0.0
  %2422 = vmatprep.subr.mxu0 0.0
  %2423 = vmatpush1.xpose.msra.mxu0 0.0
  %2424 = vmatprep.subr.mxu0 0.0
  %2425 = vmatpush1.xpose.msra.mxu0 0.0
  %2426 = vmatprep.subr.mxu0 0.0
  %2427 = vmatpush1.xpose.msra.mxu0 0.0
  %2428 = vmatprep.subr.mxu0 0.0
  %2429 = vmatpush1.xpose.msra.mxu0 0.0
  %2430 = vmatprep.subr.mxu0 0.0
  %2431 = vmatpush1.xpose.msra.mxu0 0.0
  %2432 = vmatprep.subr.mxu0 0.0
  %2433 = vmatpush1.xpose.msra.mxu0 0.0
  %2434 = vmatprep.mubr.f32.mxu0 0.0
  %2435 = vmatmul.mubr.f32.gmra.mrb[0].mxu0 %v2366
  %v2436 = vpop.f32.mrb[0].mxu0
  %v2437 = vadd.f32 0.0, %v2436
  %v2438 = vpop.f32.mrb[0].mxu0
  %2439 = vdwg.mxu0
  %v2440 = vmul.f32 %v2437, 0.35355338
  %2441 = vmatprep.subr.mxu0 0.0
  %2442 = vmatpush1.msra.mxu0 %v462
  %2443 = vmatprep.subr.mxu0 0.0
  %2444 = vmatpush1.msra.mxu0 0.0
  %2445 = vmatprep.subr.mxu0 0.0
  %2446 = vmatpush1.msra.mxu0 0.0
  %2447 = vmatprep.subr.mxu0 0.0
  %2448 = vmatpush1.msra.mxu0 0.0
  %2449 = vmatprep.subr.mxu0 0.0
  %2450 = vmatpush1.msra.mxu0 0.0
  %2451 = vmatprep.subr.mxu0 0.0
  %2452 = vmatpush1.msra.mxu0 0.0
  %2453 = vmatprep.subr.mxu0 0.0
  %2454 = vmatpush1.msra.mxu0 0.0
  %2455 = vmatprep.subr.mxu0 0.0
  %2456 = vmatpush1.msra.mxu0 0.0
  %2457 = vmatprep.subr.mxu0 0.0
  %2458 = vmatpush1.msra.mxu0 0.0
  %2459 = vmatprep.subr.mxu0 0.0
  %2460 = vmatpush1.msra.mxu0 0.0
  %2461 = vmatprep.subr.mxu0 0.0
  %2462 = vmatpush1.msra.mxu0 0.0
  %2463 = vmatprep.subr.mxu0 0.0
  %2464 = vmatpush1.msra.mxu0 0.0
  %2465 = vmatprep.subr.mxu0 0.0
  %2466 = vmatpush1.msra.mxu0 0.0
  %2467 = vmatprep.subr.mxu0 0.0
  %2468 = vmatpush1.msra.mxu0 0.0
  %2469 = vmatprep.subr.mxu0 0.0
  %2470 = vmatpush1.msra.mxu0 0.0
  %2471 = vmatprep.subr.mxu0 0.0
  %2472 = vmatpush1.msra.mxu0 0.0
  %2473 = vmatprep.subr.mxu0 0.0
  %2474 = vmatpush1.msra.mxu0 0.0
  %2475 = vmatprep.subr.mxu0 0.0
  %2476 = vmatpush1.msra.mxu0 0.0
  %2477 = vmatprep.subr.mxu0 0.0
  %2478 = vmatpush1.msra.mxu0 0.0
  %2479 = vmatprep.subr.mxu0 0.0
  %2480 = vmatpush1.msra.mxu0 0.0
  %2481 = vmatprep.subr.mxu0 0.0
  %2482 = vmatpush1.msra.mxu0 0.0
  %2483 = vmatprep.subr.mxu0 0.0
  %2484 = vmatpush1.msra.mxu0 0.0
  %2485 = vmatprep.subr.mxu0 0.0
  %2486 = vmatpush1.msra.mxu0 0.0
  %2487 = vmatprep.subr.mxu0 0.0
  %2488 = vmatpush1.msra.mxu0 0.0
  %2489 = vmatprep.subr.mxu0 0.0
  %2490 = vmatpush1.msra.mxu0 0.0
  %2491 = vmatprep.subr.mxu0 0.0
  %2492 = vmatpush1.msra.mxu0 0.0
  %2493 = vmatprep.subr.mxu0 0.0
  %2494 = vmatpush1.msra.mxu0 0.0
  %2495 = vmatprep.subr.mxu0 0.0
  %2496 = vmatpush1.msra.mxu0 0.0
  %2497 = vmatprep.subr.mxu0 0.0
  %2498 = vmatpush1.msra.mxu0 0.0
  %2499 = vmatprep.subr.mxu0 0.0
  %2500 = vmatpush1.msra.mxu0 0.0
  %2501 = vmatprep.subr.mxu0 0.0
  %2502 = vmatpush1.msra.mxu0 0.0
  %2503 = vmatprep.subr.mxu0 0.0
  %2504 = vmatpush1.msra.mxu0 0.0
  %2505 = vmatprep.mubr.f32.mxu0 0.0
  %2506 = vmatmul.mubr.f32.gmra.mrb[0].mxu0 %v2366
  %v2507 = vpop.f32.mrb[0].mxu0
  %v2508 = vadd.f32 0.0, %v2507
  %v2509 = vpop.f32.mrb[0].mxu0
  %2510 = vdwg.mxu0
  %s2512 = sor.u32 256, 121
  %2513 = vrot.lane.b32.xlu0 %v2508, %s2512
  %v2514 = vpop.permute.xlu0 %2513
  %v2515 = vadd.f32 %v2440, %v2514
  %v2516 = vsel %vm146, %v2515, -inf
  %2517 = vmax.xlane.f32.xlu0 %v2516
  %v2518 = vpop.xlane.xlu0 %2517
  %v2519 = vsub.f32 %v2515, %v2518
  %v2520 = vmul.f32 %v2519, 1.442695
  %v2521 = vpow.pop %v2520
  %v2522 = vsel %vm146, %v2521, 0.0
  %2523 = vadd.xlane.f32.xlu0 %v2522
  %v2524 = vpop.xlane.xlu0 %2523
  %v2525 = vrcp.pop %v2524
  %v2526 = vmul.f32 %v2521, %v2525
  %2528 = vrot.lane.b32.xlu0 %v141, 120
  %v2529 = vpop.permute.xlu0 %2528
  %v2532 = vsel %vm146, %v2526, 0
  %2534 = vmatprep.subr.mxu0 0.0
  %2535 = vmatpush1.msra.mxu0 %v2529
  %2536 = vmatprep.subr.mxu0 0.0
  %2537 = vmatpush1.msra.mxu0 0.0
  %2538 = vmatprep.subr.mxu0 0.0
  %2539 = vmatpush1.msra.mxu0 0.0
  %2540 = vmatprep.subr.mxu0 0.0
  %2541 = vmatpush1.msra.mxu0 0.0
  %2542 = vmatprep.subr.mxu0 0.0
  %2543 = vmatpush1.msra.mxu0 0.0
  %2544 = vmatprep.subr.mxu0 0.0
  %2545 = vmatpush1.msra.mxu0 0.0
  %2546 = vmatprep.subr.mxu0 0.0
  %2547 = vmatpush1.msra.mxu0 0.0
  %2548 = vmatprep.subr.mxu0 0.0
  %2549 = vmatpush1.msra.mxu0 0.0
  %2550 = vmatprep.subr.mxu0 0.0
  %2551 = vmatpush1.msra.mxu0 0.0
  %2552 = vmatprep.subr.mxu0 0.0
  %2553 = vmatpush1.msra.mxu0 0.0
  %2554 = vmatprep.subr.mxu0 0.0
  %2555 = vmatpush1.msra.mxu0 0.0
  %2556 = vmatprep.subr.mxu0 0.0
  %2557 = vmatpush1.msra.mxu0 0.0
  %2558 = vmatprep.subr.mxu0 0.0
  %2559 = vmatpush1.msra.mxu0 0.0
  %2560 = vmatprep.subr.mxu0 0.0
  %2561 = vmatpush1.msra.mxu0 0.0
  %2562 = vmatprep.subr.mxu0 0.0
  %2563 = vmatpush1.msra.mxu0 0.0
  %2564 = vmatprep.subr.mxu0 0.0
  %2565 = vmatpush1.msra.mxu0 0.0
  %2566 = vmatprep.subr.mxu0 0.0
  %2567 = vmatpush1.msra.mxu0 0.0
  %2568 = vmatprep.subr.mxu0 0.0
  %2569 = vmatpush1.msra.mxu0 0.0
  %2570 = vmatprep.subr.mxu0 0.0
  %2571 = vmatpush1.msra.mxu0 0.0
  %2572 = vmatprep.subr.mxu0 0.0
  %2573 = vmatpush1.msra.mxu0 0.0
  %2574 = vmatprep.subr.mxu0 0.0
  %2575 = vmatpush1.msra.mxu0 0.0
  %2576 = vmatprep.subr.mxu0 0.0
  %2577 = vmatpush1.msra.mxu0 0.0
  %2578 = vmatprep.subr.mxu0 0.0
  %2579 = vmatpush1.msra.mxu0 0.0
  %2580 = vmatprep.subr.mxu0 0.0
  %2581 = vmatpush1.msra.mxu0 0.0
  %2582 = vmatprep.subr.mxu0 0.0
  %2583 = vmatpush1.msra.mxu0 0.0
  %2584 = vmatprep.subr.mxu0 0.0
  %2585 = vmatpush1.msra.mxu0 0.0
  %2586 = vmatprep.subr.mxu0 0.0
  %2587 = vmatpush1.msra.mxu0 0.0
  %2588 = vmatprep.subr.mxu0 0.0
  %2589 = vmatpush1.msra.mxu0 0.0
  %2590 = vmatprep.subr.mxu0 0.0
  %2591 = vmatpush1.msra.mxu0 0.0
  %2592 = vmatprep.subr.mxu0 0.0
  %2593 = vmatpush1.msra.mxu0 0.0
  %2594 = vmatprep.subr.mxu0 0.0
  %2595 = vmatpush1.msra.mxu0 0.0
  %2596 = vmatprep.subr.mxu0 0.0
  %2597 = vmatpush1.msra.mxu0 0.0
  %2598 = vmatprep.mubr.f32.mxu0 0.0
  %2599 = vmatmul.mubr.f32.gmra.mrb[0].mxu0 %v2532
  %v2600 = vpop.f32.mrb[0].mxu0
  %v2601 = vadd.f32 0.0, %v2600
  %v2602 = vpop.f32.mrb[0].mxu0
  %2603 = vdwg.mxu0
  %2604 = vrot.lane.b32.xlu0 %v139, 112
  %v2605 = vpop.permute.xlu0 %2604
  %2606 = vrot.lane.b32.xlu0 %v139, 48
  %v2607 = vpop.permute.xlu0 %2606
  %v2608 = vsel %vm146, %v2605, 0
  %v2610 = vsel %vm146, %v2607, 0
  %2612 = vmatprep.subr.mxu0 0.0
  %2613 = vmatpush1.xpose.msra.mxu0 %v2610
  %2614 = vmatprep.subr.mxu0 0.0
  %2615 = vmatpush1.xpose.msra.mxu0 0.0
  %2616 = vmatprep.subr.mxu0 0.0
  %2617 = vmatpush1.xpose.msra.mxu0 0.0
  %2618 = vmatprep.subr.mxu0 0.0
  %2619 = vmatpush1.xpose.msra.mxu0 0.0
  %2620 = vmatprep.subr.mxu0 0.0
  %2621 = vmatpush1.xpose.msra.mxu0 0.0
  %2622 = vmatprep.subr.mxu0 0.0
  %2623 = vmatpush1.xpose.msra.mxu0 0.0
  %2624 = vmatprep.subr.mxu0 0.0
  %2625 = vmatpush1.xpose.msra.mxu0 0.0
  %2626 = vmatprep.subr.mxu0 0.0
  %2627 = vmatpush1.xpose.msra.mxu0 0.0
  %2628 = vmatprep.subr.mxu0 0.0
  %2629 = vmatpush1.xpose.msra.mxu0 0.0
  %2630 = vmatprep.subr.mxu0 0.0
  %2631 = vmatpush1.xpose.msra.mxu0 0.0
  %2632 = vmatprep.subr.mxu0 0.0
  %2633 = vmatpush1.xpose.msra.mxu0 0.0
  %2634 = vmatprep.subr.mxu0 0.0
  %2635 = vmatpush1.xpose.msra.mxu0 0.0
  %2636 = vmatprep.subr.mxu0 0.0
  %2637 = vmatpush1.xpose.msra.mxu0 0.0
  %2638 = vmatprep.subr.mxu0 0.0
  %2639 = vmatpush1.xpose.msra.mxu0 0.0
  %2640 = vmatprep.subr.mxu0 0.0
  %2641 = vmatpush1.xpose.msra.mxu0 0.0
  %2642 = vmatprep.subr.mxu0 0.0
  %2643 = vmatpush1.xpose.msra.mxu0 0.0
  %2644 = vmatprep.subr.mxu0 0.0
  %2645 = vmatpush1.xpose.msra.mxu0 0.0
  %2646 = vmatprep.subr.mxu0 0.0
  %2647 = vmatpush1.xpose.msra.mxu0 0.0
  %2648 = vmatprep.subr.mxu0 0.0
  %2649 = vmatpush1.xpose.msra.mxu0 0.0
  %2650 = vmatprep.subr.mxu0 0.0
  %2651 = vmatpush1.xpose.msra.mxu0 0.0
  %2652 = vmatprep.subr.mxu0 0.0
  %2653 = vmatpush1.xpose.msra.mxu0 0.0
  %2654 = vmatprep.subr.mxu0 0.0
  %2655 = vmatpush1.xpose.msra.mxu0 0.0
  %2656 = vmatprep.subr.mxu0 0.0
  %2657 = vmatpush1.xpose.msra.mxu0 0.0
  %2658 = vmatprep.subr.mxu0 0.0
  %2659 = vmatpush1.xpose.msra.mxu0 0.0
  %2660 = vmatprep.subr.mxu0 0.0
  %2661 = vmatpush1.xpose.msra.mxu0 0.0
  %2662 = vmatprep.subr.mxu0 0.0
  %2663 = vmatpush1.xpose.msra.mxu0 0.0
  %2664 = vmatprep.subr.mxu0 0.0
  %2665 = vmatpush1.xpose.msra.mxu0 0.0
  %2666 = vmatprep.subr.mxu0 0.0
  %2667 = vmatpush1.xpose.msra.mxu0 0.0
  %2668 = vmatprep.subr.mxu0 0.0
  %2669 = vmatpush1.xpose.msra.mxu0 0.0
  %2670 = vmatprep.subr.mxu0 0.0
  %2671 = vmatpush1.xpose.msra.mxu0 0.0
  %2672 = vmatprep.subr.mxu0 0.0
  %2673 = vmatpush1.xpose.msra.mxu0 0.0
  %2674 = vmatprep.subr.mxu0 0.0
  %2675 = vmatpush1.xpose.msra.mxu0 0.0
  %2676 = vmatprep.mubr.f32.mxu0 0.0
  %2677 = vmatmul.mubr.f32.gmra.mrb[0].mxu0 %v2608
  %v2678 = vpop.f32.mrb[0].mxu0
  %v2679 = vadd.f32 0.0, %v2678
  %v2680 = vpop.f32.mrb[0].mxu0
  %2681 = vdwg.mxu0
  %v2682 = vmul.f32 %v2679, 0.35355338
  %2683 = vmatprep.subr.mxu0 0.0
  %2684 = vmatpush1.msra.mxu0 %v706
  %2685 = vmatprep.subr.mxu0 0.0
  %2686 = vmatpush1.msra.mxu0 0.0
  %2687 = vmatprep.subr.mxu0 0.0
  %2688 = vmatpush1.msra.mxu0 0.0
  %2689 = vmatprep.subr.mxu0 0.0
  %2690 = vmatpush1.msra.mxu0 0.0
  %2691 = vmatprep.subr.mxu0 0.0
  %2692 = vmatpush1.msra.mxu0 0.0
  %2693 = vmatprep.subr.mxu0 0.0
  %2694 = vmatpush1.msra.mxu0 0.0
  %2695 = vmatprep.subr.mxu0 0.0
  %2696 = vmatpush1.msra.mxu0 0.0
  %2697 = vmatprep.subr.mxu0 0.0
  %2698 = vmatpush1.msra.mxu0 0.0
  %2699 = vmatprep.subr.mxu0 0.0
  %2700 = vmatpush1.msra.mxu0 0.0
  %2701 = vmatprep.subr.mxu0 0.0
  %2702 = vmatpush1.msra.mxu0 0.0
  %2703 = vmatprep.subr.mxu0 0.0
  %2704 = vmatpush1.msra.mxu0 0.0
  %2705 = vmatprep.subr.mxu0 0.0
  %2706 = vmatpush1.msra.mxu0 0.0
  %2707 = vmatprep.subr.mxu0 0.0
  %2708 = vmatpush1.msra.mxu0 0.0
  %2709 = vmatprep.subr.mxu0 0.0
  %2710 = vmatpush1.msra.mxu0 0.0
  %2711 = vmatprep.subr.mxu0 0.0
  %2712 = vmatpush1.msra.mxu0 0.0
  %2713 = vmatprep.subr.mxu0 0.0
  %2714 = vmatpush1.msra.mxu0 0.0
  %2715 = vmatprep.subr.mxu0 0.0
  %2716 = vmatpush1.msra.mxu0 0.0
  %2717 = vmatprep.subr.mxu0 0.0
  %2718 = vmatpush1.msra.mxu0 0.0
  %2719 = vmatprep.subr.mxu0 0.0
  %2720 = vmatpush1.msra.mxu0 0.0
  %2721 = vmatprep.subr.mxu0 0.0
  %2722 = vmatpush1.msra.mxu0 0.0
  %2723 = vmatprep.subr.mxu0 0.0
  %2724 = vmatpush1.msra.mxu0 0.0
  %2725 = vmatprep.subr.mxu0 0.0
  %2726 = vmatpush1.msra.mxu0 0.0
  %2727 = vmatprep.subr.mxu0 0.0
  %2728 = vmatpush1.msra.mxu0 0.0
  %2729 = vmatprep.subr.mxu0 0.0
  %2730 = vmatpush1.msra.mxu0 0.0
  %2731 = vmatprep.subr.mxu0 0.0
  %2732 = vmatpush1.msra.mxu0 0.0
  %2733 = vmatprep.subr.mxu0 0.0
  %2734 = vmatpush1.msra.mxu0 0.0
  %2735 = vmatprep.subr.mxu0 0.0
  %2736 = vmatpush1.msra.mxu0 0.0
  %2737 = vmatprep.subr.mxu0 0.0
  %2738 = vmatpush1.msra.mxu0 0.0
  %2739 = vmatprep.subr.mxu0 0.0
  %2740 = vmatpush1.msra.mxu0 0.0
  %2741 = vmatprep.subr.mxu0 0.0
  %2742 = vmatpush1.msra.mxu0 0.0
  %2743 = vmatprep.subr.mxu0 0.0
  %2744 = vmatpush1.msra.mxu0 0.0
  %2745 = vmatprep.subr.mxu0 0.0
  %2746 = vmatpush1.msra.mxu0 0.0
  %2747 = vmatprep.mubr.f32.mxu0 0.0
  %2748 = vmatmul.mubr.f32.gmra.mrb[0].mxu0 %v2608
  %v2749 = vpop.f32.mrb[0].mxu0
  %v2750 = vadd.f32 0.0, %v2749
  %v2751 = vpop.f32.mrb[0].mxu0
  %2752 = vdwg.mxu0
  %s2754 = sor.u32 256, 121
  %2755 = vrot.lane.b32.xlu0 %v2750, %s2754
  %v2756 = vpop.permute.xlu0 %2755
  %v2757 = vadd.f32 %v2682, %v2756
  %v2758 = vsel %vm146, %v2757, -inf
  %2759 = vmax.xlane.f32.xlu0 %v2758
  %v2760 = vpop.xlane.xlu0 %2759
  %v2761 = vsub.f32 %v2757, %v2760
  %v2762 = vmul.f32 %v2761, 1.442695
  %v2763 = vpow.pop %v2762
  %v2764 = vsel %vm146, %v2763, 0.0
  %2765 = vadd.xlane.f32.xlu0 %v2764
  %v2766 = vpop.xlane.xlu0 %2765
  %v2767 = vrcp.pop %v2766
  %v2768 = vmul.f32 %v2763, %v2767
  %2769 = vrot.lane.b32.xlu0 %v141, 112
  %v2770 = vpop.permute.xlu0 %2769
  %v2773 = vsel %vm146, %v2768, 0
  %2775 = vmatprep.subr.mxu0 0.0
  %2776 = vmatpush1.msra.mxu0 %v2770
  %2777 = vmatprep.subr.mxu0 0.0
  %2778 = vmatpush1.msra.mxu0 0.0
  %2779 = vmatprep.subr.mxu0 0.0
  %2780 = vmatpush1.msra.mxu0 0.0
  %2781 = vmatprep.subr.mxu0 0.0
  %2782 = vmatpush1.msra.mxu0 0.0
  %2783 = vmatprep.subr.mxu0 0.0
  %2784 = vmatpush1.msra.mxu0 0.0
  %2785 = vmatprep.subr.mxu0 0.0
  %2786 = vmatpush1.msra.mxu0 0.0
  %2787 = vmatprep.subr.mxu0 0.0
  %2788 = vmatpush1.msra.mxu0 0.0
  %2789 = vmatprep.subr.mxu0 0.0
  %2790 = vmatpush1.msra.mxu0 0.0
  %2791 = vmatprep.subr.mxu0 0.0
  %2792 = vmatpush1.msra.mxu0 0.0
  %2793 = vmatprep.subr.mxu0 0.0
  %2794 = vmatpush1.msra.mxu0 0.0
  %2795 = vmatprep.subr.mxu0 0.0
  %2796 = vmatpush1.msra.mxu0 0.0
  %2797 = vmatprep.subr.mxu0 0.0
  %2798 = vmatpush1.msra.mxu0 0.0
  %2799 = vmatprep.subr.mxu0 0.0
  %2800 = vmatpush1.msra.mxu0 0.0
  %2801 = vmatprep.subr.mxu0 0.0
  %2802 = vmatpush1.msra.mxu0 0.0
  %2803 = vmatprep.subr.mxu0 0.0
  %2804 = vmatpush1.msra.mxu0 0.0
  %2805 = vmatprep.subr.mxu0 0.0
  %2806 = vmatpush1.msra.mxu0 0.0
  %2807 = vmatprep.subr.mxu0 0.0
  %2808 = vmatpush1.msra.mxu0 0.0
  %2809 = vmatprep.subr.mxu0 0.0
  %2810 = vmatpush1.msra.mxu0 0.0
  %2811 = vmatprep.subr.mxu0 0.0
  %2812 = vmatpush1.msra.mxu0 0.0
  %2813 = vmatprep.subr.mxu0 0.0
  %2814 = vmatpush1.msra.mxu0 0.0
  %2815 = vmatprep.subr.mxu0 0.0
  %2816 = vmatpush1.msra.mxu0 0.0
  %2817 = vmatprep.subr.mxu0 0.0
  %2818 = vmatpush1.msra.mxu0 0.0
  %2819 = vmatprep.subr.mxu0 0.0
  %2820 = vmatpush1.msra.mxu0 0.0
  %2821 = vmatprep.subr.mxu0 0.0
  %2822 = vmatpush1.msra.mxu0 0.0
  %2823 = vmatprep.subr.mxu0 0.0
  %2824 = vmatpush1.msra.mxu0 0.0
  %2825 = vmatprep.subr.mxu0 0.0
  %2826 = vmatpush1.msra.mxu0 0.0
  %2827 = vmatprep.subr.mxu0 0.0
  %2828 = vmatpush1.msra.mxu0 0.0
  %2829 = vmatprep.subr.mxu0 0.0
  %2830 = vmatpush1.msra.mxu0 0.0
  %2831 = vmatprep.subr.mxu0 0.0
  %2832 = vmatpush1.msra.mxu0 0.0
  %2833 = vmatprep.subr.mxu0 0.0
  %2834 = vmatpush1.msra.mxu0 0.0
  %2835 = vmatprep.subr.mxu0 0.0
  %2836 = vmatpush1.msra.mxu0 0.0
  %2837 = vmatprep.subr.mxu0 0.0
  %2838 = vmatpush1.msra.mxu0 0.0
  %2839 = vmatprep.mubr.f32.mxu0 0.0
  %2840 = vmatmul.mubr.f32.gmra.mrb[0].mxu0 %v2773
  %v2841 = vpop.f32.mrb[0].mxu0
  %v2842 = vadd.f32 0.0, %v2841
  %v2843 = vpop.f32.mrb[0].mxu0
  %2844 = vdwg.mxu0
  %2845 = vrot.lane.b32.xlu0 %v139, 104
  %v2846 = vpop.permute.xlu0 %2845
  %2847 = vrot.lane.b32.xlu0 %v139, 40
  %v2848 = vpop.permute.xlu0 %2847
  %v2849 = vsel %vm146, %v2846, 0
  %v2851 = vsel %vm146, %v2848, 0
  %2853 = vmatprep.subr.mxu0 0.0
  %2854 = vmatpush1.xpose.msra.mxu0 %v2851
  %2855 = vmatprep.subr.mxu0 0.0
  %2856 = vmatpush1.xpose.msra.mxu0 0.0
  %2857 = vmatprep.subr.mxu0 0.0
  %2858 = vmatpush1.xpose.msra.mxu0 0.0
  %2859 = vmatprep.subr.mxu0 0.0
  %2860 = vmatpush1.xpose.msra.mxu0 0.0
  %2861 = vmatprep.subr.mxu0 0.0
  %2862 = vmatpush1.xpose.msra.mxu0 0.0
  %2863 = vmatprep.subr.mxu0 0.0
  %2864 = vmatpush1.xpose.msra.mxu0 0.0
  %2865 = vmatprep.subr.mxu0 0.0
  %2866 = vmatpush1.xpose.msra.mxu0 0.0
  %2867 = vmatprep.subr.mxu0 0.0
  %2868 = vmatpush1.xpose.msra.mxu0 0.0
  %2869 = vmatprep.subr.mxu0 0.0
  %2870 = vmatpush1.xpose.msra.mxu0 0.0
  %2871 = vmatprep.subr.mxu0 0.0
  %2872 = vmatpush1.xpose.msra.mxu0 0.0
  %2873 = vmatprep.subr.mxu0 0.0
  %2874 = vmatpush1.xpose.msra.mxu0 0.0
  %2875 = vmatprep.subr.mxu0 0.0
  %2876 = vmatpush1.xpose.msra.mxu0 0.0
  %2877 = vmatprep.subr.mxu0 0.0
  %2878 = vmatpush1.xpose.msra.mxu0 0.0
  %2879 = vmatprep.subr.mxu0 0.0
  %2880 = vmatpush1.xpose.msra.mxu0 0.0
  %2881 = vmatprep.subr.mxu0 0.0
  %2882 = vmatpush1.xpose.msra.mxu0 0.0
  %2883 = vmatprep.subr.mxu0 0.0
  %2884 = vmatpush1.xpose.msra.mxu0 0.0
  %2885 = vmatprep.subr.mxu0 0.0
  %2886 = vmatpush1.xpose.msra.mxu0 0.0
  %2887 = vmatprep.subr.mxu0 0.0
  %2888 = vmatpush1.xpose.msra.mxu0 0.0
  %2889 = vmatprep.subr.mxu0 0.0
  %2890 = vmatpush1.xpose.msra.mxu0 0.0
  %2891 = vmatprep.subr.mxu0 0.0
  %2892 = vmatpush1.xpose.msra.mxu0 0.0
  %2893 = vmatprep.subr.mxu0 0.0
  %2894 = vmatpush1.xpose.msra.mxu0 0.0
  %2895 = vmatprep.subr.mxu0 0.0
  %2896 = vmatpush1.xpose.msra.mxu0 0.0
  %2897 = vmatprep.subr.mxu0 0.0
  %2898 = vmatpush1.xpose.msra.mxu0 0.0
  %2899 = vmatprep.subr.mxu0 0.0
  %2900 = vmatpush1.xpose.msra.mxu0 0.0
  %2901 = vmatprep.subr.mxu0 0.0
  %2902 = vmatpush1.xpose.msra.mxu0 0.0
  %2903 = vmatprep.subr.mxu0 0.0
  %2904 = vmatpush1.xpose.msra.mxu0 0.0
  %2905 = vmatprep.subr.mxu0 0.0
  %2906 = vmatpush1.xpose.msra.mxu0 0.0
  %2907 = vmatprep.subr.mxu0 0.0
  %2908 = vmatpush1.xpose.msra.mxu0 0.0
  %2909 = vmatprep.subr.mxu0 0.0
  %2910 = vmatpush1.xpose.msra.mxu0 0.0
  %2911 = vmatprep.subr.mxu0 0.0
  %2912 = vmatpush1.xpose.msra.mxu0 0.0
  %2913 = vmatprep.subr.mxu0 0.0
  %2914 = vmatpush1.xpose.msra.mxu0 0.0
  %2915 = vmatprep.subr.mxu0 0.0
  %2916 = vmatpush1.xpose.msra.mxu0 0.0
  %2917 = vmatprep.mubr.f32.mxu0 0.0
  %2918 = vmatmul.mubr.f32.gmra.mrb[0].mxu0 %v2849
  %v2919 = vpop.f32.mrb[0].mxu0
  %v2920 = vadd.f32 0.0, %v2919
  %v2921 = vpop.f32.mrb[0].mxu0
  %2922 = vdwg.mxu0
  %v2923 = vmul.f32 %v2920, 0.35355338
  %2924 = vmatprep.subr.mxu0 0.0
  %2925 = vmatpush1.msra.mxu0 %v949
  %2926 = vmatprep.subr.mxu0 0.0
  %2927 = vmatpush1.msra.mxu0 0.0
  %2928 = vmatprep.subr.mxu0 0.0
  %2929 = vmatpush1.msra.mxu0 0.0
  %2930 = vmatprep.subr.mxu0 0.0
  %2931 = vmatpush1.msra.mxu0 0.0
  %2932 = vmatprep.subr.mxu0 0.0
  %2933 = vmatpush1.msra.mxu0 0.0
  %2934 = vmatprep.subr.mxu0 0.0
  %2935 = vmatpush1.msra.mxu0 0.0
  %2936 = vmatprep.subr.mxu0 0.0
  %2937 = vmatpush1.msra.mxu0 0.0
  %2938 = vmatprep.subr.mxu0 0.0
  %2939 = vmatpush1.msra.mxu0 0.0
  %2940 = vmatprep.subr.mxu0 0.0
  %2941 = vmatpush1.msra.mxu0 0.0
  %2942 = vmatprep.subr.mxu0 0.0
  %2943 = vmatpush1.msra.mxu0 0.0
  %2944 = vmatprep.subr.mxu0 0.0
  %2945 = vmatpush1.msra.mxu0 0.0
  %2946 = vmatprep.subr.mxu0 0.0
  %2947 = vmatpush1.msra.mxu0 0.0
  %2948 = vmatprep.subr.mxu0 0.0
  %2949 = vmatpush1.msra.mxu0 0.0
  %2950 = vmatprep.subr.mxu0 0.0
  %2951 = vmatpush1.msra.mxu0 0.0
  %2952 = vmatprep.subr.mxu0 0.0
  %2953 = vmatpush1.msra.mxu0 0.0
  %2954 = vmatprep.subr.mxu0 0.0
  %2955 = vmatpush1.msra.mxu0 0.0
  %2956 = vmatprep.subr.mxu0 0.0
  %2957 = vmatpush1.msra.mxu0 0.0
  %2958 = vmatprep.subr.mxu0 0.0
  %2959 = vmatpush1.msra.mxu0 0.0
  %2960 = vmatprep.subr.mxu0 0.0
  %2961 = vmatpush1.msra.mxu0 0.0
  %2962 = vmatprep.subr.mxu0 0.0
  %2963 = vmatpush1.msra.mxu0 0.0
  %2964 = vmatprep.subr.mxu0 0.0
  %2965 = vmatpush1.msra.mxu0 0.0
  %2966 = vmatprep.subr.mxu0 0.0
  %2967 = vmatpush1.msra.mxu0 0.0
  %2968 = vmatprep.subr.mxu0 0.0
  %2969 = vmatpush1.msra.mxu0 0.0
  %2970 = vmatprep.subr.mxu0 0.0
  %2971 = vmatpush1.msra.mxu0 0.0
  %2972 = vmatprep.subr.mxu0 0.0
  %2973 = vmatpush1.msra.mxu0 0.0
  %2974 = vmatprep.subr.mxu0 0.0
  %2975 = vmatpush1.msra.mxu0 0.0
  %2976 = vmatprep.subr.mxu0 0.0
  %2977 = vmatpush1.msra.mxu0 0.0
  %2978 = vmatprep.subr.mxu0 0.0
  %2979 = vmatpush1.msra.mxu0 0.0
  %2980 = vmatprep.subr.mxu0 0.0
  %2981 = vmatpush1.msra.mxu0 0.0
  %2982 = vmatprep.subr.mxu0 0.0
  %2983 = vmatpush1.msra.mxu0 0.0
  %2984 = vmatprep.subr.mxu0 0.0
  %2985 = vmatpush1.msra.mxu0 0.0
  %2986 = vmatprep.subr.mxu0 0.0
  %2987 = vmatpush1.msra.mxu0 0.0
  %2988 = vmatprep.mubr.f32.mxu0 0.0
  %2989 = vmatmul.mubr.f32.gmra.mrb[0].mxu0 %v2849
  %v2990 = vpop.f32.mrb[0].mxu0
  %v2991 = vadd.f32 0.0, %v2990
  %v2992 = vpop.f32.mrb[0].mxu0
  %2993 = vdwg.mxu0
  %s2995 = sor.u32 256, 121
  %2996 = vrot.lane.b32.xlu0 %v2991, %s2995
  %v2997 = vpop.permute.xlu0 %2996
  %v2998 = vadd.f32 %v2923, %v2997
  %v2999 = vsel %vm146, %v2998, -inf
  %3000 = vmax.xlane.f32.xlu0 %v2999
  %v3001 = vpop.xlane.xlu0 %3000
  %v3002 = vsub.f32 %v2998, %v3001
  %v3003 = vmul.f32 %v3002, 1.442695
  %v3004 = vpow.pop %v3003
  %v3005 = vsel %vm146, %v3004, 0.0
  %3006 = vadd.xlane.f32.xlu0 %v3005
  %v3007 = vpop.xlane.xlu0 %3006
  %v3008 = vrcp.pop %v3007
  %v3009 = vmul.f32 %v3004, %v3008
  %3010 = vrot.lane.b32.xlu0 %v141, 104
  %v3011 = vpop.permute.xlu0 %3010
  %v3014 = vsel %vm146, %v3009, 0
  %3016 = vmatprep.subr.mxu0 0.0
  %3017 = vmatpush1.msra.mxu0 %v3011
  %3018 = vmatprep.subr.mxu0 0.0
  %3019 = vmatpush1.msra.mxu0 0.0
  %3020 = vmatprep.subr.mxu0 0.0
  %3021 = vmatpush1.msra.mxu0 0.0
  %3022 = vmatprep.subr.mxu0 0.0
  %3023 = vmatpush1.msra.mxu0 0.0
  %3024 = vmatprep.subr.mxu0 0.0
  %3025 = vmatpush1.msra.mxu0 0.0
  %3026 = vmatprep.subr.mxu0 0.0
  %3027 = vmatpush1.msra.mxu0 0.0
  %3028 = vmatprep.subr.mxu0 0.0
  %3029 = vmatpush1.msra.mxu0 0.0
  %3030 = vmatprep.subr.mxu0 0.0
  %3031 = vmatpush1.msra.mxu0 0.0
  %3032 = vmatprep.subr.mxu0 0.0
  %3033 = vmatpush1.msra.mxu0 0.0
  %3034 = vmatprep.subr.mxu0 0.0
  %3035 = vmatpush1.msra.mxu0 0.0
  %3036 = vmatprep.subr.mxu0 0.0
  %3037 = vmatpush1.msra.mxu0 0.0
  %3038 = vmatprep.subr.mxu0 0.0
  %3039 = vmatpush1.msra.mxu0 0.0
  %3040 = vmatprep.subr.mxu0 0.0
  %3041 = vmatpush1.msra.mxu0 0.0
  %3042 = vmatprep.subr.mxu0 0.0
  %3043 = vmatpush1.msra.mxu0 0.0
  %3044 = vmatprep.subr.mxu0 0.0
  %3045 = vmatpush1.msra.mxu0 0.0
  %3046 = vmatprep.subr.mxu0 0.0
  %3047 = vmatpush1.msra.mxu0 0.0
  %3048 = vmatprep.subr.mxu0 0.0
  %3049 = vmatpush1.msra.mxu0 0.0
  %3050 = vmatprep.subr.mxu0 0.0
  %3051 = vmatpush1.msra.mxu0 0.0
  %3052 = vmatprep.subr.mxu0 0.0
  %3053 = vmatpush1.msra.mxu0 0.0
  %3054 = vmatprep.subr.mxu0 0.0
  %3055 = vmatpush1.msra.mxu0 0.0
  %3056 = vmatprep.subr.mxu0 0.0
  %3057 = vmatpush1.msra.mxu0 0.0
  %3058 = vmatprep.subr.mxu0 0.0
  %3059 = vmatpush1.msra.mxu0 0.0
  %3060 = vmatprep.subr.mxu0 0.0
  %3061 = vmatpush1.msra.mxu0 0.0
  %3062 = vmatprep.subr.mxu0 0.0
  %3063 = vmatpush1.msra.mxu0 0.0
  %3064 = vmatprep.subr.mxu0 0.0
  %3065 = vmatpush1.msra.mxu0 0.0
  %3066 = vmatprep.subr.mxu0 0.0
  %3067 = vmatpush1.msra.mxu0 0.0
  %3068 = vmatprep.subr.mxu0 0.0
  %3069 = vmatpush1.msra.mxu0 0.0
  %3070 = vmatprep.subr.mxu0 0.0
  %3071 = vmatpush1.msra.mxu0 0.0
  %3072 = vmatprep.subr.mxu0 0.0
  %3073 = vmatpush1.msra.mxu0 0.0
  %3074 = vmatprep.subr.mxu0 0.0
  %3075 = vmatpush1.msra.mxu0 0.0
  %3076 = vmatprep.subr.mxu0 0.0
  %3077 = vmatpush1.msra.mxu0 0.0
  %3078 = vmatprep.subr.mxu0 0.0
  %3079 = vmatpush1.msra.mxu0 0.0
  %3080 = vmatprep.mubr.f32.mxu0 0.0
  %3081 = vmatmul.mubr.f32.gmra.mrb[0].mxu0 %v3014
  %v3082 = vpop.f32.mrb[0].mxu0
  %v3083 = vadd.f32 0.0, %v3082
  %v3084 = vpop.f32.mrb[0].mxu0
  %3085 = vdwg.mxu0
  %3086 = vrot.lane.b32.xlu0 %v139, 96
  %v3087 = vpop.permute.xlu0 %3086
  %3088 = vrot.lane.b32.xlu0 %v139, 32
  %v3089 = vpop.permute.xlu0 %3088
  %v3090 = vsel %vm146, %v3087, 0
  %v3092 = vsel %vm146, %v3089, 0
  %3094 = vmatprep.subr.mxu0 0.0
  %3095 = vmatpush1.xpose.msra.mxu0 %v3092
  %3096 = vmatprep.subr.mxu0 0.0
  %3097 = vmatpush1.xpose.msra.mxu0 0.0
  %3098 = vmatprep.subr.mxu0 0.0
  %3099 = vmatpush1.xpose.msra.mxu0 0.0
  %3100 = vmatprep.subr.mxu0 0.0
  %3101 = vmatpush1.xpose.msra.mxu0 0.0
  %3102 = vmatprep.subr.mxu0 0.0
  %3103 = vmatpush1.xpose.msra.mxu0 0.0
  %3104 = vmatprep.subr.mxu0 0.0
  %3105 = vmatpush1.xpose.msra.mxu0 0.0
  %3106 = vmatprep.subr.mxu0 0.0
  %3107 = vmatpush1.xpose.msra.mxu0 0.0
  %3108 = vmatprep.subr.mxu0 0.0
  %3109 = vmatpush1.xpose.msra.mxu0 0.0
  %3110 = vmatprep.subr.mxu0 0.0
  %3111 = vmatpush1.xpose.msra.mxu0 0.0
  %3112 = vmatprep.subr.mxu0 0.0
  %3113 = vmatpush1.xpose.msra.mxu0 0.0
  %3114 = vmatprep.subr.mxu0 0.0
  %3115 = vmatpush1.xpose.msra.mxu0 0.0
  %3116 = vmatprep.subr.mxu0 0.0
  %3117 = vmatpush1.xpose.msra.mxu0 0.0
  %3118 = vmatprep.subr.mxu0 0.0
  %3119 = vmatpush1.xpose.msra.mxu0 0.0
  %3120 = vmatprep.subr.mxu0 0.0
  %3121 = vmatpush1.xpose.msra.mxu0 0.0
  %3122 = vmatprep.subr.mxu0 0.0
  %3123 = vmatpush1.xpose.msra.mxu0 0.0
  %3124 = vmatprep.subr.mxu0 0.0
  %3125 = vmatpush1.xpose.msra.mxu0 0.0
  %3126 = vmatprep.subr.mxu0 0.0
  %3127 = vmatpush1.xpose.msra.mxu0 0.0
  %3128 = vmatprep.subr.mxu0 0.0
  %3129 = vmatpush1.xpose.msra.mxu0 0.0
  %3130 = vmatprep.subr.mxu0 0.0
  %3131 = vmatpush1.xpose.msra.mxu0 0.0
  %3132 = vmatprep.subr.mxu0 0.0
  %3133 = vmatpush1.xpose.msra.mxu0 0.0
  %3134 = vmatprep.subr.mxu0 0.0
  %3135 = vmatpush1.xpose.msra.mxu0 0.0
  %3136 = vmatprep.subr.mxu0 0.0
  %3137 = vmatpush1.xpose.msra.mxu0 0.0
  %3138 = vmatprep.subr.mxu0 0.0
  %3139 = vmatpush1.xpose.msra.mxu0 0.0
  %3140 = vmatprep.subr.mxu0 0.0
  %3141 = vmatpush1.xpose.msra.mxu0 0.0
  %3142 = vmatprep.subr.mxu0 0.0
  %3143 = vmatpush1.xpose.msra.mxu0 0.0
  %3144 = vmatprep.subr.mxu0 0.0
  %3145 = vmatpush1.xpose.msra.mxu0 0.0
  %3146 = vmatprep.subr.mxu0 0.0
  %3147 = vmatpush1.xpose.msra.mxu0 0.0
  %3148 = vmatprep.subr.mxu0 0.0
  %3149 = vmatpush1.xpose.msra.mxu0 0.0
  %3150 = vmatprep.subr.mxu0 0.0
  %3151 = vmatpush1.xpose.msra.mxu0 0.0
  %3152 = vmatprep.subr.mxu0 0.0
  %3153 = vmatpush1.xpose.msra.mxu0 0.0
  %3154 = vmatprep.subr.mxu0 0.0
  %3155 = vmatpush1.xpose.msra.mxu0 0.0
  %3156 = vmatprep.subr.mxu0 0.0
  %3157 = vmatpush1.xpose.msra.mxu0 0.0
  %3158 = vmatprep.mubr.f32.mxu0 0.0
  %3159 = vmatmul.mubr.f32.gmra.mrb[0].mxu0 %v3090
  %v3160 = vpop.f32.mrb[0].mxu0
  %v3161 = vadd.f32 0.0, %v3160
  %v3162 = vpop.f32.mrb[0].mxu0
  %3163 = vdwg.mxu0
  %v3164 = vmul.f32 %v3161, 0.35355338
  %3165 = vmatprep.subr.mxu0 0.0
  %3166 = vmatpush1.msra.mxu0 %v1192
  %3167 = vmatprep.subr.mxu0 0.0
  %3168 = vmatpush1.msra.mxu0 0.0
  %3169 = vmatprep.subr.mxu0 0.0
  %3170 = vmatpush1.msra.mxu0 0.0
  %3171 = vmatprep.subr.mxu0 0.0
  %3172 = vmatpush1.msra.mxu0 0.0
  %3173 = vmatprep.subr.mxu0 0.0
  %3174 = vmatpush1.msra.mxu0 0.0
  %3175 = vmatprep.subr.mxu0 0.0
  %3176 = vmatpush1.msra.mxu0 0.0
  %3177 = vmatprep.subr.mxu0 0.0
  %3178 = vmatpush1.msra.mxu0 0.0
  %3179 = vmatprep.subr.mxu0 0.0
  %3180 = vmatpush1.msra.mxu0 0.0
  %3181 = vmatprep.subr.mxu0 0.0
  %3182 = vmatpush1.msra.mxu0 0.0
  %3183 = vmatprep.subr.mxu0 0.0
  %3184 = vmatpush1.msra.mxu0 0.0
  %3185 = vmatprep.subr.mxu0 0.0
  %3186 = vmatpush1.msra.mxu0 0.0
  %3187 = vmatprep.subr.mxu0 0.0
  %3188 = vmatpush1.msra.mxu0 0.0
  %3189 = vmatprep.subr.mxu0 0.0
  %3190 = vmatpush1.msra.mxu0 0.0
  %3191 = vmatprep.subr.mxu0 0.0
  %3192 = vmatpush1.msra.mxu0 0.0
  %3193 = vmatprep.subr.mxu0 0.0
  %3194 = vmatpush1.msra.mxu0 0.0
  %3195 = vmatprep.subr.mxu0 0.0
  %3196 = vmatpush1.msra.mxu0 0.0
  %3197 = vmatprep.subr.mxu0 0.0
  %3198 = vmatpush1.msra.mxu0 0.0
  %3199 = vmatprep.subr.mxu0 0.0
  %3200 = vmatpush1.msra.mxu0 0.0
  %3201 = vmatprep.subr.mxu0 0.0
  %3202 = vmatpush1.msra.mxu0 0.0
  %3203 = vmatprep.subr.mxu0 0.0
  %3204 = vmatpush1.msra.mxu0 0.0
  %3205 = vmatprep.subr.mxu0 0.0
  %3206 = vmatpush1.msra.mxu0 0.0
  %3207 = vmatprep.subr.mxu0 0.0
  %3208 = vmatpush1.msra.mxu0 0.0
  %3209 = vmatprep.subr.mxu0 0.0
  %3210 = vmatpush1.msra.mxu0 0.0
  %3211 = vmatprep.subr.mxu0 0.0
  %3212 = vmatpush1.msra.mxu0 0.0
  %3213 = vmatprep.subr.mxu0 0.0
  %3214 = vmatpush1.msra.mxu0 0.0
  %3215 = vmatprep.subr.mxu0 0.0
  %3216 = vmatpush1.msra.mxu0 0.0
  %3217 = vmatprep.subr.mxu0 0.0
  %3218 = vmatpush1.msra.mxu0 0.0
  %3219 = vmatprep.subr.mxu0 0.0
  %3220 = vmatpush1.msra.mxu0 0.0
  %3221 = vmatprep.subr.mxu0 0.0
  %3222 = vmatpush1.msra.mxu0 0.0
  %3223 = vmatprep.subr.mxu0 0.0
  %3224 = vmatpush1.msra.mxu0 0.0
  %3225 = vmatprep.subr.mxu0 0.0
  %3226 = vmatpush1.msra.mxu0 0.0
  %3227 = vmatprep.subr.mxu0 0.0
  %3228 = vmatpush1.msra.mxu0 0.0
  %3229 = vmatprep.mubr.f32.mxu0 0.0
  %3230 = vmatmul.mubr.f32.gmra.mrb[0].mxu0 %v3090
  %v3231 = vpop.f32.mrb[0].mxu0
  %v3232 = vadd.f32 0.0, %v3231
  %v3233 = vpop.f32.mrb[0].mxu0
  %3234 = vdwg.mxu0
  %s3236 = sor.u32 256, 121
  %3237 = vrot.lane.b32.xlu0 %v3232, %s3236
  %v3238 = vpop.permute.xlu0 %3237
  %v3239 = vadd.f32 %v3164, %v3238
  %v3240 = vsel %vm146, %v3239, -inf
  %3241 = vmax.xlane.f32.xlu0 %v3240
  %v3242 = vpop.xlane.xlu0 %3241
  %v3243 = vsub.f32 %v3239, %v3242
  %v3244 = vmul.f32 %v3243, 1.442695
  %v3245 = vpow.pop %v3244
  %v3246 = vsel %vm146, %v3245, 0.0
  %3247 = vadd.xlane.f32.xlu0 %v3246
  %v3248 = vpop.xlane.xlu0 %3247
  %v3249 = vrcp.pop %v3248
  %v3250 = vmul.f32 %v3245, %v3249
  %3251 = vrot.lane.b32.xlu0 %v141, 96
  %v3252 = vpop.permute.xlu0 %3251
  %v3255 = vsel %vm146, %v3250, 0
  %3257 = vmatprep.subr.mxu0 0.0
  %3258 = vmatpush1.msra.mxu0 %v3252
  %3259 = vmatprep.subr.mxu0 0.0
  %3260 = vmatpush1.msra.mxu0 0.0
  %3261 = vmatprep.subr.mxu0 0.0
  %3262 = vmatpush1.msra.mxu0 0.0
  %3263 = vmatprep.subr.mxu0 0.0
  %3264 = vmatpush1.msra.mxu0 0.0
  %3265 = vmatprep.subr.mxu0 0.0
  %3266 = vmatpush1.msra.mxu0 0.0
  %3267 = vmatprep.subr.mxu0 0.0
  %3268 = vmatpush1.msra.mxu0 0.0
  %3269 = vmatprep.subr.mxu0 0.0
  %3270 = vmatpush1.msra.mxu0 0.0
  %3271 = vmatprep.subr.mxu0 0.0
  %3272 = vmatpush1.msra.mxu0 0.0
  %3273 = vmatprep.subr.mxu0 0.0
  %3274 = vmatpush1.msra.mxu0 0.0
  %3275 = vmatprep.subr.mxu0 0.0
  %3276 = vmatpush1.msra.mxu0 0.0
  %3277 = vmatprep.subr.mxu0 0.0
  %3278 = vmatpush1.msra.mxu0 0.0
  %3279 = vmatprep.subr.mxu0 0.0
  %3280 = vmatpush1.msra.mxu0 0.0
  %3281 = vmatprep.subr.mxu0 0.0
  %3282 = vmatpush1.msra.mxu0 0.0
  %3283 = vmatprep.subr.mxu0 0.0
  %3284 = vmatpush1.msra.mxu0 0.0
  %3285 = vmatprep.subr.mxu0 0.0
  %3286 = vmatpush1.msra.mxu0 0.0
  %3287 = vmatprep.subr.mxu0 0.0
  %3288 = vmatpush1.msra.mxu0 0.0
  %3289 = vmatprep.subr.mxu0 0.0
  %3290 = vmatpush1.msra.mxu0 0.0
  %3291 = vmatprep.subr.mxu0 0.0
  %3292 = vmatpush1.msra.mxu0 0.0
  %3293 = vmatprep.subr.mxu0 0.0
  %3294 = vmatpush1.msra.mxu0 0.0
  %3295 = vmatprep.subr.mxu0 0.0
  %3296 = vmatpush1.msra.mxu0 0.0
  %3297 = vmatprep.subr.mxu0 0.0
  %3298 = vmatpush1.msra.mxu0 0.0
  %3299 = vmatprep.subr.mxu0 0.0
  %3300 = vmatpush1.msra.mxu0 0.0
  %3301 = vmatprep.subr.mxu0 0.0
  %3302 = vmatpush1.msra.mxu0 0.0
  %3303 = vmatprep.subr.mxu0 0.0
  %3304 = vmatpush1.msra.mxu0 0.0
  %3305 = vmatprep.subr.mxu0 0.0
  %3306 = vmatpush1.msra.mxu0 0.0
  %3307 = vmatprep.subr.mxu0 0.0
  %3308 = vmatpush1.msra.mxu0 0.0
  %3309 = vmatprep.subr.mxu0 0.0
  %3310 = vmatpush1.msra.mxu0 0.0
  %3311 = vmatprep.subr.mxu0 0.0
  %3312 = vmatpush1.msra.mxu0 0.0
  %3313 = vmatprep.subr.mxu0 0.0
  %3314 = vmatpush1.msra.mxu0 0.0
  %3315 = vmatprep.subr.mxu0 0.0
  %3316 = vmatpush1.msra.mxu0 0.0
  %3317 = vmatprep.subr.mxu0 0.0
  %3318 = vmatpush1.msra.mxu0 0.0
  %3319 = vmatprep.subr.mxu0 0.0
  %3320 = vmatpush1.msra.mxu0 0.0
  %3321 = vmatprep.mubr.f32.mxu0 0.0
  %3322 = vmatmul.mubr.f32.gmra.mrb[0].mxu0 %v3255
  %v3323 = vpop.f32.mrb[0].mxu0
  %v3324 = vadd.f32 0.0, %v3323
  %v3325 = vpop.f32.mrb[0].mxu0
  %3326 = vdwg.mxu0
  %3327 = vrot.lane.b32.xlu0 %v139, 88
  %v3328 = vpop.permute.xlu0 %3327
  %3329 = vrot.lane.b32.xlu0 %v139, 24
  %v3330 = vpop.permute.xlu0 %3329
  %v3331 = vsel %vm146, %v3328, 0
  %v3333 = vsel %vm146, %v3330, 0
  %3335 = vmatprep.subr.mxu0 0.0
  %3336 = vmatpush1.xpose.msra.mxu0 %v3333
  %3337 = vmatprep.subr.mxu0 0.0
  %3338 = vmatpush1.xpose.msra.mxu0 0.0
  %3339 = vmatprep.subr.mxu0 0.0
  %3340 = vmatpush1.xpose.msra.mxu0 0.0
  %3341 = vmatprep.subr.mxu0 0.0
  %3342 = vmatpush1.xpose.msra.mxu0 0.0
  %3343 = vmatprep.subr.mxu0 0.0
  %3344 = vmatpush1.xpose.msra.mxu0 0.0
  %3345 = vmatprep.subr.mxu0 0.0
  %3346 = vmatpush1.xpose.msra.mxu0 0.0
  %3347 = vmatprep.subr.mxu0 0.0
  %3348 = vmatpush1.xpose.msra.mxu0 0.0
  %3349 = vmatprep.subr.mxu0 0.0
  %3350 = vmatpush1.xpose.msra.mxu0 0.0
  %3351 = vmatprep.subr.mxu0 0.0
  %3352 = vmatpush1.xpose.msra.mxu0 0.0
  %3353 = vmatprep.subr.mxu0 0.0
  %3354 = vmatpush1.xpose.msra.mxu0 0.0
  %3355 = vmatprep.subr.mxu0 0.0
  %3356 = vmatpush1.xpose.msra.mxu0 0.0
  %3357 = vmatprep.subr.mxu0 0.0
  %3358 = vmatpush1.xpose.msra.mxu0 0.0
  %3359 = vmatprep.subr.mxu0 0.0
  %3360 = vmatpush1.xpose.msra.mxu0 0.0
  %3361 = vmatprep.subr.mxu0 0.0
  %3362 = vmatpush1.xpose.msra.mxu0 0.0
  %3363 = vmatprep.subr.mxu0 0.0
  %3364 = vmatpush1.xpose.msra.mxu0 0.0
  %3365 = vmatprep.subr.mxu0 0.0
  %3366 = vmatpush1.xpose.msra.mxu0 0.0
  %3367 = vmatprep.subr.mxu0 0.0
  %3368 = vmatpush1.xpose.msra.mxu0 0.0
  %3369 = vmatprep.subr.mxu0 0.0
  %3370 = vmatpush1.xpose.msra.mxu0 0.0
  %3371 = vmatprep.subr.mxu0 0.0
  %3372 = vmatpush1.xpose.msra.mxu0 0.0
  %3373 = vmatprep.subr.mxu0 0.0
  %3374 = vmatpush1.xpose.msra.mxu0 0.0
  %3375 = vmatprep.subr.mxu0 0.0
  %3376 = vmatpush1.xpose.msra.mxu0 0.0
  %3377 = vmatprep.subr.mxu0 0.0
  %3378 = vmatpush1.xpose.msra.mxu0 0.0
  %3379 = vmatprep.subr.mxu0 0.0
  %3380 = vmatpush1.xpose.msra.mxu0 0.0
  %3381 = vmatprep.subr.mxu0 0.0
  %3382 = vmatpush1.xpose.msra.mxu0 0.0
  %3383 = vmatprep.subr.mxu0 0.0
  %3384 = vmatpush1.xpose.msra.mxu0 0.0
  %3385 = vmatprep.subr.mxu0 0.0
  %3386 = vmatpush1.xpose.msra.mxu0 0.0
  %3387 = vmatprep.subr.mxu0 0.0
  %3388 = vmatpush1.xpose.msra.mxu0 0.0
  %3389 = vmatprep.subr.mxu0 0.0
  %3390 = vmatpush1.xpose.msra.mxu0 0.0
  %3391 = vmatprep.subr.mxu0 0.0
  %3392 = vmatpush1.xpose.msra.mxu0 0.0
  %3393 = vmatprep.subr.mxu0 0.0
  %3394 = vmatpush1.xpose.msra.mxu0 0.0
  %3395 = vmatprep.subr.mxu0 0.0
  %3396 = vmatpush1.xpose.msra.mxu0 0.0
  %3397 = vmatprep.subr.mxu0 0.0
  %3398 = vmatpush1.xpose.msra.mxu0 0.0
  %3399 = vmatprep.mubr.f32.mxu0 0.0
  %3400 = vmatmul.mubr.f32.gmra.mrb[0].mxu0 %v3331
  %v3401 = vpop.f32.mrb[0].mxu0
  %v3402 = vadd.f32 0.0, %v3401
  %v3403 = vpop.f32.mrb[0].mxu0
  %3404 = vdwg.mxu0
  %v3405 = vmul.f32 %v3402, 0.35355338
  %3406 = vmatprep.subr.mxu0 0.0
  %3407 = vmatpush1.msra.mxu0 %v1435
  %3408 = vmatprep.subr.mxu0 0.0
  %3409 = vmatpush1.msra.mxu0 0.0
  %3410 = vmatprep.subr.mxu0 0.0
  %3411 = vmatpush1.msra.mxu0 0.0
  %3412 = vmatprep.subr.mxu0 0.0
  %3413 = vmatpush1.msra.mxu0 0.0
  %3414 = vmatprep.subr.mxu0 0.0
  %3415 = vmatpush1.msra.mxu0 0.0
  %3416 = vmatprep.subr.mxu0 0.0
  %3417 = vmatpush1.msra.mxu0 0.0
  %3418 = vmatprep.subr.mxu0 0.0
  %3419 = vmatpush1.msra.mxu0 0.0
  %3420 = vmatprep.subr.mxu0 0.0
  %3421 = vmatpush1.msra.mxu0 0.0
  %3422 = vmatprep.subr.mxu0 0.0
  %3423 = vmatpush1.msra.mxu0 0.0
  %3424 = vmatprep.subr.mxu0 0.0
  %3425 = vmatpush1.msra.mxu0 0.0
  %3426 = vmatprep.subr.mxu0 0.0
  %3427 = vmatpush1.msra.mxu0 0.0
  %3428 = vmatprep.subr.mxu0 0.0
  %3429 = vmatpush1.msra.mxu0 0.0
  %3430 = vmatprep.subr.mxu0 0.0
  %3431 = vmatpush1.msra.mxu0 0.0
  %3432 = vmatprep.subr.mxu0 0.0
  %3433 = vmatpush1.msra.mxu0 0.0
  %3434 = vmatprep.subr.mxu0 0.0
  %3435 = vmatpush1.msra.mxu0 0.0
  %3436 = vmatprep.subr.mxu0 0.0
  %3437 = vmatpush1.msra.mxu0 0.0
  %3438 = vmatprep.subr.mxu0 0.0
  %3439 = vmatpush1.msra.mxu0 0.0
  %3440 = vmatprep.subr.mxu0 0.0
  %3441 = vmatpush1.msra.mxu0 0.0
  %3442 = vmatprep.subr.mxu0 0.0
  %3443 = vmatpush1.msra.mxu0 0.0
  %3444 = vmatprep.subr.mxu0 0.0
  %3445 = vmatpush1.msra.mxu0 0.0
  %3446 = vmatprep.subr.mxu0 0.0
  %3447 = vmatpush1.msra.mxu0 0.0
  %3448 = vmatprep.subr.mxu0 0.0
  %3449 = vmatpush1.msra.mxu0 0.0
  %3450 = vmatprep.subr.mxu0 0.0
  %3451 = vmatpush1.msra.mxu0 0.0
  %3452 = vmatprep.subr.mxu0 0.0
  %3453 = vmatpush1.msra.mxu0 0.0
  %3454 = vmatprep.subr.mxu0 0.0
  %3455 = vmatpush1.msra.mxu0 0.0
  %3456 = vmatprep.subr.mxu0 0.0
  %3457 = vmatpush1.msra.mxu0 0.0
  %3458 = vmatprep.subr.mxu0 0.0
  %3459 = vmatpush1.msra.mxu0 0.0
  %3460 = vmatprep.subr.mxu0 0.0
  %3461 = vmatpush1.msra.mxu0 0.0
  %3462 = vmatprep.subr.mxu0 0.0
  %3463 = vmatpush1.msra.mxu0 0.0
  %3464 = vmatprep.subr.mxu0 0.0
  %3465 = vmatpush1.msra.mxu0 0.0
  %3466 = vmatprep.subr.mxu0 0.0
  %3467 = vmatpush1.msra.mxu0 0.0
  %3468 = vmatprep.subr.mxu0 0.0
  %3469 = vmatpush1.msra.mxu0 0.0
  %3470 = vmatprep.mubr.f32.mxu0 0.0
  %3471 = vmatmul.mubr.f32.gmra.mrb[0].mxu0 %v3331
  %v3472 = vpop.f32.mrb[0].mxu0
  %v3473 = vadd.f32 0.0, %v3472
  %v3474 = vpop.f32.mrb[0].mxu0
  %3475 = vdwg.mxu0
  %s3477 = sor.u32 256, 121
  %3478 = vrot.lane.b32.xlu0 %v3473, %s3477
  %v3479 = vpop.permute.xlu0 %3478
  %v3480 = vadd.f32 %v3405, %v3479
  %v3481 = vsel %vm146, %v3480, -inf
  %3482 = vmax.xlane.f32.xlu0 %v3481
  %v3483 = vpop.xlane.xlu0 %3482
  %v3484 = vsub.f32 %v3480, %v3483
  %v3485 = vmul.f32 %v3484, 1.442695
  %v3486 = vpow.pop %v3485
  %v3487 = vsel %vm146, %v3486, 0.0
  %3488 = vadd.xlane.f32.xlu0 %v3487
  %v3489 = vpop.xlane.xlu0 %3488
  %v3490 = vrcp.pop %v3489
  %v3491 = vmul.f32 %v3486, %v3490
  %3492 = vrot.lane.b32.xlu0 %v141, 88
  %v3493 = vpop.permute.xlu0 %3492
  %v3496 = vsel %vm146, %v3491, 0
  %3498 = vmatprep.subr.mxu0 0.0
  %3499 = vmatpush1.msra.mxu0 %v3493
  %3500 = vmatprep.subr.mxu0 0.0
  %3501 = vmatpush1.msra.mxu0 0.0
  %3502 = vmatprep.subr.mxu0 0.0
  %3503 = vmatpush1.msra.mxu0 0.0
  %3504 = vmatprep.subr.mxu0 0.0
  %3505 = vmatpush1.msra.mxu0 0.0
  %3506 = vmatprep.subr.mxu0 0.0
  %3507 = vmatpush1.msra.mxu0 0.0
  %3508 = vmatprep.subr.mxu0 0.0
  %3509 = vmatpush1.msra.mxu0 0.0
  %3510 = vmatprep.subr.mxu0 0.0
  %3511 = vmatpush1.msra.mxu0 0.0
  %3512 = vmatprep.subr.mxu0 0.0
  %3513 = vmatpush1.msra.mxu0 0.0
  %3514 = vmatprep.subr.mxu0 0.0
  %3515 = vmatpush1.msra.mxu0 0.0
  %3516 = vmatprep.subr.mxu0 0.0
  %3517 = vmatpush1.msra.mxu0 0.0
  %3518 = vmatprep.subr.mxu0 0.0
  %3519 = vmatpush1.msra.mxu0 0.0
  %3520 = vmatprep.subr.mxu0 0.0
  %3521 = vmatpush1.msra.mxu0 0.0
  %3522 = vmatprep.subr.mxu0 0.0
  %3523 = vmatpush1.msra.mxu0 0.0
  %3524 = vmatprep.subr.mxu0 0.0
  %3525 = vmatpush1.msra.mxu0 0.0
  %3526 = vmatprep.subr.mxu0 0.0
  %3527 = vmatpush1.msra.mxu0 0.0
  %3528 = vmatprep.subr.mxu0 0.0
  %3529 = vmatpush1.msra.mxu0 0.0
  %3530 = vmatprep.subr.mxu0 0.0
  %3531 = vmatpush1.msra.mxu0 0.0
  %3532 = vmatprep.subr.mxu0 0.0
  %3533 = vmatpush1.msra.mxu0 0.0
  %3534 = vmatprep.subr.mxu0 0.0
  %3535 = vmatpush1.msra.mxu0 0.0
  %3536 = vmatprep.subr.mxu0 0.0
  %3537 = vmatpush1.msra.mxu0 0.0
  %3538 = vmatprep.subr.mxu0 0.0
  %3539 = vmatpush1.msra.mxu0 0.0
  %3540 = vmatprep.subr.mxu0 0.0
  %3541 = vmatpush1.msra.mxu0 0.0
  %3542 = vmatprep.subr.mxu0 0.0
  %3543 = vmatpush1.msra.mxu0 0.0
  %3544 = vmatprep.subr.mxu0 0.0
  %3545 = vmatpush1.msra.mxu0 0.0
  %3546 = vmatprep.subr.mxu0 0.0
  %3547 = vmatpush1.msra.mxu0 0.0
  %3548 = vmatprep.subr.mxu0 0.0
  %3549 = vmatpush1.msra.mxu0 0.0
  %3550 = vmatprep.subr.mxu0 0.0
  %3551 = vmatpush1.msra.mxu0 0.0
  %3552 = vmatprep.subr.mxu0 0.0
  %3553 = vmatpush1.msra.mxu0 0.0
  %3554 = vmatprep.subr.mxu0 0.0
  %3555 = vmatpush1.msra.mxu0 0.0
  %3556 = vmatprep.subr.mxu0 0.0
  %3557 = vmatpush1.msra.mxu0 0.0
  %3558 = vmatprep.subr.mxu0 0.0
  %3559 = vmatpush1.msra.mxu0 0.0
  %3560 = vmatprep.subr.mxu0 0.0
  %3561 = vmatpush1.msra.mxu0 0.0
  %3562 = vmatprep.mubr.f32.mxu0 0.0
  %3563 = vmatmul.mubr.f32.gmra.mrb[0].mxu0 %v3496
  %v3564 = vpop.f32.mrb[0].mxu0
  %v3565 = vadd.f32 0.0, %v3564
  %v3566 = vpop.f32.mrb[0].mxu0
  %3567 = vdwg.mxu0
  %3568 = vrot.lane.b32.xlu0 %v139, 80
  %v3569 = vpop.permute.xlu0 %3568
  %3570 = vrot.lane.b32.xlu0 %v139, 16
  %v3571 = vpop.permute.xlu0 %3570
  %v3572 = vsel %vm146, %v3569, 0
  %v3574 = vsel %vm146, %v3571, 0
  %3576 = vmatprep.subr.mxu0 0.0
  %3577 = vmatpush1.xpose.msra.mxu0 %v3574
  %3578 = vmatprep.subr.mxu0 0.0
  %3579 = vmatpush1.xpose.msra.mxu0 0.0
  %3580 = vmatprep.subr.mxu0 0.0
  %3581 = vmatpush1.xpose.msra.mxu0 0.0
  %3582 = vmatprep.subr.mxu0 0.0
  %3583 = vmatpush1.xpose.msra.mxu0 0.0
  %3584 = vmatprep.subr.mxu0 0.0
  %3585 = vmatpush1.xpose.msra.mxu0 0.0
  %3586 = vmatprep.subr.mxu0 0.0
  %3587 = vmatpush1.xpose.msra.mxu0 0.0
  %3588 = vmatprep.subr.mxu0 0.0
  %3589 = vmatpush1.xpose.msra.mxu0 0.0
  %3590 = vmatprep.subr.mxu0 0.0
  %3591 = vmatpush1.xpose.msra.mxu0 0.0
  %3592 = vmatprep.subr.mxu0 0.0
  %3593 = vmatpush1.xpose.msra.mxu0 0.0
  %3594 = vmatprep.subr.mxu0 0.0
  %3595 = vmatpush1.xpose.msra.mxu0 0.0
  %3596 = vmatprep.subr.mxu0 0.0
  %3597 = vmatpush1.xpose.msra.mxu0 0.0
  %3598 = vmatprep.subr.mxu0 0.0
  %3599 = vmatpush1.xpose.msra.mxu0 0.0
  %3600 = vmatprep.subr.mxu0 0.0
  %3601 = vmatpush1.xpose.msra.mxu0 0.0
  %3602 = vmatprep.subr.mxu0 0.0
  %3603 = vmatpush1.xpose.msra.mxu0 0.0
  %3604 = vmatprep.subr.mxu0 0.0
  %3605 = vmatpush1.xpose.msra.mxu0 0.0
  %3606 = vmatprep.subr.mxu0 0.0
  %3607 = vmatpush1.xpose.msra.mxu0 0.0
  %3608 = vmatprep.subr.mxu0 0.0
  %3609 = vmatpush1.xpose.msra.mxu0 0.0
  %3610 = vmatprep.subr.mxu0 0.0
  %3611 = vmatpush1.xpose.msra.mxu0 0.0
  %3612 = vmatprep.subr.mxu0 0.0
  %3613 = vmatpush1.xpose.msra.mxu0 0.0
  %3614 = vmatprep.subr.mxu0 0.0
  %3615 = vmatpush1.xpose.msra.mxu0 0.0
  %3616 = vmatprep.subr.mxu0 0.0
  %3617 = vmatpush1.xpose.msra.mxu0 0.0
  %3618 = vmatprep.subr.mxu0 0.0
  %3619 = vmatpush1.xpose.msra.mxu0 0.0
  %3620 = vmatprep.subr.mxu0 0.0
  %3621 = vmatpush1.xpose.msra.mxu0 0.0
  %3622 = vmatprep.subr.mxu0 0.0
  %3623 = vmatpush1.xpose.msra.mxu0 0.0
  %3624 = vmatprep.subr.mxu0 0.0
  %3625 = vmatpush1.xpose.msra.mxu0 0.0
  %3626 = vmatprep.subr.mxu0 0.0
  %3627 = vmatpush1.xpose.msra.mxu0 0.0
  %3628 = vmatprep.subr.mxu0 0.0
  %3629 = vmatpush1.xpose.msra.mxu0 0.0
  %3630 = vmatprep.subr.mxu0 0.0
  %3631 = vmatpush1.xpose.msra.mxu0 0.0
  %3632 = vmatprep.subr.mxu0 0.0
  %3633 = vmatpush1.xpose.msra.mxu0 0.0
  %3634 = vmatprep.subr.mxu0 0.0
  %3635 = vmatpush1.xpose.msra.mxu0 0.0
  %3636 = vmatprep.subr.mxu0 0.0
  %3637 = vmatpush1.xpose.msra.mxu0 0.0
  %3638 = vmatprep.subr.mxu0 0.0
  %3639 = vmatpush1.xpose.msra.mxu0 0.0
  %3640 = vmatprep.mubr.f32.mxu0 0.0
  %3641 = vmatmul.mubr.f32.gmra.mrb[0].mxu0 %v3572
  %v3642 = vpop.f32.mrb[0].mxu0
  %v3643 = vadd.f32 0.0, %v3642
  %v3644 = vpop.f32.mrb[0].mxu0
  %3645 = vdwg.mxu0
  %v3646 = vmul.f32 %v3643, 0.35355338
  %3647 = vmatprep.subr.mxu0 0.0
  %3648 = vmatpush1.msra.mxu0 %v1678
  %3649 = vmatprep.subr.mxu0 0.0
  %3650 = vmatpush1.msra.mxu0 0.0
  %3651 = vmatprep.subr.mxu0 0.0
  %3652 = vmatpush1.msra.mxu0 0.0
  %3653 = vmatprep.subr.mxu0 0.0
  %3654 = vmatpush1.msra.mxu0 0.0
  %3655 = vmatprep.subr.mxu0 0.0
  %3656 = vmatpush1.msra.mxu0 0.0
  %3657 = vmatprep.subr.mxu0 0.0
  %3658 = vmatpush1.msra.mxu0 0.0
  %3659 = vmatprep.subr.mxu0 0.0
  %3660 = vmatpush1.msra.mxu0 0.0
  %3661 = vmatprep.subr.mxu0 0.0
  %3662 = vmatpush1.msra.mxu0 0.0
  %3663 = vmatprep.subr.mxu0 0.0
  %3664 = vmatpush1.msra.mxu0 0.0
  %3665 = vmatprep.subr.mxu0 0.0
  %3666 = vmatpush1.msra.mxu0 0.0
  %3667 = vmatprep.subr.mxu0 0.0
  %3668 = vmatpush1.msra.mxu0 0.0
  %3669 = vmatprep.subr.mxu0 0.0
  %3670 = vmatpush1.msra.mxu0 0.0
  %3671 = vmatprep.subr.mxu0 0.0
  %3672 = vmatpush1.msra.mxu0 0.0
  %3673 = vmatprep.subr.mxu0 0.0
  %3674 = vmatpush1.msra.mxu0 0.0
  %3675 = vmatprep.subr.mxu0 0.0
  %3676 = vmatpush1.msra.mxu0 0.0
  %3677 = vmatprep.subr.mxu0 0.0
  %3678 = vmatpush1.msra.mxu0 0.0
  %3679 = vmatprep.subr.mxu0 0.0
  %3680 = vmatpush1.msra.mxu0 0.0
  %3681 = vmatprep.subr.mxu0 0.0
  %3682 = vmatpush1.msra.mxu0 0.0
  %3683 = vmatprep.subr.mxu0 0.0
  %3684 = vmatpush1.msra.mxu0 0.0
  %3685 = vmatprep.subr.mxu0 0.0
  %3686 = vmatpush1.msra.mxu0 0.0
  %3687 = vmatprep.subr.mxu0 0.0
  %3688 = vmatpush1.msra.mxu0 0.0
  %3689 = vmatprep.subr.mxu0 0.0
  %3690 = vmatpush1.msra.mxu0 0.0
  %3691 = vmatprep.subr.mxu0 0.0
  %3692 = vmatpush1.msra.mxu0 0.0
  %3693 = vmatprep.subr.mxu0 0.0
  %3694 = vmatpush1.msra.mxu0 0.0
  %3695 = vmatprep.subr.mxu0 0.0
  %3696 = vmatpush1.msra.mxu0 0.0
  %3697 = vmatprep.subr.mxu0 0.0
  %3698 = vmatpush1.msra.mxu0 0.0
  %3699 = vmatprep.subr.mxu0 0.0
  %3700 = vmatpush1.msra.mxu0 0.0
  %3701 = vmatprep.subr.mxu0 0.0
  %3702 = vmatpush1.msra.mxu0 0.0
  %3703 = vmatprep.subr.mxu0 0.0
  %3704 = vmatpush1.msra.mxu0 0.0
  %3705 = vmatprep.subr.mxu0 0.0
  %3706 = vmatpush1.msra.mxu0 0.0
  %3707 = vmatprep.subr.mxu0 0.0
  %3708 = vmatpush1.msra.mxu0 0.0
  %3709 = vmatprep.subr.mxu0 0.0
  %3710 = vmatpush1.msra.mxu0 0.0
  %3711 = vmatprep.mubr.f32.mxu0 0.0
  %3712 = vmatmul.mubr.f32.gmra.mrb[0].mxu0 %v3572
  %v3713 = vpop.f32.mrb[0].mxu0
  %v3714 = vadd.f32 0.0, %v3713
  %v3715 = vpop.f32.mrb[0].mxu0
  %3716 = vdwg.mxu0
  %s3718 = sor.u32 256, 121
  %3719 = vrot.lane.b32.xlu0 %v3714, %s3718
  %v3720 = vpop.permute.xlu0 %3719
  %v3721 = vadd.f32 %v3646, %v3720
  %v3722 = vsel %vm146, %v3721, -inf
  %3723 = vmax.xlane.f32.xlu0 %v3722
  %v3724 = vpop.xlane.xlu0 %3723
  %v3725 = vsub.f32 %v3721, %v3724
  %v3726 = vmul.f32 %v3725, 1.442695
  %v3727 = vpow.pop %v3726
  %v3728 = vsel %vm146, %v3727, 0.0
  %3729 = vadd.xlane.f32.xlu0 %v3728
  %v3730 = vpop.xlane.xlu0 %3729
  %v3731 = vrcp.pop %v3730
  %v3732 = vmul.f32 %v3727, %v3731
  %3733 = vrot.lane.b32.xlu0 %v141, 80
  %v3734 = vpop.permute.xlu0 %3733
  %v3737 = vsel %vm146, %v3732, 0
  %3739 = vmatprep.subr.mxu0 0.0
  %3740 = vmatpush1.msra.mxu0 %v3734
  %3741 = vmatprep.subr.mxu0 0.0
  %3742 = vmatpush1.msra.mxu0 0.0
  %3743 = vmatprep.subr.mxu0 0.0
  %3744 = vmatpush1.msra.mxu0 0.0
  %3745 = vmatprep.subr.mxu0 0.0
  %3746 = vmatpush1.msra.mxu0 0.0
  %3747 = vmatprep.subr.mxu0 0.0
  %3748 = vmatpush1.msra.mxu0 0.0
  %3749 = vmatprep.subr.mxu0 0.0
  %3750 = vmatpush1.msra.mxu0 0.0
  %3751 = vmatprep.subr.mxu0 0.0
  %3752 = vmatpush1.msra.mxu0 0.0
  %3753 = vmatprep.subr.mxu0 0.0
  %3754 = vmatpush1.msra.mxu0 0.0
  %3755 = vmatprep.subr.mxu0 0.0
  %3756 = vmatpush1.msra.mxu0 0.0
  %3757 = vmatprep.subr.mxu0 0.0
  %3758 = vmatpush1.msra.mxu0 0.0
  %3759 = vmatprep.subr.mxu0 0.0
  %3760 = vmatpush1.msra.mxu0 0.0
  %3761 = vmatprep.subr.mxu0 0.0
  %3762 = vmatpush1.msra.mxu0 0.0
  %3763 = vmatprep.subr.mxu0 0.0
  %3764 = vmatpush1.msra.mxu0 0.0
  %3765 = vmatprep.subr.mxu0 0.0
  %3766 = vmatpush1.msra.mxu0 0.0
  %3767 = vmatprep.subr.mxu0 0.0
  %3768 = vmatpush1.msra.mxu0 0.0
  %3769 = vmatprep.subr.mxu0 0.0
  %3770 = vmatpush1.msra.mxu0 0.0
  %3771 = vmatprep.subr.mxu0 0.0
  %3772 = vmatpush1.msra.mxu0 0.0
  %3773 = vmatprep.subr.mxu0 0.0
  %3774 = vmatpush1.msra.mxu0 0.0
  %3775 = vmatprep.subr.mxu0 0.0
  %3776 = vmatpush1.msra.mxu0 0.0
  %3777 = vmatprep.subr.mxu0 0.0
  %3778 = vmatpush1.msra.mxu0 0.0
  %3779 = vmatprep.subr.mxu0 0.0
  %3780 = vmatpush1.msra.mxu0 0.0
  %3781 = vmatprep.subr.mxu0 0.0
  %3782 = vmatpush1.msra.mxu0 0.0
  %3783 = vmatprep.subr.mxu0 0.0
  %3784 = vmatpush1.msra.mxu0 0.0
  %3785 = vmatprep.subr.mxu0 0.0
  %3786 = vmatpush1.msra.mxu0 0.0
  %3787 = vmatprep.subr.mxu0 0.0
  %3788 = vmatpush1.msra.mxu0 0.0
  %3789 = vmatprep.subr.mxu0 0.0
  %3790 = vmatpush1.msra.mxu0 0.0
  %3791 = vmatprep.subr.mxu0 0.0
  %3792 = vmatpush1.msra.mxu0 0.0
  %3793 = vmatprep.subr.mxu0 0.0
  %3794 = vmatpush1.msra.mxu0 0.0
  %3795 = vmatprep.subr.mxu0 0.0
  %3796 = vmatpush1.msra.mxu0 0.0
  %3797 = vmatprep.subr.mxu0 0.0
  %3798 = vmatpush1.msra.mxu0 0.0
  %3799 = vmatprep.subr.mxu0 0.0
  %3800 = vmatpush1.msra.mxu0 0.0
  %3801 = vmatprep.subr.mxu0 0.0
  %3802 = vmatpush1.msra.mxu0 0.0
  %3803 = vmatprep.mubr.f32.mxu0 0.0
  %3804 = vmatmul.mubr.f32.gmra.mrb[0].mxu0 %v3737
  %v3805 = vpop.f32.mrb[0].mxu0
  %v3806 = vadd.f32 0.0, %v3805
  %v3807 = vpop.f32.mrb[0].mxu0
  %3808 = vdwg.mxu0
  %3809 = vrot.lane.b32.xlu0 %v139, 72
  %v3810 = vpop.permute.xlu0 %3809
  %3811 = vrot.lane.b32.xlu0 %v139, 8
  %v3812 = vpop.permute.xlu0 %3811
  %v3813 = vsel %vm146, %v3810, 0
  %v3815 = vsel %vm146, %v3812, 0
  %3817 = vmatprep.subr.mxu0 0.0
  %3818 = vmatpush1.xpose.msra.mxu0 %v3815
  %3819 = vmatprep.subr.mxu0 0.0
  %3820 = vmatpush1.xpose.msra.mxu0 0.0
  %3821 = vmatprep.subr.mxu0 0.0
  %3822 = vmatpush1.xpose.msra.mxu0 0.0
  %3823 = vmatprep.subr.mxu0 0.0
  %3824 = vmatpush1.xpose.msra.mxu0 0.0
  %3825 = vmatprep.subr.mxu0 0.0
  %3826 = vmatpush1.xpose.msra.mxu0 0.0
  %3827 = vmatprep.subr.mxu0 0.0
  %3828 = vmatpush1.xpose.msra.mxu0 0.0
  %3829 = vmatprep.subr.mxu0 0.0
  %3830 = vmatpush1.xpose.msra.mxu0 0.0
  %3831 = vmatprep.subr.mxu0 0.0
  %3832 = vmatpush1.xpose.msra.mxu0 0.0
  %3833 = vmatprep.subr.mxu0 0.0
  %3834 = vmatpush1.xpose.msra.mxu0 0.0
  %3835 = vmatprep.subr.mxu0 0.0
  %3836 = vmatpush1.xpose.msra.mxu0 0.0
  %3837 = vmatprep.subr.mxu0 0.0
  %3838 = vmatpush1.xpose.msra.mxu0 0.0
  %3839 = vmatprep.subr.mxu0 0.0
  %3840 = vmatpush1.xpose.msra.mxu0 0.0
  %3841 = vmatprep.subr.mxu0 0.0
  %3842 = vmatpush1.xpose.msra.mxu0 0.0
  %3843 = vmatprep.subr.mxu0 0.0
  %3844 = vmatpush1.xpose.msra.mxu0 0.0
  %3845 = vmatprep.subr.mxu0 0.0
  %3846 = vmatpush1.xpose.msra.mxu0 0.0
  %3847 = vmatprep.subr.mxu0 0.0
  %3848 = vmatpush1.xpose.msra.mxu0 0.0
  %3849 = vmatprep.subr.mxu0 0.0
  %3850 = vmatpush1.xpose.msra.mxu0 0.0
  %3851 = vmatprep.subr.mxu0 0.0
  %3852 = vmatpush1.xpose.msra.mxu0 0.0
  %3853 = vmatprep.subr.mxu0 0.0
  %3854 = vmatpush1.xpose.msra.mxu0 0.0
  %3855 = vmatprep.subr.mxu0 0.0
  %3856 = vmatpush1.xpose.msra.mxu0 0.0
  %3857 = vmatprep.subr.mxu0 0.0
  %3858 = vmatpush1.xpose.msra.mxu0 0.0
  %3859 = vmatprep.subr.mxu0 0.0
  %3860 = vmatpush1.xpose.msra.mxu0 0.0
  %3861 = vmatprep.subr.mxu0 0.0
  %3862 = vmatpush1.xpose.msra.mxu0 0.0
  %3863 = vmatprep.subr.mxu0 0.0
  %3864 = vmatpush1.xpose.msra.mxu0 0.0
  %3865 = vmatprep.subr.mxu0 0.0
  %3866 = vmatpush1.xpose.msra.mxu0 0.0
  %3867 = vmatprep.subr.mxu0 0.0
  %3868 = vmatpush1.xpose.msra.mxu0 0.0
  %3869 = vmatprep.subr.mxu0 0.0
  %3870 = vmatpush1.xpose.msra.mxu0 0.0
  %3871 = vmatprep.subr.mxu0 0.0
  %3872 = vmatpush1.xpose.msra.mxu0 0.0
  %3873 = vmatprep.subr.mxu0 0.0
  %3874 = vmatpush1.xpose.msra.mxu0 0.0
  %3875 = vmatprep.subr.mxu0 0.0
  %3876 = vmatpush1.xpose.msra.mxu0 0.0
  %3877 = vmatprep.subr.mxu0 0.0
  %3878 = vmatpush1.xpose.msra.mxu0 0.0
  %3879 = vmatprep.subr.mxu0 0.0
  %3880 = vmatpush1.xpose.msra.mxu0 0.0
  %3881 = vmatprep.mubr.f32.mxu0 0.0
  %3882 = vmatmul.mubr.f32.gmra.mrb[0].mxu0 %v3813
  %v3883 = vpop.f32.mrb[0].mxu0
  %v3884 = vadd.f32 0.0, %v3883
  %v3885 = vpop.f32.mrb[0].mxu0
  %3886 = vdwg.mxu0
  %v3887 = vmul.f32 %v3884, 0.35355338
  %3888 = vmatprep.subr.mxu0 0.0
  %3889 = vmatpush1.msra.mxu0 %v1921
  %3890 = vmatprep.subr.mxu0 0.0
  %3891 = vmatpush1.msra.mxu0 0.0
  %3892 = vmatprep.subr.mxu0 0.0
  %3893 = vmatpush1.msra.mxu0 0.0
  %3894 = vmatprep.subr.mxu0 0.0
  %3895 = vmatpush1.msra.mxu0 0.0
  %3896 = vmatprep.subr.mxu0 0.0
  %3897 = vmatpush1.msra.mxu0 0.0
  %3898 = vmatprep.subr.mxu0 0.0
  %3899 = vmatpush1.msra.mxu0 0.0
  %3900 = vmatprep.subr.mxu0 0.0
  %3901 = vmatpush1.msra.mxu0 0.0
  %3902 = vmatprep.subr.mxu0 0.0
  %3903 = vmatpush1.msra.mxu0 0.0
  %3904 = vmatprep.subr.mxu0 0.0
  %3905 = vmatpush1.msra.mxu0 0.0
  %3906 = vmatprep.subr.mxu0 0.0
  %3907 = vmatpush1.msra.mxu0 0.0
  %3908 = vmatprep.subr.mxu0 0.0
  %3909 = vmatpush1.msra.mxu0 0.0
  %3910 = vmatprep.subr.mxu0 0.0
  %3911 = vmatpush1.msra.mxu0 0.0
  %3912 = vmatprep.subr.mxu0 0.0
  %3913 = vmatpush1.msra.mxu0 0.0
  %3914 = vmatprep.subr.mxu0 0.0
  %3915 = vmatpush1.msra.mxu0 0.0
  %3916 = vmatprep.subr.mxu0 0.0
  %3917 = vmatpush1.msra.mxu0 0.0
  %3918 = vmatprep.subr.mxu0 0.0
  %3919 = vmatpush1.msra.mxu0 0.0
  %3920 = vmatprep.subr.mxu0 0.0
  %3921 = vmatpush1.msra.mxu0 0.0
  %3922 = vmatprep.subr.mxu0 0.0
  %3923 = vmatpush1.msra.mxu0 0.0
  %3924 = vmatprep.subr.mxu0 0.0
  %3925 = vmatpush1.msra.mxu0 0.0
  %3926 = vmatprep.subr.mxu0 0.0
  %3927 = vmatpush1.msra.mxu0 0.0
  %3928 = vmatprep.subr.mxu0 0.0
  %3929 = vmatpush1.msra.mxu0 0.0
  %3930 = vmatprep.subr.mxu0 0.0
  %3931 = vmatpush1.msra.mxu0 0.0
  %3932 = vmatprep.subr.mxu0 0.0
  %3933 = vmatpush1.msra.mxu0 0.0
  %3934 = vmatprep.subr.mxu0 0.0
  %3935 = vmatpush1.msra.mxu0 0.0
  %3936 = vmatprep.subr.mxu0 0.0
  %3937 = vmatpush1.msra.mxu0 0.0
  %3938 = vmatprep.subr.mxu0 0.0
  %3939 = vmatpush1.msra.mxu0 0.0
  %3940 = vmatprep.subr.mxu0 0.0
  %3941 = vmatpush1.msra.mxu0 0.0
  %3942 = vmatprep.subr.mxu0 0.0
  %3943 = vmatpush1.msra.mxu0 0.0
  %3944 = vmatprep.subr.mxu0 0.0
  %3945 = vmatpush1.msra.mxu0 0.0
  %3946 = vmatprep.subr.mxu0 0.0
  %3947 = vmatpush1.msra.mxu0 0.0
  %3948 = vmatprep.subr.mxu0 0.0
  %3949 = vmatpush1.msra.mxu0 0.0
  %3950 = vmatprep.subr.mxu0 0.0
  %3951 = vmatpush1.msra.mxu0 0.0
  %3952 = vmatprep.mubr.f32.mxu0 0.0
  %3953 = vmatmul.mubr.f32.gmra.mrb[0].mxu0 %v3813
  %v3954 = vpop.f32.mrb[0].mxu0
  %v3955 = vadd.f32 0.0, %v3954
  %v3956 = vpop.f32.mrb[0].mxu0
  %3957 = vdwg.mxu0
  %s3959 = sor.u32 256, 121
  %3960 = vrot.lane.b32.xlu0 %v3955, %s3959
  %v3961 = vpop.permute.xlu0 %3960
  %v3962 = vadd.f32 %v3887, %v3961
  %v3963 = vsel %vm146, %v3962, -inf
  %3964 = vmax.xlane.f32.xlu0 %v3963
  %v3965 = vpop.xlane.xlu0 %3964
  %v3966 = vsub.f32 %v3962, %v3965
  %v3967 = vmul.f32 %v3966, 1.442695
  %v3968 = vpow.pop %v3967
  %v3969 = vsel %vm146, %v3968, 0.0
  %3970 = vadd.xlane.f32.xlu0 %v3969
  %v3971 = vpop.xlane.xlu0 %3970
  %v3972 = vrcp.pop %v3971
  %v3973 = vmul.f32 %v3968, %v3972
  %3974 = vrot.lane.b32.xlu0 %v141, 72
  %v3975 = vpop.permute.xlu0 %3974
  %v3978 = vsel %vm146, %v3973, 0
  %3980 = vmatprep.subr.mxu0 0.0
  %3981 = vmatpush1.msra.mxu0 %v3975
  %3982 = vmatprep.subr.mxu0 0.0
  %3983 = vmatpush1.msra.mxu0 0.0
  %3984 = vmatprep.subr.mxu0 0.0
  %3985 = vmatpush1.msra.mxu0 0.0
  %3986 = vmatprep.subr.mxu0 0.0
  %3987 = vmatpush1.msra.mxu0 0.0
  %3988 = vmatprep.subr.mxu0 0.0
  %3989 = vmatpush1.msra.mxu0 0.0
  %3990 = vmatprep.subr.mxu0 0.0
  %3991 = vmatpush1.msra.mxu0 0.0
  %3992 = vmatprep.subr.mxu0 0.0
  %3993 = vmatpush1.msra.mxu0 0.0
  %3994 = vmatprep.subr.mxu0 0.0
  %3995 = vmatpush1.msra.mxu0 0.0
  %3996 = vmatprep.subr.mxu0 0.0
  %3997 = vmatpush1.msra.mxu0 0.0
  %3998 = vmatprep.subr.mxu0 0.0
  %3999 = vmatpush1.msra.mxu0 0.0
  %4000 = vmatprep.subr.mxu0 0.0
  %4001 = vmatpush1.msra.mxu0 0.0
  %4002 = vmatprep.subr.mxu0 0.0
  %4003 = vmatpush1.msra.mxu0 0.0
  %4004 = vmatprep.subr.mxu0 0.0
  %4005 = vmatpush1.msra.mxu0 0.0
  %4006 = vmatprep.subr.mxu0 0.0
  %4007 = vmatpush1.msra.mxu0 0.0
  %4008 = vmatprep.subr.mxu0 0.0
  %4009 = vmatpush1.msra.mxu0 0.0
  %4010 = vmatprep.subr.mxu0 0.0
  %4011 = vmatpush1.msra.mxu0 0.0
  %4012 = vmatprep.subr.mxu0 0.0
  %4013 = vmatpush1.msra.mxu0 0.0
  %4014 = vmatprep.subr.mxu0 0.0
  %4015 = vmatpush1.msra.mxu0 0.0
  %4016 = vmatprep.subr.mxu0 0.0
  %4017 = vmatpush1.msra.mxu0 0.0
  %4018 = vmatprep.subr.mxu0 0.0
  %4019 = vmatpush1.msra.mxu0 0.0
  %4020 = vmatprep.subr.mxu0 0.0
  %4021 = vmatpush1.msra.mxu0 0.0
  %4022 = vmatprep.subr.mxu0 0.0
  %4023 = vmatpush1.msra.mxu0 0.0
  %4024 = vmatprep.subr.mxu0 0.0
  %4025 = vmatpush1.msra.mxu0 0.0
  %4026 = vmatprep.subr.mxu0 0.0
  %4027 = vmatpush1.msra.mxu0 0.0
  %4028 = vmatprep.subr.mxu0 0.0
  %4029 = vmatpush1.msra.mxu0 0.0
  %4030 = vmatprep.subr.mxu0 0.0
  %4031 = vmatpush1.msra.mxu0 0.0
  %4032 = vmatprep.subr.mxu0 0.0
  %4033 = vmatpush1.msra.mxu0 0.0
  %4034 = vmatprep.subr.mxu0 0.0
  %4035 = vmatpush1.msra.mxu0 0.0
  %4036 = vmatprep.subr.mxu0 0.0
  %4037 = vmatpush1.msra.mxu0 0.0
  %4038 = vmatprep.subr.mxu0 0.0
  %4039 = vmatpush1.msra.mxu0 0.0
  %4040 = vmatprep.subr.mxu0 0.0
  %4041 = vmatpush1.msra.mxu0 0.0
  %4042 = vmatprep.subr.mxu0 0.0
  %4043 = vmatpush1.msra.mxu0 0.0
  %4044 = vmatprep.mubr.f32.mxu0 0.0
  %4045 = vmatmul.mubr.f32.gmra.mrb[0].mxu0 %v3978
  %v4046 = vpop.f32.mrb[0].mxu0
  %v4047 = vadd.f32 0.0, %v4046
  %v4048 = vpop.f32.mrb[0].mxu0
  %4049 = vdwg.mxu0
  %4051 = vrot.lane.b32.xlu0 %v2601, 8
  %v4052 = vpop.permute.xlu0 %4051
  %4055 = vrot.lane.b32.xlu0 %v2842, 16
  %v4056 = vpop.permute.xlu0 %4055
  %4059 = vrot.lane.b32.xlu0 %v3083, 24
  %v4060 = vpop.permute.xlu0 %4059
  %4063 = vrot.lane.b32.xlu0 %v3324, 32
  %v4064 = vpop.permute.xlu0 %4063
  %4067 = vrot.lane.b32.xlu0 %v3565, 40
  %v4068 = vpop.permute.xlu0 %4067
  %4071 = vrot.lane.b32.xlu0 %v3806, 48
  %v4072 = vpop.permute.xlu0 %4071
  %4075 = vrot.lane.b32.xlu0 %v4047, 56
  %v4076 = vpop.permute.xlu0 %4075
  %v4078 = vsel %vm146, %v2359, %v4052
  %v4079 = vsel %vm2113, %v4078, %v4056
  %v4080 = vsel %vm2115, %v4079, %v4060
  %v4081 = vsel %vm2117, %v4080, %v4064
  %v4082 = vsel %vm2119, %v4081, %v4068
  %v4083 = vsel %vm2121, %v4082, %v4072
  %v4084 = vsel %vm2123, %v4083, %v4076
  %v4085 = vld [vmem:[%s2] sm:$0xff]
  %v4086 = vld [vmem:[%s2 + $0x8] sm:$0xff]
  %v4087 = vld [vmem:[%s2 + $0x10] sm:$0xff]
  %v4088 = vld [vmem:[%s2 + $0x18] sm:$0xff]
  %v4089 = vld [vmem:[%s2 + $0x20] sm:$0xff]
  %v4090 = vld [vmem:[%s2 + $0x28] sm:$0xff]
  %v4091 = vld [vmem:[%s2 + $0x30] sm:$0xff]
  %v4092 = vld [vmem:[%s2 + $0x38] sm:$0xff]
  %v4094 = vsel %vm59, %v2124, 0
  %v4097 = vsel %vm59, %v4084, 0
  %4099 = vmatprep.subr.mxu0 0.0
  %4100 = vmatpush1.msra.mxu0 %v4085
  %4101 = vmatprep.subr.mxu0 0.0
  %4102 = vmatpush1.msra.mxu0 %v4086
  %4103 = vmatprep.subr.mxu0 0.0
  %4104 = vmatpush1.msra.mxu0 %v4087
  %4105 = vmatprep.subr.mxu0 0.0
  %4106 = vmatpush1.msra.mxu0 %v4088
  %4107 = vmatprep.subr.mxu0 0.0
  %4108 = vmatpush1.msra.mxu0 %v4089
  %4109 = vmatprep.subr.mxu0 0.0
  %4110 = vmatpush1.msra.mxu0 %v4090
  %4111 = vmatprep.subr.mxu0 0.0
  %4112 = vmatpush1.msra.mxu0 %v4091
  %4113 = vmatprep.subr.mxu0 0.0
  %4114 = vmatpush1.msra.mxu0 %v4092
  %4115 = vmatprep.subr.mxu0 0.0
  %4116 = vmatpush1.msra.mxu0 0.0
  %4117 = vmatprep.subr.mxu0 0.0
  %4118 = vmatpush1.msra.mxu0 0.0
  %4119 = vmatprep.subr.mxu0 0.0
  %4120 = vmatpush1.msra.mxu0 0.0
  %4121 = vmatprep.subr.mxu0 0.0
  %4122 = vmatpush1.msra.mxu0 0.0
  %4123 = vmatprep.subr.mxu0 0.0
  %4124 = vmatpush1.msra.mxu0 0.0
  %4125 = vmatprep.subr.mxu0 0.0
  %4126 = vmatpush1.msra.mxu0 0.0
  %4127 = vmatprep.subr.mxu0 0.0
  %4128 = vmatpush1.msra.mxu0 0.0
  %4129 = vmatprep.subr.mxu0 0.0
  %4130 = vmatpush1.msra.mxu0 0.0
  %4131 = vmatprep.subr.mxu0 0.0
  %4132 = vmatpush1.msra.mxu0 0.0
  %4133 = vmatprep.subr.mxu0 0.0
  %4134 = vmatpush1.msra.mxu0 0.0
  %4135 = vmatprep.subr.mxu0 0.0
  %4136 = vmatpush1.msra.mxu0 0.0
  %4137 = vmatprep.subr.mxu0 0.0
  %4138 = vmatpush1.msra.mxu0 0.0
  %4139 = vmatprep.subr.mxu0 0.0
  %4140 = vmatpush1.msra.mxu0 0.0
  %4141 = vmatprep.subr.mxu0 0.0
  %4142 = vmatpush1.msra.mxu0 0.0
  %4143 = vmatprep.subr.mxu0 0.0
  %4144 = vmatpush1.msra.mxu0 0.0
  %4145 = vmatprep.subr.mxu0 0.0
  %4146 = vmatpush1.msra.mxu0 0.0
  %4147 = vmatprep.subr.mxu0 0.0
  %4148 = vmatpush1.msra.mxu0 0.0
  %4149 = vmatprep.subr.mxu0 0.0
  %4150 = vmatpush1.msra.mxu0 0.0
  %4151 = vmatprep.subr.mxu0 0.0
  %4152 = vmatpush1.msra.mxu0 0.0
  %4153 = vmatprep.subr.mxu0 0.0
  %4154 = vmatpush1.msra.mxu0 0.0
  %4155 = vmatprep.subr.mxu0 0.0
  %4156 = vmatpush1.msra.mxu0 0.0
  %4157 = vmatprep.subr.mxu0 0.0
  %4158 = vmatpush1.msra.mxu0 0.0
  %4159 = vmatprep.subr.mxu0 0.0
  %4160 = vmatpush1.msra.mxu0 0.0
  %4161 = vmatprep.subr.mxu0 0.0
  %4162 = vmatpush1.msra.mxu0 0.0
  %4163 = vmatprep.mubr.f32.mxu0 0.0
  %4164 = vmatmul.mubr.f32.gmra.mrb[0].mxu0 %v4094
  %v4165 = vpop.f32.mrb[0].mxu0
  %v4166 = vadd.f32 0.0, %v4165
  %v4167 = vpop.f32.mrb[0].mxu0
  %4168 = vmatprep.mubr.f32.mxu0 0.0
  %4169 = vmatmul.mubr.f32.gmra.mrb[0].mxu0 %v4097
  %v4170 = vpop.f32.mrb[0].mxu0
  %v4171 = vadd.f32 0.0, %v4170
  %v4172 = vpop.f32.mrb[0].mxu0
  %4173 = vdwg.mxu0
  %v4174 = vadd.f32 %v41, %v4166
  %v4175 = vadd.f32 %v42, %v4171
  %v4176 = vsel %vm59, %v4174, 0.0
  %4177 = vadd.xlane.f32.xlu0 %v4176
  %v4178 = vpop.xlane.xlu0 %4177
  %v4179 = vsel %vm59, %v4175, 0.0
  %4180 = vadd.xlane.f32.xlu0 %v4179
  %v4181 = vpop.xlane.xlu0 %4180
  %v4182 = vrcp.pop 64.0
  %v4183 = vmul.f32 %v4178, %v4182
  %v4184 = vmul.f32 %v4181, %v4182
  %v4185 = vsub.f32 %v4174, %v4183
  %v4186 = vsub.f32 %v4175, %v4184
  %v4187 = vmul.f32 %v4185, %v4185
  %v4188 = vmul.f32 %v4186, %v4186
  %v4189 = vsel %vm59, %v4187, 0.0
  %4190 = vadd.xlane.f32.xlu0 %v4189
  %v4191 = vpop.xlane.xlu0 %4190
  %v4192 = vsel %vm59, %v4188, 0.0
  %4193 = vadd.xlane.f32.xlu0 %v4192
  %v4194 = vpop.xlane.xlu0 %4193
  %v4195 = vmul.f32 %v4191, %v4182
  %v4196 = vmul.f32 %v4194, %v4182
  %v4197 = vadd.f32 %v4195, 1e-05
  %v4198 = vadd.f32 %v4196, 1e-05
  %v4199 = vrsqrt.pop %v4197
  %v4200 = vrsqrt.pop %v4198
  %v4201 = vmul.f32 %v4185, %v4199
  %v4202 = vmul.f32 %v4186, %v4200
  %v4203 = vld [vmem:[%s4] sm:$0x1]
  %v4205 = vlaneseq
  %v4206 = vshrl.u32 %v4205, 7
  %v4207 = vsub.s32 0, %v4206
  %v4208 = vrot.slane %v4203, %v4207
  %v4210 = vmul.f32 %v4201, %v4208
  %v4211 = vmul.f32 %v4202, %v4208
  %v4212 = vld [vmem:[%s5] sm:$0x1]
  %v4214 = vlaneseq
  %v4215 = vshrl.u32 %v4214, 7
  %v4216 = vsub.s32 0, %v4215
  %v4217 = vrot.slane %v4212, %v4216
  %v4219 = vadd.f32 %v4210, %v4217
  %v4220 = vadd.f32 %v4211, %v4217
  %v4221 = vld [vmem:[%s6] sm:$0xff]
  %v4222 = vld [vmem:[%s6 + $0x8] sm:$0xff]
  %v4223 = vld [vmem:[%s6 + $0x10] sm:$0xff]
  %v4224 = vld [vmem:[%s6 + $0x18] sm:$0xff]
  %v4225 = vld [vmem:[%s6 + $0x20] sm:$0xff]
  %v4226 = vld [vmem:[%s6 + $0x28] sm:$0xff]
  %v4227 = vld [vmem:[%s6 + $0x30] sm:$0xff]
  %v4228 = vld [vmem:[%s6 + $0x38] sm:$0xff]
  %v4229 = vld [vmem:[%s6 + $0x40] sm:$0xff]
  %v4230 = vld [vmem:[%s6 + $0x48] sm:$0xff]
  %v4231 = vld [vmem:[%s6 + $0x50] sm:$0xff]
  %v4232 = vld [vmem:[%s6 + $0x58] sm:$0xff]
  %v4233 = vld [vmem:[%s6 + $0x60] sm:$0xff]
  %v4234 = vld [vmem:[%s6 + $0x68] sm:$0xff]
  %v4235 = vld [vmem:[%s6 + $0x70] sm:$0xff]
  %v4236 = vld [vmem:[%s6 + $0x78] sm:$0xff]
  %v4237 = vld [vmem:[%s7] sm:$0x3]
  %v4239 = vlaneseq
  %v4240 = vshrl.u32 %v4239, 7
  %v4241 = vsub.s32 0, %v4240
  %v4242 = vrot.slane %v4237, %v4241
  %v4243 = vlaneseq
  %v4244 = vshrl.u32 %v4243, 7
  %v4245 = vsub.s32 1, %v4244
  %v4246 = vrot.slane %v4237, %v4245
  %v4250 = vsel %vm59, %v4219, 0
  %v4253 = vsel %vm59, %v4220, 0
  %4255 = vmatprep.subr.mxu0 %v4222
  %4256 = vmatpush1.msra.mxu0 %v4221
  %4257 = vmatprep.subr.mxu0 %v4224
  %4258 = vmatpush1.msra.mxu0 %v4223
  %4259 = vmatprep.subr.mxu0 %v4226
  %4260 = vmatpush1.msra.mxu0 %v4225
  %4261 = vmatprep.subr.mxu0 %v4228
  %4262 = vmatpush1.msra.mxu0 %v4227
  %4263 = vmatprep.subr.mxu0 %v4230
  %4264 = vmatpush1.msra.mxu0 %v4229
  %4265 = vmatprep.subr.mxu0 %v4232
  %4266 = vmatpush1.msra.mxu0 %v4231
  %4267 = vmatprep.subr.mxu0 %v4234
  %4268 = vmatpush1.msra.mxu0 %v4233
  %4269 = vmatprep.subr.mxu0 %v4236
  %4270 = vmatpush1.msra.mxu0 %v4235
  %4271 = vmatprep.subr.mxu0 0.0
  %4272 = vmatpush1.msra.mxu0 0.0
  %4273 = vmatprep.subr.mxu0 0.0
  %4274 = vmatpush1.msra.mxu0 0.0
  %4275 = vmatprep.subr.mxu0 0.0
  %4276 = vmatpush1.msra.mxu0 0.0
  %4277 = vmatprep.subr.mxu0 0.0
  %4278 = vmatpush1.msra.mxu0 0.0
  %4279 = vmatprep.subr.mxu0 0.0
  %4280 = vmatpush1.msra.mxu0 0.0
  %4281 = vmatprep.subr.mxu0 0.0
  %4282 = vmatpush1.msra.mxu0 0.0
  %4283 = vmatprep.subr.mxu0 0.0
  %4284 = vmatpush1.msra.mxu0 0.0
  %4285 = vmatprep.subr.mxu0 0.0
  %4286 = vmatpush1.msra.mxu0 0.0
  %4287 = vmatprep.subr.mxu0 0.0
  %4288 = vmatpush1.msra.mxu0 0.0
  %4289 = vmatprep.subr.mxu0 0.0
  %4290 = vmatpush1.msra.mxu0 0.0
  %4291 = vmatprep.subr.mxu0 0.0
  %4292 = vmatpush1.msra.mxu0 0.0
  %4293 = vmatprep.subr.mxu0 0.0
  %4294 = vmatpush1.msra.mxu0 0.0
  %4295 = vmatprep.subr.mxu0 0.0
  %4296 = vmatpush1.msra.mxu0 0.0
  %4297 = vmatprep.subr.mxu0 0.0
  %4298 = vmatpush1.msra.mxu0 0.0
  %4299 = vmatprep.subr.mxu0 0.0
  %4300 = vmatpush1.msra.mxu0 0.0
  %4301 = vmatprep.subr.mxu0 0.0
  %4302 = vmatpush1.msra.mxu0 0.0
  %4303 = vmatprep.subr.mxu0 0.0
  %4304 = vmatpush1.msra.mxu0 0.0
  %4305 = vmatprep.subr.mxu0 0.0
  %4306 = vmatpush1.msra.mxu0 0.0
  %4307 = vmatprep.subr.mxu0 0.0
  %4308 = vmatpush1.msra.mxu0 0.0
  %4309 = vmatprep.subr.mxu0 0.0
  %4310 = vmatpush1.msra.mxu0 0.0
  %4311 = vmatprep.subr.mxu0 0.0
  %4312 = vmatpush1.msra.mxu0 0.0
  %4313 = vmatprep.subr.mxu0 0.0
  %4314 = vmatpush1.msra.mxu0 0.0
  %4315 = vmatprep.subr.mxu0 0.0
  %4316 = vmatpush1.msra.mxu0 0.0
  %4317 = vmatprep.subr.mxu0 0.0
  %4318 = vmatpush1.msra.mxu0 0.0
  %4319 = vmatprep.mubr.f32.mxu0 0.0
  %4320 = vmatmul.mubr.f32.gmra.mrb[0].mxu0 %v4250
  %v4321 = vpop.f32.mrb[0].mxu0
  %v4322 = vadd.f32 %v4242, %v4321
  %v4323 = vpop.f32.mrb[0].mxu0
  %v4324 = vadd.f32 %v4246, %v4323
  %4325 = vmatprep.mubr.f32.mxu0 0.0
  %4326 = vmatmul.mubr.f32.gmra.mrb[0].mxu0 %v4253
  %v4327 = vpop.f32.mrb[0].mxu0
  %v4328 = vadd.f32 %v4242, %v4327
  %v4329 = vpop.f32.mrb[0].mxu0
  %v4330 = vadd.f32 %v4246, %v4329
  %4331 = vdwg.mxu0
  %v4332 = vmax.f32 %v4322, 0.0
  %v4333 = vmax.f32 %v4324, 0.0
  %v4334 = vmax.f32 %v4328, 0.0
  %v4335 = vmax.f32 %v4330, 0.0
  %v4336 = vld [vmem:[%s8] sm:$0xff]
  %v4337 = vld [vmem:[%s8 + $0x8] sm:$0xff]
  %v4338 = vld [vmem:[%s8 + $0x10] sm:$0xff]
  %v4339 = vld [vmem:[%s8 + $0x18] sm:$0xff]
  %v4340 = vld [vmem:[%s8 + $0x20] sm:$0xff]
  %v4341 = vld [vmem:[%s8 + $0x28] sm:$0xff]
  %v4342 = vld [vmem:[%s8 + $0x30] sm:$0xff]
  %v4343 = vld [vmem:[%s8 + $0x38] sm:$0xff]
  %v4344 = vld [vmem:[%s8 + $0x40] sm:$0xff]
  %v4345 = vld [vmem:[%s8 + $0x48] sm:$0xff]
  %v4346 = vld [vmem:[%s8 + $0x50] sm:$0xff]
  %v4347 = vld [vmem:[%s8 + $0x58] sm:$0xff]
  %v4348 = vld [vmem:[%s8 + $0x60] sm:$0xff]
  %v4349 = vld [vmem:[%s8 + $0x68] sm:$0xff]
  %v4350 = vld [vmem:[%s8 + $0x70] sm:$0xff]
  %v4351 = vld [vmem:[%s8 + $0x78] sm:$0xff]
  %v4352 = vld [vmem:[%s8 + $0x80] sm:$0xff]
  %v4353 = vld [vmem:[%s8 + $0x88] sm:$0xff]
  %v4354 = vld [vmem:[%s8 + $0x90] sm:$0xff]
  %v4355 = vld [vmem:[%s8 + $0x98] sm:$0xff]
  %v4356 = vld [vmem:[%s8 + $0xa0] sm:$0xff]
  %v4357 = vld [vmem:[%s8 + $0xa8] sm:$0xff]
  %v4358 = vld [vmem:[%s8 + $0xb0] sm:$0xff]
  %v4359 = vld [vmem:[%s8 + $0xb8] sm:$0xff]
  %v4360 = vld [vmem:[%s8 + $0xc0] sm:$0xff]
  %v4361 = vld [vmem:[%s8 + $0xc8] sm:$0xff]
  %v4362 = vld [vmem:[%s8 + $0xd0] sm:$0xff]
  %v4363 = vld [vmem:[%s8 + $0xd8] sm:$0xff]
  %v4364 = vld [vmem:[%s8 + $0xe0] sm:$0xff]
  %v4365 = vld [vmem:[%s8 + $0xe8] sm:$0xff]
  %v4366 = vld [vmem:[%s8 + $0xf0] sm:$0xff]
  %v4367 = vld [vmem:[%s8 + $0xf8] sm:$0xff]
  %v4368 = vld [vmem:[%s9] sm:$0x1]
  %v4370 = vlaneseq
  %v4371 = vshrl.u32 %v4370, 7
  %v4372 = vsub.s32 0, %v4371
  %v4373 = vrot.slane %v4368, %v4372
  %4375 = vmatprep.subr.mxu0 0.0
  %4376 = vmatpush1.msra.mxu0 %v4336
  %4377 = vmatprep.subr.mxu0 0.0
  %4378 = vmatpush1.msra.mxu0 %v4337
  %4379 = vmatprep.subr.mxu0 0.0
  %4380 = vmatpush1.msra.mxu0 %v4338
  %4381 = vmatprep.subr.mxu0 0.0
  %4382 = vmatpush1.msra.mxu0 %v4339
  %4383 = vmatprep.subr.mxu0 0.0
  %4384 = vmatpush1.msra.mxu0 %v4340
  %4385 = vmatprep.subr.mxu0 0.0
  %4386 = vmatpush1.msra.mxu0 %v4341
  %4387 = vmatprep.subr.mxu0 0.0
  %4388 = vmatpush1.msra.mxu0 %v4342
  %4389 = vmatprep.subr.mxu0 0.0
  %4390 = vmatpush1.msra.mxu0 %v4343
  %4391 = vmatprep.subr.mxu0 0.0
  %4392 = vmatpush1.msra.mxu0 %v4344
  %4393 = vmatprep.subr.mxu0 0.0
  %4394 = vmatpush1.msra.mxu0 %v4345
  %4395 = vmatprep.subr.mxu0 0.0
  %4396 = vmatpush1.msra.mxu0 %v4346
  %4397 = vmatprep.subr.mxu0 0.0
  %4398 = vmatpush1.msra.mxu0 %v4347
  %4399 = vmatprep.subr.mxu0 0.0
  %4400 = vmatpush1.msra.mxu0 %v4348
  %4401 = vmatprep.subr.mxu0 0.0
  %4402 = vmatpush1.msra.mxu0 %v4349
  %4403 = vmatprep.subr.mxu0 0.0
  %4404 = vmatpush1.msra.mxu0 %v4350
  %4405 = vmatprep.subr.mxu0 0.0
  %4406 = vmatpush1.msra.mxu0 %v4351
  %4407 = vmatprep.subr.mxu0 0.0
  %4408 = vmatpush1.msra.mxu0 %v4352
  %4409 = vmatprep.subr.mxu0 0.0
  %4410 = vmatpush1.msra.mxu0 %v4353
  %4411 = vmatprep.subr.mxu0 0.0
  %4412 = vmatpush1.msra.mxu0 %v4354
  %4413 = vmatprep.subr.mxu0 0.0
  %4414 = vmatpush1.msra.mxu0 %v4355
  %4415 = vmatprep.subr.mxu0 0.0
  %4416 = vmatpush1.msra.mxu0 %v4356
  %4417 = vmatprep.subr.mxu0 0.0
  %4418 = vmatpush1.msra.mxu0 %v4357
  %4419 = vmatprep.subr.mxu0 0.0
  %4420 = vmatpush1.msra.mxu0 %v4358
  %4421 = vmatprep.subr.mxu0 0.0
  %4422 = vmatpush1.msra.mxu0 %v4359
  %4423 = vmatprep.subr.mxu0 0.0
  %4424 = vmatpush1.msra.mxu0 %v4360
  %4425 = vmatprep.subr.mxu0 0.0
  %4426 = vmatpush1.msra.mxu0 %v4361
  %4427 = vmatprep.subr.mxu0 0.0
  %4428 = vmatpush1.msra.mxu0 %v4362
  %4429 = vmatprep.subr.mxu0 0.0
  %4430 = vmatpush1.msra.mxu0 %v4363
  %4431 = vmatprep.subr.mxu0 0.0
  %4432 = vmatpush1.msra.mxu0 %v4364
  %4433 = vmatprep.subr.mxu0 0.0
  %4434 = vmatpush1.msra.mxu0 %v4365
  %4435 = vmatprep.subr.mxu0 0.0
  %4436 = vmatpush1.msra.mxu0 %v4366
  %4437 = vmatprep.subr.mxu0 0.0
  %4438 = vmatpush1.msra.mxu0 %v4367
  %4439 = vmatprep.mubr.f32.mxu0 %v4333
  %4440 = vmatmul.mubr.f32.gmra.mrb[0].mxu0 %v4332
  %v4441 = vpop.f32.mrb[0].mxu0
  %v4442 = vadd.f32 %v4373, %v4441
  %v4443 = vpop.f32.mrb[0].mxu0
  %4444 = vmatprep.mubr.f32.mxu0 %v4335
  %4445 = vmatmul.mubr.f32.gmra.mrb[0].mxu0 %v4334
  %v4446 = vpop.f32.mrb[0].mxu0
  %v4447 = vadd.f32 %v4373, %v4446
  %v4448 = vpop.f32.mrb[0].mxu0
  %4449 = vdwg.mxu0
  %v4450 = vadd.f32 %v4219, %v4442
  %v4451 = vadd.f32 %v4220, %v4447
  %v4452 = vsel %vm59, %v4450, 0.0
  %4453 = vadd.xlane.f32.xlu0 %v4452
  %v4454 = vpop.xlane.xlu0 %4453
  %v4455 = vsel %vm59, %v4451, 0.0
  %4456 = vadd.xlane.f32.xlu0 %v4455
  %v4457 = vpop.xlane.xlu0 %4456
  %v4458 = vmul.f32 %v4454, %v4182
  %v4459 = vmul.f32 %v4457, %v4182
  %v4460 = vsub.f32 %v4450, %v4458
  %v4461 = vsub.f32 %v4451, %v4459
  %v4462 = vmul.f32 %v4460, %v4460
  %v4463 = vmul.f32 %v4461, %v4461
  %v4464 = vsel %vm59, %v4462, 0.0
  %4465 = vadd.xlane.f32.xlu0 %v4464
  %v4466 = vpop.xlane.xlu0 %4465
  %v4467 = vsel %vm59, %v4463, 0.0
  %4468 = vadd.xlane.f32.xlu0 %v4467
  %v4469 = vpop.xlane.xlu0 %4468
  %v4470 = vmul.f32 %v4466, %v4182
  %v4471 = vmul.f32 %v4469, %v4182
  %v4472 = vadd.f32 %v4470, 1e-05
  %v4473 = vadd.f32 %v4471, 1e-05
  %v4474 = vrsqrt.pop %v4472
  %v4475 = vrsqrt.pop %v4473
  %v4476 = vmul.f32 %v4460, %v4474
  %v4477 = vmul.f32 %v4461, %v4475
  %v4478 = vld [vmem:[%s10] sm:$0x1]
  %v4480 = vlaneseq
  %v4481 = vshrl.u32 %v4480, 7
  %v4482 = vsub.s32 0, %v4481
  %v4483 = vrot.slane %v4478, %v4482
  %v4485 = vmul.f32 %v4476, %v4483
  %v4486 = vmul.f32 %v4477, %v4483
  %v4487 = vld [vmem:[%s11] sm:$0x1]
  %v4489 = vlaneseq
  %v4490 = vshrl.u32 %v4489, 7
  %v4491 = vsub.s32 0, %v4490
  %v4492 = vrot.slane %v4487, %v4491
  %v4494 = vadd.f32 %v4485, %v4492
  %v4495 = vadd.f32 %v4486, %v4492
  %4496 = vst.msk [vmem:[%s12] sm:$0xff] %vm59, %v4494
  %4497 = vst.msk [vmem:[%s12 + $0x8] sm:$0xff] %vm59, %v4495
  // Predicated region
  $region50: #{emg_encoder_transformer_forward.13} parent=0 // pred_check
    _
  $region51: #{emg_encoder_transformer_forward.13} parent=0 // pred_check_branch
    %4499 = sbr.rel (0) target = $region53
  $region52: #{emg_encoder_transformer_forward.13} parent=0 // pred_region
    _
  $region53: #{emg_encoder_transformer_forward.13} parent=0 // pred_fallthru
    _
  // Predicated region
  $region54: #{emg_encoder_transformer_forward.13} parent=0 // pred_check
    _
  $region55: #{emg_encoder_transformer_forward.13} parent=0 // pred_check_branch
    %4501 = sbr.rel (0) target = $region57
  $region56: #{emg_encoder_transformer_forward.13} parent=0 // pred_region
    _
  $region57: #{emg_encoder_transformer_forward.13} parent=0 // pred_fallthru
    _

</llo_original>
